<compile_context>
chip_gen: v5e
topology: v5e:2x2
jax: 0.10.0
libtpu: 0.0.40
codegen_flags: <defaults>
</compile_context>

<pallas_src>
import functools

import jax
import jax.numpy as jnp
from jax.experimental import pallas as pl
from jax.experimental.pallas import tpu as pltpu

LEAKY_SLOPE = 0.1
BN_EPS = 1e-5
LANE = 128        # pad channel axes to a multiple of the TPU lane width
ROW_CHUNK = 128   # rows per in-kernel conv chunk (vreg-resident accumulator)


def _round_up(x, m):
    return (x + m - 1) // m * m


def _leaky(v):
    # max(v, 0.1*v) == LeakyReLU(0.1)(v) for slope in (0, 1).
    return jnp.maximum(v, LEAKY_SLOPE * v)


def _wide_basic_block_kernel(
    x_ref, w1_ref, w2_ref, s1_ref, t1_ref, s2_ref, t2_ref, mask_ref,
    out_ref,
    p1_ref, p2_ref,
    *, n_pad, guard, taps, chunk,
):
    """One batch sample per grid step.

    x_ref   : (n_pad, Cip)  f32  zero-padded input, spatial flattened row-major
    w*_ref  : (9, C, C)     bf16 conv taps, tap t = kh*3 + kw
    s*,t*   : (1, C)        f32  folded BN scale / shift
    mask_ref: (n_pad, 1)    f32  1 on interior rows, 0 on the padding ring
    out_ref : (n_pad, Cop)  f32  conv2 + x in the padded domain (ring rows garbage)
    p1_ref  : (n_pad+2*guard, Cip) bf16 scratch: LeakyReLU(BN1(x)), ring/guards zero
    p2_ref  : (n_pad+2*guard, Cmp) bf16 scratch: LeakyReLU(BN2(conv1)), ring/guards zero
    """
    cin = p1_ref.shape[1]
    cmid = p2_ref.shape[1]

    # Zero the guard rows every grid step.  (Megacore-safe: with a "parallel"
    # batch grid a core may never see program_id==0, so a one-shot init via
    # pl.when would leave that core's scratch uninitialized.)  Cost is tiny.
    z1 = jnp.zeros((guard, cin), p1_ref.dtype)
    p1_ref[0:guard, :] = z1
    p1_ref[guard + n_pad:2 * guard + n_pad, :] = z1
    z2 = jnp.zeros((guard, cmid), p2_ref.dtype)
    p2_ref[0:guard, :] = z2
    p2_ref[guard + n_pad:2 * guard + n_pad, :] = z2

    # ---- BN1 (host-folded) + LeakyReLU in f32; the (n_pad,1) mask zeroes the
    #      halo ring; store the conv operand as bf16 (MXU-native).
    a1 = x_ref[...] * s1_ref[...] + t1_ref[...]
    p1_ref[guard:guard + n_pad, :] = (
        _leaky(a1) * mask_ref[...]).astype(p1_ref.dtype)

    # ---- conv1: per row-chunk, 9 row-shifted bf16 matmuls accumulated in
    #      f32 vregs, one store per chunk.  BN2 + LeakyReLU + ring mask are
    #      fused into the chunk epilogue (no second full pass over p2).
    for r0 in range(0, n_pad, chunk):
        rows = min(chunk, n_pad - r0)
        acc = jnp.zeros((rows, cmid), jnp.float32)
        for t, d in enumerate(taps):
            lhs = p1_ref[guard + r0 + d:guard + r0 + d + rows, :]
            acc = acc + jnp.dot(lhs, w1_ref[t],
                                preferred_element_type=jnp.float32)
        a2 = acc * s2_ref[...] + t2_ref[...]
        p2_ref[guard + r0:guard + r0 + rows, :] = (
            _leaky(a2) * mask_ref[r0:r0 + rows, :]).astype(p2_ref.dtype)

    # ---- conv2: identity residual fused into the accumulator init
    #      (no zero-fill, no trailing `out += x` read-modify-write sweep).
    for r0 in range(0, n_pad, chunk):
        rows = min(chunk, n_pad - r0)
        acc = x_ref[r0:r0 + rows, :]                       # f32 residual
        for t, d in enumerate(taps):
            lhs = p2_ref[guard + r0 + d:guard + r0 + d + rows, :]
            acc = acc + jnp.dot(lhs, w2_ref[t],
                                preferred_element_type=jnp.float32)
        out_ref[r0:r0 + rows, :] = acc


def wide_basic_block(x_nchw, params, *, stride=1, dilation=1):
    """NCHW in / NCHW out, parameters in PyTorch layouts."""
    assert stride == 1 and dilation == 1

    N, Cin, H, W = x_nchw.shape
    w1_oihw = params["conv1_w"]              # (Cmid, Cin, 3, 3)
    w2_oihw = params["conv2_w"]              # (Cout, Cmid, 3, 3)
    Cmid, Cout = w1_oihw.shape[0], w2_oihw.shape[0]
    assert Cout == Cin, "identity residual requires out_channels == in_channels"

    Cip = _round_up(Cin, LANE)               # lane-dense channel padding
    Cmp = _round_up(Cmid, LANE)
    Cop = _round_up(Cout, LANE)
    assert Cip == Cop

    Hp, Wp = H + 2, W + 2
    n_pad = Hp * Wp
    guard = _round_up(Wp + 1, 8)             # >= max |tap offset|, 8-row aligned
    # Row offset of tap (kh, kw) in the flattened padded spatial axis.
    taps = tuple((kh - 1) * Wp + (kw - 1) for kh in range(3) for kw in range(3))
    chunk = min(ROW_CHUNK, n_pad)

    f32, bf16 = jnp.float32, jnp.bfloat16

    # Activations: NCHW -> NHWC f32, pad the spatial ring and channel lanes.
    x_nhwc = jnp.transpose(x_nchw, (0, 2, 3, 1)).astype(f32)
    x_pad = jnp.pad(x_nhwc, ((0, 0), (1, 1), (1, 1), (0, Cip - Cin)))
    x_pad = x_pad.reshape(N, n_pad, Cip)

    # Weights: OIHW -> (tap, Cin_pad, Cout_pad), bf16.
    def prep_w(w_oihw, ci, cip, co, cop):
        w = jnp.transpose(w_oihw, (2, 3, 1, 0)).astype(f32)        # (3,3,ci,co)
        w = jnp.pad(w, ((0, 0), (0, 0), (0, cip - ci), (0, cop - co)))
        return w.reshape(9, cip, cop).astype(bf16)

    w1 = prep_w(w1_oihw, Cin, Cip, Cmid, Cmp)
    w2 = prep_w(w2_oihw, Cmid, Cmp, Cout, Cop)

    def fold_bn(g, b, m, v, cp):
        scale = g.astype(f32) * jax.lax.rsqrt(v.astype(f32) + BN_EPS)
        shift = b.astype(f32) - m.astype(f32) * scale
        scale = jnp.pad(scale, (0, cp - scale.shape[0]))   # padded lanes -> 0
        shift = jnp.pad(shift, (0, cp - shift.shape[0]))
        return scale.reshape(1, cp), shift.reshape(1, cp)

    s1, t1 = fold_bn(params["bn1_g"], params["bn1_b"],
                     params["bn1_m"], params["bn1_v"], Cip)
    s2, t2 = fold_bn(params["bn2_g"], params["bn2_b"],
                     params["bn2_m"], params["bn2_v"], Cmp)

    # 1 on interior spatial positions, 0 on the 1-pixel padding ring.
    mask = jnp.pad(jnp.ones((H, W), f32), ((1, 1), (1, 1))).reshape(n_pad, 1)

    kernel = functools.partial(_wide_basic_block_kernel, n_pad=n_pad,
                               guard=guard, taps=taps, chunk=chunk)

    def const_spec(shape):                   # same block every grid step
        return pl.BlockSpec(shape, lambda n: (0,) * len(shape))

    flops = 2 * N * 9 * n_pad * (Cip * Cmp + Cmp * Cop)
    bytes_accessed = int(
        4 * (x_pad.size + N * n_pad * Cop
             + s1.size + t1.size + s2.size + t2.size + mask.size)
        + 2 * (w1.size + w2.size))

    # Per-step VMEM footprint (double-buffered pipeline operands + scratch).
    est_vmem = (2 * 4 * n_pad * (Cip + Cop)            # x / out blocks, f32, x2
                + 2 * 2 * (w1.size + w2.size)          # bf16 weights, x2
                + 2 * (n_pad + 2 * guard) * (Cip + Cmp)  # bf16 scratch
                + 4 * (2 * n_pad + 8 * (Cip + Cmp)))     # mask + scales, x2
    vmem_limit = int(max(16 << 20, min(48 << 20, est_vmem + (8 << 20))))

    out_pad = pl.pallas_call(
        kernel,
        out_shape=jax.ShapeDtypeStruct((N, n_pad, Cop), f32),
        grid_spec=pltpu.PrefetchScalarGridSpec(
            num_scalar_prefetch=0,
            grid=(N,),                       # batch-parallel grid
            in_specs=[
                pl.BlockSpec((None, n_pad, Cip), lambda n: (n, 0, 0)),
                const_spec((9, Cip, Cmp)),
                const_spec((9, Cmp, Cop)),
                const_spec((1, Cip)), const_spec((1, Cip)),
                const_spec((1, Cmp)), const_spec((1, Cmp)),
                const_spec((n_pad, 1)),
            ],
            out_specs=pl.BlockSpec((None, n_pad, Cop), lambda n: (n, 0, 0)),
            scratch_shapes=[
                pltpu.VMEM((n_pad + 2 * guard, Cip), bf16),   # LeakyReLU(BN1(x))
                pltpu.VMEM((n_pad + 2 * guard, Cmp), bf16),   # LeakyReLU(BN2(conv1))
            ],
        ),
        compiler_params=pltpu.CompilerParams(
            dimension_semantics=("parallel",),
            vmem_limit_bytes=vmem_limit),
        cost_estimate=pl.CostEstimate(
            flops=flops, transcendentals=0, bytes_accessed=bytes_accessed),
    )(x_pad, w1, w2, s1, t1, s2, t2, mask)

    # Drop ring rows (garbage) and padded channel lanes, back to NCHW.
    out_nhwc = out_pad.reshape(N, Hp, Wp, Cop)[:, 1:-1, 1:-1, :Cout]
    return jnp.transpose(out_nhwc, (0, 3, 1, 2))


def _reference_forward(x_nchw, params, conv_dtype=jnp.float32):
    """Pure-JAX reference.  conv_dtype=bf16 mirrors the kernel's MXU operand
    dtype (f32 accumulation); conv_dtype=f32 is the exact module semantics."""
    x = jnp.transpose(x_nchw, (0, 2, 3, 1)).astype(jnp.float32)

    def bn(t, g, b, m, v):
        return (t - m) * jax.lax.rsqrt(v + BN_EPS) * g + b

    def leaky(t):
        return jnp.where(t >= 0, t, LEAKY_SLOPE * t)

    def conv(t, w_oihw):
        w = jnp.transpose(w_oihw, (2, 3, 1, 0)).astype(conv_dtype)
        return jax.lax.conv_general_dilated(
            t.astype(conv_dtype), w, window_strides=(1, 1),
            padding=((1, 1), (1, 1)),
            dimension_numbers=("NHWC", "HWIO", "NHWC"),
            preferred_element_type=jnp.float32)

    a1 = leaky(bn(x, params["bn1_g"], params["bn1_b"],
                  params["bn1_m"], params["bn1_v"]))
    c1 = conv(a1, params["conv1_w"])
    a2 = leaky(bn(c1, params["bn2_g"], params["bn2_b"],
                  params["bn2_m"], params["bn2_v"]))
    c2 = conv(a2, params["conv2_w"])
    return jnp.transpose(c2 + x, (0, 3, 1, 2))


if __name__ == "__main__":
    N, C, H, W = 2, 32, 16, 16           # in_channels == out_channels (expansion=1)
    key = jax.random.PRNGKey(0)
    keys = jax.random.split(key, 11)

    fan_in = 9 * C
    params = {
        "conv1_w": jax.random.normal(keys[0], (C, C, 3, 3), jnp.float32)
        * (2.0 / fan_in) ** 0.5,
        "conv2_w": jax.random.normal(keys[1], (C, C, 3, 3), jnp.float32)
        * (2.0 / fan_in) ** 0.5,
        "bn1_g": 1.0 + 0.1 * jax.random.normal(keys[2], (C,), jnp.float32),
        "bn1_b": 0.1 * jax.random.normal(keys[3], (C,), jnp.float32),
        "bn1_m": 0.1 * jax.random.normal(keys[4], (C,), jnp.float32),
        "bn1_v": jax.random.uniform(keys[5], (C,), jnp.float32, 0.5, 1.5),
        "bn2_g": 1.0 + 0.1 * jax.random.normal(keys[6], (C,), jnp.float32),
        "bn2_b": 0.1 * jax.random.normal(keys[7], (C,), jnp.float32),
        "bn2_m": 0.1 * jax.random.normal(keys[8], (C,), jnp.float32),
        "bn2_v": jax.random.uniform(keys[9], (C,), jnp.float32, 0.5, 1.5),
    }
    x = jax.random.normal(keys[10], (N, C, H, W), jnp.float32)

    out = jax.block_until_ready(wide_basic_block(x, params))
    assert out.shape == (N, C, H, W)

    # Tight check against a reference that uses the same bf16 conv operands
    # (f32 accumulation) as the kernel.
    ref_bf16 = _reference_forward(x, params, conv_dtype=jnp.bfloat16)
    if not bool(jnp.allclose(out, ref_bf16, atol=1e-2, rtol=1e-2)):
        raise AssertionError(
            "Pallas output mismatch vs bf16-conv reference, max abs err = "
            f"{float(jnp.max(jnp.abs(out - ref_bf16)))}")

    # Loose check against the pure-f32 module semantics (tolerance covers the
    # bf16 conv-operand rounding).
    ref_f32 = _reference_forward(x, params, conv_dtype=jnp.float32)
    if not bool(jnp.allclose(out, ref_f32, atol=1e-1, rtol=1e-1)):
        raise AssertionError(
            "Pallas output mismatch vs f32 reference, max abs err = "
            f"{float(jnp.max(jnp.abs(out - ref_f32)))}")

    print("KERNEL_OK")
</pallas_src>

<mosaic_0001>
module attributes {stable_mosaic.version = 11 : i64} {
  func.func @_wide_basic_block_kernel(%arg0: i32, %arg1: memref<1x324x128xf32, #tpu.memory_space<vmem>>, %arg2: memref<9x128x128xbf16, #tpu.memory_space<vmem>>, %arg3: memref<9x128x128xbf16, #tpu.memory_space<vmem>>, %arg4: memref<1x128xf32, #tpu.memory_space<vmem>>, %arg5: memref<1x128xf32, #tpu.memory_space<vmem>>, %arg6: memref<1x128xf32, #tpu.memory_space<vmem>>, %arg7: memref<1x128xf32, #tpu.memory_space<vmem>>, %arg8: memref<324x1xf32, #tpu.memory_space<vmem>>, %arg9: memref<1x324x128xf32, #tpu.memory_space<vmem>>, %arg10: memref<372x128xbf16, #tpu.memory_space<vmem>>, %arg11: memref<372x128xbf16, #tpu.memory_space<vmem>>) attributes {dimension_semantics = [#tpu.dimension_semantics<parallel>], iteration_bounds = array<i64: 2>, scalar_prefetch = 0 : i64, scratch_operands = 2 : i64, tpu.core_type = #tpu.core_type<tc>, window_params = [{transform_indices = @transform_0, window_bounds = array<i64: 1, 324, 128>}, {pipeline_mode = #tpu.pipeline_mode<synchronous>, transform_indices = @transform_1, window_bounds = array<i64: 9, 128, 128>}, {pipeline_mode = #tpu.pipeline_mode<synchronous>, transform_indices = @transform_2, window_bounds = array<i64: 9, 128, 128>}, {pipeline_mode = #tpu.pipeline_mode<synchronous>, transform_indices = @transform_3, window_bounds = array<i64: 1, 128>}, {pipeline_mode = #tpu.pipeline_mode<synchronous>, transform_indices = @transform_4, window_bounds = array<i64: 1, 128>}, {pipeline_mode = #tpu.pipeline_mode<synchronous>, transform_indices = @transform_5, window_bounds = array<i64: 1, 128>}, {pipeline_mode = #tpu.pipeline_mode<synchronous>, transform_indices = @transform_6, window_bounds = array<i64: 1, 128>}, {pipeline_mode = #tpu.pipeline_mode<synchronous>, transform_indices = @transform_7, window_bounds = array<i64: 324, 1>}, {transform_indices = @transform_8, window_bounds = array<i64: 1, 324, 128>}]} {
    %cst = arith.constant 0.000000e+00 : bf16
    %0 = vector.broadcast %cst : bf16 to vector<24x128xbf16>
    %c0 = arith.constant 0 : index
    %c0_0 = arith.constant 0 : index
    %1 = vector.load %arg10[%c0, %c0_0] : memref<372x128xbf16, #tpu.memory_space<vmem>>, vector<24x128xbf16>
    tpu.vector_store %arg10[%c0, %c0_0], %0 {strides = array<i32>} : memref<372x128xbf16, #tpu.memory_space<vmem>>, vector<24x128xbf16>,
    %c348 = arith.constant 348 : index
    %c0_1 = arith.constant 0 : index
    %2 = vector.load %arg10[%c348, %c0_1] : memref<372x128xbf16, #tpu.memory_space<vmem>>, vector<24x128xbf16>
    tpu.vector_store %arg10[%c348, %c0_1], %0 {strides = array<i32>} : memref<372x128xbf16, #tpu.memory_space<vmem>>, vector<24x128xbf16>,
    %cst_2 = arith.constant 0.000000e+00 : bf16
    %3 = vector.broadcast %cst_2 : bf16 to vector<24x128xbf16>
    %c0_3 = arith.constant 0 : index
    %c0_4 = arith.constant 0 : index
    %4 = vector.load %arg11[%c0_3, %c0_4] : memref<372x128xbf16, #tpu.memory_space<vmem>>, vector<24x128xbf16>
    tpu.vector_store %arg11[%c0_3, %c0_4], %3 {strides = array<i32>} : memref<372x128xbf16, #tpu.memory_space<vmem>>, vector<24x128xbf16>,
    %c348_5 = arith.constant 348 : index
    %c0_6 = arith.constant 0 : index
    %5 = vector.load %arg11[%c348_5, %c0_6] : memref<372x128xbf16, #tpu.memory_space<vmem>>, vector<24x128xbf16>
    tpu.vector_store %arg11[%c348_5, %c0_6], %3 {strides = array<i32>} : memref<372x128xbf16, #tpu.memory_space<vmem>>, vector<24x128xbf16>,
    %c0_7 = arith.constant 0 : index
    %c0_8 = arith.constant 0 : index
    %c0_9 = arith.constant 0 : index
    %6 = vector.load %arg1[%c0_7, %c0_8, %c0_9] : memref<1x324x128xf32, #tpu.memory_space<vmem>>, vector<1x324x128xf32>
    %7 = vector.shape_cast %6 : vector<1x324x128xf32> to vector<324x128xf32>
    %c0_10 = arith.constant 0 : index
    %c0_11 = arith.constant 0 : index
    %8 = vector.load %arg4[%c0_10, %c0_11] : memref<1x128xf32, #tpu.memory_space<vmem>>, vector<1x128xf32>
    %9 = vector.broadcast %8 : vector<1x128xf32> to vector<324x128xf32>
    %10 = arith.mulf %7, %9 : vector<324x128xf32>
    %c0_12 = arith.constant 0 : index
    %c0_13 = arith.constant 0 : index
    %11 = vector.load %arg5[%c0_12, %c0_13] : memref<1x128xf32, #tpu.memory_space<vmem>>, vector<1x128xf32>
    %12 = vector.broadcast %11 : vector<1x128xf32> to vector<324x128xf32>
    %13 = arith.addf %10, %12 : vector<324x128xf32>
    %cst_14 = arith.constant 1.000000e-01 : f32
    %14 = vector.broadcast %cst_14 : f32 to vector<324x128xf32>
    %15 = arith.mulf %14, %13 : vector<324x128xf32>
    %16 = arith.maximumf %13, %15 : vector<324x128xf32>
    %c0_15 = arith.constant 0 : index
    %c0_16 = arith.constant 0 : index
    %17 = vector.load %arg8[%c0_15, %c0_16] : memref<324x1xf32, #tpu.memory_space<vmem>>, vector<324x1xf32>
    %18 = vector.broadcast %17 : vector<324x1xf32> to vector<324x128xf32>
    %19 = arith.mulf %16, %18 : vector<324x128xf32>
    %20 = arith.truncf %19 : vector<324x128xf32> to vector<324x128xbf16>
    %c24 = arith.constant 24 : index
    %c0_17 = arith.constant 0 : index
    %21 = vector.load %arg10[%c24, %c0_17] : memref<372x128xbf16, #tpu.memory_space<vmem>>, vector<324x128xbf16>
    tpu.vector_store %arg10[%c24, %c0_17], %20 {strides = array<i32>} : memref<372x128xbf16, #tpu.memory_space<vmem>>, vector<324x128xbf16>,
    %cst_18 = arith.constant 0.000000e+00 : f32
    %22 = vector.broadcast %cst_18 : f32 to vector<128x128xf32>
    %c5 = arith.constant 5 : index
    %c0_19 = arith.constant 0 : index
    %23 = vector.load %arg10[%c5, %c0_19] : memref<372x128xbf16, #tpu.memory_space<vmem>>, vector<128x128xbf16>
    %c0_20 = arith.constant 0 : index
    %c0_21 = arith.constant 0 : index
    %c0_22 = arith.constant 0 : index
    %24 = vector.load %arg2[%c0_20, %c0_21, %c0_22] : memref<9x128x128xbf16, #tpu.memory_space<vmem>>, vector<1x128x128xbf16>
    %25 = vector.shape_cast %24 : vector<1x128x128xbf16> to vector<128x128xbf16>
    %cst_23 = arith.constant dense<0.000000e+00> : vector<128x128xf32>
    %26 = tpu.matmul %23, %25, %cst_23 {dimension_numbers = #tpu.dot_dimension_numbers<[1], [0], [0], [1], [0, 0, 1, 1], [], []>} : vector<128x128xbf16>, vector<128x128xbf16>, vector<128x128xf32> -> vector<128x128xf32>
    %27 = arith.addf %22, %26 : vector<128x128xf32>
    %c6 = arith.constant 6 : index
    %c0_24 = arith.constant 0 : index
    %28 = vector.load %arg10[%c6, %c0_24] : memref<372x128xbf16, #tpu.memory_space<vmem>>, vector<128x128xbf16>
    %c1 = arith.constant 1 : index
    %c0_25 = arith.constant 0 : index
    %c0_26 = arith.constant 0 : index
    %29 = vector.load %arg2[%c1, %c0_25, %c0_26] : memref<9x128x128xbf16, #tpu.memory_space<vmem>>, vector<1x128x128xbf16>
    %30 = vector.shape_cast %29 : vector<1x128x128xbf16> to vector<128x128xbf16>
    %cst_27 = arith.constant dense<0.000000e+00> : vector<128x128xf32>
    %31 = tpu.matmul %28, %30, %cst_27 {dimension_numbers = #tpu.dot_dimension_numbers<[1], [0], [0], [1], [0, 0, 1, 1], [], []>} : vector<128x128xbf16>, vector<128x128xbf16>, vector<128x128xf32> -> vector<128x128xf32>
    %32 = arith.addf %27, %31 : vector<128x128xf32>
    %c7 = arith.constant 7 : index
    %c0_28 = arith.constant 0 : index
    %33 = vector.load %arg10[%c7, %c0_28] : memref<372x128xbf16, #tpu.memory_space<vmem>>, vector<128x128xbf16>
    %c2 = arith.constant 2 : index
    %c0_29 = arith.constant 0 : index
    %c0_30 = arith.constant 0 : index
    %34 = vector.load %arg2[%c2, %c0_29, %c0_30] : memref<9x128x128xbf16, #tpu.memory_space<vmem>>, vector<1x128x128xbf16>
    %35 = vector.shape_cast %34 : vector<1x128x128xbf16> to vector<128x128xbf16>
    %cst_31 = arith.constant dense<0.000000e+00> : vector<128x128xf32>
    %36 = tpu.matmul %33, %35, %cst_31 {dimension_numbers = #tpu.dot_dimension_numbers<[1], [0], [0], [1], [0, 0, 1, 1], [], []>} : vector<128x128xbf16>, vector<128x128xbf16>, vector<128x128xf32> -> vector<128x128xf32>
    %37 = arith.addf %32, %36 : vector<128x128xf32>
    %c23 = arith.constant 23 : index
    %c0_32 = arith.constant 0 : index
    %38 = vector.load %arg10[%c23, %c0_32] : memref<372x128xbf16, #tpu.memory_space<vmem>>, vector<128x128xbf16>
    %c3 = arith.constant 3 : index
    %c0_33 = arith.constant 0 : index
    %c0_34 = arith.constant 0 : index
    %39 = vector.load %arg2[%c3, %c0_33, %c0_34] : memref<9x128x128xbf16, #tpu.memory_space<vmem>>, vector<1x128x128xbf16>
    %40 = vector.shape_cast %39 : vector<1x128x128xbf16> to vector<128x128xbf16>
    %cst_35 = arith.constant dense<0.000000e+00> : vector<128x128xf32>
    %41 = tpu.matmul %38, %40, %cst_35 {dimension_numbers = #tpu.dot_dimension_numbers<[1], [0], [0], [1], [0, 0, 1, 1], [], []>} : vector<128x128xbf16>, vector<128x128xbf16>, vector<128x128xf32> -> vector<128x128xf32>
    %42 = arith.addf %37, %41 : vector<128x128xf32>
    %c24_36 = arith.constant 24 : index
    %c0_37 = arith.constant 0 : index
    %43 = vector.load %arg10[%c24_36, %c0_37] : memref<372x128xbf16, #tpu.memory_space<vmem>>, vector<128x128xbf16>
    %c4 = arith.constant 4 : index
    %c0_38 = arith.constant 0 : index
    %c0_39 = arith.constant 0 : index
    %44 = vector.load %arg2[%c4, %c0_38, %c0_39] : memref<9x128x128xbf16, #tpu.memory_space<vmem>>, vector<1x128x128xbf16>
    %45 = vector.shape_cast %44 : vector<1x128x128xbf16> to vector<128x128xbf16>
    %cst_40 = arith.constant dense<0.000000e+00> : vector<128x128xf32>
    %46 = tpu.matmul %43, %45, %cst_40 {dimension_numbers = #tpu.dot_dimension_numbers<[1], [0], [0], [1], [0, 0, 1, 1], [], []>} : vector<128x128xbf16>, vector<128x128xbf16>, vector<128x128xf32> -> vector<128x128xf32>
    %47 = arith.addf %42, %46 : vector<128x128xf32>
    %c25 = arith.constant 25 : index
    %c0_41 = arith.constant 0 : index
    %48 = vector.load %arg10[%c25, %c0_41] : memref<372x128xbf16, #tpu.memory_space<vmem>>, vector<128x128xbf16>
    %c5_42 = arith.constant 5 : index
    %c0_43 = arith.constant 0 : index
    %c0_44 = arith.constant 0 : index
    %49 = vector.load %arg2[%c5_42, %c0_43, %c0_44] : memref<9x128x128xbf16, #tpu.memory_space<vmem>>, vector<1x128x128xbf16>
    %50 = vector.shape_cast %49 : vector<1x128x128xbf16> to vector<128x128xbf16>
    %cst_45 = arith.constant dense<0.000000e+00> : vector<128x128xf32>
    %51 = tpu.matmul %48, %50, %cst_45 {dimension_numbers = #tpu.dot_dimension_numbers<[1], [0], [0], [1], [0, 0, 1, 1], [], []>} : vector<128x128xbf16>, vector<128x128xbf16>, vector<128x128xf32> -> vector<128x128xf32>
    %52 = arith.addf %47, %51 : vector<128x128xf32>
    %c41 = arith.constant 41 : index
    %c0_46 = arith.constant 0 : index
    %53 = vector.load %arg10[%c41, %c0_46] : memref<372x128xbf16, #tpu.memory_space<vmem>>, vector<128x128xbf16>
    %c6_47 = arith.constant 6 : index
    %c0_48 = arith.constant 0 : index
    %c0_49 = arith.constant 0 : index
    %54 = vector.load %arg2[%c6_47, %c0_48, %c0_49] : memref<9x128x128xbf16, #tpu.memory_space<vmem>>, vector<1x128x128xbf16>
    %55 = vector.shape_cast %54 : vector<1x128x128xbf16> to vector<128x128xbf16>
    %cst_50 = arith.constant dense<0.000000e+00> : vector<128x128xf32>
    %56 = tpu.matmul %53, %55, %cst_50 {dimension_numbers = #tpu.dot_dimension_numbers<[1], [0], [0], [1], [0, 0, 1, 1], [], []>} : vector<128x128xbf16>, vector<128x128xbf16>, vector<128x128xf32> -> vector<128x128xf32>
    %57 = arith.addf %52, %56 : vector<128x128xf32>
    %c42 = arith.constant 42 : index
    %c0_51 = arith.constant 0 : index
    %58 = vector.load %arg10[%c42, %c0_51] : memref<372x128xbf16, #tpu.memory_space<vmem>>, vector<128x128xbf16>
    %c7_52 = arith.constant 7 : index
    %c0_53 = arith.constant 0 : index
    %c0_54 = arith.constant 0 : index
    %59 = vector.load %arg2[%c7_52, %c0_53, %c0_54] : memref<9x128x128xbf16, #tpu.memory_space<vmem>>, vector<1x128x128xbf16>
    %60 = vector.shape_cast %59 : vector<1x128x128xbf16> to vector<128x128xbf16>
    %cst_55 = arith.constant dense<0.000000e+00> : vector<128x128xf32>
    %61 = tpu.matmul %58, %60, %cst_55 {dimension_numbers = #tpu.dot_dimension_numbers<[1], [0], [0], [1], [0, 0, 1, 1], [], []>} : vector<128x128xbf16>, vector<128x128xbf16>, vector<128x128xf32> -> vector<128x128xf32>
    %62 = arith.addf %57, %61 : vector<128x128xf32>
    %c43 = arith.constant 43 : index
    %c0_56 = arith.constant 0 : index
    %63 = vector.load %arg10[%c43, %c0_56] : memref<372x128xbf16, #tpu.memory_space<vmem>>, vector<128x128xbf16>
    %c8 = arith.constant 8 : index
    %c0_57 = arith.constant 0 : index
    %c0_58 = arith.constant 0 : index
    %64 = vector.load %arg2[%c8, %c0_57, %c0_58] : memref<9x128x128xbf16, #tpu.memory_space<vmem>>, vector<1x128x128xbf16>
    %65 = vector.shape_cast %64 : vector<1x128x128xbf16> to vector<128x128xbf16>
    %cst_59 = arith.constant dense<0.000000e+00> : vector<128x128xf32>
    %66 = tpu.matmul %63, %65, %cst_59 {dimension_numbers = #tpu.dot_dimension_numbers<[1], [0], [0], [1], [0, 0, 1, 1], [], []>} : vector<128x128xbf16>, vector<128x128xbf16>, vector<128x128xf32> -> vector<128x128xf32>
    %67 = arith.addf %62, %66 : vector<128x128xf32>
    %c0_60 = arith.constant 0 : index
    %c0_61 = arith.constant 0 : index
    %68 = vector.load %arg6[%c0_60, %c0_61] : memref<1x128xf32, #tpu.memory_space<vmem>>, vector<1x128xf32>
    %69 = vector.broadcast %68 : vector<1x128xf32> to vector<128x128xf32>
    %70 = arith.mulf %67, %69 : vector<128x128xf32>
    %c0_62 = arith.constant 0 : index
    %c0_63 = arith.constant 0 : index
    %71 = vector.load %arg7[%c0_62, %c0_63] : memref<1x128xf32, #tpu.memory_space<vmem>>, vector<1x128xf32>
    %72 = vector.broadcast %71 : vector<1x128xf32> to vector<128x128xf32>
    %73 = arith.addf %70, %72 : vector<128x128xf32>
    %cst_64 = arith.constant 1.000000e-01 : f32
    %74 = vector.broadcast %cst_64 : f32 to vector<128x128xf32>
    %75 = arith.mulf %74, %73 : vector<128x128xf32>
    %76 = arith.maximumf %73, %75 : vector<128x128xf32>
    %c0_65 = arith.constant 0 : index
    %c0_66 = arith.constant 0 : index
    %77 = vector.load %arg8[%c0_65, %c0_66] : memref<324x1xf32, #tpu.memory_space<vmem>>, vector<128x1xf32>
    %78 = vector.broadcast %77 : vector<128x1xf32> to vector<128x128xf32>
    %79 = arith.mulf %76, %78 : vector<128x128xf32>
    %80 = arith.truncf %79 : vector<128x128xf32> to vector<128x128xbf16>
    %c24_67 = arith.constant 24 : index
    %c0_68 = arith.constant 0 : index
    %81 = vector.load %arg11[%c24_67, %c0_68] : memref<372x128xbf16, #tpu.memory_space<vmem>>, vector<128x128xbf16>
    tpu.vector_store %arg11[%c24_67, %c0_68], %80 {strides = array<i32>} : memref<372x128xbf16, #tpu.memory_space<vmem>>, vector<128x128xbf16>,
    %cst_69 = arith.constant 0.000000e+00 : f32
    %82 = vector.broadcast %cst_69 : f32 to vector<128x128xf32>
    %c133 = arith.constant 133 : index
    %c0_70 = arith.constant 0 : index
    %83 = vector.load %arg10[%c133, %c0_70] : memref<372x128xbf16, #tpu.memory_space<vmem>>, vector<128x128xbf16>
    %c0_71 = arith.constant 0 : index
    %c0_72 = arith.constant 0 : index
    %c0_73 = arith.constant 0 : index
    %84 = vector.load %arg2[%c0_71, %c0_72, %c0_73] : memref<9x128x128xbf16, #tpu.memory_space<vmem>>, vector<1x128x128xbf16>
    %85 = vector.shape_cast %84 : vector<1x128x128xbf16> to vector<128x128xbf16>
    %cst_74 = arith.constant dense<0.000000e+00> : vector<128x128xf32>
    %86 = tpu.matmul %83, %85, %cst_74 {dimension_numbers = #tpu.dot_dimension_numbers<[1], [0], [0], [1], [0, 0, 1, 1], [], []>} : vector<128x128xbf16>, vector<128x128xbf16>, vector<128x128xf32> -> vector<128x128xf32>
    %87 = arith.addf %82, %86 : vector<128x128xf32>
    %c134 = arith.constant 134 : index
    %c0_75 = arith.constant 0 : index
    %88 = vector.load %arg10[%c134, %c0_75] : memref<372x128xbf16, #tpu.memory_space<vmem>>, vector<128x128xbf16>
    %c1_76 = arith.constant 1 : index
    %c0_77 = arith.constant 0 : index
    %c0_78 = arith.constant 0 : index
    %89 = vector.load %arg2[%c1_76, %c0_77, %c0_78] : memref<9x128x128xbf16, #tpu.memory_space<vmem>>, vector<1x128x128xbf16>
    %90 = vector.shape_cast %89 : vector<1x128x128xbf16> to vector<128x128xbf16>
    %cst_79 = arith.constant dense<0.000000e+00> : vector<128x128xf32>
    %91 = tpu.matmul %88, %90, %cst_79 {dimension_numbers = #tpu.dot_dimension_numbers<[1], [0], [0], [1], [0, 0, 1, 1], [], []>} : vector<128x128xbf16>, vector<128x128xbf16>, vector<128x128xf32> -> vector<128x128xf32>
    %92 = arith.addf %87, %91 : vector<128x128xf32>
    %c135 = arith.constant 135 : index
    %c0_80 = arith.constant 0 : index
    %93 = vector.load %arg10[%c135, %c0_80] : memref<372x128xbf16, #tpu.memory_space<vmem>>, vector<128x128xbf16>
    %c2_81 = arith.constant 2 : index
    %c0_82 = arith.constant 0 : index
    %c0_83 = arith.constant 0 : index
    %94 = vector.load %arg2[%c2_81, %c0_82, %c0_83] : memref<9x128x128xbf16, #tpu.memory_space<vmem>>, vector<1x128x128xbf16>
    %95 = vector.shape_cast %94 : vector<1x128x128xbf16> to vector<128x128xbf16>
    %cst_84 = arith.constant dense<0.000000e+00> : vector<128x128xf32>
    %96 = tpu.matmul %93, %95, %cst_84 {dimension_numbers = #tpu.dot_dimension_numbers<[1], [0], [0], [1], [0, 0, 1, 1], [], []>} : vector<128x128xbf16>, vector<128x128xbf16>, vector<128x128xf32> -> vector<128x128xf32>
    %97 = arith.addf %92, %96 : vector<128x128xf32>
    %c151 = arith.constant 151 : index
    %c0_85 = arith.constant 0 : index
    %98 = vector.load %arg10[%c151, %c0_85] : memref<372x128xbf16, #tpu.memory_space<vmem>>, vector<128x128xbf16>
    %c3_86 = arith.constant 3 : index
    %c0_87 = arith.constant 0 : index
    %c0_88 = arith.constant 0 : index
    %99 = vector.load %arg2[%c3_86, %c0_87, %c0_88] : memref<9x128x128xbf16, #tpu.memory_space<vmem>>, vector<1x128x128xbf16>
    %100 = vector.shape_cast %99 : vector<1x128x128xbf16> to vector<128x128xbf16>
    %cst_89 = arith.constant dense<0.000000e+00> : vector<128x128xf32>
    %101 = tpu.matmul %98, %100, %cst_89 {dimension_numbers = #tpu.dot_dimension_numbers<[1], [0], [0], [1], [0, 0, 1, 1], [], []>} : vector<128x128xbf16>, vector<128x128xbf16>, vector<128x128xf32> -> vector<128x128xf32>
    %102 = arith.addf %97, %101 : vector<128x128xf32>
    %c152 = arith.constant 152 : index
    %c0_90 = arith.constant 0 : index
    %103 = vector.load %arg10[%c152, %c0_90] : memref<372x128xbf16, #tpu.memory_space<vmem>>, vector<128x128xbf16>
    %c4_91 = arith.constant 4 : index
    %c0_92 = arith.constant 0 : index
    %c0_93 = arith.constant 0 : index
    %104 = vector.load %arg2[%c4_91, %c0_92, %c0_93] : memref<9x128x128xbf16, #tpu.memory_space<vmem>>, vector<1x128x128xbf16>
    %105 = vector.shape_cast %104 : vector<1x128x128xbf16> to vector<128x128xbf16>
    %cst_94 = arith.constant dense<0.000000e+00> : vector<128x128xf32>
    %106 = tpu.matmul %103, %105, %cst_94 {dimension_numbers = #tpu.dot_dimension_numbers<[1], [0], [0], [1], [0, 0, 1, 1], [], []>} : vector<128x128xbf16>, vector<128x128xbf16>, vector<128x128xf32> -> vector<128x128xf32>
    %107 = arith.addf %102, %106 : vector<128x128xf32>
    %c153 = arith.constant 153 : index
    %c0_95 = arith.constant 0 : index
    %108 = vector.load %arg10[%c153, %c0_95] : memref<372x128xbf16, #tpu.memory_space<vmem>>, vector<128x128xbf16>
    %c5_96 = arith.constant 5 : index
    %c0_97 = arith.constant 0 : index
    %c0_98 = arith.constant 0 : index
    %109 = vector.load %arg2[%c5_96, %c0_97, %c0_98] : memref<9x128x128xbf16, #tpu.memory_space<vmem>>, vector<1x128x128xbf16>
    %110 = vector.shape_cast %109 : vector<1x128x128xbf16> to vector<128x128xbf16>
    %cst_99 = arith.constant dense<0.000000e+00> : vector<128x128xf32>
    %111 = tpu.matmul %108, %110, %cst_99 {dimension_numbers = #tpu.dot_dimension_numbers<[1], [0], [0], [1], [0, 0, 1, 1], [], []>} : vector<128x128xbf16>, vector<128x128xbf16>, vector<128x128xf32> -> vector<128x128xf32>
    %112 = arith.addf %107, %111 : vector<128x128xf32>
    %c169 = arith.constant 169 : index
    %c0_100 = arith.constant 0 : index
    %113 = vector.load %arg10[%c169, %c0_100] : memref<372x128xbf16, #tpu.memory_space<vmem>>, vector<128x128xbf16>
    %c6_101 = arith.constant 6 : index
    %c0_102 = arith.constant 0 : index
    %c0_103 = arith.constant 0 : index
    %114 = vector.load %arg2[%c6_101, %c0_102, %c0_103] : memref<9x128x128xbf16, #tpu.memory_space<vmem>>, vector<1x128x128xbf16>
    %115 = vector.shape_cast %114 : vector<1x128x128xbf16> to vector<128x128xbf16>
    %cst_104 = arith.constant dense<0.000000e+00> : vector<128x128xf32>
    %116 = tpu.matmul %113, %115, %cst_104 {dimension_numbers = #tpu.dot_dimension_numbers<[1], [0], [0], [1], [0, 0, 1, 1], [], []>} : vector<128x128xbf16>, vector<128x128xbf16>, vector<128x128xf32> -> vector<128x128xf32>
    %117 = arith.addf %112, %116 : vector<128x128xf32>
    %c170 = arith.constant 170 : index
    %c0_105 = arith.constant 0 : index
    %118 = vector.load %arg10[%c170, %c0_105] : memref<372x128xbf16, #tpu.memory_space<vmem>>, vector<128x128xbf16>
    %c7_106 = arith.constant 7 : index
    %c0_107 = arith.constant 0 : index
    %c0_108 = arith.constant 0 : index
    %119 = vector.load %arg2[%c7_106, %c0_107, %c0_108] : memref<9x128x128xbf16, #tpu.memory_space<vmem>>, vector<1x128x128xbf16>
    %120 = vector.shape_cast %119 : vector<1x128x128xbf16> to vector<128x128xbf16>
    %cst_109 = arith.constant dense<0.000000e+00> : vector<128x128xf32>
    %121 = tpu.matmul %118, %120, %cst_109 {dimension_numbers = #tpu.dot_dimension_numbers<[1], [0], [0], [1], [0, 0, 1, 1], [], []>} : vector<128x128xbf16>, vector<128x128xbf16>, vector<128x128xf32> -> vector<128x128xf32>
    %122 = arith.addf %117, %121 : vector<128x128xf32>
    %c171 = arith.constant 171 : index
    %c0_110 = arith.constant 0 : index
    %123 = vector.load %arg10[%c171, %c0_110] : memref<372x128xbf16, #tpu.memory_space<vmem>>, vector<128x128xbf16>
    %c8_111 = arith.constant 8 : index
    %c0_112 = arith.constant 0 : index
    %c0_113 = arith.constant 0 : index
    %124 = vector.load %arg2[%c8_111, %c0_112, %c0_113] : memref<9x128x128xbf16, #tpu.memory_space<vmem>>, vector<1x128x128xbf16>
    %125 = vector.shape_cast %124 : vector<1x128x128xbf16> to vector<128x128xbf16>
    %cst_114 = arith.constant dense<0.000000e+00> : vector<128x128xf32>
    %126 = tpu.matmul %123, %125, %cst_114 {dimension_numbers = #tpu.dot_dimension_numbers<[1], [0], [0], [1], [0, 0, 1, 1], [], []>} : vector<128x128xbf16>, vector<128x128xbf16>, vector<128x128xf32> -> vector<128x128xf32>
    %127 = arith.addf %122, %126 : vector<128x128xf32>
    %c0_115 = arith.constant 0 : index
    %c0_116 = arith.constant 0 : index
    %128 = vector.load %arg6[%c0_115, %c0_116] : memref<1x128xf32, #tpu.memory_space<vmem>>, vector<1x128xf32>
    %129 = vector.broadcast %128 : vector<1x128xf32> to vector<128x128xf32>
    %130 = arith.mulf %127, %129 : vector<128x128xf32>
    %c0_117 = arith.constant 0 : index
    %c0_118 = arith.constant 0 : index
    %131 = vector.load %arg7[%c0_117, %c0_118] : memref<1x128xf32, #tpu.memory_space<vmem>>, vector<1x128xf32>
    %132 = vector.broadcast %131 : vector<1x128xf32> to vector<128x128xf32>
    %133 = arith.addf %130, %132 : vector<128x128xf32>
    %cst_119 = arith.constant 1.000000e-01 : f32
    %134 = vector.broadcast %cst_119 : f32 to vector<128x128xf32>
    %135 = arith.mulf %134, %133 : vector<128x128xf32>
    %136 = arith.maximumf %133, %135 : vector<128x128xf32>
    %c128 = arith.constant 128 : index
    %c0_120 = arith.constant 0 : index
    %137 = vector.load %arg8[%c128, %c0_120] : memref<324x1xf32, #tpu.memory_space<vmem>>, vector<128x1xf32>
    %138 = vector.broadcast %137 : vector<128x1xf32> to vector<128x128xf32>
    %139 = arith.mulf %136, %138 : vector<128x128xf32>
    %140 = arith.truncf %139 : vector<128x128xf32> to vector<128x128xbf16>
    %c152_121 = arith.constant 152 : index
    %c0_122 = arith.constant 0 : index
    %141 = vector.load %arg11[%c152_121, %c0_122] : memref<372x128xbf16, #tpu.memory_space<vmem>>, vector<128x128xbf16>
    tpu.vector_store %arg11[%c152_121, %c0_122], %140 {strides = array<i32>} : memref<372x128xbf16, #tpu.memory_space<vmem>>, vector<128x128xbf16>,
    %cst_123 = arith.constant 0.000000e+00 : f32
    %142 = vector.broadcast %cst_123 : f32 to vector<68x128xf32>
    %c261 = arith.constant 261 : index
    %c0_124 = arith.constant 0 : index
    %143 = vector.load %arg10[%c261, %c0_124] : memref<372x128xbf16, #tpu.memory_space<vmem>>, vector<68x128xbf16>
    %c0_125 = arith.constant 0 : index
    %c0_126 = arith.constant 0 : index
    %c0_127 = arith.constant 0 : index
    %144 = vector.load %arg2[%c0_125, %c0_126, %c0_127] : memref<9x128x128xbf16, #tpu.memory_space<vmem>>, vector<1x128x128xbf16>
    %145 = vector.shape_cast %144 : vector<1x128x128xbf16> to vector<128x128xbf16>
    %cst_128 = arith.constant dense<0.000000e+00> : vector<68x128xf32>
    %146 = tpu.matmul %143, %145, %cst_128 {dimension_numbers = #tpu.dot_dimension_numbers<[1], [0], [0], [1], [0, 0, 1, 1], [], []>} : vector<68x128xbf16>, vector<128x128xbf16>, vector<68x128xf32> -> vector<68x128xf32>
    %147 = arith.addf %142, %146 : vector<68x128xf32>
    %c262 = arith.constant 262 : index
    %c0_129 = arith.constant 0 : index
    %148 = vector.load %arg10[%c262, %c0_129] : memref<372x128xbf16, #tpu.memory_space<vmem>>, vector<68x128xbf16>
    %c1_130 = arith.constant 1 : index
    %c0_131 = arith.constant 0 : index
    %c0_132 = arith.constant 0 : index
    %149 = vector.load %arg2[%c1_130, %c0_131, %c0_132] : memref<9x128x128xbf16, #tpu.memory_space<vmem>>, vector<1x128x128xbf16>
    %150 = vector.shape_cast %149 : vector<1x128x128xbf16> to vector<128x128xbf16>
    %cst_133 = arith.constant dense<0.000000e+00> : vector<68x128xf32>
    %151 = tpu.matmul %148, %150, %cst_133 {dimension_numbers = #tpu.dot_dimension_numbers<[1], [0], [0], [1], [0, 0, 1, 1], [], []>} : vector<68x128xbf16>, vector<128x128xbf16>, vector<68x128xf32> -> vector<68x128xf32>
    %152 = arith.addf %147, %151 : vector<68x128xf32>
    %c263 = arith.constant 263 : index
    %c0_134 = arith.constant 0 : index
    %153 = vector.load %arg10[%c263, %c0_134] : memref<372x128xbf16, #tpu.memory_space<vmem>>, vector<68x128xbf16>
    %c2_135 = arith.constant 2 : index
    %c0_136 = arith.constant 0 : index
    %c0_137 = arith.constant 0 : index
    %154 = vector.load %arg2[%c2_135, %c0_136, %c0_137] : memref<9x128x128xbf16, #tpu.memory_space<vmem>>, vector<1x128x128xbf16>
    %155 = vector.shape_cast %154 : vector<1x128x128xbf16> to vector<128x128xbf16>
    %cst_138 = arith.constant dense<0.000000e+00> : vector<68x128xf32>
    %156 = tpu.matmul %153, %155, %cst_138 {dimension_numbers = #tpu.dot_dimension_numbers<[1], [0], [0], [1], [0, 0, 1, 1], [], []>} : vector<68x128xbf16>, vector<128x128xbf16>, vector<68x128xf32> -> vector<68x128xf32>
    %157 = arith.addf %152, %156 : vector<68x128xf32>
    %c279 = arith.constant 279 : index
    %c0_139 = arith.constant 0 : index
    %158 = vector.load %arg10[%c279, %c0_139] : memref<372x128xbf16, #tpu.memory_space<vmem>>, vector<68x128xbf16>
    %c3_140 = arith.constant 3 : index
    %c0_141 = arith.constant 0 : index
    %c0_142 = arith.constant 0 : index
    %159 = vector.load %arg2[%c3_140, %c0_141, %c0_142] : memref<9x128x128xbf16, #tpu.memory_space<vmem>>, vector<1x128x128xbf16>
    %160 = vector.shape_cast %159 : vector<1x128x128xbf16> to vector<128x128xbf16>
    %cst_143 = arith.constant dense<0.000000e+00> : vector<68x128xf32>
    %161 = tpu.matmul %158, %160, %cst_143 {dimension_numbers = #tpu.dot_dimension_numbers<[1], [0], [0], [1], [0, 0, 1, 1], [], []>} : vector<68x128xbf16>, vector<128x128xbf16>, vector<68x128xf32> -> vector<68x128xf32>
    %162 = arith.addf %157, %161 : vector<68x128xf32>
    %c280 = arith.constant 280 : index
    %c0_144 = arith.constant 0 : index
    %163 = vector.load %arg10[%c280, %c0_144] : memref<372x128xbf16, #tpu.memory_space<vmem>>, vector<68x128xbf16>
    %c4_145 = arith.constant 4 : index
    %c0_146 = arith.constant 0 : index
    %c0_147 = arith.constant 0 : index
    %164 = vector.load %arg2[%c4_145, %c0_146, %c0_147] : memref<9x128x128xbf16, #tpu.memory_space<vmem>>, vector<1x128x128xbf16>
    %165 = vector.shape_cast %164 : vector<1x128x128xbf16> to vector<128x128xbf16>
    %cst_148 = arith.constant dense<0.000000e+00> : vector<68x128xf32>
    %166 = tpu.matmul %163, %165, %cst_148 {dimension_numbers = #tpu.dot_dimension_numbers<[1], [0], [0], [1], [0, 0, 1, 1], [], []>} : vector<68x128xbf16>, vector<128x128xbf16>, vector<68x128xf32> -> vector<68x128xf32>
    %167 = arith.addf %162, %166 : vector<68x128xf32>
    %c281 = arith.constant 281 : index
    %c0_149 = arith.constant 0 : index
    %168 = vector.load %arg10[%c281, %c0_149] : memref<372x128xbf16, #tpu.memory_space<vmem>>, vector<68x128xbf16>
    %c5_150 = arith.constant 5 : index
    %c0_151 = arith.constant 0 : index
    %c0_152 = arith.constant 0 : index
    %169 = vector.load %arg2[%c5_150, %c0_151, %c0_152] : memref<9x128x128xbf16, #tpu.memory_space<vmem>>, vector<1x128x128xbf16>
    %170 = vector.shape_cast %169 : vector<1x128x128xbf16> to vector<128x128xbf16>
    %cst_153 = arith.constant dense<0.000000e+00> : vector<68x128xf32>
    %171 = tpu.matmul %168, %170, %cst_153 {dimension_numbers = #tpu.dot_dimension_numbers<[1], [0], [0], [1], [0, 0, 1, 1], [], []>} : vector<68x128xbf16>, vector<128x128xbf16>, vector<68x128xf32> -> vector<68x128xf32>
    %172 = arith.addf %167, %171 : vector<68x128xf32>
    %c297 = arith.constant 297 : index
    %c0_154 = arith.constant 0 : index
    %173 = vector.load %arg10[%c297, %c0_154] : memref<372x128xbf16, #tpu.memory_space<vmem>>, vector<68x128xbf16>
    %c6_155 = arith.constant 6 : index
    %c0_156 = arith.constant 0 : index
    %c0_157 = arith.constant 0 : index
    %174 = vector.load %arg2[%c6_155, %c0_156, %c0_157] : memref<9x128x128xbf16, #tpu.memory_space<vmem>>, vector<1x128x128xbf16>
    %175 = vector.shape_cast %174 : vector<1x128x128xbf16> to vector<128x128xbf16>
    %cst_158 = arith.constant dense<0.000000e+00> : vector<68x128xf32>
    %176 = tpu.matmul %173, %175, %cst_158 {dimension_numbers = #tpu.dot_dimension_numbers<[1], [0], [0], [1], [0, 0, 1, 1], [], []>} : vector<68x128xbf16>, vector<128x128xbf16>, vector<68x128xf32> -> vector<68x128xf32>
    %177 = arith.addf %172, %176 : vector<68x128xf32>
    %c298 = arith.constant 298 : index
    %c0_159 = arith.constant 0 : index
    %178 = vector.load %arg10[%c298, %c0_159] : memref<372x128xbf16, #tpu.memory_space<vmem>>, vector<68x128xbf16>
    %c7_160 = arith.constant 7 : index
    %c0_161 = arith.constant 0 : index
    %c0_162 = arith.constant 0 : index
    %179 = vector.load %arg2[%c7_160, %c0_161, %c0_162] : memref<9x128x128xbf16, #tpu.memory_space<vmem>>, vector<1x128x128xbf16>
    %180 = vector.shape_cast %179 : vector<1x128x128xbf16> to vector<128x128xbf16>
    %cst_163 = arith.constant dense<0.000000e+00> : vector<68x128xf32>
    %181 = tpu.matmul %178, %180, %cst_163 {dimension_numbers = #tpu.dot_dimension_numbers<[1], [0], [0], [1], [0, 0, 1, 1], [], []>} : vector<68x128xbf16>, vector<128x128xbf16>, vector<68x128xf32> -> vector<68x128xf32>
    %182 = arith.addf %177, %181 : vector<68x128xf32>
    %c299 = arith.constant 299 : index
    %c0_164 = arith.constant 0 : index
    %183 = vector.load %arg10[%c299, %c0_164] : memref<372x128xbf16, #tpu.memory_space<vmem>>, vector<68x128xbf16>
    %c8_165 = arith.constant 8 : index
    %c0_166 = arith.constant 0 : index
    %c0_167 = arith.constant 0 : index
    %184 = vector.load %arg2[%c8_165, %c0_166, %c0_167] : memref<9x128x128xbf16, #tpu.memory_space<vmem>>, vector<1x128x128xbf16>
    %185 = vector.shape_cast %184 : vector<1x128x128xbf16> to vector<128x128xbf16>
    %cst_168 = arith.constant dense<0.000000e+00> : vector<68x128xf32>
    %186 = tpu.matmul %183, %185, %cst_168 {dimension_numbers = #tpu.dot_dimension_numbers<[1], [0], [0], [1], [0, 0, 1, 1], [], []>} : vector<68x128xbf16>, vector<128x128xbf16>, vector<68x128xf32> -> vector<68x128xf32>
    %187 = arith.addf %182, %186 : vector<68x128xf32>
    %c0_169 = arith.constant 0 : index
    %c0_170 = arith.constant 0 : index
    %188 = vector.load %arg6[%c0_169, %c0_170] : memref<1x128xf32, #tpu.memory_space<vmem>>, vector<1x128xf32>
    %189 = vector.broadcast %188 : vector<1x128xf32> to vector<68x128xf32>
    %190 = arith.mulf %187, %189 : vector<68x128xf32>
    %c0_171 = arith.constant 0 : index
    %c0_172 = arith.constant 0 : index
    %191 = vector.load %arg7[%c0_171, %c0_172] : memref<1x128xf32, #tpu.memory_space<vmem>>, vector<1x128xf32>
    %192 = vector.broadcast %191 : vector<1x128xf32> to vector<68x128xf32>
    %193 = arith.addf %190, %192 : vector<68x128xf32>
    %cst_173 = arith.constant 1.000000e-01 : f32
    %194 = vector.broadcast %cst_173 : f32 to vector<68x128xf32>
    %195 = arith.mulf %194, %193 : vector<68x128xf32>
    %196 = arith.maximumf %193, %195 : vector<68x128xf32>
    %c256 = arith.constant 256 : index
    %c0_174 = arith.constant 0 : index
    %197 = vector.load %arg8[%c256, %c0_174] : memref<324x1xf32, #tpu.memory_space<vmem>>, vector<68x1xf32>
    %198 = vector.broadcast %197 : vector<68x1xf32> to vector<68x128xf32>
    %199 = arith.mulf %196, %198 : vector<68x128xf32>
    %200 = arith.truncf %199 : vector<68x128xf32> to vector<68x128xbf16>
    %c280_175 = arith.constant 280 : index
    %c0_176 = arith.constant 0 : index
    %201 = vector.load %arg11[%c280_175, %c0_176] : memref<372x128xbf16, #tpu.memory_space<vmem>>, vector<68x128xbf16>
    tpu.vector_store %arg11[%c280_175, %c0_176], %200 {strides = array<i32>} : memref<372x128xbf16, #tpu.memory_space<vmem>>, vector<68x128xbf16>,
    %c0_177 = arith.constant 0 : index
    %c0_178 = arith.constant 0 : index
    %c0_179 = arith.constant 0 : index
    %202 = vector.load %arg1[%c0_177, %c0_178, %c0_179] : memref<1x324x128xf32, #tpu.memory_space<vmem>>, vector<1x128x128xf32>
    %203 = vector.shape_cast %202 : vector<1x128x128xf32> to vector<128x128xf32>
    %c5_180 = arith.constant 5 : index
    %c0_181 = arith.constant 0 : index
    %204 = vector.load %arg11[%c5_180, %c0_181] : memref<372x128xbf16, #tpu.memory_space<vmem>>, vector<128x128xbf16>
    %c0_182 = arith.constant 0 : index
    %c0_183 = arith.constant 0 : index
    %c0_184 = arith.constant 0 : index
    %205 = vector.load %arg3[%c0_182, %c0_183, %c0_184] : memref<9x128x128xbf16, #tpu.memory_space<vmem>>, vector<1x128x128xbf16>
    %206 = vector.shape_cast %205 : vector<1x128x128xbf16> to vector<128x128xbf16>
    %cst_185 = arith.constant dense<0.000000e+00> : vector<128x128xf32>
    %207 = tpu.matmul %204, %206, %cst_185 {dimension_numbers = #tpu.dot_dimension_numbers<[1], [0], [0], [1], [0, 0, 1, 1], [], []>} : vector<128x128xbf16>, vector<128x128xbf16>, vector<128x128xf32> -> vector<128x128xf32>
    %208 = arith.addf %203, %207 : vector<128x128xf32>
    %c6_186 = arith.constant 6 : index
    %c0_187 = arith.constant 0 : index
    %209 = vector.load %arg11[%c6_186, %c0_187] : memref<372x128xbf16, #tpu.memory_space<vmem>>, vector<128x128xbf16>
    %c1_188 = arith.constant 1 : index
    %c0_189 = arith.constant 0 : index
    %c0_190 = arith.constant 0 : index
    %210 = vector.load %arg3[%c1_188, %c0_189, %c0_190] : memref<9x128x128xbf16, #tpu.memory_space<vmem>>, vector<1x128x128xbf16>
    %211 = vector.shape_cast %210 : vector<1x128x128xbf16> to vector<128x128xbf16>
    %cst_191 = arith.constant dense<0.000000e+00> : vector<128x128xf32>
    %212 = tpu.matmul %209, %211, %cst_191 {dimension_numbers = #tpu.dot_dimension_numbers<[1], [0], [0], [1], [0, 0, 1, 1], [], []>} : vector<128x128xbf16>, vector<128x128xbf16>, vector<128x128xf32> -> vector<128x128xf32>
    %213 = arith.addf %208, %212 : vector<128x128xf32>
    %c7_192 = arith.constant 7 : index
    %c0_193 = arith.constant 0 : index
    %214 = vector.load %arg11[%c7_192, %c0_193] : memref<372x128xbf16, #tpu.memory_space<vmem>>, vector<128x128xbf16>
    %c2_194 = arith.constant 2 : index
    %c0_195 = arith.constant 0 : index
    %c0_196 = arith.constant 0 : index
    %215 = vector.load %arg3[%c2_194, %c0_195, %c0_196] : memref<9x128x128xbf16, #tpu.memory_space<vmem>>, vector<1x128x128xbf16>
    %216 = vector.shape_cast %215 : vector<1x128x128xbf16> to vector<128x128xbf16>
    %cst_197 = arith.constant dense<0.000000e+00> : vector<128x128xf32>
    %217 = tpu.matmul %214, %216, %cst_197 {dimension_numbers = #tpu.dot_dimension_numbers<[1], [0], [0], [1], [0, 0, 1, 1], [], []>} : vector<128x128xbf16>, vector<128x128xbf16>, vector<128x128xf32> -> vector<128x128xf32>
    %218 = arith.addf %213, %217 : vector<128x128xf32>
    %c23_198 = arith.constant 23 : index
    %c0_199 = arith.constant 0 : index
    %219 = vector.load %arg11[%c23_198, %c0_199] : memref<372x128xbf16, #tpu.memory_space<vmem>>, vector<128x128xbf16>
    %c3_200 = arith.constant 3 : index
    %c0_201 = arith.constant 0 : index
    %c0_202 = arith.constant 0 : index
    %220 = vector.load %arg3[%c3_200, %c0_201, %c0_202] : memref<9x128x128xbf16, #tpu.memory_space<vmem>>, vector<1x128x128xbf16>
    %221 = vector.shape_cast %220 : vector<1x128x128xbf16> to vector<128x128xbf16>
    %cst_203 = arith.constant dense<0.000000e+00> : vector<128x128xf32>
    %222 = tpu.matmul %219, %221, %cst_203 {dimension_numbers = #tpu.dot_dimension_numbers<[1], [0], [0], [1], [0, 0, 1, 1], [], []>} : vector<128x128xbf16>, vector<128x128xbf16>, vector<128x128xf32> -> vector<128x128xf32>
    %223 = arith.addf %218, %222 : vector<128x128xf32>
    %c24_204 = arith.constant 24 : index
    %c0_205 = arith.constant 0 : index
    %224 = vector.load %arg11[%c24_204, %c0_205] : memref<372x128xbf16, #tpu.memory_space<vmem>>, vector<128x128xbf16>
    %c4_206 = arith.constant 4 : index
    %c0_207 = arith.constant 0 : index
    %c0_208 = arith.constant 0 : index
    %225 = vector.load %arg3[%c4_206, %c0_207, %c0_208] : memref<9x128x128xbf16, #tpu.memory_space<vmem>>, vector<1x128x128xbf16>
    %226 = vector.shape_cast %225 : vector<1x128x128xbf16> to vector<128x128xbf16>
    %cst_209 = arith.constant dense<0.000000e+00> : vector<128x128xf32>
    %227 = tpu.matmul %224, %226, %cst_209 {dimension_numbers = #tpu.dot_dimension_numbers<[1], [0], [0], [1], [0, 0, 1, 1], [], []>} : vector<128x128xbf16>, vector<128x128xbf16>, vector<128x128xf32> -> vector<128x128xf32>
    %228 = arith.addf %223, %227 : vector<128x128xf32>
    %c25_210 = arith.constant 25 : index
    %c0_211 = arith.constant 0 : index
    %229 = vector.load %arg11[%c25_210, %c0_211] : memref<372x128xbf16, #tpu.memory_space<vmem>>, vector<128x128xbf16>
    %c5_212 = arith.constant 5 : index
    %c0_213 = arith.constant 0 : index
    %c0_214 = arith.constant 0 : index
    %230 = vector.load %arg3[%c5_212, %c0_213, %c0_214] : memref<9x128x128xbf16, #tpu.memory_space<vmem>>, vector<1x128x128xbf16>
    %231 = vector.shape_cast %230 : vector<1x128x128xbf16> to vector<128x128xbf16>
    %cst_215 = arith.constant dense<0.000000e+00> : vector<128x128xf32>
    %232 = tpu.matmul %229, %231, %cst_215 {dimension_numbers = #tpu.dot_dimension_numbers<[1], [0], [0], [1], [0, 0, 1, 1], [], []>} : vector<128x128xbf16>, vector<128x128xbf16>, vector<128x128xf32> -> vector<128x128xf32>
    %233 = arith.addf %228, %232 : vector<128x128xf32>
    %c41_216 = arith.constant 41 : index
    %c0_217 = arith.constant 0 : index
    %234 = vector.load %arg11[%c41_216, %c0_217] : memref<372x128xbf16, #tpu.memory_space<vmem>>, vector<128x128xbf16>
    %c6_218 = arith.constant 6 : index
    %c0_219 = arith.constant 0 : index
    %c0_220 = arith.constant 0 : index
    %235 = vector.load %arg3[%c6_218, %c0_219, %c0_220] : memref<9x128x128xbf16, #tpu.memory_space<vmem>>, vector<1x128x128xbf16>
    %236 = vector.shape_cast %235 : vector<1x128x128xbf16> to vector<128x128xbf16>
    %cst_221 = arith.constant dense<0.000000e+00> : vector<128x128xf32>
    %237 = tpu.matmul %234, %236, %cst_221 {dimension_numbers = #tpu.dot_dimension_numbers<[1], [0], [0], [1], [0, 0, 1, 1], [], []>} : vector<128x128xbf16>, vector<128x128xbf16>, vector<128x128xf32> -> vector<128x128xf32>
    %238 = arith.addf %233, %237 : vector<128x128xf32>
    %c42_222 = arith.constant 42 : index
    %c0_223 = arith.constant 0 : index
    %239 = vector.load %arg11[%c42_222, %c0_223] : memref<372x128xbf16, #tpu.memory_space<vmem>>, vector<128x128xbf16>
    %c7_224 = arith.constant 7 : index
    %c0_225 = arith.constant 0 : index
    %c0_226 = arith.constant 0 : index
    %240 = vector.load %arg3[%c7_224, %c0_225, %c0_226] : memref<9x128x128xbf16, #tpu.memory_space<vmem>>, vector<1x128x128xbf16>
    %241 = vector.shape_cast %240 : vector<1x128x128xbf16> to vector<128x128xbf16>
    %cst_227 = arith.constant dense<0.000000e+00> : vector<128x128xf32>
    %242 = tpu.matmul %239, %241, %cst_227 {dimension_numbers = #tpu.dot_dimension_numbers<[1], [0], [0], [1], [0, 0, 1, 1], [], []>} : vector<128x128xbf16>, vector<128x128xbf16>, vector<128x128xf32> -> vector<128x128xf32>
    %243 = arith.addf %238, %242 : vector<128x128xf32>
    %c43_228 = arith.constant 43 : index
    %c0_229 = arith.constant 0 : index
    %244 = vector.load %arg11[%c43_228, %c0_229] : memref<372x128xbf16, #tpu.memory_space<vmem>>, vector<128x128xbf16>
    %c8_230 = arith.constant 8 : index
    %c0_231 = arith.constant 0 : index
    %c0_232 = arith.constant 0 : index
    %245 = vector.load %arg3[%c8_230, %c0_231, %c0_232] : memref<9x128x128xbf16, #tpu.memory_space<vmem>>, vector<1x128x128xbf16>
    %246 = vector.shape_cast %245 : vector<1x128x128xbf16> to vector<128x128xbf16>
    %cst_233 = arith.constant dense<0.000000e+00> : vector<128x128xf32>
    %247 = tpu.matmul %244, %246, %cst_233 {dimension_numbers = #tpu.dot_dimension_numbers<[1], [0], [0], [1], [0, 0, 1, 1], [], []>} : vector<128x128xbf16>, vector<128x128xbf16>, vector<128x128xf32> -> vector<128x128xf32>
    %248 = arith.addf %243, %247 : vector<128x128xf32>
    %c0_234 = arith.constant 0 : index
    %c0_235 = arith.constant 0 : index
    %c0_236 = arith.constant 0 : index
    %249 = vector.load %arg9[%c0_234, %c0_235, %c0_236] : memref<1x324x128xf32, #tpu.memory_space<vmem>>, vector<1x128x128xf32>
    %250 = vector.shape_cast %249 : vector<1x128x128xf32> to vector<128x128xf32>
    %251 = vector.shape_cast %248 : vector<128x128xf32> to vector<1x128x128xf32>
    tpu.vector_store %arg9[%c0_234, %c0_235, %c0_236], %251 {strides = array<i32>} : memref<1x324x128xf32, #tpu.memory_space<vmem>>, vector<1x128x128xf32>,
    %c0_237 = arith.constant 0 : index
    %c128_238 = arith.constant 128 : index
    %c0_239 = arith.constant 0 : index
    %252 = vector.load %arg1[%c0_237, %c128_238, %c0_239] : memref<1x324x128xf32, #tpu.memory_space<vmem>>, vector<1x128x128xf32>
    %253 = vector.shape_cast %252 : vector<1x128x128xf32> to vector<128x128xf32>
    %c133_240 = arith.constant 133 : index
    %c0_241 = arith.constant 0 : index
    %254 = vector.load %arg11[%c133_240, %c0_241] : memref<372x128xbf16, #tpu.memory_space<vmem>>, vector<128x128xbf16>
    %c0_242 = arith.constant 0 : index
    %c0_243 = arith.constant 0 : index
    %c0_244 = arith.constant 0 : index
    %255 = vector.load %arg3[%c0_242, %c0_243, %c0_244] : memref<9x128x128xbf16, #tpu.memory_space<vmem>>, vector<1x128x128xbf16>
    %256 = vector.shape_cast %255 : vector<1x128x128xbf16> to vector<128x128xbf16>
    %cst_245 = arith.constant dense<0.000000e+00> : vector<128x128xf32>
    %257 = tpu.matmul %254, %256, %cst_245 {dimension_numbers = #tpu.dot_dimension_numbers<[1], [0], [0], [1], [0, 0, 1, 1], [], []>} : vector<128x128xbf16>, vector<128x128xbf16>, vector<128x128xf32> -> vector<128x128xf32>
    %258 = arith.addf %253, %257 : vector<128x128xf32>
    %c134_246 = arith.constant 134 : index
    %c0_247 = arith.constant 0 : index
    %259 = vector.load %arg11[%c134_246, %c0_247] : memref<372x128xbf16, #tpu.memory_space<vmem>>, vector<128x128xbf16>
    %c1_248 = arith.constant 1 : index
    %c0_249 = arith.constant 0 : index
    %c0_250 = arith.constant 0 : index
    %260 = vector.load %arg3[%c1_248, %c0_249, %c0_250] : memref<9x128x128xbf16, #tpu.memory_space<vmem>>, vector<1x128x128xbf16>
    %261 = vector.shape_cast %260 : vector<1x128x128xbf16> to vector<128x128xbf16>
    %cst_251 = arith.constant dense<0.000000e+00> : vector<128x128xf32>
    %262 = tpu.matmul %259, %261, %cst_251 {dimension_numbers = #tpu.dot_dimension_numbers<[1], [0], [0], [1], [0, 0, 1, 1], [], []>} : vector<128x128xbf16>, vector<128x128xbf16>, vector<128x128xf32> -> vector<128x128xf32>
    %263 = arith.addf %258, %262 : vector<128x128xf32>
    %c135_252 = arith.constant 135 : index
    %c0_253 = arith.constant 0 : index
    %264 = vector.load %arg11[%c135_252, %c0_253] : memref<372x128xbf16, #tpu.memory_space<vmem>>, vector<128x128xbf16>
    %c2_254 = arith.constant 2 : index
    %c0_255 = arith.constant 0 : index
    %c0_256 = arith.constant 0 : index
    %265 = vector.load %arg3[%c2_254, %c0_255, %c0_256] : memref<9x128x128xbf16, #tpu.memory_space<vmem>>, vector<1x128x128xbf16>
    %266 = vector.shape_cast %265 : vector<1x128x128xbf16> to vector<128x128xbf16>
    %cst_257 = arith.constant dense<0.000000e+00> : vector<128x128xf32>
    %267 = tpu.matmul %264, %266, %cst_257 {dimension_numbers = #tpu.dot_dimension_numbers<[1], [0], [0], [1], [0, 0, 1, 1], [], []>} : vector<128x128xbf16>, vector<128x128xbf16>, vector<128x128xf32> -> vector<128x128xf32>
    %268 = arith.addf %263, %267 : vector<128x128xf32>
    %c151_258 = arith.constant 151 : index
    %c0_259 = arith.constant 0 : index
    %269 = vector.load %arg11[%c151_258, %c0_259] : memref<372x128xbf16, #tpu.memory_space<vmem>>, vector<128x128xbf16>
    %c3_260 = arith.constant 3 : index
    %c0_261 = arith.constant 0 : index
    %c0_262 = arith.constant 0 : index
    %270 = vector.load %arg3[%c3_260, %c0_261, %c0_262] : memref<9x128x128xbf16, #tpu.memory_space<vmem>>, vector<1x128x128xbf16>
    %271 = vector.shape_cast %270 : vector<1x128x128xbf16> to vector<128x128xbf16>
    %cst_263 = arith.constant dense<0.000000e+00> : vector<128x128xf32>
    %272 = tpu.matmul %269, %271, %cst_263 {dimension_numbers = #tpu.dot_dimension_numbers<[1], [0], [0], [1], [0, 0, 1, 1], [], []>} : vector<128x128xbf16>, vector<128x128xbf16>, vector<128x128xf32> -> vector<128x128xf32>
    %273 = arith.addf %268, %272 : vector<128x128xf32>
    %c152_264 = arith.constant 152 : index
    %c0_265 = arith.constant 0 : index
    %274 = vector.load %arg11[%c152_264, %c0_265] : memref<372x128xbf16, #tpu.memory_space<vmem>>, vector<128x128xbf16>
    %c4_266 = arith.constant 4 : index
    %c0_267 = arith.constant 0 : index
    %c0_268 = arith.constant 0 : index
    %275 = vector.load %arg3[%c4_266, %c0_267, %c0_268] : memref<9x128x128xbf16, #tpu.memory_space<vmem>>, vector<1x128x128xbf16>
    %276 = vector.shape_cast %275 : vector<1x128x128xbf16> to vector<128x128xbf16>
    %cst_269 = arith.constant dense<0.000000e+00> : vector<128x128xf32>
    %277 = tpu.matmul %274, %276, %cst_269 {dimension_numbers = #tpu.dot_dimension_numbers<[1], [0], [0], [1], [0, 0, 1, 1], [], []>} : vector<128x128xbf16>, vector<128x128xbf16>, vector<128x128xf32> -> vector<128x128xf32>
    %278 = arith.addf %273, %277 : vector<128x128xf32>
    %c153_270 = arith.constant 153 : index
    %c0_271 = arith.constant 0 : index
    %279 = vector.load %arg11[%c153_270, %c0_271] : memref<372x128xbf16, #tpu.memory_space<vmem>>, vector<128x128xbf16>
    %c5_272 = arith.constant 5 : index
    %c0_273 = arith.constant 0 : index
    %c0_274 = arith.constant 0 : index
    %280 = vector.load %arg3[%c5_272, %c0_273, %c0_274] : memref<9x128x128xbf16, #tpu.memory_space<vmem>>, vector<1x128x128xbf16>
    %281 = vector.shape_cast %280 : vector<1x128x128xbf16> to vector<128x128xbf16>
    %cst_275 = arith.constant dense<0.000000e+00> : vector<128x128xf32>
    %282 = tpu.matmul %279, %281, %cst_275 {dimension_numbers = #tpu.dot_dimension_numbers<[1], [0], [0], [1], [0, 0, 1, 1], [], []>} : vector<128x128xbf16>, vector<128x128xbf16>, vector<128x128xf32> -> vector<128x128xf32>
    %283 = arith.addf %278, %282 : vector<128x128xf32>
    %c169_276 = arith.constant 169 : index
    %c0_277 = arith.constant 0 : index
    %284 = vector.load %arg11[%c169_276, %c0_277] : memref<372x128xbf16, #tpu.memory_space<vmem>>, vector<128x128xbf16>
    %c6_278 = arith.constant 6 : index
    %c0_279 = arith.constant 0 : index
    %c0_280 = arith.constant 0 : index
    %285 = vector.load %arg3[%c6_278, %c0_279, %c0_280] : memref<9x128x128xbf16, #tpu.memory_space<vmem>>, vector<1x128x128xbf16>
    %286 = vector.shape_cast %285 : vector<1x128x128xbf16> to vector<128x128xbf16>
    %cst_281 = arith.constant dense<0.000000e+00> : vector<128x128xf32>
    %287 = tpu.matmul %284, %286, %cst_281 {dimension_numbers = #tpu.dot_dimension_numbers<[1], [0], [0], [1], [0, 0, 1, 1], [], []>} : vector<128x128xbf16>, vector<128x128xbf16>, vector<128x128xf32> -> vector<128x128xf32>
    %288 = arith.addf %283, %287 : vector<128x128xf32>
    %c170_282 = arith.constant 170 : index
    %c0_283 = arith.constant 0 : index
    %289 = vector.load %arg11[%c170_282, %c0_283] : memref<372x128xbf16, #tpu.memory_space<vmem>>, vector<128x128xbf16>
    %c7_284 = arith.constant 7 : index
    %c0_285 = arith.constant 0 : index
    %c0_286 = arith.constant 0 : index
    %290 = vector.load %arg3[%c7_284, %c0_285, %c0_286] : memref<9x128x128xbf16, #tpu.memory_space<vmem>>, vector<1x128x128xbf16>
    %291 = vector.shape_cast %290 : vector<1x128x128xbf16> to vector<128x128xbf16>
    %cst_287 = arith.constant dense<0.000000e+00> : vector<128x128xf32>
    %292 = tpu.matmul %289, %291, %cst_287 {dimension_numbers = #tpu.dot_dimension_numbers<[1], [0], [0], [1], [0, 0, 1, 1], [], []>} : vector<128x128xbf16>, vector<128x128xbf16>, vector<128x128xf32> -> vector<128x128xf32>
    %293 = arith.addf %288, %292 : vector<128x128xf32>
    %c171_288 = arith.constant 171 : index
    %c0_289 = arith.constant 0 : index
    %294 = vector.load %arg11[%c171_288, %c0_289] : memref<372x128xbf16, #tpu.memory_space<vmem>>, vector<128x128xbf16>
    %c8_290 = arith.constant 8 : index
    %c0_291 = arith.constant 0 : index
    %c0_292 = arith.constant 0 : index
    %295 = vector.load %arg3[%c8_290, %c0_291, %c0_292] : memref<9x128x128xbf16, #tpu.memory_space<vmem>>, vector<1x128x128xbf16>
    %296 = vector.shape_cast %295 : vector<1x128x128xbf16> to vector<128x128xbf16>
    %cst_293 = arith.constant dense<0.000000e+00> : vector<128x128xf32>
    %297 = tpu.matmul %294, %296, %cst_293 {dimension_numbers = #tpu.dot_dimension_numbers<[1], [0], [0], [1], [0, 0, 1, 1], [], []>} : vector<128x128xbf16>, vector<128x128xbf16>, vector<128x128xf32> -> vector<128x128xf32>
    %298 = arith.addf %293, %297 : vector<128x128xf32>
    %c0_294 = arith.constant 0 : index
    %c128_295 = arith.constant 128 : index
    %c0_296 = arith.constant 0 : index
    %299 = vector.load %arg9[%c0_294, %c128_295, %c0_296] : memref<1x324x128xf32, #tpu.memory_space<vmem>>, vector<1x128x128xf32>
    %300 = vector.shape_cast %299 : vector<1x128x128xf32> to vector<128x128xf32>
    %301 = vector.shape_cast %298 : vector<128x128xf32> to vector<1x128x128xf32>
    tpu.vector_store %arg9[%c0_294, %c128_295, %c0_296], %301 {strides = array<i32>} : memref<1x324x128xf32, #tpu.memory_space<vmem>>, vector<1x128x128xf32>,
    %c0_297 = arith.constant 0 : index
    %c256_298 = arith.constant 256 : index
    %c0_299 = arith.constant 0 : index
    %302 = vector.load %arg1[%c0_297, %c256_298, %c0_299] : memref<1x324x128xf32, #tpu.memory_space<vmem>>, vector<1x68x128xf32>
    %303 = vector.shape_cast %302 : vector<1x68x128xf32> to vector<68x128xf32>
    %c261_300 = arith.constant 261 : index
    %c0_301 = arith.constant 0 : index
    %304 = vector.load %arg11[%c261_300, %c0_301] : memref<372x128xbf16, #tpu.memory_space<vmem>>, vector<68x128xbf16>
    %c0_302 = arith.constant 0 : index
    %c0_303 = arith.constant 0 : index
    %c0_304 = arith.constant 0 : index
    %305 = vector.load %arg3[%c0_302, %c0_303, %c0_304] : memref<9x128x128xbf16, #tpu.memory_space<vmem>>, vector<1x128x128xbf16>
    %306 = vector.shape_cast %305 : vector<1x128x128xbf16> to vector<128x128xbf16>
    %cst_305 = arith.constant dense<0.000000e+00> : vector<68x128xf32>
    %307 = tpu.matmul %304, %306, %cst_305 {dimension_numbers = #tpu.dot_dimension_numbers<[1], [0], [0], [1], [0, 0, 1, 1], [], []>} : vector<68x128xbf16>, vector<128x128xbf16>, vector<68x128xf32> -> vector<68x128xf32>
    %308 = arith.addf %303, %307 : vector<68x128xf32>
    %c262_306 = arith.constant 262 : index
    %c0_307 = arith.constant 0 : index
    %309 = vector.load %arg11[%c262_306, %c0_307] : memref<372x128xbf16, #tpu.memory_space<vmem>>, vector<68x128xbf16>
    %c1_308 = arith.constant 1 : index
    %c0_309 = arith.constant 0 : index
    %c0_310 = arith.constant 0 : index
    %310 = vector.load %arg3[%c1_308, %c0_309, %c0_310] : memref<9x128x128xbf16, #tpu.memory_space<vmem>>, vector<1x128x128xbf16>
    %311 = vector.shape_cast %310 : vector<1x128x128xbf16> to vector<128x128xbf16>
    %cst_311 = arith.constant dense<0.000000e+00> : vector<68x128xf32>
    %312 = tpu.matmul %309, %311, %cst_311 {dimension_numbers = #tpu.dot_dimension_numbers<[1], [0], [0], [1], [0, 0, 1, 1], [], []>} : vector<68x128xbf16>, vector<128x128xbf16>, vector<68x128xf32> -> vector<68x128xf32>
    %313 = arith.addf %308, %312 : vector<68x128xf32>
    %c263_312 = arith.constant 263 : index
    %c0_313 = arith.constant 0 : index
    %314 = vector.load %arg11[%c263_312, %c0_313] : memref<372x128xbf16, #tpu.memory_space<vmem>>, vector<68x128xbf16>
    %c2_314 = arith.constant 2 : index
    %c0_315 = arith.constant 0 : index
    %c0_316 = arith.constant 0 : index
    %315 = vector.load %arg3[%c2_314, %c0_315, %c0_316] : memref<9x128x128xbf16, #tpu.memory_space<vmem>>, vector<1x128x128xbf16>
    %316 = vector.shape_cast %315 : vector<1x128x128xbf16> to vector<128x128xbf16>
    %cst_317 = arith.constant dense<0.000000e+00> : vector<68x128xf32>
    %317 = tpu.matmul %314, %316, %cst_317 {dimension_numbers = #tpu.dot_dimension_numbers<[1], [0], [0], [1], [0, 0, 1, 1], [], []>} : vector<68x128xbf16>, vector<128x128xbf16>, vector<68x128xf32> -> vector<68x128xf32>
    %318 = arith.addf %313, %317 : vector<68x128xf32>
    %c279_318 = arith.constant 279 : index
    %c0_319 = arith.constant 0 : index
    %319 = vector.load %arg11[%c279_318, %c0_319] : memref<372x128xbf16, #tpu.memory_space<vmem>>, vector<68x128xbf16>
    %c3_320 = arith.constant 3 : index
    %c0_321 = arith.constant 0 : index
    %c0_322 = arith.constant 0 : index
    %320 = vector.load %arg3[%c3_320, %c0_321, %c0_322] : memref<9x128x128xbf16, #tpu.memory_space<vmem>>, vector<1x128x128xbf16>
    %321 = vector.shape_cast %320 : vector<1x128x128xbf16> to vector<128x128xbf16>
    %cst_323 = arith.constant dense<0.000000e+00> : vector<68x128xf32>
    %322 = tpu.matmul %319, %321, %cst_323 {dimension_numbers = #tpu.dot_dimension_numbers<[1], [0], [0], [1], [0, 0, 1, 1], [], []>} : vector<68x128xbf16>, vector<128x128xbf16>, vector<68x128xf32> -> vector<68x128xf32>
    %323 = arith.addf %318, %322 : vector<68x128xf32>
    %c280_324 = arith.constant 280 : index
    %c0_325 = arith.constant 0 : index
    %324 = vector.load %arg11[%c280_324, %c0_325] : memref<372x128xbf16, #tpu.memory_space<vmem>>, vector<68x128xbf16>
    %c4_326 = arith.constant 4 : index
    %c0_327 = arith.constant 0 : index
    %c0_328 = arith.constant 0 : index
    %325 = vector.load %arg3[%c4_326, %c0_327, %c0_328] : memref<9x128x128xbf16, #tpu.memory_space<vmem>>, vector<1x128x128xbf16>
    %326 = vector.shape_cast %325 : vector<1x128x128xbf16> to vector<128x128xbf16>
    %cst_329 = arith.constant dense<0.000000e+00> : vector<68x128xf32>
    %327 = tpu.matmul %324, %326, %cst_329 {dimension_numbers = #tpu.dot_dimension_numbers<[1], [0], [0], [1], [0, 0, 1, 1], [], []>} : vector<68x128xbf16>, vector<128x128xbf16>, vector<68x128xf32> -> vector<68x128xf32>
    %328 = arith.addf %323, %327 : vector<68x128xf32>
    %c281_330 = arith.constant 281 : index
    %c0_331 = arith.constant 0 : index
    %329 = vector.load %arg11[%c281_330, %c0_331] : memref<372x128xbf16, #tpu.memory_space<vmem>>, vector<68x128xbf16>
    %c5_332 = arith.constant 5 : index
    %c0_333 = arith.constant 0 : index
    %c0_334 = arith.constant 0 : index
    %330 = vector.load %arg3[%c5_332, %c0_333, %c0_334] : memref<9x128x128xbf16, #tpu.memory_space<vmem>>, vector<1x128x128xbf16>
    %331 = vector.shape_cast %330 : vector<1x128x128xbf16> to vector<128x128xbf16>
    %cst_335 = arith.constant dense<0.000000e+00> : vector<68x128xf32>
    %332 = tpu.matmul %329, %331, %cst_335 {dimension_numbers = #tpu.dot_dimension_numbers<[1], [0], [0], [1], [0, 0, 1, 1], [], []>} : vector<68x128xbf16>, vector<128x128xbf16>, vector<68x128xf32> -> vector<68x128xf32>
    %333 = arith.addf %328, %332 : vector<68x128xf32>
    %c297_336 = arith.constant 297 : index
    %c0_337 = arith.constant 0 : index
    %334 = vector.load %arg11[%c297_336, %c0_337] : memref<372x128xbf16, #tpu.memory_space<vmem>>, vector<68x128xbf16>
    %c6_338 = arith.constant 6 : index
    %c0_339 = arith.constant 0 : index
    %c0_340 = arith.constant 0 : index
    %335 = vector.load %arg3[%c6_338, %c0_339, %c0_340] : memref<9x128x128xbf16, #tpu.memory_space<vmem>>, vector<1x128x128xbf16>
    %336 = vector.shape_cast %335 : vector<1x128x128xbf16> to vector<128x128xbf16>
    %cst_341 = arith.constant dense<0.000000e+00> : vector<68x128xf32>
    %337 = tpu.matmul %334, %336, %cst_341 {dimension_numbers = #tpu.dot_dimension_numbers<[1], [0], [0], [1], [0, 0, 1, 1], [], []>} : vector<68x128xbf16>, vector<128x128xbf16>, vector<68x128xf32> -> vector<68x128xf32>
    %338 = arith.addf %333, %337 : vector<68x128xf32>
    %c298_342 = arith.constant 298 : index
    %c0_343 = arith.constant 0 : index
    %339 = vector.load %arg11[%c298_342, %c0_343] : memref<372x128xbf16, #tpu.memory_space<vmem>>, vector<68x128xbf16>
    %c7_344 = arith.constant 7 : index
    %c0_345 = arith.constant 0 : index
    %c0_346 = arith.constant 0 : index
    %340 = vector.load %arg3[%c7_344, %c0_345, %c0_346] : memref<9x128x128xbf16, #tpu.memory_space<vmem>>, vector<1x128x128xbf16>
    %341 = vector.shape_cast %340 : vector<1x128x128xbf16> to vector<128x128xbf16>
    %cst_347 = arith.constant dense<0.000000e+00> : vector<68x128xf32>
    %342 = tpu.matmul %339, %341, %cst_347 {dimension_numbers = #tpu.dot_dimension_numbers<[1], [0], [0], [1], [0, 0, 1, 1], [], []>} : vector<68x128xbf16>, vector<128x128xbf16>, vector<68x128xf32> -> vector<68x128xf32>
    %343 = arith.addf %338, %342 : vector<68x128xf32>
    %c299_348 = arith.constant 299 : index
    %c0_349 = arith.constant 0 : index
    %344 = vector.load %arg11[%c299_348, %c0_349] : memref<372x128xbf16, #tpu.memory_space<vmem>>, vector<68x128xbf16>
    %c8_350 = arith.constant 8 : index
    %c0_351 = arith.constant 0 : index
    %c0_352 = arith.constant 0 : index
    %345 = vector.load %arg3[%c8_350, %c0_351, %c0_352] : memref<9x128x128xbf16, #tpu.memory_space<vmem>>, vector<1x128x128xbf16>
    %346 = vector.shape_cast %345 : vector<1x128x128xbf16> to vector<128x128xbf16>
    %cst_353 = arith.constant dense<0.000000e+00> : vector<68x128xf32>
    %347 = tpu.matmul %344, %346, %cst_353 {dimension_numbers = #tpu.dot_dimension_numbers<[1], [0], [0], [1], [0, 0, 1, 1], [], []>} : vector<68x128xbf16>, vector<128x128xbf16>, vector<68x128xf32> -> vector<68x128xf32>
    %348 = arith.addf %343, %347 : vector<68x128xf32>
    %c0_354 = arith.constant 0 : index
    %c256_355 = arith.constant 256 : index
    %c0_356 = arith.constant 0 : index
    %349 = vector.load %arg9[%c0_354, %c256_355, %c0_356] : memref<1x324x128xf32, #tpu.memory_space<vmem>>, vector<1x68x128xf32>
    %350 = vector.shape_cast %349 : vector<1x68x128xf32> to vector<68x128xf32>
    %351 = vector.shape_cast %348 : vector<68x128xf32> to vector<1x68x128xf32>
    tpu.vector_store %arg9[%c0_354, %c256_355, %c0_356], %351 {strides = array<i32>} : memref<1x324x128xf32, #tpu.memory_space<vmem>>, vector<1x68x128xf32>,
    return
  }
  func.func @transform_0(%arg0: i32) -> (i32, i32, i32) {
    %c0_i32 = arith.constant 0 : i32
    %c0_i32_0 = arith.constant 0 : i32
    %c0_i32_1 = arith.constant 0 : i32
    return %arg0, %c0_i32, %c0_i32_0 : i32, i32, i32
  }
  func.func @transform_1(%arg0: i32) -> (i32, i32, i32) {
    %c0_i32 = arith.constant 0 : i32
    %c0_i32_0 = arith.constant 0 : i32
    %c0_i32_1 = arith.constant 0 : i32
    %c0_i32_2 = arith.constant 0 : i32
    return %c0_i32, %c0_i32_0, %c0_i32_1 : i32, i32, i32
  }
  func.func @transform_2(%arg0: i32) -> (i32, i32, i32) {
    %c0_i32 = arith.constant 0 : i32
    %c0_i32_0 = arith.constant 0 : i32
    %c0_i32_1 = arith.constant 0 : i32
    %c0_i32_2 = arith.constant 0 : i32
    return %c0_i32, %c0_i32_0, %c0_i32_1 : i32, i32, i32
  }
  func.func @transform_3(%arg0: i32) -> (i32, i32) {
    %c0_i32 = arith.constant 0 : i32
    %c0_i32_0 = arith.constant 0 : i32
    %c0_i32_1 = arith.constant 0 : i32
    return %c0_i32, %c0_i32_0 : i32, i32
  }
  func.func @transform_4(%arg0: i32) -> (i32, i32) {
    %c0_i32 = arith.constant 0 : i32
    %c0_i32_0 = arith.constant 0 : i32
    %c0_i32_1 = arith.constant 0 : i32
    return %c0_i32, %c0_i32_0 : i32, i32
  }
  func.func @transform_5(%arg0: i32) -> (i32, i32) {
    %c0_i32 = arith.constant 0 : i32
    %c0_i32_0 = arith.constant 0 : i32
    %c0_i32_1 = arith.constant 0 : i32
    return %c0_i32, %c0_i32_0 : i32, i32
  }
  func.func @transform_6(%arg0: i32) -> (i32, i32) {
    %c0_i32 = arith.constant 0 : i32
    %c0_i32_0 = arith.constant 0 : i32
    %c0_i32_1 = arith.constant 0 : i32
    return %c0_i32, %c0_i32_0 : i32, i32
  }
  func.func @transform_7(%arg0: i32) -> (i32, i32) {
    %c0_i32 = arith.constant 0 : i32
    %c0_i32_0 = arith.constant 0 : i32
    %c0_i32_1 = arith.constant 0 : i32
    return %c0_i32, %c0_i32_0 : i32, i32
  }
  func.func @transform_8(%arg0: i32) -> (i32, i32, i32) {
    %c0_i32 = arith.constant 0 : i32
    %c0_i32_0 = arith.constant 0 : i32
    %c0_i32_1 = arith.constant 0 : i32
    return %arg0, %c0_i32, %c0_i32_0 : i32, i32, i32
  }
}

</mosaic_0001>

<llo_original>
// kernel: tpu_custom_call.1
$region0: #{tpu_custom_call.1}
  #allocation0 [shape = 'u32[]', space=smem, size = 0x4, offset = 0x4, fixed_abs, tag = 'smem constant byte address 0x4 - core index']
  #allocation1 [shape = 'u32[72,128]{1,0:T(1,128)}', space=vmem, size = 0x9000, scoped, tag = 'internal scratch']
  #allocation2 [shape = 'bf16[372,128]{1,0:T(8,128)(2,1)}', space=vmem, size = 0x17800, scoped, tag = 'scratch operand']
  #allocation3 [shape = 'bf16[372,128]{1,0:T(8,128)(2,1)}', space=vmem, size = 0x17800, scoped, tag = 'scratch operand']
  %s0 = inlined_call_operand.vmem [shape: f32[2,324,128], index: 0, kind: input, shape index: {}]
  %s1 = inlined_call_operand.vmem [shape: bf16[9,128,128], index: 1, kind: input, shape index: {}]
  %s2 = inlined_call_operand.vmem [shape: bf16[9,128,128], index: 2, kind: input, shape index: {}]
  %s3 = inlined_call_operand.vmem [shape: f32[1,128], index: 3, kind: input, shape index: {}]
  %s4 = inlined_call_operand.vmem [shape: f32[1,128], index: 4, kind: input, shape index: {}]
  %s5 = inlined_call_operand.vmem [shape: f32[1,128], index: 5, kind: input, shape index: {}]
  %s6 = inlined_call_operand.vmem [shape: f32[1,128], index: 6, kind: input, shape index: {}]
  %s7 = inlined_call_operand.vmem [shape: f32[324,1], index: 7, kind: input, shape index: {}]
  %s8 = inlined_call_operand.vmem [shape: f32[2,324,128], index: 8, kind: output, shape index: {}]
  %s9 = sld [smem:[#allocation0]]
  $region65: #{tpu_custom_call.1} parent=0
    _
  %s11 = ssub.s32 1, %s9
  %s12 = scalar_select 0, %s11, %s9
  loop: start=0, step=1, limit=4
  $region2: #{tpu_custom_call.1} parent=0 // loop_pre_header
    _
  $region3: #{tpu_custom_call.1} parent=0 // loop_header
    %s14 = sphi 0, %s18
    %p15 = scmp.ge.s32.totalorder %s14, 4
    %s24 = sphi 0, %s26
    %s27 = sphi 0, %s24
    %s28 = sphi 0, %s27
    %s44 = sphi 0, %s28
    %s48 = sphi 0, %s48
    %s50 = sphi 0, %s48
    %s51 = sphi 0, %s50
    %s65 = sphi 0, %s51
    %s69 = sphi 0, %s69
    %s71 = sphi 0, %s69
    %s72 = sphi 0, %s71
    %s86 = sphi 0, %s72
    %s90 = sphi 0, %s90
    %s92 = sphi 0, %s90
    %s93 = sphi 0, %s92
    %s107 = sphi 0, %s93
    %s111 = sphi 0, %s111
    %s113 = sphi 0, %s111
    %s114 = sphi 0, %s113
    %s128 = sphi 0, %s114
    %s132 = sphi 0, %s132
    %s134 = sphi 0, %s132
    %s135 = sphi 0, %s134
    %s149 = sphi 0, %s135
    %s153 = sphi 0, %s153
    %s155 = sphi 0, %s153
    %s156 = sphi 0, %s155
    %s170 = sphi 0, %s156
    %s174 = sphi 0, %s174
    %s176 = sphi 0, %s174
    %s177 = sphi 0, %s176
    %s191 = sphi 0, %s177
    %s197 = sphi 0, %s199
    %s200 = sphi 0, %s197
    %s201 = sphi 0, %s200
    %s217 = sphi 0, %s201
  $region4: #{tpu_custom_call.1} parent=0 // loop_header_branch
    %17 = sbr.rel (%p15) target = $region8
  $region5: #{tpu_custom_call.1} parent=0 // loop_body
    %s19 = ssub.s32 %s14, 1
    %s20 = ssub.s32 %s14, 2
    %s21 = sadd.s32 %s14, 1
    %s22 = ssub.s32 %s14, %s21
    %p23 = scmp.eq.s32.totalorder %s22, 0
    %s25 = sadd.s32 %s24, 1
    %s26 = scalar_select %p23, %s24, %s25
    %p29 = pneg %p23
    %p30 = scmp.eq.s32.totalorder %s14, 1
    %p31 = por %p29, %p30
    %p32 = scmp.ne.s32.totalorder %s24, %s27
    %p33 = scmp.eq.s32.totalorder %s14, 0
    %p34 = por %p32, %p33
    %p35 = scmp.ne.s32.totalorder %s24, %s27
    %p36 = scmp.eq.s32.totalorder %s19, 1
    %p37 = por %p35, %p36
    %p38 = scmp.ne.s32.totalorder %s27, %s28
    %p39 = scmp.eq.s32.totalorder %s19, 0
    %p40 = por %p38, %p39
    %p41 = scmp.ne.s32.totalorder %s27, %s28
    %p42 = scmp.eq.s32.totalorder %s20, 1
    %p43 = por %p41, %p42
    %p45 = scmp.ne.s32.totalorder %s28, %s44
    %p46 = scmp.eq.s32.totalorder %s20, 0
    %p47 = por %p45, %p46
    %s49 = sadd.s32 %s48, 1
    %p52 = scmp.eq.s32.totalorder %s14, 1
    %p53 = scmp.ne.s32.totalorder %s48, %s50
    %p54 = scmp.eq.s32.totalorder %s14, 0
    %p55 = por %p53, %p54
    %p56 = scmp.ne.s32.totalorder %s48, %s50
    %p57 = scmp.eq.s32.totalorder %s19, 1
    %p58 = por %p56, %p57
    %p59 = scmp.ne.s32.totalorder %s50, %s51
    %p60 = scmp.eq.s32.totalorder %s19, 0
    %p61 = por %p59, %p60
    %p62 = scmp.ne.s32.totalorder %s50, %s51
    %p63 = scmp.eq.s32.totalorder %s20, 1
    %p64 = por %p62, %p63
    %p66 = scmp.ne.s32.totalorder %s51, %s65
    %p67 = scmp.eq.s32.totalorder %s20, 0
    %p68 = por %p66, %p67
    %s70 = sadd.s32 %s69, 1
    %p73 = scmp.eq.s32.totalorder %s14, 1
    %p74 = scmp.ne.s32.totalorder %s69, %s71
    %p75 = scmp.eq.s32.totalorder %s14, 0
    %p76 = por %p74, %p75
    %p77 = scmp.ne.s32.totalorder %s69, %s71
    %p78 = scmp.eq.s32.totalorder %s19, 1
    %p79 = por %p77, %p78
    %p80 = scmp.ne.s32.totalorder %s71, %s72
    %p81 = scmp.eq.s32.totalorder %s19, 0
    %p82 = por %p80, %p81
    %p83 = scmp.ne.s32.totalorder %s71, %s72
    %p84 = scmp.eq.s32.totalorder %s20, 1
    %p85 = por %p83, %p84
    %p87 = scmp.ne.s32.totalorder %s72, %s86
    %p88 = scmp.eq.s32.totalorder %s20, 0
    %p89 = por %p87, %p88
    %s91 = sadd.s32 %s90, 1
    %p94 = scmp.eq.s32.totalorder %s14, 1
    %p95 = scmp.ne.s32.totalorder %s90, %s92
    %p96 = scmp.eq.s32.totalorder %s14, 0
    %p97 = por %p95, %p96
    %p98 = scmp.ne.s32.totalorder %s90, %s92
    %p99 = scmp.eq.s32.totalorder %s19, 1
    %p100 = por %p98, %p99
    %p101 = scmp.ne.s32.totalorder %s92, %s93
    %p102 = scmp.eq.s32.totalorder %s19, 0
    %p103 = por %p101, %p102
    %p104 = scmp.ne.s32.totalorder %s92, %s93
    %p105 = scmp.eq.s32.totalorder %s20, 1
    %p106 = por %p104, %p105
    %p108 = scmp.ne.s32.totalorder %s93, %s107
    %p109 = scmp.eq.s32.totalorder %s20, 0
    %p110 = por %p108, %p109
    %s112 = sadd.s32 %s111, 1
    %p115 = scmp.eq.s32.totalorder %s14, 1
    %p116 = scmp.ne.s32.totalorder %s111, %s113
    %p117 = scmp.eq.s32.totalorder %s14, 0
    %p118 = por %p116, %p117
    %p119 = scmp.ne.s32.totalorder %s111, %s113
    %p120 = scmp.eq.s32.totalorder %s19, 1
    %p121 = por %p119, %p120
    %p122 = scmp.ne.s32.totalorder %s113, %s114
    %p123 = scmp.eq.s32.totalorder %s19, 0
    %p124 = por %p122, %p123
    %p125 = scmp.ne.s32.totalorder %s113, %s114
    %p126 = scmp.eq.s32.totalorder %s20, 1
    %p127 = por %p125, %p126
    %p129 = scmp.ne.s32.totalorder %s114, %s128
    %p130 = scmp.eq.s32.totalorder %s20, 0
    %p131 = por %p129, %p130
    %s133 = sadd.s32 %s132, 1
    %p136 = scmp.eq.s32.totalorder %s14, 1
    %p137 = scmp.ne.s32.totalorder %s132, %s134
    %p138 = scmp.eq.s32.totalorder %s14, 0
    %p139 = por %p137, %p138
    %p140 = scmp.ne.s32.totalorder %s132, %s134
    %p141 = scmp.eq.s32.totalorder %s19, 1
    %p142 = por %p140, %p141
    %p143 = scmp.ne.s32.totalorder %s134, %s135
    %p144 = scmp.eq.s32.totalorder %s19, 0
    %p145 = por %p143, %p144
    %p146 = scmp.ne.s32.totalorder %s134, %s135
    %p147 = scmp.eq.s32.totalorder %s20, 1
    %p148 = por %p146, %p147
    %p150 = scmp.ne.s32.totalorder %s135, %s149
    %p151 = scmp.eq.s32.totalorder %s20, 0
    %p152 = por %p150, %p151
    %s154 = sadd.s32 %s153, 1
    %p157 = scmp.eq.s32.totalorder %s14, 1
    %p158 = scmp.ne.s32.totalorder %s153, %s155
    %p159 = scmp.eq.s32.totalorder %s14, 0
    %p160 = por %p158, %p159
    %p161 = scmp.ne.s32.totalorder %s153, %s155
    %p162 = scmp.eq.s32.totalorder %s19, 1
    %p163 = por %p161, %p162
    %p164 = scmp.ne.s32.totalorder %s155, %s156
    %p165 = scmp.eq.s32.totalorder %s19, 0
    %p166 = por %p164, %p165
    %p167 = scmp.ne.s32.totalorder %s155, %s156
    %p168 = scmp.eq.s32.totalorder %s20, 1
    %p169 = por %p167, %p168
    %p171 = scmp.ne.s32.totalorder %s156, %s170
    %p172 = scmp.eq.s32.totalorder %s20, 0
    %p173 = por %p171, %p172
    %s175 = sadd.s32 %s174, 1
    %p178 = scmp.eq.s32.totalorder %s14, 1
    %p179 = scmp.ne.s32.totalorder %s174, %s176
    %p180 = scmp.eq.s32.totalorder %s14, 0
    %p181 = por %p179, %p180
    %p182 = scmp.ne.s32.totalorder %s174, %s176
    %p183 = scmp.eq.s32.totalorder %s19, 1
    %p184 = por %p182, %p183
    %p185 = scmp.ne.s32.totalorder %s176, %s177
    %p186 = scmp.eq.s32.totalorder %s19, 0
    %p187 = por %p185, %p186
    %p188 = scmp.ne.s32.totalorder %s176, %s177
    %p189 = scmp.eq.s32.totalorder %s20, 1
    %p190 = por %p188, %p189
    %p192 = scmp.ne.s32.totalorder %s177, %s191
    %p193 = scmp.eq.s32.totalorder %s20, 0
    %p194 = por %p192, %p193
    %s195 = ssub.s32 %s14, %s21
    %p196 = scmp.eq.s32.totalorder %s195, 0
    %s198 = sadd.s32 %s197, 1
    %s199 = scalar_select %p196, %s197, %s198
    %p202 = pneg %p196
    %p203 = scmp.eq.s32.totalorder %s14, 1
    %p204 = por %p202, %p203
    %p205 = scmp.ne.s32.totalorder %s197, %s200
    %p206 = scmp.eq.s32.totalorder %s14, 0
    %p207 = por %p205, %p206
    %p208 = scmp.ne.s32.totalorder %s197, %s200
    %p209 = scmp.eq.s32.totalorder %s19, 1
    %p210 = por %p208, %p209
    %p211 = scmp.ne.s32.totalorder %s200, %s201
    %p212 = scmp.eq.s32.totalorder %s19, 0
    %p213 = por %p211, %p212
    %p214 = scmp.ne.s32.totalorder %s200, %s201
    %p215 = scmp.eq.s32.totalorder %s20, 1
    %p216 = por %p214, %p215
    %p218 = scmp.ne.s32.totalorder %s201, %s217
    %p219 = scmp.eq.s32.totalorder %s20, 0
    %p220 = por %p218, %p219
    %p221 = scmp.le.s32.totalorder 1, %s14
    %p222 = scmp.lt.s32.totalorder %s14, 3
    %p223 = pnand %p221, %p222
    %p224 = pneg %p223
    // Predicated region
    $region9: #{tpu_custom_call.1} parent=5 // pred_check
      _
    $region10: #{tpu_custom_call.1} parent=5 // pred_check_branch
      %226 = sbr.rel (%p223) target = $region12
    $region11: #{tpu_custom_call.1} parent=5 // pred_region
      %s227 = ssub.s32 %s14, 1
      // Predicated region
      $region13: #{tpu_custom_call.1} parent=11 // pred_check
        %p228 = pneg %p61
      $region14: #{tpu_custom_call.1} parent=11 // pred_check_branch
        %230 = sbr.rel (%p228) target = $region16
      $region15: #{tpu_custom_call.1} parent=11 // pred_region
        _
      $region16: #{tpu_custom_call.1} parent=11 // pred_fallthru
        _
      // Predicated region
      $region17: #{tpu_custom_call.1} parent=11 // pred_check
        %p231 = pneg %p82
      $region18: #{tpu_custom_call.1} parent=11 // pred_check_branch
        %233 = sbr.rel (%p231) target = $region20
      $region19: #{tpu_custom_call.1} parent=11 // pred_region
        _
      $region20: #{tpu_custom_call.1} parent=11 // pred_fallthru
        _
      // Predicated region
      $region21: #{tpu_custom_call.1} parent=11 // pred_check
        %p234 = pneg %p103
      $region22: #{tpu_custom_call.1} parent=11 // pred_check_branch
        %236 = sbr.rel (%p234) target = $region24
      $region23: #{tpu_custom_call.1} parent=11 // pred_region
        _
      $region24: #{tpu_custom_call.1} parent=11 // pred_fallthru
        _
      // Predicated region
      $region25: #{tpu_custom_call.1} parent=11 // pred_check
        %p237 = pneg %p124
      $region26: #{tpu_custom_call.1} parent=11 // pred_check_branch
        %239 = sbr.rel (%p237) target = $region28
      $region27: #{tpu_custom_call.1} parent=11 // pred_region
        _
      $region28: #{tpu_custom_call.1} parent=11 // pred_fallthru
        _
      // Predicated region
      $region29: #{tpu_custom_call.1} parent=11 // pred_check
        %p240 = pneg %p145
      $region30: #{tpu_custom_call.1} parent=11 // pred_check_branch
        %242 = sbr.rel (%p240) target = $region32
      $region31: #{tpu_custom_call.1} parent=11 // pred_region
        _
      $region32: #{tpu_custom_call.1} parent=11 // pred_fallthru
        _
      // Predicated region
      $region33: #{tpu_custom_call.1} parent=11 // pred_check
        %p243 = pneg %p166
      $region34: #{tpu_custom_call.1} parent=11 // pred_check_branch
        %245 = sbr.rel (%p243) target = $region36
      $region35: #{tpu_custom_call.1} parent=11 // pred_region
        _
      $region36: #{tpu_custom_call.1} parent=11 // pred_fallthru
        _
      // Predicated region
      $region37: #{tpu_custom_call.1} parent=11 // pred_check
        %p246 = pneg %p187
      $region38: #{tpu_custom_call.1} parent=11 // pred_check_branch
        %248 = sbr.rel (%p246) target = $region40
      $region39: #{tpu_custom_call.1} parent=11 // pred_region
        _
      $region40: #{tpu_custom_call.1} parent=11 // pred_fallthru
        _
    $region12: #{tpu_custom_call.1} parent=5 // pred_fallthru
      _
    %p249 = scmp.lt.s32.totalorder %s14, 2
    // Predicated region
    $region41: #{tpu_custom_call.1} parent=5 // pred_check
      %p250 = pneg %p249
    $region42: #{tpu_custom_call.1} parent=5 // pred_check_branch
      %252 = sbr.rel (%p250) target = $region44
    $region43: #{tpu_custom_call.1} parent=5 // pred_region
      // Predicated region
      $region45: #{tpu_custom_call.1} parent=43 // pred_check
        %p253 = pneg %p34
      $region46: #{tpu_custom_call.1} parent=43 // pred_check_branch
        %255 = sbr.rel (%p253) target = $region48
      $region47: #{tpu_custom_call.1} parent=43 // pred_region
        %p256 = scmp.lt.s32.totalorder %s14, 1
        %s257 = scalar_select %p256, %s14, 1
        %s258 = smul.addr %s257, 41
        %s259 = smul.addr %s258, 8
        %s260 = scalar_lea.vmem %s0, %s259
      $region48: #{tpu_custom_call.1} parent=43 // pred_fallthru
        _
    $region44: #{tpu_custom_call.1} parent=5 // pred_fallthru
      _
    %p261 = scmp.le.s32.totalorder 1, %s14
    %p262 = scmp.lt.s32.totalorder %s14, 3
    %p263 = pnand %p261, %p262
    %p264 = pneg %p263
    // Predicated region
    $region49: #{tpu_custom_call.1} parent=5 // pred_check
      _
    $region50: #{tpu_custom_call.1} parent=5 // pred_check_branch
      %266 = sbr.rel (%p263) target = $region52
    $region51: #{tpu_custom_call.1} parent=5 // pred_region
      %s267 = ssub.s32 %s14, 1
      %p268 = scmp.lt.s32.totalorder %s19, 1
      %s269 = scalar_select %p268, %s19, 1
      %s270 = smul.addr %s269, 41
      %s271 = smul.addr %s270, 8
      %s272 = scalar_lea.vmem %s0, %s271
      %p273 = pneg %p40
      %p274 = pneg %p37
      %p275 = pneg %p61
      %p276 = pneg %p58
      %p277 = pneg %p82
      %p278 = pneg %p79
      %p279 = pneg %p103
      %p280 = pneg %p100
      %p281 = pneg %p124
      %p282 = pneg %p121
      %p283 = pneg %p145
      %p284 = pneg %p142
      %p285 = pneg %p166
      %p286 = pneg %p163
      %p287 = pneg %p187
      %p288 = pneg %p184
      %p289 = pneg %p213
      %p290 = pneg %p210
      %p291 = scmp.lt.s32.totalorder %s19, 1
      %s292 = scalar_select %p291, %s19, 1
      %s293 = smul.addr %s292, 41
      %s294 = smul.addr %s293, 8
      %s295 = scalar_lea.vmem %s8, %s294
      %p296 = scmp.lt.s32.totalorder %s19, 1
      %s297 = scalar_select %p296, %s19, 1
      %s298 = smul.addr %s297, 41
      %s299 = smul.addr %s298, 8
      %s300 = scalar_lea.vmem %s0, %s299
      %p301 = scmp.lt.s32.totalorder %s19, 1
      %s302 = scalar_select %p301, %s19, 1
      %s303 = smul.addr %s302, 41
      %s304 = smul.addr %s303, 8
      %s305 = scalar_lea.vmem %s8, %s304
      %307 = vst [vmem:[#allocation2] sm:$0xf] 0
      %308 = vst [vmem:[#allocation2 + $0x4] sm:$0xf] 0
      %309 = vst [vmem:[#allocation2 + $0x8] sm:$0xf] 0
      %310 = vst [vmem:[#allocation2 + $0xac] sm:$0xc] 0
      %311 = vst [vmem:[#allocation2 + $0xb0] sm:$0xf] 0
      %312 = vst [vmem:[#allocation2 + $0xb4] sm:$0xf] 0
      %313 = vst [vmem:[#allocation2 + $0xb8] sm:$0x3] 0
      %314 = vst [vmem:[#allocation3] sm:$0xf] 0
      %315 = vst [vmem:[#allocation3 + $0x4] sm:$0xf] 0
      %316 = vst [vmem:[#allocation3 + $0x8] sm:$0xf] 0
      %317 = vst [vmem:[#allocation3 + $0xac] sm:$0xc] 0
      %318 = vst [vmem:[#allocation3 + $0xb0] sm:$0xf] 0
      %319 = vst [vmem:[#allocation3 + $0xb4] sm:$0xf] 0
      %320 = vst [vmem:[#allocation3 + $0xb8] sm:$0x3] 0
      %v321 = vld [vmem:[%s300] sm:$0xff]
      %v322 = vld [vmem:[%s300 + $0x8] sm:$0xff]
      %v323 = vld [vmem:[%s300 + $0x10] sm:$0xff]
      %v324 = vld [vmem:[%s300 + $0x18] sm:$0xff]
      %v325 = vld [vmem:[%s300 + $0x20] sm:$0xff]
      %v326 = vld [vmem:[%s300 + $0x28] sm:$0xff]
      %v327 = vld [vmem:[%s300 + $0x30] sm:$0xff]
      %v328 = vld [vmem:[%s300 + $0x38] sm:$0xff]
      %v329 = vld [vmem:[%s300 + $0x40] sm:$0xff]
      %v330 = vld [vmem:[%s300 + $0x48] sm:$0xff]
      %v331 = vld [vmem:[%s300 + $0x50] sm:$0xff]
      %v332 = vld [vmem:[%s300 + $0x58] sm:$0xff]
      %v333 = vld [vmem:[%s300 + $0x60] sm:$0xff]
      %v334 = vld [vmem:[%s300 + $0x68] sm:$0xff]
      %v335 = vld [vmem:[%s300 + $0x70] sm:$0xff]
      %v336 = vld [vmem:[%s300 + $0x78] sm:$0xff]
      %v337 = vld [vmem:[%s300 + $0x80] sm:$0xff]
      %v338 = vld [vmem:[%s300 + $0x88] sm:$0xff]
      %v339 = vld [vmem:[%s300 + $0x90] sm:$0xff]
      %v340 = vld [vmem:[%s300 + $0x98] sm:$0xff]
      %v341 = vld [vmem:[%s300 + $0xa0] sm:$0xff]
      %v342 = vld [vmem:[%s300 + $0xa8] sm:$0xff]
      %v343 = vld [vmem:[%s300 + $0xb0] sm:$0xff]
      %v344 = vld [vmem:[%s300 + $0xb8] sm:$0xff]
      %v345 = vld [vmem:[%s300 + $0xc0] sm:$0xff]
      %v346 = vld [vmem:[%s300 + $0xc8] sm:$0xff]
      %v347 = vld [vmem:[%s300 + $0xd0] sm:$0xff]
      %v348 = vld [vmem:[%s300 + $0xd8] sm:$0xff]
      %v349 = vld [vmem:[%s300 + $0xe0] sm:$0xff]
      %v350 = vld [vmem:[%s300 + $0xe8] sm:$0xff]
      %v351 = vld [vmem:[%s300 + $0xf0] sm:$0xff]
      %v352 = vld [vmem:[%s300 + $0xf8] sm:$0xff]
      %v353 = vld [vmem:[%s300 + $0x100] sm:$0xff]
      %v354 = vld [vmem:[%s300 + $0x108] sm:$0xff]
      %v355 = vld [vmem:[%s300 + $0x110] sm:$0xff]
      %v356 = vld [vmem:[%s300 + $0x118] sm:$0xff]
      %v357 = vld [vmem:[%s300 + $0x120] sm:$0xff]
      %v358 = vld [vmem:[%s300 + $0x128] sm:$0xff]
      %v359 = vld [vmem:[%s300 + $0x130] sm:$0xff]
      %v360 = vld [vmem:[%s300 + $0x138] sm:$0xff]
      %v361 = vld [vmem:[%s300 + $0x140] sm:$0xf]
      %v362 = vld [vmem:[%s3] sm:$0x1]
      %v364 = vperm.slane %v362, 0
      %v366 = vmul.f32 %v321, %v364
      %v367 = vmul.f32 %v322, %v364
      %v368 = vmul.f32 %v323, %v364
      %v369 = vmul.f32 %v324, %v364
      %v370 = vmul.f32 %v325, %v364
      %v371 = vmul.f32 %v326, %v364
      %v372 = vmul.f32 %v327, %v364
      %v373 = vmul.f32 %v328, %v364
      %v374 = vmul.f32 %v329, %v364
      %v375 = vmul.f32 %v330, %v364
      %v376 = vmul.f32 %v331, %v364
      %v377 = vmul.f32 %v332, %v364
      %v378 = vmul.f32 %v333, %v364
      %v379 = vmul.f32 %v334, %v364
      %v380 = vmul.f32 %v335, %v364
      %v381 = vmul.f32 %v336, %v364
      %v382 = vmul.f32 %v337, %v364
      %v383 = vmul.f32 %v338, %v364
      %v384 = vmul.f32 %v339, %v364
      %v385 = vmul.f32 %v340, %v364
      %v386 = vmul.f32 %v341, %v364
      %v387 = vmul.f32 %v342, %v364
      %v388 = vmul.f32 %v343, %v364
      %v389 = vmul.f32 %v344, %v364
      %v390 = vmul.f32 %v345, %v364
      %v391 = vmul.f32 %v346, %v364
      %v392 = vmul.f32 %v347, %v364
      %v393 = vmul.f32 %v348, %v364
      %v394 = vmul.f32 %v349, %v364
      %v395 = vmul.f32 %v350, %v364
      %v396 = vmul.f32 %v351, %v364
      %v397 = vmul.f32 %v352, %v364
      %v398 = vmul.f32 %v353, %v364
      %v399 = vmul.f32 %v354, %v364
      %v400 = vmul.f32 %v355, %v364
      %v401 = vmul.f32 %v356, %v364
      %v402 = vmul.f32 %v357, %v364
      %v403 = vmul.f32 %v358, %v364
      %v404 = vmul.f32 %v359, %v364
      %v405 = vmul.f32 %v360, %v364
      %v406 = vmul.f32 %v361, %v364
      %v407 = vld [vmem:[%s4] sm:$0x1]
      %v409 = vperm.slane %v407, 0
      %v411 = vadd.f32 %v366, %v409
      %v412 = vadd.f32 %v367, %v409
      %v413 = vadd.f32 %v368, %v409
      %v414 = vadd.f32 %v369, %v409
      %v415 = vadd.f32 %v370, %v409
      %v416 = vadd.f32 %v371, %v409
      %v417 = vadd.f32 %v372, %v409
      %v418 = vadd.f32 %v373, %v409
      %v419 = vadd.f32 %v374, %v409
      %v420 = vadd.f32 %v375, %v409
      %v421 = vadd.f32 %v376, %v409
      %v422 = vadd.f32 %v377, %v409
      %v423 = vadd.f32 %v378, %v409
      %v424 = vadd.f32 %v379, %v409
      %v425 = vadd.f32 %v380, %v409
      %v426 = vadd.f32 %v381, %v409
      %v427 = vadd.f32 %v382, %v409
      %v428 = vadd.f32 %v383, %v409
      %v429 = vadd.f32 %v384, %v409
      %v430 = vadd.f32 %v385, %v409
      %v431 = vadd.f32 %v386, %v409
      %v432 = vadd.f32 %v387, %v409
      %v433 = vadd.f32 %v388, %v409
      %v434 = vadd.f32 %v389, %v409
      %v435 = vadd.f32 %v390, %v409
      %v436 = vadd.f32 %v391, %v409
      %v437 = vadd.f32 %v392, %v409
      %v438 = vadd.f32 %v393, %v409
      %v439 = vadd.f32 %v394, %v409
      %v440 = vadd.f32 %v395, %v409
      %v441 = vadd.f32 %v396, %v409
      %v442 = vadd.f32 %v397, %v409
      %v443 = vadd.f32 %v398, %v409
      %v444 = vadd.f32 %v399, %v409
      %v445 = vadd.f32 %v400, %v409
      %v446 = vadd.f32 %v401, %v409
      %v447 = vadd.f32 %v402, %v409
      %v448 = vadd.f32 %v403, %v409
      %v449 = vadd.f32 %v404, %v409
      %v450 = vadd.f32 %v405, %v409
      %v451 = vadd.f32 %v406, %v409
      %v452 = vmul.f32 %v411, 0.1
      %v453 = vmul.f32 %v412, 0.1
      %v454 = vmul.f32 %v413, 0.1
      %v455 = vmul.f32 %v414, 0.1
      %v456 = vmul.f32 %v415, 0.1
      %v457 = vmul.f32 %v416, 0.1
      %v458 = vmul.f32 %v417, 0.1
      %v459 = vmul.f32 %v418, 0.1
      %v460 = vmul.f32 %v419, 0.1
      %v461 = vmul.f32 %v420, 0.1
      %v462 = vmul.f32 %v421, 0.1
      %v463 = vmul.f32 %v422, 0.1
      %v464 = vmul.f32 %v423, 0.1
      %v465 = vmul.f32 %v424, 0.1
      %v466 = vmul.f32 %v425, 0.1
      %v467 = vmul.f32 %v426, 0.1
      %v468 = vmul.f32 %v427, 0.1
      %v469 = vmul.f32 %v428, 0.1
      %v470 = vmul.f32 %v429, 0.1
      %v471 = vmul.f32 %v430, 0.1
      %v472 = vmul.f32 %v431, 0.1
      %v473 = vmul.f32 %v432, 0.1
      %v474 = vmul.f32 %v433, 0.1
      %v475 = vmul.f32 %v434, 0.1
      %v476 = vmul.f32 %v435, 0.1
      %v477 = vmul.f32 %v436, 0.1
      %v478 = vmul.f32 %v437, 0.1
      %v479 = vmul.f32 %v438, 0.1
      %v480 = vmul.f32 %v439, 0.1
      %v481 = vmul.f32 %v440, 0.1
      %v482 = vmul.f32 %v441, 0.1
      %v483 = vmul.f32 %v442, 0.1
      %v484 = vmul.f32 %v443, 0.1
      %v485 = vmul.f32 %v444, 0.1
      %v486 = vmul.f32 %v445, 0.1
      %v487 = vmul.f32 %v446, 0.1
      %v488 = vmul.f32 %v447, 0.1
      %v489 = vmul.f32 %v448, 0.1
      %v490 = vmul.f32 %v449, 0.1
      %v491 = vmul.f32 %v450, 0.1
      %v492 = vmul.f32 %v451, 0.1
      %v493 = vmax.f32 %v411, %v452
      %v494 = vmax.f32 %v412, %v453
      %v495 = vmax.f32 %v413, %v454
      %v496 = vmax.f32 %v414, %v455
      %v497 = vmax.f32 %v415, %v456
      %v498 = vmax.f32 %v416, %v457
      %v499 = vmax.f32 %v417, %v458
      %v500 = vmax.f32 %v418, %v459
      %v501 = vmax.f32 %v419, %v460
      %v502 = vmax.f32 %v420, %v461
      %v503 = vmax.f32 %v421, %v462
      %v504 = vmax.f32 %v422, %v463
      %v505 = vmax.f32 %v423, %v464
      %v506 = vmax.f32 %v424, %v465
      %v507 = vmax.f32 %v425, %v466
      %v508 = vmax.f32 %v426, %v467
      %v509 = vmax.f32 %v427, %v468
      %v510 = vmax.f32 %v428, %v469
      %v511 = vmax.f32 %v429, %v470
      %v512 = vmax.f32 %v430, %v471
      %v513 = vmax.f32 %v431, %v472
      %v514 = vmax.f32 %v432, %v473
      %v515 = vmax.f32 %v433, %v474
      %v516 = vmax.f32 %v434, %v475
      %v517 = vmax.f32 %v435, %v476
      %v518 = vmax.f32 %v436, %v477
      %v519 = vmax.f32 %v437, %v478
      %v520 = vmax.f32 %v438, %v479
      %v521 = vmax.f32 %v439, %v480
      %v522 = vmax.f32 %v440, %v481
      %v523 = vmax.f32 %v441, %v482
      %v524 = vmax.f32 %v442, %v483
      %v525 = vmax.f32 %v443, %v484
      %v526 = vmax.f32 %v444, %v485
      %v527 = vmax.f32 %v445, %v486
      %v528 = vmax.f32 %v446, %v487
      %v529 = vmax.f32 %v447, %v488
      %v530 = vmax.f32 %v448, %v489
      %v531 = vmax.f32 %v449, %v490
      %v532 = vmax.f32 %v450, %v491
      %v533 = vmax.f32 %v451, %v492
      %v534 = vld [vmem:[%s7] sm:$0xff]
      %v535 = vld [vmem:[%s7 + $0x8] sm:$0xff]
      %v536 = vld [vmem:[%s7 + $0x10] sm:$0xff]
      %v537 = vld [vmem:[%s7 + $0x18] sm:$0xff]
      %v538 = vld [vmem:[%s7 + $0x20] sm:$0xff]
      %v539 = vld [vmem:[%s7 + $0x28] sm:$0xff]
      %v540 = vld [vmem:[%s7 + $0x30] sm:$0xff]
      %v541 = vld [vmem:[%s7 + $0x38] sm:$0xff]
      %v542 = vld [vmem:[%s7 + $0x40] sm:$0xff]
      %v543 = vld [vmem:[%s7 + $0x48] sm:$0xff]
      %v544 = vld [vmem:[%s7 + $0x50] sm:$0xff]
      %v545 = vld [vmem:[%s7 + $0x58] sm:$0xff]
      %v546 = vld [vmem:[%s7 + $0x60] sm:$0xff]
      %v547 = vld [vmem:[%s7 + $0x68] sm:$0xff]
      %v548 = vld [vmem:[%s7 + $0x70] sm:$0xff]
      %v549 = vld [vmem:[%s7 + $0x78] sm:$0xff]
      %v550 = vld [vmem:[%s7 + $0x80] sm:$0xff]
      %v551 = vld [vmem:[%s7 + $0x88] sm:$0xff]
      %v552 = vld [vmem:[%s7 + $0x90] sm:$0xff]
      %v553 = vld [vmem:[%s7 + $0x98] sm:$0xff]
      %v554 = vld [vmem:[%s7 + $0xa0] sm:$0xff]
      %v555 = vld [vmem:[%s7 + $0xa8] sm:$0xff]
      %v556 = vld [vmem:[%s7 + $0xb0] sm:$0xff]
      %v557 = vld [vmem:[%s7 + $0xb8] sm:$0xff]
      %v558 = vld [vmem:[%s7 + $0xc0] sm:$0xff]
      %v559 = vld [vmem:[%s7 + $0xc8] sm:$0xff]
      %v560 = vld [vmem:[%s7 + $0xd0] sm:$0xff]
      %v561 = vld [vmem:[%s7 + $0xd8] sm:$0xff]
      %v562 = vld [vmem:[%s7 + $0xe0] sm:$0xff]
      %v563 = vld [vmem:[%s7 + $0xe8] sm:$0xff]
      %v564 = vld [vmem:[%s7 + $0xf0] sm:$0xff]
      %v565 = vld [vmem:[%s7 + $0xf8] sm:$0xff]
      %v566 = vld [vmem:[%s7 + $0x100] sm:$0xff]
      %v567 = vld [vmem:[%s7 + $0x108] sm:$0xff]
      %v568 = vld [vmem:[%s7 + $0x110] sm:$0xff]
      %v569 = vld [vmem:[%s7 + $0x118] sm:$0xff]
      %v570 = vld [vmem:[%s7 + $0x120] sm:$0xff]
      %v571 = vld [vmem:[%s7 + $0x128] sm:$0xff]
      %v572 = vld [vmem:[%s7 + $0x130] sm:$0xff]
      %v573 = vld [vmem:[%s7 + $0x138] sm:$0xff]
      %v574 = vld [vmem:[%s7 + $0x140] sm:$0xf]
      %576 = vset.pattern.permute.xlu0 0
      %577 = vperm.xlu0 %576, %v534
      %v578 = vpop.permute.xlu0 %577
      %581 = vset.pattern.permute.xlu0 0
      %582 = vperm.xlu0 %581, %v535
      %v583 = vpop.permute.xlu0 %582
      %586 = vset.pattern.permute.xlu0 0
      %587 = vperm.xlu0 %586, %v536
      %v588 = vpop.permute.xlu0 %587
      %591 = vset.pattern.permute.xlu0 0
      %592 = vperm.xlu0 %591, %v537
      %v593 = vpop.permute.xlu0 %592
      %596 = vset.pattern.permute.xlu0 0
      %597 = vperm.xlu0 %596, %v538
      %v598 = vpop.permute.xlu0 %597
      %601 = vset.pattern.permute.xlu0 0
      %602 = vperm.xlu0 %601, %v539
      %v603 = vpop.permute.xlu0 %602
      %606 = vset.pattern.permute.xlu0 0
      %607 = vperm.xlu0 %606, %v540
      %v608 = vpop.permute.xlu0 %607
      %611 = vset.pattern.permute.xlu0 0
      %612 = vperm.xlu0 %611, %v541
      %v613 = vpop.permute.xlu0 %612
      %616 = vset.pattern.permute.xlu0 0
      %617 = vperm.xlu0 %616, %v542
      %v618 = vpop.permute.xlu0 %617
      %621 = vset.pattern.permute.xlu0 0
      %622 = vperm.xlu0 %621, %v543
      %v623 = vpop.permute.xlu0 %622
      %626 = vset.pattern.permute.xlu0 0
      %627 = vperm.xlu0 %626, %v544
      %v628 = vpop.permute.xlu0 %627
      %631 = vset.pattern.permute.xlu0 0
      %632 = vperm.xlu0 %631, %v545
      %v633 = vpop.permute.xlu0 %632
      %636 = vset.pattern.permute.xlu0 0
      %637 = vperm.xlu0 %636, %v546
      %v638 = vpop.permute.xlu0 %637
      %641 = vset.pattern.permute.xlu0 0
      %642 = vperm.xlu0 %641, %v547
      %v643 = vpop.permute.xlu0 %642
      %646 = vset.pattern.permute.xlu0 0
      %647 = vperm.xlu0 %646, %v548
      %v648 = vpop.permute.xlu0 %647
      %651 = vset.pattern.permute.xlu0 0
      %652 = vperm.xlu0 %651, %v549
      %v653 = vpop.permute.xlu0 %652
      %656 = vset.pattern.permute.xlu0 0
      %657 = vperm.xlu0 %656, %v550
      %v658 = vpop.permute.xlu0 %657
      %661 = vset.pattern.permute.xlu0 0
      %662 = vperm.xlu0 %661, %v551
      %v663 = vpop.permute.xlu0 %662
      %666 = vset.pattern.permute.xlu0 0
      %667 = vperm.xlu0 %666, %v552
      %v668 = vpop.permute.xlu0 %667
      %671 = vset.pattern.permute.xlu0 0
      %672 = vperm.xlu0 %671, %v553
      %v673 = vpop.permute.xlu0 %672
      %676 = vset.pattern.permute.xlu0 0
      %677 = vperm.xlu0 %676, %v554
      %v678 = vpop.permute.xlu0 %677
      %681 = vset.pattern.permute.xlu0 0
      %682 = vperm.xlu0 %681, %v555
      %v683 = vpop.permute.xlu0 %682
      %686 = vset.pattern.permute.xlu0 0
      %687 = vperm.xlu0 %686, %v556
      %v688 = vpop.permute.xlu0 %687
      %691 = vset.pattern.permute.xlu0 0
      %692 = vperm.xlu0 %691, %v557
      %v693 = vpop.permute.xlu0 %692
      %696 = vset.pattern.permute.xlu0 0
      %697 = vperm.xlu0 %696, %v558
      %v698 = vpop.permute.xlu0 %697
      %701 = vset.pattern.permute.xlu0 0
      %702 = vperm.xlu0 %701, %v559
      %v703 = vpop.permute.xlu0 %702
      %706 = vset.pattern.permute.xlu0 0
      %707 = vperm.xlu0 %706, %v560
      %v708 = vpop.permute.xlu0 %707
      %711 = vset.pattern.permute.xlu0 0
      %712 = vperm.xlu0 %711, %v561
      %v713 = vpop.permute.xlu0 %712
      %716 = vset.pattern.permute.xlu0 0
      %717 = vperm.xlu0 %716, %v562
      %v718 = vpop.permute.xlu0 %717
      %721 = vset.pattern.permute.xlu0 0
      %722 = vperm.xlu0 %721, %v563
      %v723 = vpop.permute.xlu0 %722
      %726 = vset.pattern.permute.xlu0 0
      %727 = vperm.xlu0 %726, %v564
      %v728 = vpop.permute.xlu0 %727
      %731 = vset.pattern.permute.xlu0 0
      %732 = vperm.xlu0 %731, %v565
      %v733 = vpop.permute.xlu0 %732
      %736 = vset.pattern.permute.xlu0 0
      %737 = vperm.xlu0 %736, %v566
      %v738 = vpop.permute.xlu0 %737
      %741 = vset.pattern.permute.xlu0 0
      %742 = vperm.xlu0 %741, %v567
      %v743 = vpop.permute.xlu0 %742
      %746 = vset.pattern.permute.xlu0 0
      %747 = vperm.xlu0 %746, %v568
      %v748 = vpop.permute.xlu0 %747
      %751 = vset.pattern.permute.xlu0 0
      %752 = vperm.xlu0 %751, %v569
      %v753 = vpop.permute.xlu0 %752
      %756 = vset.pattern.permute.xlu0 0
      %757 = vperm.xlu0 %756, %v570
      %v758 = vpop.permute.xlu0 %757
      %761 = vset.pattern.permute.xlu0 0
      %762 = vperm.xlu0 %761, %v571
      %v763 = vpop.permute.xlu0 %762
      %766 = vset.pattern.permute.xlu0 0
      %767 = vperm.xlu0 %766, %v572
      %v768 = vpop.permute.xlu0 %767
      %771 = vset.pattern.permute.xlu0 0
      %772 = vperm.xlu0 %771, %v573
      %v773 = vpop.permute.xlu0 %772
      %776 = vset.pattern.permute.xlu0 0
      %777 = vperm.xlu0 %776, %v574
      %v778 = vpop.permute.xlu0 %777
      %v780 = vmul.f32 %v493, %v578
      %v781 = vmul.f32 %v494, %v583
      %v782 = vmul.f32 %v495, %v588
      %v783 = vmul.f32 %v496, %v593
      %v784 = vmul.f32 %v497, %v598
      %v785 = vmul.f32 %v498, %v603
      %v786 = vmul.f32 %v499, %v608
      %v787 = vmul.f32 %v500, %v613
      %v788 = vmul.f32 %v501, %v618
      %v789 = vmul.f32 %v502, %v623
      %v790 = vmul.f32 %v503, %v628
      %v791 = vmul.f32 %v504, %v633
      %v792 = vmul.f32 %v505, %v638
      %v793 = vmul.f32 %v506, %v643
      %v794 = vmul.f32 %v507, %v648
      %v795 = vmul.f32 %v508, %v653
      %v796 = vmul.f32 %v509, %v658
      %v797 = vmul.f32 %v510, %v663
      %v798 = vmul.f32 %v511, %v668
      %v799 = vmul.f32 %v512, %v673
      %v800 = vmul.f32 %v513, %v678
      %v801 = vmul.f32 %v514, %v683
      %v802 = vmul.f32 %v515, %v688
      %v803 = vmul.f32 %v516, %v693
      %v804 = vmul.f32 %v517, %v698
      %v805 = vmul.f32 %v518, %v703
      %v806 = vmul.f32 %v519, %v708
      %v807 = vmul.f32 %v520, %v713
      %v808 = vmul.f32 %v521, %v718
      %v809 = vmul.f32 %v522, %v723
      %v810 = vmul.f32 %v523, %v728
      %v811 = vmul.f32 %v524, %v733
      %v812 = vmul.f32 %v525, %v738
      %v813 = vmul.f32 %v526, %v743
      %v814 = vmul.f32 %v527, %v748
      %v815 = vmul.f32 %v528, %v753
      %v816 = vmul.f32 %v529, %v758
      %v817 = vmul.f32 %v530, %v763
      %v818 = vmul.f32 %v531, %v768
      %v819 = vmul.f32 %v532, %v773
      %v820 = vmul.f32 %v533, %v778
      %v821 = vpack.c.bf16 %v780, %v780
      %v822 = vpack.c.bf16 %v781, %v781
      %v823 = vpack.c.bf16 %v782, %v782
      %v824 = vpack.c.bf16 %v783, %v783
      %v825 = vpack.c.bf16 %v784, %v784
      %v826 = vpack.c.bf16 %v785, %v785
      %v827 = vpack.c.bf16 %v786, %v786
      %v828 = vpack.c.bf16 %v787, %v787
      %v829 = vpack.c.bf16 %v788, %v788
      %v830 = vpack.c.bf16 %v789, %v789
      %v831 = vpack.c.bf16 %v790, %v790
      %v832 = vpack.c.bf16 %v791, %v791
      %v833 = vpack.c.bf16 %v792, %v792
      %v834 = vpack.c.bf16 %v793, %v793
      %v835 = vpack.c.bf16 %v794, %v794
      %v836 = vpack.c.bf16 %v795, %v795
      %v837 = vpack.c.bf16 %v796, %v796
      %v838 = vpack.c.bf16 %v797, %v797
      %v839 = vpack.c.bf16 %v798, %v798
      %v840 = vpack.c.bf16 %v799, %v799
      %v841 = vpack.c.bf16 %v800, %v800
      %v842 = vpack.c.bf16 %v801, %v801
      %v843 = vpack.c.bf16 %v802, %v802
      %v844 = vpack.c.bf16 %v803, %v803
      %v845 = vpack.c.bf16 %v804, %v804
      %v846 = vpack.c.bf16 %v805, %v805
      %v847 = vpack.c.bf16 %v806, %v806
      %v848 = vpack.c.bf16 %v807, %v807
      %v849 = vpack.c.bf16 %v808, %v808
      %v850 = vpack.c.bf16 %v809, %v809
      %v851 = vpack.c.bf16 %v810, %v810
      %v852 = vpack.c.bf16 %v811, %v811
      %v853 = vpack.c.bf16 %v812, %v812
      %v854 = vpack.c.bf16 %v813, %v813
      %v855 = vpack.c.bf16 %v814, %v814
      %v856 = vpack.c.bf16 %v815, %v815
      %v857 = vpack.c.bf16 %v816, %v816
      %v858 = vpack.c.bf16 %v817, %v817
      %v859 = vpack.c.bf16 %v818, %v818
      %v860 = vpack.c.bf16 %v819, %v819
      %v861 = vpack.c.bf16 %v820, %v820
      %862 = vst [vmem:[#allocation2 + $0xc] sm:$0xf] %v821
      %863 = vst [vmem:[#allocation2 + $0x10] sm:$0xf] %v822
      %864 = vst [vmem:[#allocation2 + $0x14] sm:$0xf] %v823
      %865 = vst [vmem:[#allocation2 + $0x18] sm:$0xf] %v824
      %866 = vst [vmem:[#allocation2 + $0x1c] sm:$0xf] %v825
      %867 = vst [vmem:[#allocation2 + $0x20] sm:$0xf] %v826
      %868 = vst [vmem:[#allocation2 + $0x24] sm:$0xf] %v827
      %869 = vst [vmem:[#allocation2 + $0x28] sm:$0xf] %v828
      %870 = vst [vmem:[#allocation2 + $0x2c] sm:$0xf] %v829
      %871 = vst [vmem:[#allocation2 + $0x30] sm:$0xf] %v830
      %872 = vst [vmem:[#allocation2 + $0x34] sm:$0xf] %v831
      %873 = vst [vmem:[#allocation2 + $0x38] sm:$0xf] %v832
      %874 = vst [vmem:[#allocation2 + $0x3c] sm:$0xf] %v833
      %875 = vst [vmem:[#allocation2 + $0x40] sm:$0xf] %v834
      %876 = vst [vmem:[#allocation2 + $0x44] sm:$0xf] %v835
      %877 = vst [vmem:[#allocation2 + $0x48] sm:$0xf] %v836
      %878 = vst [vmem:[#allocation2 + $0x4c] sm:$0xf] %v837
      %879 = vst [vmem:[#allocation2 + $0x50] sm:$0xf] %v838
      %880 = vst [vmem:[#allocation2 + $0x54] sm:$0xf] %v839
      %881 = vst [vmem:[#allocation2 + $0x58] sm:$0xf] %v840
      %882 = vst [vmem:[#allocation2 + $0x5c] sm:$0xf] %v841
      %883 = vst [vmem:[#allocation2 + $0x60] sm:$0xf] %v842
      %884 = vst [vmem:[#allocation2 + $0x64] sm:$0xf] %v843
      %885 = vst [vmem:[#allocation2 + $0x68] sm:$0xf] %v844
      %886 = vst [vmem:[#allocation2 + $0x6c] sm:$0xf] %v845
      %887 = vst [vmem:[#allocation2 + $0x70] sm:$0xf] %v846
      %888 = vst [vmem:[#allocation2 + $0x74] sm:$0xf] %v847
      %889 = vst [vmem:[#allocation2 + $0x78] sm:$0xf] %v848
      %890 = vst [vmem:[#allocation2 + $0x7c] sm:$0xf] %v849
      %891 = vst [vmem:[#allocation2 + $0x80] sm:$0xf] %v850
      %892 = vst [vmem:[#allocation2 + $0x84] sm:$0xf] %v851
      %893 = vst [vmem:[#allocation2 + $0x88] sm:$0xf] %v852
      %894 = vst [vmem:[#allocation2 + $0x8c] sm:$0xf] %v853
      %895 = vst [vmem:[#allocation2 + $0x90] sm:$0xf] %v854
      %896 = vst [vmem:[#allocation2 + $0x94] sm:$0xf] %v855
      %897 = vst [vmem:[#allocation2 + $0x98] sm:$0xf] %v856
      %898 = vst [vmem:[#allocation2 + $0x9c] sm:$0xf] %v857
      %899 = vst [vmem:[#allocation2 + $0xa0] sm:$0xf] %v858
      %900 = vst [vmem:[#allocation2 + $0xa4] sm:$0xf] %v859
      %901 = vst [vmem:[#allocation2 + $0xa8] sm:$0xf] %v860
      %902 = vst [vmem:[#allocation2 + $0xac] sm:$0x3] %v861
      %v903 = vld [vmem:[#allocation2] sm:$0xc]
      %v904 = vld [vmem:[#allocation2 + $0x4] sm:$0xf]
      %v905 = vld [vmem:[#allocation2 + $0x8] sm:$0xf]
      %v906 = vld [vmem:[#allocation2 + $0xc] sm:$0xf]
      %v907 = vld [vmem:[#allocation2 + $0x10] sm:$0xf]
      %v908 = vld [vmem:[#allocation2 + $0x14] sm:$0xf]
      %v909 = vld [vmem:[#allocation2 + $0x18] sm:$0xf]
      %v910 = vld [vmem:[#allocation2 + $0x1c] sm:$0xf]
      %v911 = vld [vmem:[#allocation2 + $0x20] sm:$0xf]
      %v912 = vld [vmem:[#allocation2 + $0x24] sm:$0xf]
      %v913 = vld [vmem:[#allocation2 + $0x28] sm:$0xf]
      %v914 = vld [vmem:[#allocation2 + $0x2c] sm:$0xf]
      %v915 = vld [vmem:[#allocation2 + $0x30] sm:$0xf]
      %v916 = vld [vmem:[#allocation2 + $0x34] sm:$0xf]
      %v917 = vld [vmem:[#allocation2 + $0x38] sm:$0xf]
      %v918 = vld [vmem:[#allocation2 + $0x3c] sm:$0xf]
      %v919 = vld [vmem:[#allocation2 + $0x40] sm:$0x7]
      %v920 = vld [vmem:[%s1] sm:$0xf]
      %v921 = vld [vmem:[%s1 + $0x4] sm:$0xf]
      %v922 = vld [vmem:[%s1 + $0x8] sm:$0xf]
      %v923 = vld [vmem:[%s1 + $0xc] sm:$0xf]
      %v924 = vld [vmem:[%s1 + $0x10] sm:$0xf]
      %v925 = vld [vmem:[%s1 + $0x14] sm:$0xf]
      %v926 = vld [vmem:[%s1 + $0x18] sm:$0xf]
      %v927 = vld [vmem:[%s1 + $0x1c] sm:$0xf]
      %v928 = vld [vmem:[%s1 + $0x20] sm:$0xf]
      %v929 = vld [vmem:[%s1 + $0x24] sm:$0xf]
      %v930 = vld [vmem:[%s1 + $0x28] sm:$0xf]
      %v931 = vld [vmem:[%s1 + $0x2c] sm:$0xf]
      %v932 = vld [vmem:[%s1 + $0x30] sm:$0xf]
      %v933 = vld [vmem:[%s1 + $0x34] sm:$0xf]
      %v934 = vld [vmem:[%s1 + $0x38] sm:$0xf]
      %v935 = vld [vmem:[%s1 + $0x3c] sm:$0xf]
      %v936 = vld [vmem:[#allocation2] sm:$0x8]
      %s937 = scalar_lea.vmem %s1, 64
      %v938 = vld [vmem:[%s937] sm:$0xf]
      %v939 = vld [vmem:[%s937 + $0x4] sm:$0xf]
      %v940 = vld [vmem:[%s937 + $0x8] sm:$0xf]
      %v941 = vld [vmem:[%s937 + $0xc] sm:$0xf]
      %v942 = vld [vmem:[%s937 + $0x10] sm:$0xf]
      %v943 = vld [vmem:[%s937 + $0x14] sm:$0xf]
      %v944 = vld [vmem:[%s937 + $0x18] sm:$0xf]
      %v945 = vld [vmem:[%s937 + $0x1c] sm:$0xf]
      %v946 = vld [vmem:[%s937 + $0x20] sm:$0xf]
      %v947 = vld [vmem:[%s937 + $0x24] sm:$0xf]
      %v948 = vld [vmem:[%s937 + $0x28] sm:$0xf]
      %v949 = vld [vmem:[%s937 + $0x2c] sm:$0xf]
      %v950 = vld [vmem:[%s937 + $0x30] sm:$0xf]
      %v951 = vld [vmem:[%s937 + $0x34] sm:$0xf]
      %v952 = vld [vmem:[%s937 + $0x38] sm:$0xf]
      %v953 = vld [vmem:[%s937 + $0x3c] sm:$0xf]
      %v971 = vunpack.c.l.b16 %v936
      %v972 = vunpack.c.l.b16 %v904
      %v973 = vunpack.c.l.b16 %v905
      %v974 = vunpack.c.l.b16 %v906
      %v975 = vunpack.c.l.b16 %v907
      %v976 = vunpack.c.l.b16 %v908
      %v977 = vunpack.c.l.b16 %v909
      %v978 = vunpack.c.l.b16 %v910
      %v979 = vunpack.c.l.b16 %v911
      %v980 = vunpack.c.l.b16 %v912
      %v981 = vunpack.c.l.b16 %v913
      %v982 = vunpack.c.l.b16 %v914
      %v983 = vunpack.c.l.b16 %v915
      %v984 = vunpack.c.l.b16 %v916
      %v985 = vunpack.c.l.b16 %v917
      %v986 = vunpack.c.l.b16 %v918
      %v987 = vunpack.c.l.b16 %v919
      %v988 = vpack.c.b16 %v972, %v971
      %v989 = vpack.c.b16 %v974, %v973
      %v990 = vpack.c.b16 %v976, %v975
      %v991 = vpack.c.b16 %v978, %v977
      %v992 = vpack.c.b16 %v980, %v979
      %v993 = vpack.c.b16 %v982, %v981
      %v994 = vpack.c.b16 %v984, %v983
      %v995 = vpack.c.b16 %v986, %v985
      %v996 = vpack.c.b16 %v987, %v987
      %vm997 = vcmask 1044480
      %v998 = vrot.slane %v988, 3
      %v999 = vrot.slane %v989, 3
      %v1000 = vsel %vm997, %v998, %v999
      %v1001 = vrot.slane %v990, 3
      %v1002 = vsel %vm997, %v999, %v1001
      %v1003 = vrot.slane %v991, 3
      %v1004 = vsel %vm997, %v1001, %v1003
      %v1005 = vrot.slane %v992, 3
      %v1006 = vsel %vm997, %v1003, %v1005
      %v1007 = vrot.slane %v993, 3
      %v1008 = vsel %vm997, %v1005, %v1007
      %v1009 = vrot.slane %v994, 3
      %v1010 = vsel %vm997, %v1007, %v1009
      %v1011 = vrot.slane %v995, 3
      %v1012 = vsel %vm997, %v1009, %v1011
      %v1013 = vrot.slane %v996, 3
      %v1014 = vsel %vm997, %v1011, %v1013
      %v1039 = vunpack.c.l.b16 %v938
      %v1040 = vunpack.c.l.b16 %v939
      %v1041 = vunpack.c.l.b16 %v940
      %v1042 = vunpack.c.l.b16 %v941
      %v1043 = vunpack.c.l.b16 %v942
      %v1044 = vunpack.c.l.b16 %v943
      %v1045 = vunpack.c.l.b16 %v944
      %v1046 = vunpack.c.l.b16 %v945
      %v1047 = vunpack.c.l.b16 %v946
      %v1048 = vunpack.c.l.b16 %v947
      %v1049 = vunpack.c.l.b16 %v948
      %v1050 = vunpack.c.l.b16 %v949
      %v1051 = vunpack.c.l.b16 %v950
      %v1052 = vunpack.c.l.b16 %v951
      %v1053 = vunpack.c.l.b16 %v952
      %v1054 = vunpack.c.l.b16 %v953
      %v1055 = vpack.c.b16 %v1040, %v1039
      %v1056 = vpack.c.b16 %v1042, %v1041
      %v1057 = vpack.c.b16 %v1044, %v1043
      %v1058 = vpack.c.b16 %v1046, %v1045
      %v1059 = vpack.c.b16 %v1048, %v1047
      %v1060 = vpack.c.b16 %v1050, %v1049
      %v1061 = vpack.c.b16 %v1052, %v1051
      %v1062 = vpack.c.b16 %v1054, %v1053
      %1071 = vmatpush.bf16.msra.mxu0 %v1062
      %1072 = vmatpush.bf16.msra.mxu0 %v1061
      %1073 = vmatpush.bf16.msra.mxu0 %v1060
      %1074 = vmatpush.bf16.msra.mxu0 %v1059
      %1075 = vmatpush.bf16.msra.mxu0 %v1058
      %1076 = vmatpush.bf16.msra.mxu0 %v1057
      %1077 = vmatpush.bf16.msra.mxu0 %v1056
      %1078 = vmatpush.bf16.msra.mxu0 %v1055
      %1079 = vmatmul.bf16.gmra.mxu0 %v1000
      %v1080 = vpop.f32.mrf.mxu0
      %v1081 = vadd.f32 0.0, %v1080
      %v1082 = vpop.f32.mrf.mxu0
      %v1083 = vadd.f32 0.0, %v1082
      %1084 = vmatmul.bf16.gmra.mxu0 %v1002
      %v1085 = vpop.f32.mrf.mxu0
      %v1086 = vadd.f32 0.0, %v1085
      %v1087 = vpop.f32.mrf.mxu0
      %v1088 = vadd.f32 0.0, %v1087
      %1089 = vmatmul.bf16.gmra.mxu0 %v1004
      %v1090 = vpop.f32.mrf.mxu0
      %v1091 = vadd.f32 0.0, %v1090
      %v1092 = vpop.f32.mrf.mxu0
      %v1093 = vadd.f32 0.0, %v1092
      %1094 = vmatmul.bf16.gmra.mxu0 %v1006
      %v1095 = vpop.f32.mrf.mxu0
      %v1096 = vadd.f32 0.0, %v1095
      %v1097 = vpop.f32.mrf.mxu0
      %v1098 = vadd.f32 0.0, %v1097
      %1099 = vmatmul.bf16.gmra.mxu0 %v1008
      %v1100 = vpop.f32.mrf.mxu0
      %v1101 = vadd.f32 0.0, %v1100
      %v1102 = vpop.f32.mrf.mxu0
      %v1103 = vadd.f32 0.0, %v1102
      %1104 = vmatmul.bf16.gmra.mxu0 %v1010
      %v1105 = vpop.f32.mrf.mxu0
      %v1106 = vadd.f32 0.0, %v1105
      %v1107 = vpop.f32.mrf.mxu0
      %v1108 = vadd.f32 0.0, %v1107
      %1109 = vmatmul.bf16.gmra.mxu0 %v1012
      %v1110 = vpop.f32.mrf.mxu0
      %v1111 = vadd.f32 0.0, %v1110
      %v1112 = vpop.f32.mrf.mxu0
      %v1113 = vadd.f32 0.0, %v1112
      %1114 = vmatmul.bf16.gmra.mxu0 %v1014
      %v1115 = vpop.f32.mrf.mxu0
      %v1116 = vadd.f32 0.0, %v1115
      %v1117 = vpop.f32.mrf.mxu0
      %v1118 = vadd.f32 0.0, %v1117
      %1119 = vdwg.mxu0
      %v1121 = vunpack.c.l.b16 %v903
      %v1122 = vpack.c.b16 %v972, %v1121
      %vm1123 = vsmask.f32 5376
      %v1125 = vshrl.u32 %v1122, 16
      %v1127 = vrot.slane %v1125, 2
      %v1128 = vshll.u32 %v1122, 16
      %v1130 = vrot.slane %v1128, 3
      %v1131 = vor.u32 %v1127, %v1130
      %v1133 = vshrl.u32 %v989, 16
      %v1135 = vrot.slane %v1133, 2
      %v1136 = vshll.u32 %v989, 16
      %v1138 = vrot.slane %v1136, 3
      %v1139 = vor.u32 %v1135, %v1138
      %v1140 = vsel %vm1123, %v1131, %v1139
      %v1142 = vshrl.u32 %v990, 16
      %v1144 = vrot.slane %v1142, 2
      %v1145 = vshll.u32 %v990, 16
      %v1147 = vrot.slane %v1145, 3
      %v1148 = vor.u32 %v1144, %v1147
      %v1149 = vsel %vm1123, %v1139, %v1148
      %v1151 = vshrl.u32 %v991, 16
      %v1153 = vrot.slane %v1151, 2
      %v1154 = vshll.u32 %v991, 16
      %v1156 = vrot.slane %v1154, 3
      %v1157 = vor.u32 %v1153, %v1156
      %v1158 = vsel %vm1123, %v1148, %v1157
      %v1160 = vshrl.u32 %v992, 16
      %v1162 = vrot.slane %v1160, 2
      %v1163 = vshll.u32 %v992, 16
      %v1165 = vrot.slane %v1163, 3
      %v1166 = vor.u32 %v1162, %v1165
      %v1167 = vsel %vm1123, %v1157, %v1166
      %v1169 = vshrl.u32 %v993, 16
      %v1171 = vrot.slane %v1169, 2
      %v1172 = vshll.u32 %v993, 16
      %v1174 = vrot.slane %v1172, 3
      %v1175 = vor.u32 %v1171, %v1174
      %v1176 = vsel %vm1123, %v1166, %v1175
      %v1178 = vshrl.u32 %v994, 16
      %v1180 = vrot.slane %v1178, 2
      %v1181 = vshll.u32 %v994, 16
      %v1183 = vrot.slane %v1181, 3
      %v1184 = vor.u32 %v1180, %v1183
      %v1185 = vsel %vm1123, %v1175, %v1184
      %v1187 = vshrl.u32 %v995, 16
      %v1189 = vrot.slane %v1187, 2
      %v1190 = vshll.u32 %v995, 16
      %v1192 = vrot.slane %v1190, 3
      %v1193 = vor.u32 %v1189, %v1192
      %v1194 = vsel %vm1123, %v1184, %v1193
      %v1196 = vshrl.u32 %v996, 16
      %v1198 = vrot.slane %v1196, 2
      %v1199 = vshll.u32 %v996, 16
      %v1201 = vrot.slane %v1199, 3
      %v1202 = vor.u32 %v1198, %v1201
      %v1203 = vsel %vm1123, %v1193, %v1202
      %v1228 = vunpack.c.l.b16 %v920
      %v1229 = vunpack.c.l.b16 %v921
      %v1230 = vunpack.c.l.b16 %v922
      %v1231 = vunpack.c.l.b16 %v923
      %v1232 = vunpack.c.l.b16 %v924
      %v1233 = vunpack.c.l.b16 %v925
      %v1234 = vunpack.c.l.b16 %v926
      %v1235 = vunpack.c.l.b16 %v927
      %v1236 = vunpack.c.l.b16 %v928
      %v1237 = vunpack.c.l.b16 %v929
      %v1238 = vunpack.c.l.b16 %v930
      %v1239 = vunpack.c.l.b16 %v931
      %v1240 = vunpack.c.l.b16 %v932
      %v1241 = vunpack.c.l.b16 %v933
      %v1242 = vunpack.c.l.b16 %v934
      %v1243 = vunpack.c.l.b16 %v935
      %v1244 = vpack.c.b16 %v1229, %v1228
      %v1245 = vpack.c.b16 %v1231, %v1230
      %v1246 = vpack.c.b16 %v1233, %v1232
      %v1247 = vpack.c.b16 %v1235, %v1234
      %v1248 = vpack.c.b16 %v1237, %v1236
      %v1249 = vpack.c.b16 %v1239, %v1238
      %v1250 = vpack.c.b16 %v1241, %v1240
      %v1251 = vpack.c.b16 %v1243, %v1242
      %1260 = vmatpush.bf16.msra.mxu0 %v1251
      %1261 = vmatpush.bf16.msra.mxu0 %v1250
      %1262 = vmatpush.bf16.msra.mxu0 %v1249
      %1263 = vmatpush.bf16.msra.mxu0 %v1248
      %1264 = vmatpush.bf16.msra.mxu0 %v1247
      %1265 = vmatpush.bf16.msra.mxu0 %v1246
      %1266 = vmatpush.bf16.msra.mxu0 %v1245
      %1267 = vmatpush.bf16.msra.mxu0 %v1244
      %1268 = vmatmul.bf16.gmra.mxu0 %v1140
      %v1269 = vpop.f32.mrf.mxu0
      %v1270 = vadd.f32 %v1081, %v1269
      %v1271 = vpop.f32.mrf.mxu0
      %v1272 = vadd.f32 %v1083, %v1271
      %1273 = vmatmul.bf16.gmra.mxu0 %v1149
      %v1274 = vpop.f32.mrf.mxu0
      %v1275 = vadd.f32 %v1086, %v1274
      %v1276 = vpop.f32.mrf.mxu0
      %v1277 = vadd.f32 %v1088, %v1276
      %1278 = vmatmul.bf16.gmra.mxu0 %v1158
      %v1279 = vpop.f32.mrf.mxu0
      %v1280 = vadd.f32 %v1091, %v1279
      %v1281 = vpop.f32.mrf.mxu0
      %v1282 = vadd.f32 %v1093, %v1281
      %1283 = vmatmul.bf16.gmra.mxu0 %v1167
      %v1284 = vpop.f32.mrf.mxu0
      %v1285 = vadd.f32 %v1096, %v1284
      %v1286 = vpop.f32.mrf.mxu0
      %v1287 = vadd.f32 %v1098, %v1286
      %1288 = vmatmul.bf16.gmra.mxu0 %v1176
      %v1289 = vpop.f32.mrf.mxu0
      %v1290 = vadd.f32 %v1101, %v1289
      %v1291 = vpop.f32.mrf.mxu0
      %v1292 = vadd.f32 %v1103, %v1291
      %1293 = vmatmul.bf16.gmra.mxu0 %v1185
      %v1294 = vpop.f32.mrf.mxu0
      %v1295 = vadd.f32 %v1106, %v1294
      %v1296 = vpop.f32.mrf.mxu0
      %v1297 = vadd.f32 %v1108, %v1296
      %1298 = vmatmul.bf16.gmra.mxu0 %v1194
      %v1299 = vpop.f32.mrf.mxu0
      %v1300 = vadd.f32 %v1111, %v1299
      %v1301 = vpop.f32.mrf.mxu0
      %v1302 = vadd.f32 %v1113, %v1301
      %1303 = vmatmul.bf16.gmra.mxu0 %v1203
      %v1304 = vpop.f32.mrf.mxu0
      %v1305 = vadd.f32 %v1116, %v1304
      %v1306 = vpop.f32.mrf.mxu0
      %v1307 = vadd.f32 %v1118, %v1306
      %1308 = vdwg.mxu0
      %v1309 = vld [vmem:[#allocation2 + $0x40] sm:$0xf]
      %s1310 = scalar_lea.vmem %s1, 128
      %v1311 = vld [vmem:[%s1310] sm:$0xf]
      %v1312 = vld [vmem:[%s1310 + $0x4] sm:$0xf]
      %v1313 = vld [vmem:[%s1310 + $0x8] sm:$0xf]
      %v1314 = vld [vmem:[%s1310 + $0xc] sm:$0xf]
      %v1315 = vld [vmem:[%s1310 + $0x10] sm:$0xf]
      %v1316 = vld [vmem:[%s1310 + $0x14] sm:$0xf]
      %v1317 = vld [vmem:[%s1310 + $0x18] sm:$0xf]
      %v1318 = vld [vmem:[%s1310 + $0x1c] sm:$0xf]
      %v1319 = vld [vmem:[%s1310 + $0x20] sm:$0xf]
      %v1320 = vld [vmem:[%s1310 + $0x24] sm:$0xf]
      %v1321 = vld [vmem:[%s1310 + $0x28] sm:$0xf]
      %v1322 = vld [vmem:[%s1310 + $0x2c] sm:$0xf]
      %v1323 = vld [vmem:[%s1310 + $0x30] sm:$0xf]
      %v1324 = vld [vmem:[%s1310 + $0x34] sm:$0xf]
      %v1325 = vld [vmem:[%s1310 + $0x38] sm:$0xf]
      %v1326 = vld [vmem:[%s1310 + $0x3c] sm:$0xf]
      %v1328 = vunpack.c.l.b16 %v1309
      %v1329 = vpack.c.b16 %v1328, %v1328
      %vm1330 = vsmask.f32 4352
      %v1332 = vshrl.u32 %v988, 16
      %v1334 = vrot.slane %v1332, 3
      %v1335 = vshll.u32 %v988, 16
      %v1337 = vrot.slane %v1335, 4
      %v1338 = vor.u32 %v1334, %v1337
      %v1339 = vrot.slane %v1133, 3
      %v1340 = vrot.slane %v1136, 4
      %v1341 = vor.u32 %v1339, %v1340
      %v1342 = vsel %vm1330, %v1338, %v1341
      %v1343 = vrot.slane %v1142, 3
      %v1344 = vrot.slane %v1145, 4
      %v1345 = vor.u32 %v1343, %v1344
      %v1346 = vsel %vm1330, %v1341, %v1345
      %v1347 = vrot.slane %v1151, 3
      %v1348 = vrot.slane %v1154, 4
      %v1349 = vor.u32 %v1347, %v1348
      %v1350 = vsel %vm1330, %v1345, %v1349
      %v1351 = vrot.slane %v1160, 3
      %v1352 = vrot.slane %v1163, 4
      %v1353 = vor.u32 %v1351, %v1352
      %v1354 = vsel %vm1330, %v1349, %v1353
      %v1355 = vrot.slane %v1169, 3
      %v1356 = vrot.slane %v1172, 4
      %v1357 = vor.u32 %v1355, %v1356
      %v1358 = vsel %vm1330, %v1353, %v1357
      %v1359 = vrot.slane %v1178, 3
      %v1360 = vrot.slane %v1181, 4
      %v1361 = vor.u32 %v1359, %v1360
      %v1362 = vsel %vm1330, %v1357, %v1361
      %v1363 = vrot.slane %v1187, 3
      %v1364 = vrot.slane %v1190, 4
      %v1365 = vor.u32 %v1363, %v1364
      %v1366 = vsel %vm1330, %v1361, %v1365
      %v1368 = vshrl.u32 %v1329, 16
      %v1370 = vrot.slane %v1368, 3
      %v1371 = vshll.u32 %v1329, 16
      %v1373 = vrot.slane %v1371, 4
      %v1374 = vor.u32 %v1370, %v1373
      %v1375 = vsel %vm1330, %v1365, %v1374
      %v1400 = vunpack.c.l.b16 %v1311
      %v1401 = vunpack.c.l.b16 %v1312
      %v1402 = vunpack.c.l.b16 %v1313
      %v1403 = vunpack.c.l.b16 %v1314
      %v1404 = vunpack.c.l.b16 %v1315
      %v1405 = vunpack.c.l.b16 %v1316
      %v1406 = vunpack.c.l.b16 %v1317
      %v1407 = vunpack.c.l.b16 %v1318
      %v1408 = vunpack.c.l.b16 %v1319
      %v1409 = vunpack.c.l.b16 %v1320
      %v1410 = vunpack.c.l.b16 %v1321
      %v1411 = vunpack.c.l.b16 %v1322
      %v1412 = vunpack.c.l.b16 %v1323
      %v1413 = vunpack.c.l.b16 %v1324
      %v1414 = vunpack.c.l.b16 %v1325
      %v1415 = vunpack.c.l.b16 %v1326
      %v1416 = vpack.c.b16 %v1401, %v1400
      %v1417 = vpack.c.b16 %v1403, %v1402
      %v1418 = vpack.c.b16 %v1405, %v1404
      %v1419 = vpack.c.b16 %v1407, %v1406
      %v1420 = vpack.c.b16 %v1409, %v1408
      %v1421 = vpack.c.b16 %v1411, %v1410
      %v1422 = vpack.c.b16 %v1413, %v1412
      %v1423 = vpack.c.b16 %v1415, %v1414
      %1432 = vmatpush.bf16.msra.mxu0 %v1423
      %1433 = vmatpush.bf16.msra.mxu0 %v1422
      %1434 = vmatpush.bf16.msra.mxu0 %v1421
      %1435 = vmatpush.bf16.msra.mxu0 %v1420
      %1436 = vmatpush.bf16.msra.mxu0 %v1419
      %1437 = vmatpush.bf16.msra.mxu0 %v1418
      %1438 = vmatpush.bf16.msra.mxu0 %v1417
      %1439 = vmatpush.bf16.msra.mxu0 %v1416
      %1440 = vmatmul.bf16.gmra.mxu0 %v1342
      %v1441 = vpop.f32.mrf.mxu0
      %v1442 = vadd.f32 0.0, %v1441
      %v1443 = vpop.f32.mrf.mxu0
      %v1444 = vadd.f32 0.0, %v1443
      %1445 = vmatmul.bf16.gmra.mxu0 %v1346
      %v1446 = vpop.f32.mrf.mxu0
      %v1447 = vadd.f32 0.0, %v1446
      %v1448 = vpop.f32.mrf.mxu0
      %v1449 = vadd.f32 0.0, %v1448
      %1450 = vmatmul.bf16.gmra.mxu0 %v1350
      %v1451 = vpop.f32.mrf.mxu0
      %v1452 = vadd.f32 0.0, %v1451
      %v1453 = vpop.f32.mrf.mxu0
      %v1454 = vadd.f32 0.0, %v1453
      %1455 = vmatmul.bf16.gmra.mxu0 %v1354
      %v1456 = vpop.f32.mrf.mxu0
      %v1457 = vadd.f32 0.0, %v1456
      %v1458 = vpop.f32.mrf.mxu0
      %v1459 = vadd.f32 0.0, %v1458
      %1460 = vmatmul.bf16.gmra.mxu0 %v1358
      %v1461 = vpop.f32.mrf.mxu0
      %v1462 = vadd.f32 0.0, %v1461
      %v1463 = vpop.f32.mrf.mxu0
      %v1464 = vadd.f32 0.0, %v1463
      %1465 = vmatmul.bf16.gmra.mxu0 %v1362
      %v1466 = vpop.f32.mrf.mxu0
      %v1467 = vadd.f32 0.0, %v1466
      %v1468 = vpop.f32.mrf.mxu0
      %v1469 = vadd.f32 0.0, %v1468
      %1470 = vmatmul.bf16.gmra.mxu0 %v1366
      %v1471 = vpop.f32.mrf.mxu0
      %v1472 = vadd.f32 0.0, %v1471
      %v1473 = vpop.f32.mrf.mxu0
      %v1474 = vadd.f32 0.0, %v1473
      %1475 = vmatmul.bf16.gmra.mxu0 %v1375
      %v1476 = vpop.f32.mrf.mxu0
      %v1477 = vadd.f32 0.0, %v1476
      %v1478 = vpop.f32.mrf.mxu0
      %v1479 = vadd.f32 0.0, %v1478
      %1480 = vdwg.mxu0
      %v1481 = vadd.f32 %v1270, %v1442
      %v1482 = vadd.f32 %v1272, %v1444
      %v1483 = vadd.f32 %v1275, %v1447
      %v1484 = vadd.f32 %v1277, %v1449
      %v1485 = vadd.f32 %v1280, %v1452
      %v1486 = vadd.f32 %v1282, %v1454
      %v1487 = vadd.f32 %v1285, %v1457
      %v1488 = vadd.f32 %v1287, %v1459
      %v1489 = vadd.f32 %v1290, %v1462
      %v1490 = vadd.f32 %v1292, %v1464
      %v1491 = vadd.f32 %v1295, %v1467
      %v1492 = vadd.f32 %v1297, %v1469
      %v1493 = vadd.f32 %v1300, %v1472
      %v1494 = vadd.f32 %v1302, %v1474
      %v1495 = vadd.f32 %v1305, %v1477
      %v1496 = vadd.f32 %v1307, %v1479
      %v1497 = vld [vmem:[#allocation2 + $0x8] sm:$0x8]
      %v1498 = vld [vmem:[#allocation2 + $0xc] sm:$0xf]
      %v1499 = vld [vmem:[#allocation2 + $0x10] sm:$0xf]
      %v1500 = vld [vmem:[#allocation2 + $0x14] sm:$0xf]
      %v1501 = vld [vmem:[#allocation2 + $0x18] sm:$0xf]
      %v1502 = vld [vmem:[#allocation2 + $0x1c] sm:$0xf]
      %v1503 = vld [vmem:[#allocation2 + $0x20] sm:$0xf]
      %v1504 = vld [vmem:[#allocation2 + $0x24] sm:$0xf]
      %v1505 = vld [vmem:[#allocation2 + $0x28] sm:$0xf]
      %v1506 = vld [vmem:[#allocation2 + $0x2c] sm:$0xf]
      %v1507 = vld [vmem:[#allocation2 + $0x30] sm:$0xf]
      %v1508 = vld [vmem:[#allocation2 + $0x34] sm:$0xf]
      %v1509 = vld [vmem:[#allocation2 + $0x38] sm:$0xf]
      %v1510 = vld [vmem:[#allocation2 + $0x3c] sm:$0xf]
      %v1511 = vld [vmem:[#allocation2 + $0x40] sm:$0xf]
      %v1512 = vld [vmem:[#allocation2 + $0x44] sm:$0xf]
      %v1513 = vld [vmem:[#allocation2 + $0x48] sm:$0xf]
      %s1514 = scalar_lea.vmem %s1, 192
      %v1515 = vld [vmem:[%s1514] sm:$0xf]
      %v1516 = vld [vmem:[%s1514 + $0x4] sm:$0xf]
      %v1517 = vld [vmem:[%s1514 + $0x8] sm:$0xf]
      %v1518 = vld [vmem:[%s1514 + $0xc] sm:$0xf]
      %v1519 = vld [vmem:[%s1514 + $0x10] sm:$0xf]
      %v1520 = vld [vmem:[%s1514 + $0x14] sm:$0xf]
      %v1521 = vld [vmem:[%s1514 + $0x18] sm:$0xf]
      %v1522 = vld [vmem:[%s1514 + $0x1c] sm:$0xf]
      %v1523 = vld [vmem:[%s1514 + $0x20] sm:$0xf]
      %v1524 = vld [vmem:[%s1514 + $0x24] sm:$0xf]
      %v1525 = vld [vmem:[%s1514 + $0x28] sm:$0xf]
      %v1526 = vld [vmem:[%s1514 + $0x2c] sm:$0xf]
      %v1527 = vld [vmem:[%s1514 + $0x30] sm:$0xf]
      %v1528 = vld [vmem:[%s1514 + $0x34] sm:$0xf]
      %v1529 = vld [vmem:[%s1514 + $0x38] sm:$0xf]
      %v1530 = vld [vmem:[%s1514 + $0x3c] sm:$0xf]
      %v1548 = vunpack.c.l.b16 %v1497
      %v1549 = vunpack.c.l.b16 %v1498
      %v1550 = vunpack.c.l.b16 %v1499
      %v1551 = vunpack.c.l.b16 %v1500
      %v1552 = vunpack.c.l.b16 %v1501
      %v1553 = vunpack.c.l.b16 %v1502
      %v1554 = vunpack.c.l.b16 %v1503
      %v1555 = vunpack.c.l.b16 %v1504
      %v1556 = vunpack.c.l.b16 %v1505
      %v1557 = vunpack.c.l.b16 %v1506
      %v1558 = vunpack.c.l.b16 %v1507
      %v1559 = vunpack.c.l.b16 %v1508
      %v1560 = vunpack.c.l.b16 %v1509
      %v1561 = vunpack.c.l.b16 %v1510
      %v1562 = vunpack.c.l.b16 %v1511
      %v1563 = vunpack.c.l.b16 %v1512
      %v1564 = vunpack.c.l.b16 %v1513
      %v1565 = vpack.c.b16 %v1549, %v1548
      %v1566 = vpack.c.b16 %v1551, %v1550
      %v1567 = vpack.c.b16 %v1553, %v1552
      %v1568 = vpack.c.b16 %v1555, %v1554
      %v1569 = vpack.c.b16 %v1557, %v1556
      %v1570 = vpack.c.b16 %v1559, %v1558
      %v1571 = vpack.c.b16 %v1561, %v1560
      %v1572 = vpack.c.b16 %v1563, %v1562
      %v1573 = vpack.c.b16 %v1564, %v1564
      %v1575 = vshrl.u32 %v1565, 16
      %v1577 = vrot.slane %v1575, 3
      %v1578 = vshll.u32 %v1565, 16
      %v1580 = vrot.slane %v1578, 4
      %v1581 = vor.u32 %v1577, %v1580
      %v1583 = vshrl.u32 %v1566, 16
      %v1585 = vrot.slane %v1583, 3
      %v1586 = vshll.u32 %v1566, 16
      %v1588 = vrot.slane %v1586, 4
      %v1589 = vor.u32 %v1585, %v1588
      %v1590 = vsel %vm1330, %v1581, %v1589
      %v1592 = vshrl.u32 %v1567, 16
      %v1594 = vrot.slane %v1592, 3
      %v1595 = vshll.u32 %v1567, 16
      %v1597 = vrot.slane %v1595, 4
      %v1598 = vor.u32 %v1594, %v1597
      %v1599 = vsel %vm1330, %v1589, %v1598
      %v1601 = vshrl.u32 %v1568, 16
      %v1603 = vrot.slane %v1601, 3
      %v1604 = vshll.u32 %v1568, 16
      %v1606 = vrot.slane %v1604, 4
      %v1607 = vor.u32 %v1603, %v1606
      %v1608 = vsel %vm1330, %v1598, %v1607
      %v1610 = vshrl.u32 %v1569, 16
      %v1612 = vrot.slane %v1610, 3
      %v1613 = vshll.u32 %v1569, 16
      %v1615 = vrot.slane %v1613, 4
      %v1616 = vor.u32 %v1612, %v1615
      %v1617 = vsel %vm1330, %v1607, %v1616
      %v1619 = vshrl.u32 %v1570, 16
      %v1621 = vrot.slane %v1619, 3
      %v1622 = vshll.u32 %v1570, 16
      %v1624 = vrot.slane %v1622, 4
      %v1625 = vor.u32 %v1621, %v1624
      %v1626 = vsel %vm1330, %v1616, %v1625
      %v1628 = vshrl.u32 %v1571, 16
      %v1630 = vrot.slane %v1628, 3
      %v1631 = vshll.u32 %v1571, 16
      %v1633 = vrot.slane %v1631, 4
      %v1634 = vor.u32 %v1630, %v1633
      %v1635 = vsel %vm1330, %v1625, %v1634
      %v1637 = vshrl.u32 %v1572, 16
      %v1639 = vrot.slane %v1637, 3
      %v1640 = vshll.u32 %v1572, 16
      %v1642 = vrot.slane %v1640, 4
      %v1643 = vor.u32 %v1639, %v1642
      %v1644 = vsel %vm1330, %v1634, %v1643
      %v1646 = vshrl.u32 %v1573, 16
      %v1648 = vrot.slane %v1646, 3
      %v1649 = vshll.u32 %v1573, 16
      %v1651 = vrot.slane %v1649, 4
      %v1652 = vor.u32 %v1648, %v1651
      %v1653 = vsel %vm1330, %v1643, %v1652
      %v1678 = vunpack.c.l.b16 %v1515
      %v1679 = vunpack.c.l.b16 %v1516
      %v1680 = vunpack.c.l.b16 %v1517
      %v1681 = vunpack.c.l.b16 %v1518
      %v1682 = vunpack.c.l.b16 %v1519
      %v1683 = vunpack.c.l.b16 %v1520
      %v1684 = vunpack.c.l.b16 %v1521
      %v1685 = vunpack.c.l.b16 %v1522
      %v1686 = vunpack.c.l.b16 %v1523
      %v1687 = vunpack.c.l.b16 %v1524
      %v1688 = vunpack.c.l.b16 %v1525
      %v1689 = vunpack.c.l.b16 %v1526
      %v1690 = vunpack.c.l.b16 %v1527
      %v1691 = vunpack.c.l.b16 %v1528
      %v1692 = vunpack.c.l.b16 %v1529
      %v1693 = vunpack.c.l.b16 %v1530
      %v1694 = vpack.c.b16 %v1679, %v1678
      %v1695 = vpack.c.b16 %v1681, %v1680
      %v1696 = vpack.c.b16 %v1683, %v1682
      %v1697 = vpack.c.b16 %v1685, %v1684
      %v1698 = vpack.c.b16 %v1687, %v1686
      %v1699 = vpack.c.b16 %v1689, %v1688
      %v1700 = vpack.c.b16 %v1691, %v1690
      %v1701 = vpack.c.b16 %v1693, %v1692
      %1710 = vmatpush.bf16.msra.mxu0 %v1701
      %1711 = vmatpush.bf16.msra.mxu0 %v1700
      %1712 = vmatpush.bf16.msra.mxu0 %v1699
      %1713 = vmatpush.bf16.msra.mxu0 %v1698
      %1714 = vmatpush.bf16.msra.mxu0 %v1697
      %1715 = vmatpush.bf16.msra.mxu0 %v1696
      %1716 = vmatpush.bf16.msra.mxu0 %v1695
      %1717 = vmatpush.bf16.msra.mxu0 %v1694
      %1718 = vmatmul.bf16.gmra.mxu0 %v1590
      %v1719 = vpop.f32.mrf.mxu0
      %v1720 = vadd.f32 0.0, %v1719
      %v1721 = vpop.f32.mrf.mxu0
      %v1722 = vadd.f32 0.0, %v1721
      %1723 = vmatmul.bf16.gmra.mxu0 %v1599
      %v1724 = vpop.f32.mrf.mxu0
      %v1725 = vadd.f32 0.0, %v1724
      %v1726 = vpop.f32.mrf.mxu0
      %v1727 = vadd.f32 0.0, %v1726
      %1728 = vmatmul.bf16.gmra.mxu0 %v1608
      %v1729 = vpop.f32.mrf.mxu0
      %v1730 = vadd.f32 0.0, %v1729
      %v1731 = vpop.f32.mrf.mxu0
      %v1732 = vadd.f32 0.0, %v1731
      %1733 = vmatmul.bf16.gmra.mxu0 %v1617
      %v1734 = vpop.f32.mrf.mxu0
      %v1735 = vadd.f32 0.0, %v1734
      %v1736 = vpop.f32.mrf.mxu0
      %v1737 = vadd.f32 0.0, %v1736
      %1738 = vmatmul.bf16.gmra.mxu0 %v1626
      %v1739 = vpop.f32.mrf.mxu0
      %v1740 = vadd.f32 0.0, %v1739
      %v1741 = vpop.f32.mrf.mxu0
      %v1742 = vadd.f32 0.0, %v1741
      %1743 = vmatmul.bf16.gmra.mxu0 %v1635
      %v1744 = vpop.f32.mrf.mxu0
      %v1745 = vadd.f32 0.0, %v1744
      %v1746 = vpop.f32.mrf.mxu0
      %v1747 = vadd.f32 0.0, %v1746
      %1748 = vmatmul.bf16.gmra.mxu0 %v1644
      %v1749 = vpop.f32.mrf.mxu0
      %v1750 = vadd.f32 0.0, %v1749
      %v1751 = vpop.f32.mrf.mxu0
      %v1752 = vadd.f32 0.0, %v1751
      %1753 = vmatmul.bf16.gmra.mxu0 %v1653
      %v1754 = vpop.f32.mrf.mxu0
      %v1755 = vadd.f32 0.0, %v1754
      %v1756 = vpop.f32.mrf.mxu0
      %v1757 = vadd.f32 0.0, %v1756
      %1758 = vdwg.mxu0
      %v1759 = vadd.f32 %v1481, %v1720
      %v1760 = vadd.f32 %v1482, %v1722
      %v1761 = vadd.f32 %v1483, %v1725
      %v1762 = vadd.f32 %v1484, %v1727
      %v1763 = vadd.f32 %v1485, %v1730
      %v1764 = vadd.f32 %v1486, %v1732
      %v1765 = vadd.f32 %v1487, %v1735
      %v1766 = vadd.f32 %v1488, %v1737
      %v1767 = vadd.f32 %v1489, %v1740
      %v1768 = vadd.f32 %v1490, %v1742
      %v1769 = vadd.f32 %v1491, %v1745
      %v1770 = vadd.f32 %v1492, %v1747
      %v1771 = vadd.f32 %v1493, %v1750
      %v1772 = vadd.f32 %v1494, %v1752
      %v1773 = vadd.f32 %v1495, %v1755
      %v1774 = vadd.f32 %v1496, %v1757
      %s1775 = scalar_lea.vmem %s1, 256
      %v1776 = vld [vmem:[%s1775] sm:$0xf]
      %v1777 = vld [vmem:[%s1775 + $0x4] sm:$0xf]
      %v1778 = vld [vmem:[%s1775 + $0x8] sm:$0xf]
      %v1779 = vld [vmem:[%s1775 + $0xc] sm:$0xf]
      %v1780 = vld [vmem:[%s1775 + $0x10] sm:$0xf]
      %v1781 = vld [vmem:[%s1775 + $0x14] sm:$0xf]
      %v1782 = vld [vmem:[%s1775 + $0x18] sm:$0xf]
      %v1783 = vld [vmem:[%s1775 + $0x1c] sm:$0xf]
      %v1784 = vld [vmem:[%s1775 + $0x20] sm:$0xf]
      %v1785 = vld [vmem:[%s1775 + $0x24] sm:$0xf]
      %v1786 = vld [vmem:[%s1775 + $0x28] sm:$0xf]
      %v1787 = vld [vmem:[%s1775 + $0x2c] sm:$0xf]
      %v1788 = vld [vmem:[%s1775 + $0x30] sm:$0xf]
      %v1789 = vld [vmem:[%s1775 + $0x34] sm:$0xf]
      %v1790 = vld [vmem:[%s1775 + $0x38] sm:$0xf]
      %v1791 = vld [vmem:[%s1775 + $0x3c] sm:$0xf]
      %v1792 = vpack.c.b16 %v1550, %v1549
      %v1793 = vpack.c.b16 %v1552, %v1551
      %v1794 = vpack.c.b16 %v1554, %v1553
      %v1795 = vpack.c.b16 %v1556, %v1555
      %v1796 = vpack.c.b16 %v1558, %v1557
      %v1797 = vpack.c.b16 %v1560, %v1559
      %v1798 = vpack.c.b16 %v1562, %v1561
      %v1799 = vpack.c.b16 %v1564, %v1563
      %v1824 = vunpack.c.l.b16 %v1776
      %v1825 = vunpack.c.l.b16 %v1777
      %v1826 = vunpack.c.l.b16 %v1778
      %v1827 = vunpack.c.l.b16 %v1779
      %v1828 = vunpack.c.l.b16 %v1780
      %v1829 = vunpack.c.l.b16 %v1781
      %v1830 = vunpack.c.l.b16 %v1782
      %v1831 = vunpack.c.l.b16 %v1783
      %v1832 = vunpack.c.l.b16 %v1784
      %v1833 = vunpack.c.l.b16 %v1785
      %v1834 = vunpack.c.l.b16 %v1786
      %v1835 = vunpack.c.l.b16 %v1787
      %v1836 = vunpack.c.l.b16 %v1788
      %v1837 = vunpack.c.l.b16 %v1789
      %v1838 = vunpack.c.l.b16 %v1790
      %v1839 = vunpack.c.l.b16 %v1791
      %v1840 = vpack.c.b16 %v1825, %v1824
      %v1841 = vpack.c.b16 %v1827, %v1826
      %v1842 = vpack.c.b16 %v1829, %v1828
      %v1843 = vpack.c.b16 %v1831, %v1830
      %v1844 = vpack.c.b16 %v1833, %v1832
      %v1845 = vpack.c.b16 %v1835, %v1834
      %v1846 = vpack.c.b16 %v1837, %v1836
      %v1847 = vpack.c.b16 %v1839, %v1838
      %1856 = vmatpush.bf16.msra.mxu0 %v1847
      %1857 = vmatpush.bf16.msra.mxu0 %v1846
      %1858 = vmatpush.bf16.msra.mxu0 %v1845
      %1859 = vmatpush.bf16.msra.mxu0 %v1844
      %1860 = vmatpush.bf16.msra.mxu0 %v1843
      %1861 = vmatpush.bf16.msra.mxu0 %v1842
      %1862 = vmatpush.bf16.msra.mxu0 %v1841
      %1863 = vmatpush.bf16.msra.mxu0 %v1840
      %1864 = vmatmul.bf16.gmra.mxu0 %v1792
      %v1865 = vpop.f32.mrf.mxu0
      %v1866 = vadd.f32 0.0, %v1865
      %v1867 = vpop.f32.mrf.mxu0
      %v1868 = vadd.f32 0.0, %v1867
      %1869 = vmatmul.bf16.gmra.mxu0 %v1793
      %v1870 = vpop.f32.mrf.mxu0
      %v1871 = vadd.f32 0.0, %v1870
      %v1872 = vpop.f32.mrf.mxu0
      %v1873 = vadd.f32 0.0, %v1872
      %1874 = vmatmul.bf16.gmra.mxu0 %v1794
      %v1875 = vpop.f32.mrf.mxu0
      %v1876 = vadd.f32 0.0, %v1875
      %v1877 = vpop.f32.mrf.mxu0
      %v1878 = vadd.f32 0.0, %v1877
      %1879 = vmatmul.bf16.gmra.mxu0 %v1795
      %v1880 = vpop.f32.mrf.mxu0
      %v1881 = vadd.f32 0.0, %v1880
      %v1882 = vpop.f32.mrf.mxu0
      %v1883 = vadd.f32 0.0, %v1882
      %1884 = vmatmul.bf16.gmra.mxu0 %v1796
      %v1885 = vpop.f32.mrf.mxu0
      %v1886 = vadd.f32 0.0, %v1885
      %v1887 = vpop.f32.mrf.mxu0
      %v1888 = vadd.f32 0.0, %v1887
      %1889 = vmatmul.bf16.gmra.mxu0 %v1797
      %v1890 = vpop.f32.mrf.mxu0
      %v1891 = vadd.f32 0.0, %v1890
      %v1892 = vpop.f32.mrf.mxu0
      %v1893 = vadd.f32 0.0, %v1892
      %1894 = vmatmul.bf16.gmra.mxu0 %v1798
      %v1895 = vpop.f32.mrf.mxu0
      %v1896 = vadd.f32 0.0, %v1895
      %v1897 = vpop.f32.mrf.mxu0
      %v1898 = vadd.f32 0.0, %v1897
      %1899 = vmatmul.bf16.gmra.mxu0 %v1799
      %v1900 = vpop.f32.mrf.mxu0
      %v1901 = vadd.f32 0.0, %v1900
      %v1902 = vpop.f32.mrf.mxu0
      %v1903 = vadd.f32 0.0, %v1902
      %1904 = vdwg.mxu0
      %v1905 = vadd.f32 %v1759, %v1866
      %v1906 = vadd.f32 %v1760, %v1868
      %v1907 = vadd.f32 %v1761, %v1871
      %v1908 = vadd.f32 %v1762, %v1873
      %v1909 = vadd.f32 %v1763, %v1876
      %v1910 = vadd.f32 %v1764, %v1878
      %v1911 = vadd.f32 %v1765, %v1881
      %v1912 = vadd.f32 %v1766, %v1883
      %v1913 = vadd.f32 %v1767, %v1886
      %v1914 = vadd.f32 %v1768, %v1888
      %v1915 = vadd.f32 %v1769, %v1891
      %v1916 = vadd.f32 %v1770, %v1893
      %v1917 = vadd.f32 %v1771, %v1896
      %v1918 = vadd.f32 %v1772, %v1898
      %v1919 = vadd.f32 %v1773, %v1901
      %v1920 = vadd.f32 %v1774, %v1903
      %v1921 = vld [vmem:[#allocation2 + $0xc] sm:$0xf]
      %v1922 = vld [vmem:[#allocation2 + $0x10] sm:$0xf]
      %v1923 = vld [vmem:[#allocation2 + $0x14] sm:$0xf]
      %v1924 = vld [vmem:[#allocation2 + $0x18] sm:$0xf]
      %v1925 = vld [vmem:[#allocation2 + $0x1c] sm:$0xf]
      %v1926 = vld [vmem:[#allocation2 + $0x20] sm:$0xf]
      %v1927 = vld [vmem:[#allocation2 + $0x24] sm:$0xf]
      %v1928 = vld [vmem:[#allocation2 + $0x28] sm:$0xf]
      %v1929 = vld [vmem:[#allocation2 + $0x2c] sm:$0xf]
      %v1930 = vld [vmem:[#allocation2 + $0x30] sm:$0xf]
      %v1931 = vld [vmem:[#allocation2 + $0x34] sm:$0xf]
      %v1932 = vld [vmem:[#allocation2 + $0x38] sm:$0xf]
      %v1933 = vld [vmem:[#allocation2 + $0x3c] sm:$0xf]
      %v1934 = vld [vmem:[#allocation2 + $0x40] sm:$0xf]
      %v1935 = vld [vmem:[#allocation2 + $0x44] sm:$0xf]
      %v1936 = vld [vmem:[#allocation2 + $0x48] sm:$0xf]
      %v1937 = vld [vmem:[#allocation2 + $0x4c] sm:$0x1]
      %s1938 = scalar_lea.vmem %s1, 320
      %v1939 = vld [vmem:[%s1938] sm:$0xf]
      %v1940 = vld [vmem:[%s1938 + $0x4] sm:$0xf]
      %v1941 = vld [vmem:[%s1938 + $0x8] sm:$0xf]
      %v1942 = vld [vmem:[%s1938 + $0xc] sm:$0xf]
      %v1943 = vld [vmem:[%s1938 + $0x10] sm:$0xf]
      %v1944 = vld [vmem:[%s1938 + $0x14] sm:$0xf]
      %v1945 = vld [vmem:[%s1938 + $0x18] sm:$0xf]
      %v1946 = vld [vmem:[%s1938 + $0x1c] sm:$0xf]
      %v1947 = vld [vmem:[%s1938 + $0x20] sm:$0xf]
      %v1948 = vld [vmem:[%s1938 + $0x24] sm:$0xf]
      %v1949 = vld [vmem:[%s1938 + $0x28] sm:$0xf]
      %v1950 = vld [vmem:[%s1938 + $0x2c] sm:$0xf]
      %v1951 = vld [vmem:[%s1938 + $0x30] sm:$0xf]
      %v1952 = vld [vmem:[%s1938 + $0x34] sm:$0xf]
      %v1953 = vld [vmem:[%s1938 + $0x38] sm:$0xf]
      %v1954 = vld [vmem:[%s1938 + $0x3c] sm:$0xf]
      %v1972 = vunpack.c.l.b16 %v1921
      %v1973 = vunpack.c.l.b16 %v1922
      %v1974 = vunpack.c.l.b16 %v1923
      %v1975 = vunpack.c.l.b16 %v1924
      %v1976 = vunpack.c.l.b16 %v1925
      %v1977 = vunpack.c.l.b16 %v1926
      %v1978 = vunpack.c.l.b16 %v1927
      %v1979 = vunpack.c.l.b16 %v1928
      %v1980 = vunpack.c.l.b16 %v1929
      %v1981 = vunpack.c.l.b16 %v1930
      %v1982 = vunpack.c.l.b16 %v1931
      %v1983 = vunpack.c.l.b16 %v1932
      %v1984 = vunpack.c.l.b16 %v1933
      %v1985 = vunpack.c.l.b16 %v1934
      %v1986 = vunpack.c.l.b16 %v1935
      %v1987 = vunpack.c.l.b16 %v1936
      %v1988 = vunpack.c.l.b16 %v1937
      %v1989 = vpack.c.b16 %v1973, %v1972
      %v1990 = vpack.c.b16 %v1975, %v1974
      %v1991 = vpack.c.b16 %v1977, %v1976
      %v1992 = vpack.c.b16 %v1979, %v1978
      %v1993 = vpack.c.b16 %v1981, %v1980
      %v1994 = vpack.c.b16 %v1983, %v1982
      %v1995 = vpack.c.b16 %v1985, %v1984
      %v1996 = vpack.c.b16 %v1987, %v1986
      %v1997 = vpack.c.b16 %v1988, %v1988
      %vm1998 = vsmask.f32 7424
      %v2000 = vshrl.u32 %v1989, 16
      %v2002 = vshll.u32 %v1989, 16
      %v2004 = vrot.slane %v2002, 1
      %v2005 = vor.u32 %v2000, %v2004
      %v2007 = vshll.u32 %v1990, 16
      %v2009 = vrot.slane %v2007, 1
      %v2010 = vsel %vm1998, %v2005, %v2009
      %v2011 = vshrl.u32 %v1990, 16
      %v2013 = vor.u32 %v2011, %v2009
      %v2015 = vshll.u32 %v1991, 16
      %v2017 = vrot.slane %v2015, 1
      %v2018 = vsel %vm1998, %v2013, %v2017
      %v2019 = vshrl.u32 %v1991, 16
      %v2021 = vor.u32 %v2019, %v2017
      %v2023 = vshll.u32 %v1992, 16
      %v2025 = vrot.slane %v2023, 1
      %v2026 = vsel %vm1998, %v2021, %v2025
      %v2027 = vshrl.u32 %v1992, 16
      %v2029 = vor.u32 %v2027, %v2025
      %v2031 = vshll.u32 %v1993, 16
      %v2033 = vrot.slane %v2031, 1
      %v2034 = vsel %vm1998, %v2029, %v2033
      %v2035 = vshrl.u32 %v1993, 16
      %v2037 = vor.u32 %v2035, %v2033
      %v2039 = vshll.u32 %v1994, 16
      %v2041 = vrot.slane %v2039, 1
      %v2042 = vsel %vm1998, %v2037, %v2041
      %v2043 = vshrl.u32 %v1994, 16
      %v2045 = vor.u32 %v2043, %v2041
      %v2047 = vshll.u32 %v1995, 16
      %v2049 = vrot.slane %v2047, 1
      %v2050 = vsel %vm1998, %v2045, %v2049
      %v2051 = vshrl.u32 %v1995, 16
      %v2053 = vor.u32 %v2051, %v2049
      %v2055 = vshll.u32 %v1996, 16
      %v2057 = vrot.slane %v2055, 1
      %v2058 = vsel %vm1998, %v2053, %v2057
      %v2059 = vshrl.u32 %v1996, 16
      %v2061 = vor.u32 %v2059, %v2057
      %v2063 = vshll.u32 %v1997, 16
      %v2065 = vrot.slane %v2063, 1
      %v2066 = vsel %vm1998, %v2061, %v2065
      %v2091 = vunpack.c.l.b16 %v1939
      %v2092 = vunpack.c.l.b16 %v1940
      %v2093 = vunpack.c.l.b16 %v1941
      %v2094 = vunpack.c.l.b16 %v1942
      %v2095 = vunpack.c.l.b16 %v1943
      %v2096 = vunpack.c.l.b16 %v1944
      %v2097 = vunpack.c.l.b16 %v1945
      %v2098 = vunpack.c.l.b16 %v1946
      %v2099 = vunpack.c.l.b16 %v1947
      %v2100 = vunpack.c.l.b16 %v1948
      %v2101 = vunpack.c.l.b16 %v1949
      %v2102 = vunpack.c.l.b16 %v1950
      %v2103 = vunpack.c.l.b16 %v1951
      %v2104 = vunpack.c.l.b16 %v1952
      %v2105 = vunpack.c.l.b16 %v1953
      %v2106 = vunpack.c.l.b16 %v1954
      %v2107 = vpack.c.b16 %v2092, %v2091
      %v2108 = vpack.c.b16 %v2094, %v2093
      %v2109 = vpack.c.b16 %v2096, %v2095
      %v2110 = vpack.c.b16 %v2098, %v2097
      %v2111 = vpack.c.b16 %v2100, %v2099
      %v2112 = vpack.c.b16 %v2102, %v2101
      %v2113 = vpack.c.b16 %v2104, %v2103
      %v2114 = vpack.c.b16 %v2106, %v2105
      %2123 = vmatpush.bf16.msra.mxu0 %v2114
      %2124 = vmatpush.bf16.msra.mxu0 %v2113
      %2125 = vmatpush.bf16.msra.mxu0 %v2112
      %2126 = vmatpush.bf16.msra.mxu0 %v2111
      %2127 = vmatpush.bf16.msra.mxu0 %v2110
      %2128 = vmatpush.bf16.msra.mxu0 %v2109
      %2129 = vmatpush.bf16.msra.mxu0 %v2108
      %2130 = vmatpush.bf16.msra.mxu0 %v2107
      %2131 = vmatmul.bf16.gmra.mxu0 %v2010
      %v2132 = vpop.f32.mrf.mxu0
      %v2133 = vadd.f32 0.0, %v2132
      %v2134 = vpop.f32.mrf.mxu0
      %v2135 = vadd.f32 0.0, %v2134
      %2136 = vmatmul.bf16.gmra.mxu0 %v2018
      %v2137 = vpop.f32.mrf.mxu0
      %v2138 = vadd.f32 0.0, %v2137
      %v2139 = vpop.f32.mrf.mxu0
      %v2140 = vadd.f32 0.0, %v2139
      %2141 = vmatmul.bf16.gmra.mxu0 %v2026
      %v2142 = vpop.f32.mrf.mxu0
      %v2143 = vadd.f32 0.0, %v2142
      %v2144 = vpop.f32.mrf.mxu0
      %v2145 = vadd.f32 0.0, %v2144
      %2146 = vmatmul.bf16.gmra.mxu0 %v2034
      %v2147 = vpop.f32.mrf.mxu0
      %v2148 = vadd.f32 0.0, %v2147
      %v2149 = vpop.f32.mrf.mxu0
      %v2150 = vadd.f32 0.0, %v2149
      %2151 = vmatmul.bf16.gmra.mxu0 %v2042
      %v2152 = vpop.f32.mrf.mxu0
      %v2153 = vadd.f32 0.0, %v2152
      %v2154 = vpop.f32.mrf.mxu0
      %v2155 = vadd.f32 0.0, %v2154
      %2156 = vmatmul.bf16.gmra.mxu0 %v2050
      %v2157 = vpop.f32.mrf.mxu0
      %v2158 = vadd.f32 0.0, %v2157
      %v2159 = vpop.f32.mrf.mxu0
      %v2160 = vadd.f32 0.0, %v2159
      %2161 = vmatmul.bf16.gmra.mxu0 %v2058
      %v2162 = vpop.f32.mrf.mxu0
      %v2163 = vadd.f32 0.0, %v2162
      %v2164 = vpop.f32.mrf.mxu0
      %v2165 = vadd.f32 0.0, %v2164
      %2166 = vmatmul.bf16.gmra.mxu0 %v2066
      %v2167 = vpop.f32.mrf.mxu0
      %v2168 = vadd.f32 0.0, %v2167
      %v2169 = vpop.f32.mrf.mxu0
      %v2170 = vadd.f32 0.0, %v2169
      %2171 = vdwg.mxu0
      %v2172 = vadd.f32 %v1905, %v2133
      %v2173 = vadd.f32 %v1906, %v2135
      %v2174 = vadd.f32 %v1907, %v2138
      %v2175 = vadd.f32 %v1908, %v2140
      %v2176 = vadd.f32 %v1909, %v2143
      %v2177 = vadd.f32 %v1910, %v2145
      %v2178 = vadd.f32 %v1911, %v2148
      %v2179 = vadd.f32 %v1912, %v2150
      %v2180 = vadd.f32 %v1913, %v2153
      %v2181 = vadd.f32 %v1914, %v2155
      %v2182 = vadd.f32 %v1915, %v2158
      %v2183 = vadd.f32 %v1916, %v2160
      %v2184 = vadd.f32 %v1917, %v2163
      %v2185 = vadd.f32 %v1918, %v2165
      %v2186 = vadd.f32 %v1919, %v2168
      %v2187 = vadd.f32 %v1920, %v2170
      %v2188 = vld [vmem:[#allocation2 + $0x14] sm:$0xf]
      %v2189 = vld [vmem:[#allocation2 + $0x18] sm:$0xf]
      %v2190 = vld [vmem:[#allocation2 + $0x1c] sm:$0xf]
      %v2191 = vld [vmem:[#allocation2 + $0x20] sm:$0xf]
      %v2192 = vld [vmem:[#allocation2 + $0x24] sm:$0xf]
      %v2193 = vld [vmem:[#allocation2 + $0x28] sm:$0xf]
      %v2194 = vld [vmem:[#allocation2 + $0x2c] sm:$0xf]
      %v2195 = vld [vmem:[#allocation2 + $0x30] sm:$0xf]
      %v2196 = vld [vmem:[#allocation2 + $0x34] sm:$0xf]
      %v2197 = vld [vmem:[#allocation2 + $0x38] sm:$0xf]
      %v2198 = vld [vmem:[#allocation2 + $0x3c] sm:$0xf]
      %v2199 = vld [vmem:[#allocation2 + $0x40] sm:$0xf]
      %v2200 = vld [vmem:[#allocation2 + $0x44] sm:$0xf]
      %v2201 = vld [vmem:[#allocation2 + $0x48] sm:$0xf]
      %v2202 = vld [vmem:[#allocation2 + $0x4c] sm:$0xf]
      %v2203 = vld [vmem:[#allocation2 + $0x50] sm:$0xf]
      %v2204 = vld [vmem:[#allocation2 + $0x54] sm:$0x1]
      %s2205 = scalar_lea.vmem %s1, 384
      %v2206 = vld [vmem:[%s2205] sm:$0xf]
      %v2207 = vld [vmem:[%s2205 + $0x4] sm:$0xf]
      %v2208 = vld [vmem:[%s2205 + $0x8] sm:$0xf]
      %v2209 = vld [vmem:[%s2205 + $0xc] sm:$0xf]
      %v2210 = vld [vmem:[%s2205 + $0x10] sm:$0xf]
      %v2211 = vld [vmem:[%s2205 + $0x14] sm:$0xf]
      %v2212 = vld [vmem:[%s2205 + $0x18] sm:$0xf]
      %v2213 = vld [vmem:[%s2205 + $0x1c] sm:$0xf]
      %v2214 = vld [vmem:[%s2205 + $0x20] sm:$0xf]
      %v2215 = vld [vmem:[%s2205 + $0x24] sm:$0xf]
      %v2216 = vld [vmem:[%s2205 + $0x28] sm:$0xf]
      %v2217 = vld [vmem:[%s2205 + $0x2c] sm:$0xf]
      %v2218 = vld [vmem:[%s2205 + $0x30] sm:$0xf]
      %v2219 = vld [vmem:[%s2205 + $0x34] sm:$0xf]
      %v2220 = vld [vmem:[%s2205 + $0x38] sm:$0xf]
      %v2221 = vld [vmem:[%s2205 + $0x3c] sm:$0xf]
      %v2239 = vunpack.c.l.b16 %v2188
      %v2240 = vunpack.c.l.b16 %v2189
      %v2241 = vunpack.c.l.b16 %v2190
      %v2242 = vunpack.c.l.b16 %v2191
      %v2243 = vunpack.c.l.b16 %v2192
      %v2244 = vunpack.c.l.b16 %v2193
      %v2245 = vunpack.c.l.b16 %v2194
      %v2246 = vunpack.c.l.b16 %v2195
      %v2247 = vunpack.c.l.b16 %v2196
      %v2248 = vunpack.c.l.b16 %v2197
      %v2249 = vunpack.c.l.b16 %v2198
      %v2250 = vunpack.c.l.b16 %v2199
      %v2251 = vunpack.c.l.b16 %v2200
      %v2252 = vunpack.c.l.b16 %v2201
      %v2253 = vunpack.c.l.b16 %v2202
      %v2254 = vunpack.c.l.b16 %v2203
      %v2255 = vunpack.c.l.b16 %v2204
      %v2256 = vpack.c.b16 %v2240, %v2239
      %v2257 = vpack.c.b16 %v2242, %v2241
      %v2258 = vpack.c.b16 %v2244, %v2243
      %v2259 = vpack.c.b16 %v2246, %v2245
      %v2260 = vpack.c.b16 %v2248, %v2247
      %v2261 = vpack.c.b16 %v2250, %v2249
      %v2262 = vpack.c.b16 %v2252, %v2251
      %v2263 = vpack.c.b16 %v2254, %v2253
      %v2264 = vpack.c.b16 %v2255, %v2255
      %v2266 = vshrl.u32 %v2256, 16
      %v2268 = vshll.u32 %v2256, 16
      %v2270 = vrot.slane %v2268, 1
      %v2271 = vor.u32 %v2266, %v2270
      %v2273 = vshll.u32 %v2257, 16
      %v2275 = vrot.slane %v2273, 1
      %v2276 = vsel %vm1998, %v2271, %v2275
      %v2277 = vshrl.u32 %v2257, 16
      %v2279 = vor.u32 %v2277, %v2275
      %v2281 = vshll.u32 %v2258, 16
      %v2283 = vrot.slane %v2281, 1
      %v2284 = vsel %vm1998, %v2279, %v2283
      %v2285 = vshrl.u32 %v2258, 16
      %v2287 = vor.u32 %v2285, %v2283
      %v2289 = vshll.u32 %v2259, 16
      %v2291 = vrot.slane %v2289, 1
      %v2292 = vsel %vm1998, %v2287, %v2291
      %v2293 = vshrl.u32 %v2259, 16
      %v2295 = vor.u32 %v2293, %v2291
      %v2297 = vshll.u32 %v2260, 16
      %v2299 = vrot.slane %v2297, 1
      %v2300 = vsel %vm1998, %v2295, %v2299
      %v2301 = vshrl.u32 %v2260, 16
      %v2303 = vor.u32 %v2301, %v2299
      %v2305 = vshll.u32 %v2261, 16
      %v2307 = vrot.slane %v2305, 1
      %v2308 = vsel %vm1998, %v2303, %v2307
      %v2309 = vshrl.u32 %v2261, 16
      %v2311 = vor.u32 %v2309, %v2307
      %v2313 = vshll.u32 %v2262, 16
      %v2315 = vrot.slane %v2313, 1
      %v2316 = vsel %vm1998, %v2311, %v2315
      %v2317 = vshrl.u32 %v2262, 16
      %v2319 = vor.u32 %v2317, %v2315
      %v2321 = vshll.u32 %v2263, 16
      %v2323 = vrot.slane %v2321, 1
      %v2324 = vsel %vm1998, %v2319, %v2323
      %v2325 = vshrl.u32 %v2263, 16
      %v2327 = vor.u32 %v2325, %v2323
      %v2329 = vshll.u32 %v2264, 16
      %v2331 = vrot.slane %v2329, 1
      %v2332 = vsel %vm1998, %v2327, %v2331
      %v2357 = vunpack.c.l.b16 %v2206
      %v2358 = vunpack.c.l.b16 %v2207
      %v2359 = vunpack.c.l.b16 %v2208
      %v2360 = vunpack.c.l.b16 %v2209
      %v2361 = vunpack.c.l.b16 %v2210
      %v2362 = vunpack.c.l.b16 %v2211
      %v2363 = vunpack.c.l.b16 %v2212
      %v2364 = vunpack.c.l.b16 %v2213
      %v2365 = vunpack.c.l.b16 %v2214
      %v2366 = vunpack.c.l.b16 %v2215
      %v2367 = vunpack.c.l.b16 %v2216
      %v2368 = vunpack.c.l.b16 %v2217
      %v2369 = vunpack.c.l.b16 %v2218
      %v2370 = vunpack.c.l.b16 %v2219
      %v2371 = vunpack.c.l.b16 %v2220
      %v2372 = vunpack.c.l.b16 %v2221
      %v2373 = vpack.c.b16 %v2358, %v2357
      %v2374 = vpack.c.b16 %v2360, %v2359
      %v2375 = vpack.c.b16 %v2362, %v2361
      %v2376 = vpack.c.b16 %v2364, %v2363
      %v2377 = vpack.c.b16 %v2366, %v2365
      %v2378 = vpack.c.b16 %v2368, %v2367
      %v2379 = vpack.c.b16 %v2370, %v2369
      %v2380 = vpack.c.b16 %v2372, %v2371
      %2389 = vmatpush.bf16.msra.mxu0 %v2380
      %2390 = vmatpush.bf16.msra.mxu0 %v2379
      %2391 = vmatpush.bf16.msra.mxu0 %v2378
      %2392 = vmatpush.bf16.msra.mxu0 %v2377
      %2393 = vmatpush.bf16.msra.mxu0 %v2376
      %2394 = vmatpush.bf16.msra.mxu0 %v2375
      %2395 = vmatpush.bf16.msra.mxu0 %v2374
      %2396 = vmatpush.bf16.msra.mxu0 %v2373
      %2397 = vmatmul.bf16.gmra.mxu0 %v2276
      %v2398 = vpop.f32.mrf.mxu0
      %v2399 = vadd.f32 0.0, %v2398
      %v2400 = vpop.f32.mrf.mxu0
      %v2401 = vadd.f32 0.0, %v2400
      %2402 = vmatmul.bf16.gmra.mxu0 %v2284
      %v2403 = vpop.f32.mrf.mxu0
      %v2404 = vadd.f32 0.0, %v2403
      %v2405 = vpop.f32.mrf.mxu0
      %v2406 = vadd.f32 0.0, %v2405
      %2407 = vmatmul.bf16.gmra.mxu0 %v2292
      %v2408 = vpop.f32.mrf.mxu0
      %v2409 = vadd.f32 0.0, %v2408
      %v2410 = vpop.f32.mrf.mxu0
      %v2411 = vadd.f32 0.0, %v2410
      %2412 = vmatmul.bf16.gmra.mxu0 %v2300
      %v2413 = vpop.f32.mrf.mxu0
      %v2414 = vadd.f32 0.0, %v2413
      %v2415 = vpop.f32.mrf.mxu0
      %v2416 = vadd.f32 0.0, %v2415
      %2417 = vmatmul.bf16.gmra.mxu0 %v2308
      %v2418 = vpop.f32.mrf.mxu0
      %v2419 = vadd.f32 0.0, %v2418
      %v2420 = vpop.f32.mrf.mxu0
      %v2421 = vadd.f32 0.0, %v2420
      %2422 = vmatmul.bf16.gmra.mxu0 %v2316
      %v2423 = vpop.f32.mrf.mxu0
      %v2424 = vadd.f32 0.0, %v2423
      %v2425 = vpop.f32.mrf.mxu0
      %v2426 = vadd.f32 0.0, %v2425
      %2427 = vmatmul.bf16.gmra.mxu0 %v2324
      %v2428 = vpop.f32.mrf.mxu0
      %v2429 = vadd.f32 0.0, %v2428
      %v2430 = vpop.f32.mrf.mxu0
      %v2431 = vadd.f32 0.0, %v2430
      %2432 = vmatmul.bf16.gmra.mxu0 %v2332
      %v2433 = vpop.f32.mrf.mxu0
      %v2434 = vadd.f32 0.0, %v2433
      %v2435 = vpop.f32.mrf.mxu0
      %v2436 = vadd.f32 0.0, %v2435
      %2437 = vdwg.mxu0
      %v2438 = vadd.f32 %v2172, %v2399
      %v2439 = vadd.f32 %v2173, %v2401
      %v2440 = vadd.f32 %v2174, %v2404
      %v2441 = vadd.f32 %v2175, %v2406
      %v2442 = vadd.f32 %v2176, %v2409
      %v2443 = vadd.f32 %v2177, %v2411
      %v2444 = vadd.f32 %v2178, %v2414
      %v2445 = vadd.f32 %v2179, %v2416
      %v2446 = vadd.f32 %v2180, %v2419
      %v2447 = vadd.f32 %v2181, %v2421
      %v2448 = vadd.f32 %v2182, %v2424
      %v2449 = vadd.f32 %v2183, %v2426
      %v2450 = vadd.f32 %v2184, %v2429
      %v2451 = vadd.f32 %v2185, %v2431
      %v2452 = vadd.f32 %v2186, %v2434
      %v2453 = vadd.f32 %v2187, %v2436
      %v2454 = vld [vmem:[#allocation2 + $0x14] sm:$0xe]
      %s2455 = scalar_lea.vmem %s1, 448
      %v2456 = vld [vmem:[%s2455] sm:$0xf]
      %v2457 = vld [vmem:[%s2455 + $0x4] sm:$0xf]
      %v2458 = vld [vmem:[%s2455 + $0x8] sm:$0xf]
      %v2459 = vld [vmem:[%s2455 + $0xc] sm:$0xf]
      %v2460 = vld [vmem:[%s2455 + $0x10] sm:$0xf]
      %v2461 = vld [vmem:[%s2455 + $0x14] sm:$0xf]
      %v2462 = vld [vmem:[%s2455 + $0x18] sm:$0xf]
      %v2463 = vld [vmem:[%s2455 + $0x1c] sm:$0xf]
      %v2464 = vld [vmem:[%s2455 + $0x20] sm:$0xf]
      %v2465 = vld [vmem:[%s2455 + $0x24] sm:$0xf]
      %v2466 = vld [vmem:[%s2455 + $0x28] sm:$0xf]
      %v2467 = vld [vmem:[%s2455 + $0x2c] sm:$0xf]
      %v2468 = vld [vmem:[%s2455 + $0x30] sm:$0xf]
      %v2469 = vld [vmem:[%s2455 + $0x34] sm:$0xf]
      %v2470 = vld [vmem:[%s2455 + $0x38] sm:$0xf]
      %v2471 = vld [vmem:[%s2455 + $0x3c] sm:$0xf]
      %v2473 = vunpack.c.l.b16 %v2454
      %v2474 = vpack.c.b16 %v2240, %v2473
      %vm2475 = vcmask 1046528
      %v2476 = vrot.slane %v2474, 1
      %v2477 = vrot.slane %v2257, 1
      %v2478 = vsel %vm2475, %v2476, %v2477
      %v2479 = vrot.slane %v2258, 1
      %v2480 = vsel %vm2475, %v2477, %v2479
      %v2481 = vrot.slane %v2259, 1
      %v2482 = vsel %vm2475, %v2479, %v2481
      %v2483 = vrot.slane %v2260, 1
      %v2484 = vsel %vm2475, %v2481, %v2483
      %v2485 = vrot.slane %v2261, 1
      %v2486 = vsel %vm2475, %v2483, %v2485
      %v2487 = vrot.slane %v2262, 1
      %v2488 = vsel %vm2475, %v2485, %v2487
      %v2489 = vrot.slane %v2263, 1
      %v2490 = vsel %vm2475, %v2487, %v2489
      %v2491 = vrot.slane %v2264, 1
      %v2492 = vsel %vm2475, %v2489, %v2491
      %v2517 = vunpack.c.l.b16 %v2456
      %v2518 = vunpack.c.l.b16 %v2457
      %v2519 = vunpack.c.l.b16 %v2458
      %v2520 = vunpack.c.l.b16 %v2459
      %v2521 = vunpack.c.l.b16 %v2460
      %v2522 = vunpack.c.l.b16 %v2461
      %v2523 = vunpack.c.l.b16 %v2462
      %v2524 = vunpack.c.l.b16 %v2463
      %v2525 = vunpack.c.l.b16 %v2464
      %v2526 = vunpack.c.l.b16 %v2465
      %v2527 = vunpack.c.l.b16 %v2466
      %v2528 = vunpack.c.l.b16 %v2467
      %v2529 = vunpack.c.l.b16 %v2468
      %v2530 = vunpack.c.l.b16 %v2469
      %v2531 = vunpack.c.l.b16 %v2470
      %v2532 = vunpack.c.l.b16 %v2471
      %v2533 = vpack.c.b16 %v2518, %v2517
      %v2534 = vpack.c.b16 %v2520, %v2519
      %v2535 = vpack.c.b16 %v2522, %v2521
      %v2536 = vpack.c.b16 %v2524, %v2523
      %v2537 = vpack.c.b16 %v2526, %v2525
      %v2538 = vpack.c.b16 %v2528, %v2527
      %v2539 = vpack.c.b16 %v2530, %v2529
      %v2540 = vpack.c.b16 %v2532, %v2531
      %2549 = vmatpush.bf16.msra.mxu0 %v2540
      %2550 = vmatpush.bf16.msra.mxu0 %v2539
      %2551 = vmatpush.bf16.msra.mxu0 %v2538
      %2552 = vmatpush.bf16.msra.mxu0 %v2537
      %2553 = vmatpush.bf16.msra.mxu0 %v2536
      %2554 = vmatpush.bf16.msra.mxu0 %v2535
      %2555 = vmatpush.bf16.msra.mxu0 %v2534
      %2556 = vmatpush.bf16.msra.mxu0 %v2533
      %2557 = vmatmul.bf16.gmra.mxu0 %v2478
      %v2558 = vpop.f32.mrf.mxu0
      %v2559 = vadd.f32 0.0, %v2558
      %v2560 = vpop.f32.mrf.mxu0
      %v2561 = vadd.f32 0.0, %v2560
      %2562 = vmatmul.bf16.gmra.mxu0 %v2480
      %v2563 = vpop.f32.mrf.mxu0
      %v2564 = vadd.f32 0.0, %v2563
      %v2565 = vpop.f32.mrf.mxu0
      %v2566 = vadd.f32 0.0, %v2565
      %2567 = vmatmul.bf16.gmra.mxu0 %v2482
      %v2568 = vpop.f32.mrf.mxu0
      %v2569 = vadd.f32 0.0, %v2568
      %v2570 = vpop.f32.mrf.mxu0
      %v2571 = vadd.f32 0.0, %v2570
      %2572 = vmatmul.bf16.gmra.mxu0 %v2484
      %v2573 = vpop.f32.mrf.mxu0
      %v2574 = vadd.f32 0.0, %v2573
      %v2575 = vpop.f32.mrf.mxu0
      %v2576 = vadd.f32 0.0, %v2575
      %2577 = vmatmul.bf16.gmra.mxu0 %v2486
      %v2578 = vpop.f32.mrf.mxu0
      %v2579 = vadd.f32 0.0, %v2578
      %v2580 = vpop.f32.mrf.mxu0
      %v2581 = vadd.f32 0.0, %v2580
      %2582 = vmatmul.bf16.gmra.mxu0 %v2488
      %v2583 = vpop.f32.mrf.mxu0
      %v2584 = vadd.f32 0.0, %v2583
      %v2585 = vpop.f32.mrf.mxu0
      %v2586 = vadd.f32 0.0, %v2585
      %2587 = vmatmul.bf16.gmra.mxu0 %v2490
      %v2588 = vpop.f32.mrf.mxu0
      %v2589 = vadd.f32 0.0, %v2588
      %v2590 = vpop.f32.mrf.mxu0
      %v2591 = vadd.f32 0.0, %v2590
      %2592 = vmatmul.bf16.gmra.mxu0 %v2492
      %v2593 = vpop.f32.mrf.mxu0
      %v2594 = vadd.f32 0.0, %v2593
      %v2595 = vpop.f32.mrf.mxu0
      %v2596 = vadd.f32 0.0, %v2595
      %2597 = vdwg.mxu0
      %v2598 = vadd.f32 %v2438, %v2559
      %v2599 = vadd.f32 %v2439, %v2561
      %v2600 = vadd.f32 %v2440, %v2564
      %v2601 = vadd.f32 %v2441, %v2566
      %v2602 = vadd.f32 %v2442, %v2569
      %v2603 = vadd.f32 %v2443, %v2571
      %v2604 = vadd.f32 %v2444, %v2574
      %v2605 = vadd.f32 %v2445, %v2576
      %v2606 = vadd.f32 %v2446, %v2579
      %v2607 = vadd.f32 %v2447, %v2581
      %v2608 = vadd.f32 %v2448, %v2584
      %v2609 = vadd.f32 %v2449, %v2586
      %v2610 = vadd.f32 %v2450, %v2589
      %v2611 = vadd.f32 %v2451, %v2591
      %v2612 = vadd.f32 %v2452, %v2594
      %v2613 = vadd.f32 %v2453, %v2596
      %v2614 = vld [vmem:[#allocation2 + $0x54] sm:$0x3]
      %s2615 = scalar_lea.vmem %s1, 512
      %v2616 = vld [vmem:[%s2615] sm:$0xf]
      %v2617 = vld [vmem:[%s2615 + $0x4] sm:$0xf]
      %v2618 = vld [vmem:[%s2615 + $0x8] sm:$0xf]
      %v2619 = vld [vmem:[%s2615 + $0xc] sm:$0xf]
      %v2620 = vld [vmem:[%s2615 + $0x10] sm:$0xf]
      %v2621 = vld [vmem:[%s2615 + $0x14] sm:$0xf]
      %v2622 = vld [vmem:[%s2615 + $0x18] sm:$0xf]
      %v2623 = vld [vmem:[%s2615 + $0x1c] sm:$0xf]
      %v2624 = vld [vmem:[%s2615 + $0x20] sm:$0xf]
      %v2625 = vld [vmem:[%s2615 + $0x24] sm:$0xf]
      %v2626 = vld [vmem:[%s2615 + $0x28] sm:$0xf]
      %v2627 = vld [vmem:[%s2615 + $0x2c] sm:$0xf]
      %v2628 = vld [vmem:[%s2615 + $0x30] sm:$0xf]
      %v2629 = vld [vmem:[%s2615 + $0x34] sm:$0xf]
      %v2630 = vld [vmem:[%s2615 + $0x38] sm:$0xf]
      %v2631 = vld [vmem:[%s2615 + $0x3c] sm:$0xf]
      %v2633 = vunpack.c.l.b16 %v2614
      %v2634 = vpack.c.b16 %v2633, %v2633
      %vm2635 = vsmask.f32 6400
      %v2637 = vshrl.u32 %v2474, 16
      %v2639 = vrot.slane %v2637, 1
      %v2640 = vshll.u32 %v2474, 16
      %v2642 = vrot.slane %v2640, 2
      %v2643 = vor.u32 %v2639, %v2642
      %v2644 = vrot.slane %v2277, 1
      %v2645 = vrot.slane %v2273, 2
      %v2646 = vor.u32 %v2644, %v2645
      %v2647 = vsel %vm2635, %v2643, %v2646
      %v2648 = vrot.slane %v2285, 1
      %v2649 = vrot.slane %v2281, 2
      %v2650 = vor.u32 %v2648, %v2649
      %v2651 = vsel %vm2635, %v2646, %v2650
      %v2652 = vrot.slane %v2293, 1
      %v2653 = vrot.slane %v2289, 2
      %v2654 = vor.u32 %v2652, %v2653
      %v2655 = vsel %vm2635, %v2650, %v2654
      %v2656 = vrot.slane %v2301, 1
      %v2657 = vrot.slane %v2297, 2
      %v2658 = vor.u32 %v2656, %v2657
      %v2659 = vsel %vm2635, %v2654, %v2658
      %v2660 = vrot.slane %v2309, 1
      %v2661 = vrot.slane %v2305, 2
      %v2662 = vor.u32 %v2660, %v2661
      %v2663 = vsel %vm2635, %v2658, %v2662
      %v2664 = vrot.slane %v2317, 1
      %v2665 = vrot.slane %v2313, 2
      %v2666 = vor.u32 %v2664, %v2665
      %v2667 = vsel %vm2635, %v2662, %v2666
      %v2668 = vrot.slane %v2325, 1
      %v2669 = vrot.slane %v2321, 2
      %v2670 = vor.u32 %v2668, %v2669
      %v2671 = vsel %vm2635, %v2666, %v2670
      %v2673 = vshrl.u32 %v2634, 16
      %v2675 = vrot.slane %v2673, 1
      %v2676 = vshll.u32 %v2634, 16
      %v2678 = vrot.slane %v2676, 2
      %v2679 = vor.u32 %v2675, %v2678
      %v2680 = vsel %vm2635, %v2670, %v2679
      %v2705 = vunpack.c.l.b16 %v2616
      %v2706 = vunpack.c.l.b16 %v2617
      %v2707 = vunpack.c.l.b16 %v2618
      %v2708 = vunpack.c.l.b16 %v2619
      %v2709 = vunpack.c.l.b16 %v2620
      %v2710 = vunpack.c.l.b16 %v2621
      %v2711 = vunpack.c.l.b16 %v2622
      %v2712 = vunpack.c.l.b16 %v2623
      %v2713 = vunpack.c.l.b16 %v2624
      %v2714 = vunpack.c.l.b16 %v2625
      %v2715 = vunpack.c.l.b16 %v2626
      %v2716 = vunpack.c.l.b16 %v2627
      %v2717 = vunpack.c.l.b16 %v2628
      %v2718 = vunpack.c.l.b16 %v2629
      %v2719 = vunpack.c.l.b16 %v2630
      %v2720 = vunpack.c.l.b16 %v2631
      %v2721 = vpack.c.b16 %v2706, %v2705
      %v2722 = vpack.c.b16 %v2708, %v2707
      %v2723 = vpack.c.b16 %v2710, %v2709
      %v2724 = vpack.c.b16 %v2712, %v2711
      %v2725 = vpack.c.b16 %v2714, %v2713
      %v2726 = vpack.c.b16 %v2716, %v2715
      %v2727 = vpack.c.b16 %v2718, %v2717
      %v2728 = vpack.c.b16 %v2720, %v2719
      %2737 = vmatpush.bf16.msra.mxu0 %v2728
      %2738 = vmatpush.bf16.msra.mxu0 %v2727
      %2739 = vmatpush.bf16.msra.mxu0 %v2726
      %2740 = vmatpush.bf16.msra.mxu0 %v2725
      %2741 = vmatpush.bf16.msra.mxu0 %v2724
      %2742 = vmatpush.bf16.msra.mxu0 %v2723
      %2743 = vmatpush.bf16.msra.mxu0 %v2722
      %2744 = vmatpush.bf16.msra.mxu0 %v2721
      %2745 = vmatmul.bf16.gmra.mxu0 %v2647
      %v2746 = vpop.f32.mrf.mxu0
      %v2747 = vadd.f32 0.0, %v2746
      %v2748 = vpop.f32.mrf.mxu0
      %v2749 = vadd.f32 0.0, %v2748
      %2750 = vmatmul.bf16.gmra.mxu0 %v2651
      %v2751 = vpop.f32.mrf.mxu0
      %v2752 = vadd.f32 0.0, %v2751
      %v2753 = vpop.f32.mrf.mxu0
      %v2754 = vadd.f32 0.0, %v2753
      %2755 = vmatmul.bf16.gmra.mxu0 %v2655
      %v2756 = vpop.f32.mrf.mxu0
      %v2757 = vadd.f32 0.0, %v2756
      %v2758 = vpop.f32.mrf.mxu0
      %v2759 = vadd.f32 0.0, %v2758
      %2760 = vmatmul.bf16.gmra.mxu0 %v2659
      %v2761 = vpop.f32.mrf.mxu0
      %v2762 = vadd.f32 0.0, %v2761
      %v2763 = vpop.f32.mrf.mxu0
      %v2764 = vadd.f32 0.0, %v2763
      %2765 = vmatmul.bf16.gmra.mxu0 %v2663
      %v2766 = vpop.f32.mrf.mxu0
      %v2767 = vadd.f32 0.0, %v2766
      %v2768 = vpop.f32.mrf.mxu0
      %v2769 = vadd.f32 0.0, %v2768
      %2770 = vmatmul.bf16.gmra.mxu0 %v2667
      %v2771 = vpop.f32.mrf.mxu0
      %v2772 = vadd.f32 0.0, %v2771
      %v2773 = vpop.f32.mrf.mxu0
      %v2774 = vadd.f32 0.0, %v2773
      %2775 = vmatmul.bf16.gmra.mxu0 %v2671
      %v2776 = vpop.f32.mrf.mxu0
      %v2777 = vadd.f32 0.0, %v2776
      %v2778 = vpop.f32.mrf.mxu0
      %v2779 = vadd.f32 0.0, %v2778
      %2780 = vmatmul.bf16.gmra.mxu0 %v2680
      %v2781 = vpop.f32.mrf.mxu0
      %v2782 = vadd.f32 0.0, %v2781
      %v2783 = vpop.f32.mrf.mxu0
      %v2784 = vadd.f32 0.0, %v2783
      %2785 = vdwg.mxu0
      %v2786 = vadd.f32 %v2598, %v2747
      %v2787 = vadd.f32 %v2599, %v2749
      %v2788 = vadd.f32 %v2600, %v2752
      %v2789 = vadd.f32 %v2601, %v2754
      %v2790 = vadd.f32 %v2602, %v2757
      %v2791 = vadd.f32 %v2603, %v2759
      %v2792 = vadd.f32 %v2604, %v2762
      %v2793 = vadd.f32 %v2605, %v2764
      %v2794 = vadd.f32 %v2606, %v2767
      %v2795 = vadd.f32 %v2607, %v2769
      %v2796 = vadd.f32 %v2608, %v2772
      %v2797 = vadd.f32 %v2609, %v2774
      %v2798 = vadd.f32 %v2610, %v2777
      %v2799 = vadd.f32 %v2611, %v2779
      %v2800 = vadd.f32 %v2612, %v2782
      %v2801 = vadd.f32 %v2613, %v2784
      %v2802 = vld [vmem:[%s5] sm:$0x1]
      %v2804 = vperm.slane %v2802, 0
      %v2806 = vmul.f32 %v2786, %v2804
      %v2807 = vmul.f32 %v2787, %v2804
      %v2808 = vmul.f32 %v2788, %v2804
      %v2809 = vmul.f32 %v2789, %v2804
      %v2810 = vmul.f32 %v2790, %v2804
      %v2811 = vmul.f32 %v2791, %v2804
      %v2812 = vmul.f32 %v2792, %v2804
      %v2813 = vmul.f32 %v2793, %v2804
      %v2814 = vmul.f32 %v2794, %v2804
      %v2815 = vmul.f32 %v2795, %v2804
      %v2816 = vmul.f32 %v2796, %v2804
      %v2817 = vmul.f32 %v2797, %v2804
      %v2818 = vmul.f32 %v2798, %v2804
      %v2819 = vmul.f32 %v2799, %v2804
      %v2820 = vmul.f32 %v2800, %v2804
      %v2821 = vmul.f32 %v2801, %v2804
      %v2822 = vld [vmem:[%s6] sm:$0x1]
      %v2824 = vperm.slane %v2822, 0
      %v2826 = vadd.f32 %v2806, %v2824
      %v2827 = vadd.f32 %v2807, %v2824
      %v2828 = vadd.f32 %v2808, %v2824
      %v2829 = vadd.f32 %v2809, %v2824
      %v2830 = vadd.f32 %v2810, %v2824
      %v2831 = vadd.f32 %v2811, %v2824
      %v2832 = vadd.f32 %v2812, %v2824
      %v2833 = vadd.f32 %v2813, %v2824
      %v2834 = vadd.f32 %v2814, %v2824
      %v2835 = vadd.f32 %v2815, %v2824
      %v2836 = vadd.f32 %v2816, %v2824
      %v2837 = vadd.f32 %v2817, %v2824
      %v2838 = vadd.f32 %v2818, %v2824
      %v2839 = vadd.f32 %v2819, %v2824
      %v2840 = vadd.f32 %v2820, %v2824
      %v2841 = vadd.f32 %v2821, %v2824
      %v2842 = vmul.f32 %v2826, 0.1
      %v2843 = vmul.f32 %v2827, 0.1
      %v2844 = vmul.f32 %v2828, 0.1
      %v2845 = vmul.f32 %v2829, 0.1
      %v2846 = vmul.f32 %v2830, 0.1
      %v2847 = vmul.f32 %v2831, 0.1
      %v2848 = vmul.f32 %v2832, 0.1
      %v2849 = vmul.f32 %v2833, 0.1
      %v2850 = vmul.f32 %v2834, 0.1
      %v2851 = vmul.f32 %v2835, 0.1
      %v2852 = vmul.f32 %v2836, 0.1
      %v2853 = vmul.f32 %v2837, 0.1
      %v2854 = vmul.f32 %v2838, 0.1
      %v2855 = vmul.f32 %v2839, 0.1
      %v2856 = vmul.f32 %v2840, 0.1
      %v2857 = vmul.f32 %v2841, 0.1
      %v2858 = vmax.f32 %v2826, %v2842
      %v2859 = vmax.f32 %v2827, %v2843
      %v2860 = vmax.f32 %v2828, %v2844
      %v2861 = vmax.f32 %v2829, %v2845
      %v2862 = vmax.f32 %v2830, %v2846
      %v2863 = vmax.f32 %v2831, %v2847
      %v2864 = vmax.f32 %v2832, %v2848
      %v2865 = vmax.f32 %v2833, %v2849
      %v2866 = vmax.f32 %v2834, %v2850
      %v2867 = vmax.f32 %v2835, %v2851
      %v2868 = vmax.f32 %v2836, %v2852
      %v2869 = vmax.f32 %v2837, %v2853
      %v2870 = vmax.f32 %v2838, %v2854
      %v2871 = vmax.f32 %v2839, %v2855
      %v2872 = vmax.f32 %v2840, %v2856
      %v2873 = vmax.f32 %v2841, %v2857
      %v2874 = vld [vmem:[%s7] sm:$0xff]
      %v2875 = vld [vmem:[%s7 + $0x8] sm:$0xff]
      %v2876 = vld [vmem:[%s7 + $0x10] sm:$0xff]
      %v2877 = vld [vmem:[%s7 + $0x18] sm:$0xff]
      %v2878 = vld [vmem:[%s7 + $0x20] sm:$0xff]
      %v2879 = vld [vmem:[%s7 + $0x28] sm:$0xff]
      %v2880 = vld [vmem:[%s7 + $0x30] sm:$0xff]
      %v2881 = vld [vmem:[%s7 + $0x38] sm:$0xff]
      %v2882 = vld [vmem:[%s7 + $0x40] sm:$0xff]
      %v2883 = vld [vmem:[%s7 + $0x48] sm:$0xff]
      %v2884 = vld [vmem:[%s7 + $0x50] sm:$0xff]
      %v2885 = vld [vmem:[%s7 + $0x58] sm:$0xff]
      %v2886 = vld [vmem:[%s7 + $0x60] sm:$0xff]
      %v2887 = vld [vmem:[%s7 + $0x68] sm:$0xff]
      %v2888 = vld [vmem:[%s7 + $0x70] sm:$0xff]
      %v2889 = vld [vmem:[%s7 + $0x78] sm:$0xff]
      %2891 = vset.pattern.permute.xlu0 0
      %2892 = vperm.xlu0 %2891, %v2874
      %v2893 = vpop.permute.xlu0 %2892
      %2896 = vset.pattern.permute.xlu0 0
      %2897 = vperm.xlu0 %2896, %v2875
      %v2898 = vpop.permute.xlu0 %2897
      %2901 = vset.pattern.permute.xlu0 0
      %2902 = vperm.xlu0 %2901, %v2876
      %v2903 = vpop.permute.xlu0 %2902
      %2906 = vset.pattern.permute.xlu0 0
      %2907 = vperm.xlu0 %2906, %v2877
      %v2908 = vpop.permute.xlu0 %2907
      %2911 = vset.pattern.permute.xlu0 0
      %2912 = vperm.xlu0 %2911, %v2878
      %v2913 = vpop.permute.xlu0 %2912
      %2916 = vset.pattern.permute.xlu0 0
      %2917 = vperm.xlu0 %2916, %v2879
      %v2918 = vpop.permute.xlu0 %2917
      %2921 = vset.pattern.permute.xlu0 0
      %2922 = vperm.xlu0 %2921, %v2880
      %v2923 = vpop.permute.xlu0 %2922
      %2926 = vset.pattern.permute.xlu0 0
      %2927 = vperm.xlu0 %2926, %v2881
      %v2928 = vpop.permute.xlu0 %2927
      %2931 = vset.pattern.permute.xlu0 0
      %2932 = vperm.xlu0 %2931, %v2882
      %v2933 = vpop.permute.xlu0 %2932
      %2936 = vset.pattern.permute.xlu0 0
      %2937 = vperm.xlu0 %2936, %v2883
      %v2938 = vpop.permute.xlu0 %2937
      %2941 = vset.pattern.permute.xlu0 0
      %2942 = vperm.xlu0 %2941, %v2884
      %v2943 = vpop.permute.xlu0 %2942
      %2946 = vset.pattern.permute.xlu0 0
      %2947 = vperm.xlu0 %2946, %v2885
      %v2948 = vpop.permute.xlu0 %2947
      %2951 = vset.pattern.permute.xlu0 0
      %2952 = vperm.xlu0 %2951, %v2886
      %v2953 = vpop.permute.xlu0 %2952
      %2956 = vset.pattern.permute.xlu0 0
      %2957 = vperm.xlu0 %2956, %v2887
      %v2958 = vpop.permute.xlu0 %2957
      %2961 = vset.pattern.permute.xlu0 0
      %2962 = vperm.xlu0 %2961, %v2888
      %v2963 = vpop.permute.xlu0 %2962
      %2966 = vset.pattern.permute.xlu0 0
      %2967 = vperm.xlu0 %2966, %v2889
      %v2968 = vpop.permute.xlu0 %2967
      %v2970 = vmul.f32 %v2858, %v2893
      %v2971 = vmul.f32 %v2859, %v2898
      %v2972 = vmul.f32 %v2860, %v2903
      %v2973 = vmul.f32 %v2861, %v2908
      %v2974 = vmul.f32 %v2862, %v2913
      %v2975 = vmul.f32 %v2863, %v2918
      %v2976 = vmul.f32 %v2864, %v2923
      %v2977 = vmul.f32 %v2865, %v2928
      %v2978 = vmul.f32 %v2866, %v2933
      %v2979 = vmul.f32 %v2867, %v2938
      %v2980 = vmul.f32 %v2868, %v2943
      %v2981 = vmul.f32 %v2869, %v2948
      %v2982 = vmul.f32 %v2870, %v2953
      %v2983 = vmul.f32 %v2871, %v2958
      %v2984 = vmul.f32 %v2872, %v2963
      %v2985 = vmul.f32 %v2873, %v2968
      %v2986 = vpack.c.bf16 %v2970, %v2970
      %v2987 = vpack.c.bf16 %v2971, %v2971
      %v2988 = vpack.c.bf16 %v2972, %v2972
      %v2989 = vpack.c.bf16 %v2973, %v2973
      %v2990 = vpack.c.bf16 %v2974, %v2974
      %v2991 = vpack.c.bf16 %v2975, %v2975
      %v2992 = vpack.c.bf16 %v2976, %v2976
      %v2993 = vpack.c.bf16 %v2977, %v2977
      %v2994 = vpack.c.bf16 %v2978, %v2978
      %v2995 = vpack.c.bf16 %v2979, %v2979
      %v2996 = vpack.c.bf16 %v2980, %v2980
      %v2997 = vpack.c.bf16 %v2981, %v2981
      %v2998 = vpack.c.bf16 %v2982, %v2982
      %v2999 = vpack.c.bf16 %v2983, %v2983
      %v3000 = vpack.c.bf16 %v2984, %v2984
      %v3001 = vpack.c.bf16 %v2985, %v2985
      %3002 = vst [vmem:[#allocation3 + $0xc] sm:$0xf] %v2986
      %3003 = vst [vmem:[#allocation3 + $0x10] sm:$0xf] %v2987
      %3004 = vst [vmem:[#allocation3 + $0x14] sm:$0xf] %v2988
      %3005 = vst [vmem:[#allocation3 + $0x18] sm:$0xf] %v2989
      %3006 = vst [vmem:[#allocation3 + $0x1c] sm:$0xf] %v2990
      %3007 = vst [vmem:[#allocation3 + $0x20] sm:$0xf] %v2991
      %3008 = vst [vmem:[#allocation3 + $0x24] sm:$0xf] %v2992
      %3009 = vst [vmem:[#allocation3 + $0x28] sm:$0xf] %v2993
      %3010 = vst [vmem:[#allocation3 + $0x2c] sm:$0xf] %v2994
      %3011 = vst [vmem:[#allocation3 + $0x30] sm:$0xf] %v2995
      %3012 = vst [vmem:[#allocation3 + $0x34] sm:$0xf] %v2996
      %3013 = vst [vmem:[#allocation3 + $0x38] sm:$0xf] %v2997
      %3014 = vst [vmem:[#allocation3 + $0x3c] sm:$0xf] %v2998
      %3015 = vst [vmem:[#allocation3 + $0x40] sm:$0xf] %v2999
      %3016 = vst [vmem:[#allocation3 + $0x44] sm:$0xf] %v3000
      %3017 = vst [vmem:[#allocation3 + $0x48] sm:$0xf] %v3001
      %v3018 = vld [vmem:[#allocation2 + $0x40] sm:$0xc]
      %v3019 = vld [vmem:[#allocation2 + $0x44] sm:$0xf]
      %v3020 = vld [vmem:[#allocation2 + $0x48] sm:$0xf]
      %v3021 = vld [vmem:[#allocation2 + $0x4c] sm:$0xf]
      %v3022 = vld [vmem:[#allocation2 + $0x50] sm:$0xf]
      %v3023 = vld [vmem:[#allocation2 + $0x54] sm:$0xf]
      %v3024 = vld [vmem:[#allocation2 + $0x58] sm:$0xf]
      %v3025 = vld [vmem:[#allocation2 + $0x5c] sm:$0xf]
      %v3026 = vld [vmem:[#allocation2 + $0x60] sm:$0xf]
      %v3027 = vld [vmem:[#allocation2 + $0x64] sm:$0xf]
      %v3028 = vld [vmem:[#allocation2 + $0x68] sm:$0xf]
      %v3029 = vld [vmem:[#allocation2 + $0x6c] sm:$0xf]
      %v3030 = vld [vmem:[#allocation2 + $0x70] sm:$0xf]
      %v3031 = vld [vmem:[#allocation2 + $0x74] sm:$0xf]
      %v3032 = vld [vmem:[#allocation2 + $0x78] sm:$0xf]
      %v3033 = vld [vmem:[#allocation2 + $0x7c] sm:$0xf]
      %v3034 = vld [vmem:[#allocation2 + $0x80] sm:$0x7]
      %v3035 = vld [vmem:[%s1] sm:$0xf]
      %v3036 = vld [vmem:[%s1 + $0x4] sm:$0xf]
      %v3037 = vld [vmem:[%s1 + $0x8] sm:$0xf]
      %v3038 = vld [vmem:[%s1 + $0xc] sm:$0xf]
      %v3039 = vld [vmem:[%s1 + $0x10] sm:$0xf]
      %v3040 = vld [vmem:[%s1 + $0x14] sm:$0xf]
      %v3041 = vld [vmem:[%s1 + $0x18] sm:$0xf]
      %v3042 = vld [vmem:[%s1 + $0x1c] sm:$0xf]
      %v3043 = vld [vmem:[%s1 + $0x20] sm:$0xf]
      %v3044 = vld [vmem:[%s1 + $0x24] sm:$0xf]
      %v3045 = vld [vmem:[%s1 + $0x28] sm:$0xf]
      %v3046 = vld [vmem:[%s1 + $0x2c] sm:$0xf]
      %v3047 = vld [vmem:[%s1 + $0x30] sm:$0xf]
      %v3048 = vld [vmem:[%s1 + $0x34] sm:$0xf]
      %v3049 = vld [vmem:[%s1 + $0x38] sm:$0xf]
      %v3050 = vld [vmem:[%s1 + $0x3c] sm:$0xf]
      %v3051 = vld [vmem:[#allocation2 + $0x40] sm:$0x8]
      %v3052 = vld [vmem:[%s937] sm:$0xf]
      %v3053 = vld [vmem:[%s937 + $0x4] sm:$0xf]
      %v3054 = vld [vmem:[%s937 + $0x8] sm:$0xf]
      %v3055 = vld [vmem:[%s937 + $0xc] sm:$0xf]
      %v3056 = vld [vmem:[%s937 + $0x10] sm:$0xf]
      %v3057 = vld [vmem:[%s937 + $0x14] sm:$0xf]
      %v3058 = vld [vmem:[%s937 + $0x18] sm:$0xf]
      %v3059 = vld [vmem:[%s937 + $0x1c] sm:$0xf]
      %v3060 = vld [vmem:[%s937 + $0x20] sm:$0xf]
      %v3061 = vld [vmem:[%s937 + $0x24] sm:$0xf]
      %v3062 = vld [vmem:[%s937 + $0x28] sm:$0xf]
      %v3063 = vld [vmem:[%s937 + $0x2c] sm:$0xf]
      %v3064 = vld [vmem:[%s937 + $0x30] sm:$0xf]
      %v3065 = vld [vmem:[%s937 + $0x34] sm:$0xf]
      %v3066 = vld [vmem:[%s937 + $0x38] sm:$0xf]
      %v3067 = vld [vmem:[%s937 + $0x3c] sm:$0xf]
      %v3085 = vunpack.c.l.b16 %v3051
      %v3086 = vunpack.c.l.b16 %v3019
      %v3087 = vunpack.c.l.b16 %v3020
      %v3088 = vunpack.c.l.b16 %v3021
      %v3089 = vunpack.c.l.b16 %v3022
      %v3090 = vunpack.c.l.b16 %v3023
      %v3091 = vunpack.c.l.b16 %v3024
      %v3092 = vunpack.c.l.b16 %v3025
      %v3093 = vunpack.c.l.b16 %v3026
      %v3094 = vunpack.c.l.b16 %v3027
      %v3095 = vunpack.c.l.b16 %v3028
      %v3096 = vunpack.c.l.b16 %v3029
      %v3097 = vunpack.c.l.b16 %v3030
      %v3098 = vunpack.c.l.b16 %v3031
      %v3099 = vunpack.c.l.b16 %v3032
      %v3100 = vunpack.c.l.b16 %v3033
      %v3101 = vunpack.c.l.b16 %v3034
      %v3102 = vpack.c.b16 %v3086, %v3085
      %v3103 = vpack.c.b16 %v3088, %v3087
      %v3104 = vpack.c.b16 %v3090, %v3089
      %v3105 = vpack.c.b16 %v3092, %v3091
      %v3106 = vpack.c.b16 %v3094, %v3093
      %v3107 = vpack.c.b16 %v3096, %v3095
      %v3108 = vpack.c.b16 %v3098, %v3097
      %v3109 = vpack.c.b16 %v3100, %v3099
      %v3110 = vpack.c.b16 %v3101, %v3101
      %v3111 = vrot.slane %v3102, 3
      %v3112 = vrot.slane %v3103, 3
      %v3113 = vsel %vm997, %v3111, %v3112
      %v3114 = vrot.slane %v3104, 3
      %v3115 = vsel %vm997, %v3112, %v3114
      %v3116 = vrot.slane %v3105, 3
      %v3117 = vsel %vm997, %v3114, %v3116
      %v3118 = vrot.slane %v3106, 3
      %v3119 = vsel %vm997, %v3116, %v3118
      %v3120 = vrot.slane %v3107, 3
      %v3121 = vsel %vm997, %v3118, %v3120
      %v3122 = vrot.slane %v3108, 3
      %v3123 = vsel %vm997, %v3120, %v3122
      %v3124 = vrot.slane %v3109, 3
      %v3125 = vsel %vm997, %v3122, %v3124
      %v3126 = vrot.slane %v3110, 3
      %v3127 = vsel %vm997, %v3124, %v3126
      %v3152 = vunpack.c.l.b16 %v3052
      %v3153 = vunpack.c.l.b16 %v3053
      %v3154 = vunpack.c.l.b16 %v3054
      %v3155 = vunpack.c.l.b16 %v3055
      %v3156 = vunpack.c.l.b16 %v3056
      %v3157 = vunpack.c.l.b16 %v3057
      %v3158 = vunpack.c.l.b16 %v3058
      %v3159 = vunpack.c.l.b16 %v3059
      %v3160 = vunpack.c.l.b16 %v3060
      %v3161 = vunpack.c.l.b16 %v3061
      %v3162 = vunpack.c.l.b16 %v3062
      %v3163 = vunpack.c.l.b16 %v3063
      %v3164 = vunpack.c.l.b16 %v3064
      %v3165 = vunpack.c.l.b16 %v3065
      %v3166 = vunpack.c.l.b16 %v3066
      %v3167 = vunpack.c.l.b16 %v3067
      %v3168 = vpack.c.b16 %v3153, %v3152
      %v3169 = vpack.c.b16 %v3155, %v3154
      %v3170 = vpack.c.b16 %v3157, %v3156
      %v3171 = vpack.c.b16 %v3159, %v3158
      %v3172 = vpack.c.b16 %v3161, %v3160
      %v3173 = vpack.c.b16 %v3163, %v3162
      %v3174 = vpack.c.b16 %v3165, %v3164
      %v3175 = vpack.c.b16 %v3167, %v3166
      %3184 = vmatpush.bf16.msra.mxu0 %v3175
      %3185 = vmatpush.bf16.msra.mxu0 %v3174
      %3186 = vmatpush.bf16.msra.mxu0 %v3173
      %3187 = vmatpush.bf16.msra.mxu0 %v3172
      %3188 = vmatpush.bf16.msra.mxu0 %v3171
      %3189 = vmatpush.bf16.msra.mxu0 %v3170
      %3190 = vmatpush.bf16.msra.mxu0 %v3169
      %3191 = vmatpush.bf16.msra.mxu0 %v3168
      %3192 = vmatmul.bf16.gmra.mxu0 %v3113
      %v3193 = vpop.f32.mrf.mxu0
      %v3194 = vadd.f32 0.0, %v3193
      %v3195 = vpop.f32.mrf.mxu0
      %v3196 = vadd.f32 0.0, %v3195
      %3197 = vmatmul.bf16.gmra.mxu0 %v3115
      %v3198 = vpop.f32.mrf.mxu0
      %v3199 = vadd.f32 0.0, %v3198
      %v3200 = vpop.f32.mrf.mxu0
      %v3201 = vadd.f32 0.0, %v3200
      %3202 = vmatmul.bf16.gmra.mxu0 %v3117
      %v3203 = vpop.f32.mrf.mxu0
      %v3204 = vadd.f32 0.0, %v3203
      %v3205 = vpop.f32.mrf.mxu0
      %v3206 = vadd.f32 0.0, %v3205
      %3207 = vmatmul.bf16.gmra.mxu0 %v3119
      %v3208 = vpop.f32.mrf.mxu0
      %v3209 = vadd.f32 0.0, %v3208
      %v3210 = vpop.f32.mrf.mxu0
      %v3211 = vadd.f32 0.0, %v3210
      %3212 = vmatmul.bf16.gmra.mxu0 %v3121
      %v3213 = vpop.f32.mrf.mxu0
      %v3214 = vadd.f32 0.0, %v3213
      %v3215 = vpop.f32.mrf.mxu0
      %v3216 = vadd.f32 0.0, %v3215
      %3217 = vmatmul.bf16.gmra.mxu0 %v3123
      %v3218 = vpop.f32.mrf.mxu0
      %v3219 = vadd.f32 0.0, %v3218
      %v3220 = vpop.f32.mrf.mxu0
      %v3221 = vadd.f32 0.0, %v3220
      %3222 = vmatmul.bf16.gmra.mxu0 %v3125
      %v3223 = vpop.f32.mrf.mxu0
      %v3224 = vadd.f32 0.0, %v3223
      %v3225 = vpop.f32.mrf.mxu0
      %v3226 = vadd.f32 0.0, %v3225
      %3227 = vmatmul.bf16.gmra.mxu0 %v3127
      %v3228 = vpop.f32.mrf.mxu0
      %v3229 = vadd.f32 0.0, %v3228
      %v3230 = vpop.f32.mrf.mxu0
      %v3231 = vadd.f32 0.0, %v3230
      %3232 = vdwg.mxu0
      %v3234 = vunpack.c.l.b16 %v3018
      %v3235 = vpack.c.b16 %v3086, %v3234
      %v3237 = vshrl.u32 %v3235, 16
      %v3239 = vrot.slane %v3237, 2
      %v3240 = vshll.u32 %v3235, 16
      %v3242 = vrot.slane %v3240, 3
      %v3243 = vor.u32 %v3239, %v3242
      %v3245 = vshrl.u32 %v3103, 16
      %v3247 = vrot.slane %v3245, 2
      %v3248 = vshll.u32 %v3103, 16
      %v3250 = vrot.slane %v3248, 3
      %v3251 = vor.u32 %v3247, %v3250
      %v3252 = vsel %vm1123, %v3243, %v3251
      %v3254 = vshrl.u32 %v3104, 16
      %v3256 = vrot.slane %v3254, 2
      %v3257 = vshll.u32 %v3104, 16
      %v3259 = vrot.slane %v3257, 3
      %v3260 = vor.u32 %v3256, %v3259
      %v3261 = vsel %vm1123, %v3251, %v3260
      %v3263 = vshrl.u32 %v3105, 16
      %v3265 = vrot.slane %v3263, 2
      %v3266 = vshll.u32 %v3105, 16
      %v3268 = vrot.slane %v3266, 3
      %v3269 = vor.u32 %v3265, %v3268
      %v3270 = vsel %vm1123, %v3260, %v3269
      %v3272 = vshrl.u32 %v3106, 16
      %v3274 = vrot.slane %v3272, 2
      %v3275 = vshll.u32 %v3106, 16
      %v3277 = vrot.slane %v3275, 3
      %v3278 = vor.u32 %v3274, %v3277
      %v3279 = vsel %vm1123, %v3269, %v3278
      %v3281 = vshrl.u32 %v3107, 16
      %v3283 = vrot.slane %v3281, 2
      %v3284 = vshll.u32 %v3107, 16
      %v3286 = vrot.slane %v3284, 3
      %v3287 = vor.u32 %v3283, %v3286
      %v3288 = vsel %vm1123, %v3278, %v3287
      %v3290 = vshrl.u32 %v3108, 16
      %v3292 = vrot.slane %v3290, 2
      %v3293 = vshll.u32 %v3108, 16
      %v3295 = vrot.slane %v3293, 3
      %v3296 = vor.u32 %v3292, %v3295
      %v3297 = vsel %vm1123, %v3287, %v3296
      %v3299 = vshrl.u32 %v3109, 16
      %v3301 = vrot.slane %v3299, 2
      %v3302 = vshll.u32 %v3109, 16
      %v3304 = vrot.slane %v3302, 3
      %v3305 = vor.u32 %v3301, %v3304
      %v3306 = vsel %vm1123, %v3296, %v3305
      %v3308 = vshrl.u32 %v3110, 16
      %v3310 = vrot.slane %v3308, 2
      %v3311 = vshll.u32 %v3110, 16
      %v3313 = vrot.slane %v3311, 3
      %v3314 = vor.u32 %v3310, %v3313
      %v3315 = vsel %vm1123, %v3305, %v3314
      %v3340 = vunpack.c.l.b16 %v3035
      %v3341 = vunpack.c.l.b16 %v3036
      %v3342 = vunpack.c.l.b16 %v3037
      %v3343 = vunpack.c.l.b16 %v3038
      %v3344 = vunpack.c.l.b16 %v3039
      %v3345 = vunpack.c.l.b16 %v3040
      %v3346 = vunpack.c.l.b16 %v3041
      %v3347 = vunpack.c.l.b16 %v3042
      %v3348 = vunpack.c.l.b16 %v3043
      %v3349 = vunpack.c.l.b16 %v3044
      %v3350 = vunpack.c.l.b16 %v3045
      %v3351 = vunpack.c.l.b16 %v3046
      %v3352 = vunpack.c.l.b16 %v3047
      %v3353 = vunpack.c.l.b16 %v3048
      %v3354 = vunpack.c.l.b16 %v3049
      %v3355 = vunpack.c.l.b16 %v3050
      %v3356 = vpack.c.b16 %v3341, %v3340
      %v3357 = vpack.c.b16 %v3343, %v3342
      %v3358 = vpack.c.b16 %v3345, %v3344
      %v3359 = vpack.c.b16 %v3347, %v3346
      %v3360 = vpack.c.b16 %v3349, %v3348
      %v3361 = vpack.c.b16 %v3351, %v3350
      %v3362 = vpack.c.b16 %v3353, %v3352
      %v3363 = vpack.c.b16 %v3355, %v3354
      %3372 = vmatpush.bf16.msra.mxu0 %v3363
      %3373 = vmatpush.bf16.msra.mxu0 %v3362
      %3374 = vmatpush.bf16.msra.mxu0 %v3361
      %3375 = vmatpush.bf16.msra.mxu0 %v3360
      %3376 = vmatpush.bf16.msra.mxu0 %v3359
      %3377 = vmatpush.bf16.msra.mxu0 %v3358
      %3378 = vmatpush.bf16.msra.mxu0 %v3357
      %3379 = vmatpush.bf16.msra.mxu0 %v3356
      %3380 = vmatmul.bf16.gmra.mxu0 %v3252
      %v3381 = vpop.f32.mrf.mxu0
      %v3382 = vadd.f32 %v3194, %v3381
      %v3383 = vpop.f32.mrf.mxu0
      %v3384 = vadd.f32 %v3196, %v3383
      %3385 = vmatmul.bf16.gmra.mxu0 %v3261
      %v3386 = vpop.f32.mrf.mxu0
      %v3387 = vadd.f32 %v3199, %v3386
      %v3388 = vpop.f32.mrf.mxu0
      %v3389 = vadd.f32 %v3201, %v3388
      %3390 = vmatmul.bf16.gmra.mxu0 %v3270
      %v3391 = vpop.f32.mrf.mxu0
      %v3392 = vadd.f32 %v3204, %v3391
      %v3393 = vpop.f32.mrf.mxu0
      %v3394 = vadd.f32 %v3206, %v3393
      %3395 = vmatmul.bf16.gmra.mxu0 %v3279
      %v3396 = vpop.f32.mrf.mxu0
      %v3397 = vadd.f32 %v3209, %v3396
      %v3398 = vpop.f32.mrf.mxu0
      %v3399 = vadd.f32 %v3211, %v3398
      %3400 = vmatmul.bf16.gmra.mxu0 %v3288
      %v3401 = vpop.f32.mrf.mxu0
      %v3402 = vadd.f32 %v3214, %v3401
      %v3403 = vpop.f32.mrf.mxu0
      %v3404 = vadd.f32 %v3216, %v3403
      %3405 = vmatmul.bf16.gmra.mxu0 %v3297
      %v3406 = vpop.f32.mrf.mxu0
      %v3407 = vadd.f32 %v3219, %v3406
      %v3408 = vpop.f32.mrf.mxu0
      %v3409 = vadd.f32 %v3221, %v3408
      %3410 = vmatmul.bf16.gmra.mxu0 %v3306
      %v3411 = vpop.f32.mrf.mxu0
      %v3412 = vadd.f32 %v3224, %v3411
      %v3413 = vpop.f32.mrf.mxu0
      %v3414 = vadd.f32 %v3226, %v3413
      %3415 = vmatmul.bf16.gmra.mxu0 %v3315
      %v3416 = vpop.f32.mrf.mxu0
      %v3417 = vadd.f32 %v3229, %v3416
      %v3418 = vpop.f32.mrf.mxu0
      %v3419 = vadd.f32 %v3231, %v3418
      %3420 = vdwg.mxu0
      %v3421 = vld [vmem:[#allocation2 + $0x80] sm:$0xf]
      %v3422 = vld [vmem:[%s1310] sm:$0xf]
      %v3423 = vld [vmem:[%s1310 + $0x4] sm:$0xf]
      %v3424 = vld [vmem:[%s1310 + $0x8] sm:$0xf]
      %v3425 = vld [vmem:[%s1310 + $0xc] sm:$0xf]
      %v3426 = vld [vmem:[%s1310 + $0x10] sm:$0xf]
      %v3427 = vld [vmem:[%s1310 + $0x14] sm:$0xf]
      %v3428 = vld [vmem:[%s1310 + $0x18] sm:$0xf]
      %v3429 = vld [vmem:[%s1310 + $0x1c] sm:$0xf]
      %v3430 = vld [vmem:[%s1310 + $0x20] sm:$0xf]
      %v3431 = vld [vmem:[%s1310 + $0x24] sm:$0xf]
      %v3432 = vld [vmem:[%s1310 + $0x28] sm:$0xf]
      %v3433 = vld [vmem:[%s1310 + $0x2c] sm:$0xf]
      %v3434 = vld [vmem:[%s1310 + $0x30] sm:$0xf]
      %v3435 = vld [vmem:[%s1310 + $0x34] sm:$0xf]
      %v3436 = vld [vmem:[%s1310 + $0x38] sm:$0xf]
      %v3437 = vld [vmem:[%s1310 + $0x3c] sm:$0xf]
      %v3439 = vunpack.c.l.b16 %v3421
      %v3440 = vpack.c.b16 %v3439, %v3439
      %v3442 = vshrl.u32 %v3102, 16
      %v3444 = vrot.slane %v3442, 3
      %v3445 = vshll.u32 %v3102, 16
      %v3447 = vrot.slane %v3445, 4
      %v3448 = vor.u32 %v3444, %v3447
      %v3449 = vrot.slane %v3245, 3
      %v3450 = vrot.slane %v3248, 4
      %v3451 = vor.u32 %v3449, %v3450
      %v3452 = vsel %vm1330, %v3448, %v3451
      %v3453 = vrot.slane %v3254, 3
      %v3454 = vrot.slane %v3257, 4
      %v3455 = vor.u32 %v3453, %v3454
      %v3456 = vsel %vm1330, %v3451, %v3455
      %v3457 = vrot.slane %v3263, 3
      %v3458 = vrot.slane %v3266, 4
      %v3459 = vor.u32 %v3457, %v3458
      %v3460 = vsel %vm1330, %v3455, %v3459
      %v3461 = vrot.slane %v3272, 3
      %v3462 = vrot.slane %v3275, 4
      %v3463 = vor.u32 %v3461, %v3462
      %v3464 = vsel %vm1330, %v3459, %v3463
      %v3465 = vrot.slane %v3281, 3
      %v3466 = vrot.slane %v3284, 4
      %v3467 = vor.u32 %v3465, %v3466
      %v3468 = vsel %vm1330, %v3463, %v3467
      %v3469 = vrot.slane %v3290, 3
      %v3470 = vrot.slane %v3293, 4
      %v3471 = vor.u32 %v3469, %v3470
      %v3472 = vsel %vm1330, %v3467, %v3471
      %v3473 = vrot.slane %v3299, 3
      %v3474 = vrot.slane %v3302, 4
      %v3475 = vor.u32 %v3473, %v3474
      %v3476 = vsel %vm1330, %v3471, %v3475
      %v3478 = vshrl.u32 %v3440, 16
      %v3480 = vrot.slane %v3478, 3
      %v3481 = vshll.u32 %v3440, 16
      %v3483 = vrot.slane %v3481, 4
      %v3484 = vor.u32 %v3480, %v3483
      %v3485 = vsel %vm1330, %v3475, %v3484
      %v3510 = vunpack.c.l.b16 %v3422
      %v3511 = vunpack.c.l.b16 %v3423
      %v3512 = vunpack.c.l.b16 %v3424
      %v3513 = vunpack.c.l.b16 %v3425
      %v3514 = vunpack.c.l.b16 %v3426
      %v3515 = vunpack.c.l.b16 %v3427
      %v3516 = vunpack.c.l.b16 %v3428
      %v3517 = vunpack.c.l.b16 %v3429
      %v3518 = vunpack.c.l.b16 %v3430
      %v3519 = vunpack.c.l.b16 %v3431
      %v3520 = vunpack.c.l.b16 %v3432
      %v3521 = vunpack.c.l.b16 %v3433
      %v3522 = vunpack.c.l.b16 %v3434
      %v3523 = vunpack.c.l.b16 %v3435
      %v3524 = vunpack.c.l.b16 %v3436
      %v3525 = vunpack.c.l.b16 %v3437
      %v3526 = vpack.c.b16 %v3511, %v3510
      %v3527 = vpack.c.b16 %v3513, %v3512
      %v3528 = vpack.c.b16 %v3515, %v3514
      %v3529 = vpack.c.b16 %v3517, %v3516
      %v3530 = vpack.c.b16 %v3519, %v3518
      %v3531 = vpack.c.b16 %v3521, %v3520
      %v3532 = vpack.c.b16 %v3523, %v3522
      %v3533 = vpack.c.b16 %v3525, %v3524
      %3542 = vmatpush.bf16.msra.mxu0 %v3533
      %3543 = vmatpush.bf16.msra.mxu0 %v3532
      %3544 = vmatpush.bf16.msra.mxu0 %v3531
      %3545 = vmatpush.bf16.msra.mxu0 %v3530
      %3546 = vmatpush.bf16.msra.mxu0 %v3529
      %3547 = vmatpush.bf16.msra.mxu0 %v3528
      %3548 = vmatpush.bf16.msra.mxu0 %v3527
      %3549 = vmatpush.bf16.msra.mxu0 %v3526
      %3550 = vmatmul.bf16.gmra.mxu0 %v3452
      %v3551 = vpop.f32.mrf.mxu0
      %v3552 = vadd.f32 0.0, %v3551
      %v3553 = vpop.f32.mrf.mxu0
      %v3554 = vadd.f32 0.0, %v3553
      %3555 = vmatmul.bf16.gmra.mxu0 %v3456
      %v3556 = vpop.f32.mrf.mxu0
      %v3557 = vadd.f32 0.0, %v3556
      %v3558 = vpop.f32.mrf.mxu0
      %v3559 = vadd.f32 0.0, %v3558
      %3560 = vmatmul.bf16.gmra.mxu0 %v3460
      %v3561 = vpop.f32.mrf.mxu0
      %v3562 = vadd.f32 0.0, %v3561
      %v3563 = vpop.f32.mrf.mxu0
      %v3564 = vadd.f32 0.0, %v3563
      %3565 = vmatmul.bf16.gmra.mxu0 %v3464
      %v3566 = vpop.f32.mrf.mxu0
      %v3567 = vadd.f32 0.0, %v3566
      %v3568 = vpop.f32.mrf.mxu0
      %v3569 = vadd.f32 0.0, %v3568
      %3570 = vmatmul.bf16.gmra.mxu0 %v3468
      %v3571 = vpop.f32.mrf.mxu0
      %v3572 = vadd.f32 0.0, %v3571
      %v3573 = vpop.f32.mrf.mxu0
      %v3574 = vadd.f32 0.0, %v3573
      %3575 = vmatmul.bf16.gmra.mxu0 %v3472
      %v3576 = vpop.f32.mrf.mxu0
      %v3577 = vadd.f32 0.0, %v3576
      %v3578 = vpop.f32.mrf.mxu0
      %v3579 = vadd.f32 0.0, %v3578
      %3580 = vmatmul.bf16.gmra.mxu0 %v3476
      %v3581 = vpop.f32.mrf.mxu0
      %v3582 = vadd.f32 0.0, %v3581
      %v3583 = vpop.f32.mrf.mxu0
      %v3584 = vadd.f32 0.0, %v3583
      %3585 = vmatmul.bf16.gmra.mxu0 %v3485
      %v3586 = vpop.f32.mrf.mxu0
      %v3587 = vadd.f32 0.0, %v3586
      %v3588 = vpop.f32.mrf.mxu0
      %v3589 = vadd.f32 0.0, %v3588
      %3590 = vdwg.mxu0
      %v3591 = vadd.f32 %v3382, %v3552
      %v3592 = vadd.f32 %v3384, %v3554
      %v3593 = vadd.f32 %v3387, %v3557
      %v3594 = vadd.f32 %v3389, %v3559
      %v3595 = vadd.f32 %v3392, %v3562
      %v3596 = vadd.f32 %v3394, %v3564
      %v3597 = vadd.f32 %v3397, %v3567
      %v3598 = vadd.f32 %v3399, %v3569
      %v3599 = vadd.f32 %v3402, %v3572
      %v3600 = vadd.f32 %v3404, %v3574
      %v3601 = vadd.f32 %v3407, %v3577
      %v3602 = vadd.f32 %v3409, %v3579
      %v3603 = vadd.f32 %v3412, %v3582
      %v3604 = vadd.f32 %v3414, %v3584
      %v3605 = vadd.f32 %v3417, %v3587
      %v3606 = vadd.f32 %v3419, %v3589
      %v3607 = vld [vmem:[#allocation2 + $0x48] sm:$0x8]
      %v3608 = vld [vmem:[#allocation2 + $0x4c] sm:$0xf]
      %v3609 = vld [vmem:[#allocation2 + $0x50] sm:$0xf]
      %v3610 = vld [vmem:[#allocation2 + $0x54] sm:$0xf]
      %v3611 = vld [vmem:[#allocation2 + $0x58] sm:$0xf]
      %v3612 = vld [vmem:[#allocation2 + $0x5c] sm:$0xf]
      %v3613 = vld [vmem:[#allocation2 + $0x60] sm:$0xf]
      %v3614 = vld [vmem:[#allocation2 + $0x64] sm:$0xf]
      %v3615 = vld [vmem:[#allocation2 + $0x68] sm:$0xf]
      %v3616 = vld [vmem:[#allocation2 + $0x6c] sm:$0xf]
      %v3617 = vld [vmem:[#allocation2 + $0x70] sm:$0xf]
      %v3618 = vld [vmem:[#allocation2 + $0x74] sm:$0xf]
      %v3619 = vld [vmem:[#allocation2 + $0x78] sm:$0xf]
      %v3620 = vld [vmem:[#allocation2 + $0x7c] sm:$0xf]
      %v3621 = vld [vmem:[#allocation2 + $0x80] sm:$0xf]
      %v3622 = vld [vmem:[#allocation2 + $0x84] sm:$0xf]
      %v3623 = vld [vmem:[#allocation2 + $0x88] sm:$0xf]
      %v3624 = vld [vmem:[%s1514] sm:$0xf]
      %v3625 = vld [vmem:[%s1514 + $0x4] sm:$0xf]
      %v3626 = vld [vmem:[%s1514 + $0x8] sm:$0xf]
      %v3627 = vld [vmem:[%s1514 + $0xc] sm:$0xf]
      %v3628 = vld [vmem:[%s1514 + $0x10] sm:$0xf]
      %v3629 = vld [vmem:[%s1514 + $0x14] sm:$0xf]
      %v3630 = vld [vmem:[%s1514 + $0x18] sm:$0xf]
      %v3631 = vld [vmem:[%s1514 + $0x1c] sm:$0xf]
      %v3632 = vld [vmem:[%s1514 + $0x20] sm:$0xf]
      %v3633 = vld [vmem:[%s1514 + $0x24] sm:$0xf]
      %v3634 = vld [vmem:[%s1514 + $0x28] sm:$0xf]
      %v3635 = vld [vmem:[%s1514 + $0x2c] sm:$0xf]
      %v3636 = vld [vmem:[%s1514 + $0x30] sm:$0xf]
      %v3637 = vld [vmem:[%s1514 + $0x34] sm:$0xf]
      %v3638 = vld [vmem:[%s1514 + $0x38] sm:$0xf]
      %v3639 = vld [vmem:[%s1514 + $0x3c] sm:$0xf]
      %v3657 = vunpack.c.l.b16 %v3607
      %v3658 = vunpack.c.l.b16 %v3608
      %v3659 = vunpack.c.l.b16 %v3609
      %v3660 = vunpack.c.l.b16 %v3610
      %v3661 = vunpack.c.l.b16 %v3611
      %v3662 = vunpack.c.l.b16 %v3612
      %v3663 = vunpack.c.l.b16 %v3613
      %v3664 = vunpack.c.l.b16 %v3614
      %v3665 = vunpack.c.l.b16 %v3615
      %v3666 = vunpack.c.l.b16 %v3616
      %v3667 = vunpack.c.l.b16 %v3617
      %v3668 = vunpack.c.l.b16 %v3618
      %v3669 = vunpack.c.l.b16 %v3619
      %v3670 = vunpack.c.l.b16 %v3620
      %v3671 = vunpack.c.l.b16 %v3621
      %v3672 = vunpack.c.l.b16 %v3622
      %v3673 = vunpack.c.l.b16 %v3623
      %v3674 = vpack.c.b16 %v3658, %v3657
      %v3675 = vpack.c.b16 %v3660, %v3659
      %v3676 = vpack.c.b16 %v3662, %v3661
      %v3677 = vpack.c.b16 %v3664, %v3663
      %v3678 = vpack.c.b16 %v3666, %v3665
      %v3679 = vpack.c.b16 %v3668, %v3667
      %v3680 = vpack.c.b16 %v3670, %v3669
      %v3681 = vpack.c.b16 %v3672, %v3671
      %v3682 = vpack.c.b16 %v3673, %v3673
      %v3684 = vshrl.u32 %v3674, 16
      %v3686 = vrot.slane %v3684, 3
      %v3687 = vshll.u32 %v3674, 16
      %v3689 = vrot.slane %v3687, 4
      %v3690 = vor.u32 %v3686, %v3689
      %v3692 = vshrl.u32 %v3675, 16
      %v3694 = vrot.slane %v3692, 3
      %v3695 = vshll.u32 %v3675, 16
      %v3697 = vrot.slane %v3695, 4
      %v3698 = vor.u32 %v3694, %v3697
      %v3699 = vsel %vm1330, %v3690, %v3698
      %v3701 = vshrl.u32 %v3676, 16
      %v3703 = vrot.slane %v3701, 3
      %v3704 = vshll.u32 %v3676, 16
      %v3706 = vrot.slane %v3704, 4
      %v3707 = vor.u32 %v3703, %v3706
      %v3708 = vsel %vm1330, %v3698, %v3707
      %v3710 = vshrl.u32 %v3677, 16
      %v3712 = vrot.slane %v3710, 3
      %v3713 = vshll.u32 %v3677, 16
      %v3715 = vrot.slane %v3713, 4
      %v3716 = vor.u32 %v3712, %v3715
      %v3717 = vsel %vm1330, %v3707, %v3716
      %v3719 = vshrl.u32 %v3678, 16
      %v3721 = vrot.slane %v3719, 3
      %v3722 = vshll.u32 %v3678, 16
      %v3724 = vrot.slane %v3722, 4
      %v3725 = vor.u32 %v3721, %v3724
      %v3726 = vsel %vm1330, %v3716, %v3725
      %v3728 = vshrl.u32 %v3679, 16
      %v3730 = vrot.slane %v3728, 3
      %v3731 = vshll.u32 %v3679, 16
      %v3733 = vrot.slane %v3731, 4
      %v3734 = vor.u32 %v3730, %v3733
      %v3735 = vsel %vm1330, %v3725, %v3734
      %v3737 = vshrl.u32 %v3680, 16
      %v3739 = vrot.slane %v3737, 3
      %v3740 = vshll.u32 %v3680, 16
      %v3742 = vrot.slane %v3740, 4
      %v3743 = vor.u32 %v3739, %v3742
      %v3744 = vsel %vm1330, %v3734, %v3743
      %v3746 = vshrl.u32 %v3681, 16
      %v3748 = vrot.slane %v3746, 3
      %v3749 = vshll.u32 %v3681, 16
      %v3751 = vrot.slane %v3749, 4
      %v3752 = vor.u32 %v3748, %v3751
      %v3753 = vsel %vm1330, %v3743, %v3752
      %v3755 = vshrl.u32 %v3682, 16
      %v3757 = vrot.slane %v3755, 3
      %v3758 = vshll.u32 %v3682, 16
      %v3760 = vrot.slane %v3758, 4
      %v3761 = vor.u32 %v3757, %v3760
      %v3762 = vsel %vm1330, %v3752, %v3761
      %v3787 = vunpack.c.l.b16 %v3624
      %v3788 = vunpack.c.l.b16 %v3625
      %v3789 = vunpack.c.l.b16 %v3626
      %v3790 = vunpack.c.l.b16 %v3627
      %v3791 = vunpack.c.l.b16 %v3628
      %v3792 = vunpack.c.l.b16 %v3629
      %v3793 = vunpack.c.l.b16 %v3630
      %v3794 = vunpack.c.l.b16 %v3631
      %v3795 = vunpack.c.l.b16 %v3632
      %v3796 = vunpack.c.l.b16 %v3633
      %v3797 = vunpack.c.l.b16 %v3634
      %v3798 = vunpack.c.l.b16 %v3635
      %v3799 = vunpack.c.l.b16 %v3636
      %v3800 = vunpack.c.l.b16 %v3637
      %v3801 = vunpack.c.l.b16 %v3638
      %v3802 = vunpack.c.l.b16 %v3639
      %v3803 = vpack.c.b16 %v3788, %v3787
      %v3804 = vpack.c.b16 %v3790, %v3789
      %v3805 = vpack.c.b16 %v3792, %v3791
      %v3806 = vpack.c.b16 %v3794, %v3793
      %v3807 = vpack.c.b16 %v3796, %v3795
      %v3808 = vpack.c.b16 %v3798, %v3797
      %v3809 = vpack.c.b16 %v3800, %v3799
      %v3810 = vpack.c.b16 %v3802, %v3801
      %3819 = vmatpush.bf16.msra.mxu0 %v3810
      %3820 = vmatpush.bf16.msra.mxu0 %v3809
      %3821 = vmatpush.bf16.msra.mxu0 %v3808
      %3822 = vmatpush.bf16.msra.mxu0 %v3807
      %3823 = vmatpush.bf16.msra.mxu0 %v3806
      %3824 = vmatpush.bf16.msra.mxu0 %v3805
      %3825 = vmatpush.bf16.msra.mxu0 %v3804
      %3826 = vmatpush.bf16.msra.mxu0 %v3803
      %3827 = vmatmul.bf16.gmra.mxu0 %v3699
      %v3828 = vpop.f32.mrf.mxu0
      %v3829 = vadd.f32 0.0, %v3828
      %v3830 = vpop.f32.mrf.mxu0
      %v3831 = vadd.f32 0.0, %v3830
      %3832 = vmatmul.bf16.gmra.mxu0 %v3708
      %v3833 = vpop.f32.mrf.mxu0
      %v3834 = vadd.f32 0.0, %v3833
      %v3835 = vpop.f32.mrf.mxu0
      %v3836 = vadd.f32 0.0, %v3835
      %3837 = vmatmul.bf16.gmra.mxu0 %v3717
      %v3838 = vpop.f32.mrf.mxu0
      %v3839 = vadd.f32 0.0, %v3838
      %v3840 = vpop.f32.mrf.mxu0
      %v3841 = vadd.f32 0.0, %v3840
      %3842 = vmatmul.bf16.gmra.mxu0 %v3726
      %v3843 = vpop.f32.mrf.mxu0
      %v3844 = vadd.f32 0.0, %v3843
      %v3845 = vpop.f32.mrf.mxu0
      %v3846 = vadd.f32 0.0, %v3845
      %3847 = vmatmul.bf16.gmra.mxu0 %v3735
      %v3848 = vpop.f32.mrf.mxu0
      %v3849 = vadd.f32 0.0, %v3848
      %v3850 = vpop.f32.mrf.mxu0
      %v3851 = vadd.f32 0.0, %v3850
      %3852 = vmatmul.bf16.gmra.mxu0 %v3744
      %v3853 = vpop.f32.mrf.mxu0
      %v3854 = vadd.f32 0.0, %v3853
      %v3855 = vpop.f32.mrf.mxu0
      %v3856 = vadd.f32 0.0, %v3855
      %3857 = vmatmul.bf16.gmra.mxu0 %v3753
      %v3858 = vpop.f32.mrf.mxu0
      %v3859 = vadd.f32 0.0, %v3858
      %v3860 = vpop.f32.mrf.mxu0
      %v3861 = vadd.f32 0.0, %v3860
      %3862 = vmatmul.bf16.gmra.mxu0 %v3762
      %v3863 = vpop.f32.mrf.mxu0
      %v3864 = vadd.f32 0.0, %v3863
      %v3865 = vpop.f32.mrf.mxu0
      %v3866 = vadd.f32 0.0, %v3865
      %3867 = vdwg.mxu0
      %v3868 = vadd.f32 %v3591, %v3829
      %v3869 = vadd.f32 %v3592, %v3831
      %v3870 = vadd.f32 %v3593, %v3834
      %v3871 = vadd.f32 %v3594, %v3836
      %v3872 = vadd.f32 %v3595, %v3839
      %v3873 = vadd.f32 %v3596, %v3841
      %v3874 = vadd.f32 %v3597, %v3844
      %v3875 = vadd.f32 %v3598, %v3846
      %v3876 = vadd.f32 %v3599, %v3849
      %v3877 = vadd.f32 %v3600, %v3851
      %v3878 = vadd.f32 %v3601, %v3854
      %v3879 = vadd.f32 %v3602, %v3856
      %v3880 = vadd.f32 %v3603, %v3859
      %v3881 = vadd.f32 %v3604, %v3861
      %v3882 = vadd.f32 %v3605, %v3864
      %v3883 = vadd.f32 %v3606, %v3866
      %v3884 = vld [vmem:[%s1775] sm:$0xf]
      %v3885 = vld [vmem:[%s1775 + $0x4] sm:$0xf]
      %v3886 = vld [vmem:[%s1775 + $0x8] sm:$0xf]
      %v3887 = vld [vmem:[%s1775 + $0xc] sm:$0xf]
      %v3888 = vld [vmem:[%s1775 + $0x10] sm:$0xf]
      %v3889 = vld [vmem:[%s1775 + $0x14] sm:$0xf]
      %v3890 = vld [vmem:[%s1775 + $0x18] sm:$0xf]
      %v3891 = vld [vmem:[%s1775 + $0x1c] sm:$0xf]
      %v3892 = vld [vmem:[%s1775 + $0x20] sm:$0xf]
      %v3893 = vld [vmem:[%s1775 + $0x24] sm:$0xf]
      %v3894 = vld [vmem:[%s1775 + $0x28] sm:$0xf]
      %v3895 = vld [vmem:[%s1775 + $0x2c] sm:$0xf]
      %v3896 = vld [vmem:[%s1775 + $0x30] sm:$0xf]
      %v3897 = vld [vmem:[%s1775 + $0x34] sm:$0xf]
      %v3898 = vld [vmem:[%s1775 + $0x38] sm:$0xf]
      %v3899 = vld [vmem:[%s1775 + $0x3c] sm:$0xf]
      %v3900 = vpack.c.b16 %v3659, %v3658
      %v3901 = vpack.c.b16 %v3661, %v3660
      %v3902 = vpack.c.b16 %v3663, %v3662
      %v3903 = vpack.c.b16 %v3665, %v3664
      %v3904 = vpack.c.b16 %v3667, %v3666
      %v3905 = vpack.c.b16 %v3669, %v3668
      %v3906 = vpack.c.b16 %v3671, %v3670
      %v3907 = vpack.c.b16 %v3673, %v3672
      %v3932 = vunpack.c.l.b16 %v3884
      %v3933 = vunpack.c.l.b16 %v3885
      %v3934 = vunpack.c.l.b16 %v3886
      %v3935 = vunpack.c.l.b16 %v3887
      %v3936 = vunpack.c.l.b16 %v3888
      %v3937 = vunpack.c.l.b16 %v3889
      %v3938 = vunpack.c.l.b16 %v3890
      %v3939 = vunpack.c.l.b16 %v3891
      %v3940 = vunpack.c.l.b16 %v3892
      %v3941 = vunpack.c.l.b16 %v3893
      %v3942 = vunpack.c.l.b16 %v3894
      %v3943 = vunpack.c.l.b16 %v3895
      %v3944 = vunpack.c.l.b16 %v3896
      %v3945 = vunpack.c.l.b16 %v3897
      %v3946 = vunpack.c.l.b16 %v3898
      %v3947 = vunpack.c.l.b16 %v3899
      %v3948 = vpack.c.b16 %v3933, %v3932
      %v3949 = vpack.c.b16 %v3935, %v3934
      %v3950 = vpack.c.b16 %v3937, %v3936
      %v3951 = vpack.c.b16 %v3939, %v3938
      %v3952 = vpack.c.b16 %v3941, %v3940
      %v3953 = vpack.c.b16 %v3943, %v3942
      %v3954 = vpack.c.b16 %v3945, %v3944
      %v3955 = vpack.c.b16 %v3947, %v3946
      %3964 = vmatpush.bf16.msra.mxu0 %v3955
      %3965 = vmatpush.bf16.msra.mxu0 %v3954
      %3966 = vmatpush.bf16.msra.mxu0 %v3953
      %3967 = vmatpush.bf16.msra.mxu0 %v3952
      %3968 = vmatpush.bf16.msra.mxu0 %v3951
      %3969 = vmatpush.bf16.msra.mxu0 %v3950
      %3970 = vmatpush.bf16.msra.mxu0 %v3949
      %3971 = vmatpush.bf16.msra.mxu0 %v3948
      %3972 = vmatmul.bf16.gmra.mxu0 %v3900
      %v3973 = vpop.f32.mrf.mxu0
      %v3974 = vadd.f32 0.0, %v3973
      %v3975 = vpop.f32.mrf.mxu0
      %v3976 = vadd.f32 0.0, %v3975
      %3977 = vmatmul.bf16.gmra.mxu0 %v3901
      %v3978 = vpop.f32.mrf.mxu0
      %v3979 = vadd.f32 0.0, %v3978
      %v3980 = vpop.f32.mrf.mxu0
      %v3981 = vadd.f32 0.0, %v3980
      %3982 = vmatmul.bf16.gmra.mxu0 %v3902
      %v3983 = vpop.f32.mrf.mxu0
      %v3984 = vadd.f32 0.0, %v3983
      %v3985 = vpop.f32.mrf.mxu0
      %v3986 = vadd.f32 0.0, %v3985
      %3987 = vmatmul.bf16.gmra.mxu0 %v3903
      %v3988 = vpop.f32.mrf.mxu0
      %v3989 = vadd.f32 0.0, %v3988
      %v3990 = vpop.f32.mrf.mxu0
      %v3991 = vadd.f32 0.0, %v3990
      %3992 = vmatmul.bf16.gmra.mxu0 %v3904
      %v3993 = vpop.f32.mrf.mxu0
      %v3994 = vadd.f32 0.0, %v3993
      %v3995 = vpop.f32.mrf.mxu0
      %v3996 = vadd.f32 0.0, %v3995
      %3997 = vmatmul.bf16.gmra.mxu0 %v3905
      %v3998 = vpop.f32.mrf.mxu0
      %v3999 = vadd.f32 0.0, %v3998
      %v4000 = vpop.f32.mrf.mxu0
      %v4001 = vadd.f32 0.0, %v4000
      %4002 = vmatmul.bf16.gmra.mxu0 %v3906
      %v4003 = vpop.f32.mrf.mxu0
      %v4004 = vadd.f32 0.0, %v4003
      %v4005 = vpop.f32.mrf.mxu0
      %v4006 = vadd.f32 0.0, %v4005
      %4007 = vmatmul.bf16.gmra.mxu0 %v3907
      %v4008 = vpop.f32.mrf.mxu0
      %v4009 = vadd.f32 0.0, %v4008
      %v4010 = vpop.f32.mrf.mxu0
      %v4011 = vadd.f32 0.0, %v4010
      %4012 = vdwg.mxu0
      %v4013 = vadd.f32 %v3868, %v3974
      %v4014 = vadd.f32 %v3869, %v3976
      %v4015 = vadd.f32 %v3870, %v3979
      %v4016 = vadd.f32 %v3871, %v3981
      %v4017 = vadd.f32 %v3872, %v3984
      %v4018 = vadd.f32 %v3873, %v3986
      %v4019 = vadd.f32 %v3874, %v3989
      %v4020 = vadd.f32 %v3875, %v3991
      %v4021 = vadd.f32 %v3876, %v3994
      %v4022 = vadd.f32 %v3877, %v3996
      %v4023 = vadd.f32 %v3878, %v3999
      %v4024 = vadd.f32 %v3879, %v4001
      %v4025 = vadd.f32 %v3880, %v4004
      %v4026 = vadd.f32 %v3881, %v4006
      %v4027 = vadd.f32 %v3882, %v4009
      %v4028 = vadd.f32 %v3883, %v4011
      %v4029 = vld [vmem:[#allocation2 + $0x4c] sm:$0xf]
      %v4030 = vld [vmem:[#allocation2 + $0x50] sm:$0xf]
      %v4031 = vld [vmem:[#allocation2 + $0x54] sm:$0xf]
      %v4032 = vld [vmem:[#allocation2 + $0x58] sm:$0xf]
      %v4033 = vld [vmem:[#allocation2 + $0x5c] sm:$0xf]
      %v4034 = vld [vmem:[#allocation2 + $0x60] sm:$0xf]
      %v4035 = vld [vmem:[#allocation2 + $0x64] sm:$0xf]
      %v4036 = vld [vmem:[#allocation2 + $0x68] sm:$0xf]
      %v4037 = vld [vmem:[#allocation2 + $0x6c] sm:$0xf]
      %v4038 = vld [vmem:[#allocation2 + $0x70] sm:$0xf]
      %v4039 = vld [vmem:[#allocation2 + $0x74] sm:$0xf]
      %v4040 = vld [vmem:[#allocation2 + $0x78] sm:$0xf]
      %v4041 = vld [vmem:[#allocation2 + $0x7c] sm:$0xf]
      %v4042 = vld [vmem:[#allocation2 + $0x80] sm:$0xf]
      %v4043 = vld [vmem:[#allocation2 + $0x84] sm:$0xf]
      %v4044 = vld [vmem:[#allocation2 + $0x88] sm:$0xf]
      %v4045 = vld [vmem:[#allocation2 + $0x8c] sm:$0x1]
      %v4046 = vld [vmem:[%s1938] sm:$0xf]
      %v4047 = vld [vmem:[%s1938 + $0x4] sm:$0xf]
      %v4048 = vld [vmem:[%s1938 + $0x8] sm:$0xf]
      %v4049 = vld [vmem:[%s1938 + $0xc] sm:$0xf]
      %v4050 = vld [vmem:[%s1938 + $0x10] sm:$0xf]
      %v4051 = vld [vmem:[%s1938 + $0x14] sm:$0xf]
      %v4052 = vld [vmem:[%s1938 + $0x18] sm:$0xf]
      %v4053 = vld [vmem:[%s1938 + $0x1c] sm:$0xf]
      %v4054 = vld [vmem:[%s1938 + $0x20] sm:$0xf]
      %v4055 = vld [vmem:[%s1938 + $0x24] sm:$0xf]
      %v4056 = vld [vmem:[%s1938 + $0x28] sm:$0xf]
      %v4057 = vld [vmem:[%s1938 + $0x2c] sm:$0xf]
      %v4058 = vld [vmem:[%s1938 + $0x30] sm:$0xf]
      %v4059 = vld [vmem:[%s1938 + $0x34] sm:$0xf]
      %v4060 = vld [vmem:[%s1938 + $0x38] sm:$0xf]
      %v4061 = vld [vmem:[%s1938 + $0x3c] sm:$0xf]
      %v4079 = vunpack.c.l.b16 %v4029
      %v4080 = vunpack.c.l.b16 %v4030
      %v4081 = vunpack.c.l.b16 %v4031
      %v4082 = vunpack.c.l.b16 %v4032
      %v4083 = vunpack.c.l.b16 %v4033
      %v4084 = vunpack.c.l.b16 %v4034
      %v4085 = vunpack.c.l.b16 %v4035
      %v4086 = vunpack.c.l.b16 %v4036
      %v4087 = vunpack.c.l.b16 %v4037
      %v4088 = vunpack.c.l.b16 %v4038
      %v4089 = vunpack.c.l.b16 %v4039
      %v4090 = vunpack.c.l.b16 %v4040
      %v4091 = vunpack.c.l.b16 %v4041
      %v4092 = vunpack.c.l.b16 %v4042
      %v4093 = vunpack.c.l.b16 %v4043
      %v4094 = vunpack.c.l.b16 %v4044
      %v4095 = vunpack.c.l.b16 %v4045
      %v4096 = vpack.c.b16 %v4080, %v4079
      %v4097 = vpack.c.b16 %v4082, %v4081
      %v4098 = vpack.c.b16 %v4084, %v4083
      %v4099 = vpack.c.b16 %v4086, %v4085
      %v4100 = vpack.c.b16 %v4088, %v4087
      %v4101 = vpack.c.b16 %v4090, %v4089
      %v4102 = vpack.c.b16 %v4092, %v4091
      %v4103 = vpack.c.b16 %v4094, %v4093
      %v4104 = vpack.c.b16 %v4095, %v4095
      %v4106 = vshrl.u32 %v4096, 16
      %v4108 = vshll.u32 %v4096, 16
      %v4110 = vrot.slane %v4108, 1
      %v4111 = vor.u32 %v4106, %v4110
      %v4113 = vshll.u32 %v4097, 16
      %v4115 = vrot.slane %v4113, 1
      %v4116 = vsel %vm1998, %v4111, %v4115
      %v4117 = vshrl.u32 %v4097, 16
      %v4119 = vor.u32 %v4117, %v4115
      %v4121 = vshll.u32 %v4098, 16
      %v4123 = vrot.slane %v4121, 1
      %v4124 = vsel %vm1998, %v4119, %v4123
      %v4125 = vshrl.u32 %v4098, 16
      %v4127 = vor.u32 %v4125, %v4123
      %v4129 = vshll.u32 %v4099, 16
      %v4131 = vrot.slane %v4129, 1
      %v4132 = vsel %vm1998, %v4127, %v4131
      %v4133 = vshrl.u32 %v4099, 16
      %v4135 = vor.u32 %v4133, %v4131
      %v4137 = vshll.u32 %v4100, 16
      %v4139 = vrot.slane %v4137, 1
      %v4140 = vsel %vm1998, %v4135, %v4139
      %v4141 = vshrl.u32 %v4100, 16
      %v4143 = vor.u32 %v4141, %v4139
      %v4145 = vshll.u32 %v4101, 16
      %v4147 = vrot.slane %v4145, 1
      %v4148 = vsel %vm1998, %v4143, %v4147
      %v4149 = vshrl.u32 %v4101, 16
      %v4151 = vor.u32 %v4149, %v4147
      %v4153 = vshll.u32 %v4102, 16
      %v4155 = vrot.slane %v4153, 1
      %v4156 = vsel %vm1998, %v4151, %v4155
      %v4157 = vshrl.u32 %v4102, 16
      %v4159 = vor.u32 %v4157, %v4155
      %v4161 = vshll.u32 %v4103, 16
      %v4163 = vrot.slane %v4161, 1
      %v4164 = vsel %vm1998, %v4159, %v4163
      %v4165 = vshrl.u32 %v4103, 16
      %v4167 = vor.u32 %v4165, %v4163
      %v4169 = vshll.u32 %v4104, 16
      %v4171 = vrot.slane %v4169, 1
      %v4172 = vsel %vm1998, %v4167, %v4171
      %v4197 = vunpack.c.l.b16 %v4046
      %v4198 = vunpack.c.l.b16 %v4047
      %v4199 = vunpack.c.l.b16 %v4048
      %v4200 = vunpack.c.l.b16 %v4049
      %v4201 = vunpack.c.l.b16 %v4050
      %v4202 = vunpack.c.l.b16 %v4051
      %v4203 = vunpack.c.l.b16 %v4052
      %v4204 = vunpack.c.l.b16 %v4053
      %v4205 = vunpack.c.l.b16 %v4054
      %v4206 = vunpack.c.l.b16 %v4055
      %v4207 = vunpack.c.l.b16 %v4056
      %v4208 = vunpack.c.l.b16 %v4057
      %v4209 = vunpack.c.l.b16 %v4058
      %v4210 = vunpack.c.l.b16 %v4059
      %v4211 = vunpack.c.l.b16 %v4060
      %v4212 = vunpack.c.l.b16 %v4061
      %v4213 = vpack.c.b16 %v4198, %v4197
      %v4214 = vpack.c.b16 %v4200, %v4199
      %v4215 = vpack.c.b16 %v4202, %v4201
      %v4216 = vpack.c.b16 %v4204, %v4203
      %v4217 = vpack.c.b16 %v4206, %v4205
      %v4218 = vpack.c.b16 %v4208, %v4207
      %v4219 = vpack.c.b16 %v4210, %v4209
      %v4220 = vpack.c.b16 %v4212, %v4211
      %4229 = vmatpush.bf16.msra.mxu0 %v4220
      %4230 = vmatpush.bf16.msra.mxu0 %v4219
      %4231 = vmatpush.bf16.msra.mxu0 %v4218
      %4232 = vmatpush.bf16.msra.mxu0 %v4217
      %4233 = vmatpush.bf16.msra.mxu0 %v4216
      %4234 = vmatpush.bf16.msra.mxu0 %v4215
      %4235 = vmatpush.bf16.msra.mxu0 %v4214
      %4236 = vmatpush.bf16.msra.mxu0 %v4213
      %4237 = vmatmul.bf16.gmra.mxu0 %v4116
      %v4238 = vpop.f32.mrf.mxu0
      %v4239 = vadd.f32 0.0, %v4238
      %v4240 = vpop.f32.mrf.mxu0
      %v4241 = vadd.f32 0.0, %v4240
      %4242 = vmatmul.bf16.gmra.mxu0 %v4124
      %v4243 = vpop.f32.mrf.mxu0
      %v4244 = vadd.f32 0.0, %v4243
      %v4245 = vpop.f32.mrf.mxu0
      %v4246 = vadd.f32 0.0, %v4245
      %4247 = vmatmul.bf16.gmra.mxu0 %v4132
      %v4248 = vpop.f32.mrf.mxu0
      %v4249 = vadd.f32 0.0, %v4248
      %v4250 = vpop.f32.mrf.mxu0
      %v4251 = vadd.f32 0.0, %v4250
      %4252 = vmatmul.bf16.gmra.mxu0 %v4140
      %v4253 = vpop.f32.mrf.mxu0
      %v4254 = vadd.f32 0.0, %v4253
      %v4255 = vpop.f32.mrf.mxu0
      %v4256 = vadd.f32 0.0, %v4255
      %4257 = vmatmul.bf16.gmra.mxu0 %v4148
      %v4258 = vpop.f32.mrf.mxu0
      %v4259 = vadd.f32 0.0, %v4258
      %v4260 = vpop.f32.mrf.mxu0
      %v4261 = vadd.f32 0.0, %v4260
      %4262 = vmatmul.bf16.gmra.mxu0 %v4156
      %v4263 = vpop.f32.mrf.mxu0
      %v4264 = vadd.f32 0.0, %v4263
      %v4265 = vpop.f32.mrf.mxu0
      %v4266 = vadd.f32 0.0, %v4265
      %4267 = vmatmul.bf16.gmra.mxu0 %v4164
      %v4268 = vpop.f32.mrf.mxu0
      %v4269 = vadd.f32 0.0, %v4268
      %v4270 = vpop.f32.mrf.mxu0
      %v4271 = vadd.f32 0.0, %v4270
      %4272 = vmatmul.bf16.gmra.mxu0 %v4172
      %v4273 = vpop.f32.mrf.mxu0
      %v4274 = vadd.f32 0.0, %v4273
      %v4275 = vpop.f32.mrf.mxu0
      %v4276 = vadd.f32 0.0, %v4275
      %4277 = vdwg.mxu0
      %v4278 = vadd.f32 %v4013, %v4239
      %v4279 = vadd.f32 %v4014, %v4241
      %v4280 = vadd.f32 %v4015, %v4244
      %v4281 = vadd.f32 %v4016, %v4246
      %v4282 = vadd.f32 %v4017, %v4249
      %v4283 = vadd.f32 %v4018, %v4251
      %v4284 = vadd.f32 %v4019, %v4254
      %v4285 = vadd.f32 %v4020, %v4256
      %v4286 = vadd.f32 %v4021, %v4259
      %v4287 = vadd.f32 %v4022, %v4261
      %v4288 = vadd.f32 %v4023, %v4264
      %v4289 = vadd.f32 %v4024, %v4266
      %v4290 = vadd.f32 %v4025, %v4269
      %v4291 = vadd.f32 %v4026, %v4271
      %v4292 = vadd.f32 %v4027, %v4274
      %v4293 = vadd.f32 %v4028, %v4276
      %v4294 = vld [vmem:[#allocation2 + $0x54] sm:$0xf]
      %v4295 = vld [vmem:[#allocation2 + $0x58] sm:$0xf]
      %v4296 = vld [vmem:[#allocation2 + $0x5c] sm:$0xf]
      %v4297 = vld [vmem:[#allocation2 + $0x60] sm:$0xf]
      %v4298 = vld [vmem:[#allocation2 + $0x64] sm:$0xf]
      %v4299 = vld [vmem:[#allocation2 + $0x68] sm:$0xf]
      %v4300 = vld [vmem:[#allocation2 + $0x6c] sm:$0xf]
      %v4301 = vld [vmem:[#allocation2 + $0x70] sm:$0xf]
      %v4302 = vld [vmem:[#allocation2 + $0x74] sm:$0xf]
      %v4303 = vld [vmem:[#allocation2 + $0x78] sm:$0xf]
      %v4304 = vld [vmem:[#allocation2 + $0x7c] sm:$0xf]
      %v4305 = vld [vmem:[#allocation2 + $0x80] sm:$0xf]
      %v4306 = vld [vmem:[#allocation2 + $0x84] sm:$0xf]
      %v4307 = vld [vmem:[#allocation2 + $0x88] sm:$0xf]
      %v4308 = vld [vmem:[#allocation2 + $0x8c] sm:$0xf]
      %v4309 = vld [vmem:[#allocation2 + $0x90] sm:$0xf]
      %v4310 = vld [vmem:[#allocation2 + $0x94] sm:$0x1]
      %v4311 = vld [vmem:[%s2205] sm:$0xf]
      %v4312 = vld [vmem:[%s2205 + $0x4] sm:$0xf]
      %v4313 = vld [vmem:[%s2205 + $0x8] sm:$0xf]
      %v4314 = vld [vmem:[%s2205 + $0xc] sm:$0xf]
      %v4315 = vld [vmem:[%s2205 + $0x10] sm:$0xf]
      %v4316 = vld [vmem:[%s2205 + $0x14] sm:$0xf]
      %v4317 = vld [vmem:[%s2205 + $0x18] sm:$0xf]
      %v4318 = vld [vmem:[%s2205 + $0x1c] sm:$0xf]
      %v4319 = vld [vmem:[%s2205 + $0x20] sm:$0xf]
      %v4320 = vld [vmem:[%s2205 + $0x24] sm:$0xf]
      %v4321 = vld [vmem:[%s2205 + $0x28] sm:$0xf]
      %v4322 = vld [vmem:[%s2205 + $0x2c] sm:$0xf]
      %v4323 = vld [vmem:[%s2205 + $0x30] sm:$0xf]
      %v4324 = vld [vmem:[%s2205 + $0x34] sm:$0xf]
      %v4325 = vld [vmem:[%s2205 + $0x38] sm:$0xf]
      %v4326 = vld [vmem:[%s2205 + $0x3c] sm:$0xf]
      %v4344 = vunpack.c.l.b16 %v4294
      %v4345 = vunpack.c.l.b16 %v4295
      %v4346 = vunpack.c.l.b16 %v4296
      %v4347 = vunpack.c.l.b16 %v4297
      %v4348 = vunpack.c.l.b16 %v4298
      %v4349 = vunpack.c.l.b16 %v4299
      %v4350 = vunpack.c.l.b16 %v4300
      %v4351 = vunpack.c.l.b16 %v4301
      %v4352 = vunpack.c.l.b16 %v4302
      %v4353 = vunpack.c.l.b16 %v4303
      %v4354 = vunpack.c.l.b16 %v4304
      %v4355 = vunpack.c.l.b16 %v4305
      %v4356 = vunpack.c.l.b16 %v4306
      %v4357 = vunpack.c.l.b16 %v4307
      %v4358 = vunpack.c.l.b16 %v4308
      %v4359 = vunpack.c.l.b16 %v4309
      %v4360 = vunpack.c.l.b16 %v4310
      %v4361 = vpack.c.b16 %v4345, %v4344
      %v4362 = vpack.c.b16 %v4347, %v4346
      %v4363 = vpack.c.b16 %v4349, %v4348
      %v4364 = vpack.c.b16 %v4351, %v4350
      %v4365 = vpack.c.b16 %v4353, %v4352
      %v4366 = vpack.c.b16 %v4355, %v4354
      %v4367 = vpack.c.b16 %v4357, %v4356
      %v4368 = vpack.c.b16 %v4359, %v4358
      %v4369 = vpack.c.b16 %v4360, %v4360
      %v4371 = vshrl.u32 %v4361, 16
      %v4373 = vshll.u32 %v4361, 16
      %v4375 = vrot.slane %v4373, 1
      %v4376 = vor.u32 %v4371, %v4375
      %v4378 = vshll.u32 %v4362, 16
      %v4380 = vrot.slane %v4378, 1
      %v4381 = vsel %vm1998, %v4376, %v4380
      %v4382 = vshrl.u32 %v4362, 16
      %v4384 = vor.u32 %v4382, %v4380
      %v4386 = vshll.u32 %v4363, 16
      %v4388 = vrot.slane %v4386, 1
      %v4389 = vsel %vm1998, %v4384, %v4388
      %v4390 = vshrl.u32 %v4363, 16
      %v4392 = vor.u32 %v4390, %v4388
      %v4394 = vshll.u32 %v4364, 16
      %v4396 = vrot.slane %v4394, 1
      %v4397 = vsel %vm1998, %v4392, %v4396
      %v4398 = vshrl.u32 %v4364, 16
      %v4400 = vor.u32 %v4398, %v4396
      %v4402 = vshll.u32 %v4365, 16
      %v4404 = vrot.slane %v4402, 1
      %v4405 = vsel %vm1998, %v4400, %v4404
      %v4406 = vshrl.u32 %v4365, 16
      %v4408 = vor.u32 %v4406, %v4404
      %v4410 = vshll.u32 %v4366, 16
      %v4412 = vrot.slane %v4410, 1
      %v4413 = vsel %vm1998, %v4408, %v4412
      %v4414 = vshrl.u32 %v4366, 16
      %v4416 = vor.u32 %v4414, %v4412
      %v4418 = vshll.u32 %v4367, 16
      %v4420 = vrot.slane %v4418, 1
      %v4421 = vsel %vm1998, %v4416, %v4420
      %v4422 = vshrl.u32 %v4367, 16
      %v4424 = vor.u32 %v4422, %v4420
      %v4426 = vshll.u32 %v4368, 16
      %v4428 = vrot.slane %v4426, 1
      %v4429 = vsel %vm1998, %v4424, %v4428
      %v4430 = vshrl.u32 %v4368, 16
      %v4432 = vor.u32 %v4430, %v4428
      %v4434 = vshll.u32 %v4369, 16
      %v4436 = vrot.slane %v4434, 1
      %v4437 = vsel %vm1998, %v4432, %v4436
      %v4462 = vunpack.c.l.b16 %v4311
      %v4463 = vunpack.c.l.b16 %v4312
      %v4464 = vunpack.c.l.b16 %v4313
      %v4465 = vunpack.c.l.b16 %v4314
      %v4466 = vunpack.c.l.b16 %v4315
      %v4467 = vunpack.c.l.b16 %v4316
      %v4468 = vunpack.c.l.b16 %v4317
      %v4469 = vunpack.c.l.b16 %v4318
      %v4470 = vunpack.c.l.b16 %v4319
      %v4471 = vunpack.c.l.b16 %v4320
      %v4472 = vunpack.c.l.b16 %v4321
      %v4473 = vunpack.c.l.b16 %v4322
      %v4474 = vunpack.c.l.b16 %v4323
      %v4475 = vunpack.c.l.b16 %v4324
      %v4476 = vunpack.c.l.b16 %v4325
      %v4477 = vunpack.c.l.b16 %v4326
      %v4478 = vpack.c.b16 %v4463, %v4462
      %v4479 = vpack.c.b16 %v4465, %v4464
      %v4480 = vpack.c.b16 %v4467, %v4466
      %v4481 = vpack.c.b16 %v4469, %v4468
      %v4482 = vpack.c.b16 %v4471, %v4470
      %v4483 = vpack.c.b16 %v4473, %v4472
      %v4484 = vpack.c.b16 %v4475, %v4474
      %v4485 = vpack.c.b16 %v4477, %v4476
      %4494 = vmatpush.bf16.msra.mxu0 %v4485
      %4495 = vmatpush.bf16.msra.mxu0 %v4484
      %4496 = vmatpush.bf16.msra.mxu0 %v4483
      %4497 = vmatpush.bf16.msra.mxu0 %v4482
      %4498 = vmatpush.bf16.msra.mxu0 %v4481
      %4499 = vmatpush.bf16.msra.mxu0 %v4480
      %4500 = vmatpush.bf16.msra.mxu0 %v4479
      %4501 = vmatpush.bf16.msra.mxu0 %v4478
      %4502 = vmatmul.bf16.gmra.mxu0 %v4381
      %v4503 = vpop.f32.mrf.mxu0
      %v4504 = vadd.f32 0.0, %v4503
      %v4505 = vpop.f32.mrf.mxu0
      %v4506 = vadd.f32 0.0, %v4505
      %4507 = vmatmul.bf16.gmra.mxu0 %v4389
      %v4508 = vpop.f32.mrf.mxu0
      %v4509 = vadd.f32 0.0, %v4508
      %v4510 = vpop.f32.mrf.mxu0
      %v4511 = vadd.f32 0.0, %v4510
      %4512 = vmatmul.bf16.gmra.mxu0 %v4397
      %v4513 = vpop.f32.mrf.mxu0
      %v4514 = vadd.f32 0.0, %v4513
      %v4515 = vpop.f32.mrf.mxu0
      %v4516 = vadd.f32 0.0, %v4515
      %4517 = vmatmul.bf16.gmra.mxu0 %v4405
      %v4518 = vpop.f32.mrf.mxu0
      %v4519 = vadd.f32 0.0, %v4518
      %v4520 = vpop.f32.mrf.mxu0
      %v4521 = vadd.f32 0.0, %v4520
      %4522 = vmatmul.bf16.gmra.mxu0 %v4413
      %v4523 = vpop.f32.mrf.mxu0
      %v4524 = vadd.f32 0.0, %v4523
      %v4525 = vpop.f32.mrf.mxu0
      %v4526 = vadd.f32 0.0, %v4525
      %4527 = vmatmul.bf16.gmra.mxu0 %v4421
      %v4528 = vpop.f32.mrf.mxu0
      %v4529 = vadd.f32 0.0, %v4528
      %v4530 = vpop.f32.mrf.mxu0
      %v4531 = vadd.f32 0.0, %v4530
      %4532 = vmatmul.bf16.gmra.mxu0 %v4429
      %v4533 = vpop.f32.mrf.mxu0
      %v4534 = vadd.f32 0.0, %v4533
      %v4535 = vpop.f32.mrf.mxu0
      %v4536 = vadd.f32 0.0, %v4535
      %4537 = vmatmul.bf16.gmra.mxu0 %v4437
      %v4538 = vpop.f32.mrf.mxu0
      %v4539 = vadd.f32 0.0, %v4538
      %v4540 = vpop.f32.mrf.mxu0
      %v4541 = vadd.f32 0.0, %v4540
      %4542 = vdwg.mxu0
      %v4543 = vadd.f32 %v4278, %v4504
      %v4544 = vadd.f32 %v4279, %v4506
      %v4545 = vadd.f32 %v4280, %v4509
      %v4546 = vadd.f32 %v4281, %v4511
      %v4547 = vadd.f32 %v4282, %v4514
      %v4548 = vadd.f32 %v4283, %v4516
      %v4549 = vadd.f32 %v4284, %v4519
      %v4550 = vadd.f32 %v4285, %v4521
      %v4551 = vadd.f32 %v4286, %v4524
      %v4552 = vadd.f32 %v4287, %v4526
      %v4553 = vadd.f32 %v4288, %v4529
      %v4554 = vadd.f32 %v4289, %v4531
      %v4555 = vadd.f32 %v4290, %v4534
      %v4556 = vadd.f32 %v4291, %v4536
      %v4557 = vadd.f32 %v4292, %v4539
      %v4558 = vadd.f32 %v4293, %v4541
      %v4559 = vld [vmem:[#allocation2 + $0x54] sm:$0xe]
      %v4560 = vld [vmem:[%s2455] sm:$0xf]
      %v4561 = vld [vmem:[%s2455 + $0x4] sm:$0xf]
      %v4562 = vld [vmem:[%s2455 + $0x8] sm:$0xf]
      %v4563 = vld [vmem:[%s2455 + $0xc] sm:$0xf]
      %v4564 = vld [vmem:[%s2455 + $0x10] sm:$0xf]
      %v4565 = vld [vmem:[%s2455 + $0x14] sm:$0xf]
      %v4566 = vld [vmem:[%s2455 + $0x18] sm:$0xf]
      %v4567 = vld [vmem:[%s2455 + $0x1c] sm:$0xf]
      %v4568 = vld [vmem:[%s2455 + $0x20] sm:$0xf]
      %v4569 = vld [vmem:[%s2455 + $0x24] sm:$0xf]
      %v4570 = vld [vmem:[%s2455 + $0x28] sm:$0xf]
      %v4571 = vld [vmem:[%s2455 + $0x2c] sm:$0xf]
      %v4572 = vld [vmem:[%s2455 + $0x30] sm:$0xf]
      %v4573 = vld [vmem:[%s2455 + $0x34] sm:$0xf]
      %v4574 = vld [vmem:[%s2455 + $0x38] sm:$0xf]
      %v4575 = vld [vmem:[%s2455 + $0x3c] sm:$0xf]
      %v4577 = vunpack.c.l.b16 %v4559
      %v4578 = vpack.c.b16 %v4345, %v4577
      %v4579 = vrot.slane %v4578, 1
      %v4580 = vrot.slane %v4362, 1
      %v4581 = vsel %vm2475, %v4579, %v4580
      %v4582 = vrot.slane %v4363, 1
      %v4583 = vsel %vm2475, %v4580, %v4582
      %v4584 = vrot.slane %v4364, 1
      %v4585 = vsel %vm2475, %v4582, %v4584
      %v4586 = vrot.slane %v4365, 1
      %v4587 = vsel %vm2475, %v4584, %v4586
      %v4588 = vrot.slane %v4366, 1
      %v4589 = vsel %vm2475, %v4586, %v4588
      %v4590 = vrot.slane %v4367, 1
      %v4591 = vsel %vm2475, %v4588, %v4590
      %v4592 = vrot.slane %v4368, 1
      %v4593 = vsel %vm2475, %v4590, %v4592
      %v4594 = vrot.slane %v4369, 1
      %v4595 = vsel %vm2475, %v4592, %v4594
      %v4620 = vunpack.c.l.b16 %v4560
      %v4621 = vunpack.c.l.b16 %v4561
      %v4622 = vunpack.c.l.b16 %v4562
      %v4623 = vunpack.c.l.b16 %v4563
      %v4624 = vunpack.c.l.b16 %v4564
      %v4625 = vunpack.c.l.b16 %v4565
      %v4626 = vunpack.c.l.b16 %v4566
      %v4627 = vunpack.c.l.b16 %v4567
      %v4628 = vunpack.c.l.b16 %v4568
      %v4629 = vunpack.c.l.b16 %v4569
      %v4630 = vunpack.c.l.b16 %v4570
      %v4631 = vunpack.c.l.b16 %v4571
      %v4632 = vunpack.c.l.b16 %v4572
      %v4633 = vunpack.c.l.b16 %v4573
      %v4634 = vunpack.c.l.b16 %v4574
      %v4635 = vunpack.c.l.b16 %v4575
      %v4636 = vpack.c.b16 %v4621, %v4620
      %v4637 = vpack.c.b16 %v4623, %v4622
      %v4638 = vpack.c.b16 %v4625, %v4624
      %v4639 = vpack.c.b16 %v4627, %v4626
      %v4640 = vpack.c.b16 %v4629, %v4628
      %v4641 = vpack.c.b16 %v4631, %v4630
      %v4642 = vpack.c.b16 %v4633, %v4632
      %v4643 = vpack.c.b16 %v4635, %v4634
      %4652 = vmatpush.bf16.msra.mxu0 %v4643
      %4653 = vmatpush.bf16.msra.mxu0 %v4642
      %4654 = vmatpush.bf16.msra.mxu0 %v4641
      %4655 = vmatpush.bf16.msra.mxu0 %v4640
      %4656 = vmatpush.bf16.msra.mxu0 %v4639
      %4657 = vmatpush.bf16.msra.mxu0 %v4638
      %4658 = vmatpush.bf16.msra.mxu0 %v4637
      %4659 = vmatpush.bf16.msra.mxu0 %v4636
      %4660 = vmatmul.bf16.gmra.mxu0 %v4581
      %v4661 = vpop.f32.mrf.mxu0
      %v4662 = vadd.f32 0.0, %v4661
      %v4663 = vpop.f32.mrf.mxu0
      %v4664 = vadd.f32 0.0, %v4663
      %4665 = vmatmul.bf16.gmra.mxu0 %v4583
      %v4666 = vpop.f32.mrf.mxu0
      %v4667 = vadd.f32 0.0, %v4666
      %v4668 = vpop.f32.mrf.mxu0
      %v4669 = vadd.f32 0.0, %v4668
      %4670 = vmatmul.bf16.gmra.mxu0 %v4585
      %v4671 = vpop.f32.mrf.mxu0
      %v4672 = vadd.f32 0.0, %v4671
      %v4673 = vpop.f32.mrf.mxu0
      %v4674 = vadd.f32 0.0, %v4673
      %4675 = vmatmul.bf16.gmra.mxu0 %v4587
      %v4676 = vpop.f32.mrf.mxu0
      %v4677 = vadd.f32 0.0, %v4676
      %v4678 = vpop.f32.mrf.mxu0
      %v4679 = vadd.f32 0.0, %v4678
      %4680 = vmatmul.bf16.gmra.mxu0 %v4589
      %v4681 = vpop.f32.mrf.mxu0
      %v4682 = vadd.f32 0.0, %v4681
      %v4683 = vpop.f32.mrf.mxu0
      %v4684 = vadd.f32 0.0, %v4683
      %4685 = vmatmul.bf16.gmra.mxu0 %v4591
      %v4686 = vpop.f32.mrf.mxu0
      %v4687 = vadd.f32 0.0, %v4686
      %v4688 = vpop.f32.mrf.mxu0
      %v4689 = vadd.f32 0.0, %v4688
      %4690 = vmatmul.bf16.gmra.mxu0 %v4593
      %v4691 = vpop.f32.mrf.mxu0
      %v4692 = vadd.f32 0.0, %v4691
      %v4693 = vpop.f32.mrf.mxu0
      %v4694 = vadd.f32 0.0, %v4693
      %4695 = vmatmul.bf16.gmra.mxu0 %v4595
      %v4696 = vpop.f32.mrf.mxu0
      %v4697 = vadd.f32 0.0, %v4696
      %v4698 = vpop.f32.mrf.mxu0
      %v4699 = vadd.f32 0.0, %v4698
      %4700 = vdwg.mxu0
      %v4701 = vadd.f32 %v4543, %v4662
      %v4702 = vadd.f32 %v4544, %v4664
      %v4703 = vadd.f32 %v4545, %v4667
      %v4704 = vadd.f32 %v4546, %v4669
      %v4705 = vadd.f32 %v4547, %v4672
      %v4706 = vadd.f32 %v4548, %v4674
      %v4707 = vadd.f32 %v4549, %v4677
      %v4708 = vadd.f32 %v4550, %v4679
      %v4709 = vadd.f32 %v4551, %v4682
      %v4710 = vadd.f32 %v4552, %v4684
      %v4711 = vadd.f32 %v4553, %v4687
      %v4712 = vadd.f32 %v4554, %v4689
      %v4713 = vadd.f32 %v4555, %v4692
      %v4714 = vadd.f32 %v4556, %v4694
      %v4715 = vadd.f32 %v4557, %v4697
      %v4716 = vadd.f32 %v4558, %v4699
      %v4717 = vld [vmem:[#allocation2 + $0x94] sm:$0x3]
      %v4718 = vld [vmem:[%s2615] sm:$0xf]
      %v4719 = vld [vmem:[%s2615 + $0x4] sm:$0xf]
      %v4720 = vld [vmem:[%s2615 + $0x8] sm:$0xf]
      %v4721 = vld [vmem:[%s2615 + $0xc] sm:$0xf]
      %v4722 = vld [vmem:[%s2615 + $0x10] sm:$0xf]
      %v4723 = vld [vmem:[%s2615 + $0x14] sm:$0xf]
      %v4724 = vld [vmem:[%s2615 + $0x18] sm:$0xf]
      %v4725 = vld [vmem:[%s2615 + $0x1c] sm:$0xf]
      %v4726 = vld [vmem:[%s2615 + $0x20] sm:$0xf]
      %v4727 = vld [vmem:[%s2615 + $0x24] sm:$0xf]
      %v4728 = vld [vmem:[%s2615 + $0x28] sm:$0xf]
      %v4729 = vld [vmem:[%s2615 + $0x2c] sm:$0xf]
      %v4730 = vld [vmem:[%s2615 + $0x30] sm:$0xf]
      %v4731 = vld [vmem:[%s2615 + $0x34] sm:$0xf]
      %v4732 = vld [vmem:[%s2615 + $0x38] sm:$0xf]
      %v4733 = vld [vmem:[%s2615 + $0x3c] sm:$0xf]
      %v4735 = vunpack.c.l.b16 %v4717
      %v4736 = vpack.c.b16 %v4735, %v4735
      %v4738 = vshrl.u32 %v4578, 16
      %v4740 = vrot.slane %v4738, 1
      %v4741 = vshll.u32 %v4578, 16
      %v4743 = vrot.slane %v4741, 2
      %v4744 = vor.u32 %v4740, %v4743
      %v4745 = vrot.slane %v4382, 1
      %v4746 = vrot.slane %v4378, 2
      %v4747 = vor.u32 %v4745, %v4746
      %v4748 = vsel %vm2635, %v4744, %v4747
      %v4749 = vrot.slane %v4390, 1
      %v4750 = vrot.slane %v4386, 2
      %v4751 = vor.u32 %v4749, %v4750
      %v4752 = vsel %vm2635, %v4747, %v4751
      %v4753 = vrot.slane %v4398, 1
      %v4754 = vrot.slane %v4394, 2
      %v4755 = vor.u32 %v4753, %v4754
      %v4756 = vsel %vm2635, %v4751, %v4755
      %v4757 = vrot.slane %v4406, 1
      %v4758 = vrot.slane %v4402, 2
      %v4759 = vor.u32 %v4757, %v4758
      %v4760 = vsel %vm2635, %v4755, %v4759
      %v4761 = vrot.slane %v4414, 1
      %v4762 = vrot.slane %v4410, 2
      %v4763 = vor.u32 %v4761, %v4762
      %v4764 = vsel %vm2635, %v4759, %v4763
      %v4765 = vrot.slane %v4422, 1
      %v4766 = vrot.slane %v4418, 2
      %v4767 = vor.u32 %v4765, %v4766
      %v4768 = vsel %vm2635, %v4763, %v4767
      %v4769 = vrot.slane %v4430, 1
      %v4770 = vrot.slane %v4426, 2
      %v4771 = vor.u32 %v4769, %v4770
      %v4772 = vsel %vm2635, %v4767, %v4771
      %v4774 = vshrl.u32 %v4736, 16
      %v4776 = vrot.slane %v4774, 1
      %v4777 = vshll.u32 %v4736, 16
      %v4779 = vrot.slane %v4777, 2
      %v4780 = vor.u32 %v4776, %v4779
      %v4781 = vsel %vm2635, %v4771, %v4780
      %v4806 = vunpack.c.l.b16 %v4718
      %v4807 = vunpack.c.l.b16 %v4719
      %v4808 = vunpack.c.l.b16 %v4720
      %v4809 = vunpack.c.l.b16 %v4721
      %v4810 = vunpack.c.l.b16 %v4722
      %v4811 = vunpack.c.l.b16 %v4723
      %v4812 = vunpack.c.l.b16 %v4724
      %v4813 = vunpack.c.l.b16 %v4725
      %v4814 = vunpack.c.l.b16 %v4726
      %v4815 = vunpack.c.l.b16 %v4727
      %v4816 = vunpack.c.l.b16 %v4728
      %v4817 = vunpack.c.l.b16 %v4729
      %v4818 = vunpack.c.l.b16 %v4730
      %v4819 = vunpack.c.l.b16 %v4731
      %v4820 = vunpack.c.l.b16 %v4732
      %v4821 = vunpack.c.l.b16 %v4733
      %v4822 = vpack.c.b16 %v4807, %v4806
      %v4823 = vpack.c.b16 %v4809, %v4808
      %v4824 = vpack.c.b16 %v4811, %v4810
      %v4825 = vpack.c.b16 %v4813, %v4812
      %v4826 = vpack.c.b16 %v4815, %v4814
      %v4827 = vpack.c.b16 %v4817, %v4816
      %v4828 = vpack.c.b16 %v4819, %v4818
      %v4829 = vpack.c.b16 %v4821, %v4820
      %4838 = vmatpush.bf16.msra.mxu0 %v4829
      %4839 = vmatpush.bf16.msra.mxu0 %v4828
      %4840 = vmatpush.bf16.msra.mxu0 %v4827
      %4841 = vmatpush.bf16.msra.mxu0 %v4826
      %4842 = vmatpush.bf16.msra.mxu0 %v4825
      %4843 = vmatpush.bf16.msra.mxu0 %v4824
      %4844 = vmatpush.bf16.msra.mxu0 %v4823
      %4845 = vmatpush.bf16.msra.mxu0 %v4822
      %4846 = vmatmul.bf16.gmra.mxu0 %v4748
      %v4847 = vpop.f32.mrf.mxu0
      %v4848 = vadd.f32 0.0, %v4847
      %v4849 = vpop.f32.mrf.mxu0
      %v4850 = vadd.f32 0.0, %v4849
      %4851 = vmatmul.bf16.gmra.mxu0 %v4752
      %v4852 = vpop.f32.mrf.mxu0
      %v4853 = vadd.f32 0.0, %v4852
      %v4854 = vpop.f32.mrf.mxu0
      %v4855 = vadd.f32 0.0, %v4854
      %4856 = vmatmul.bf16.gmra.mxu0 %v4756
      %v4857 = vpop.f32.mrf.mxu0
      %v4858 = vadd.f32 0.0, %v4857
      %v4859 = vpop.f32.mrf.mxu0
      %v4860 = vadd.f32 0.0, %v4859
      %4861 = vmatmul.bf16.gmra.mxu0 %v4760
      %v4862 = vpop.f32.mrf.mxu0
      %v4863 = vadd.f32 0.0, %v4862
      %v4864 = vpop.f32.mrf.mxu0
      %v4865 = vadd.f32 0.0, %v4864
      %4866 = vmatmul.bf16.gmra.mxu0 %v4764
      %v4867 = vpop.f32.mrf.mxu0
      %v4868 = vadd.f32 0.0, %v4867
      %v4869 = vpop.f32.mrf.mxu0
      %v4870 = vadd.f32 0.0, %v4869
      %4871 = vmatmul.bf16.gmra.mxu0 %v4768
      %v4872 = vpop.f32.mrf.mxu0
      %v4873 = vadd.f32 0.0, %v4872
      %v4874 = vpop.f32.mrf.mxu0
      %v4875 = vadd.f32 0.0, %v4874
      %4876 = vmatmul.bf16.gmra.mxu0 %v4772
      %v4877 = vpop.f32.mrf.mxu0
      %v4878 = vadd.f32 0.0, %v4877
      %v4879 = vpop.f32.mrf.mxu0
      %v4880 = vadd.f32 0.0, %v4879
      %4881 = vmatmul.bf16.gmra.mxu0 %v4781
      %v4882 = vpop.f32.mrf.mxu0
      %v4883 = vadd.f32 0.0, %v4882
      %v4884 = vpop.f32.mrf.mxu0
      %v4885 = vadd.f32 0.0, %v4884
      %4886 = vdwg.mxu0
      %v4887 = vadd.f32 %v4701, %v4848
      %v4888 = vadd.f32 %v4702, %v4850
      %v4889 = vadd.f32 %v4703, %v4853
      %v4890 = vadd.f32 %v4704, %v4855
      %v4891 = vadd.f32 %v4705, %v4858
      %v4892 = vadd.f32 %v4706, %v4860
      %v4893 = vadd.f32 %v4707, %v4863
      %v4894 = vadd.f32 %v4708, %v4865
      %v4895 = vadd.f32 %v4709, %v4868
      %v4896 = vadd.f32 %v4710, %v4870
      %v4897 = vadd.f32 %v4711, %v4873
      %v4898 = vadd.f32 %v4712, %v4875
      %v4899 = vadd.f32 %v4713, %v4878
      %v4900 = vadd.f32 %v4714, %v4880
      %v4901 = vadd.f32 %v4715, %v4883
      %v4902 = vadd.f32 %v4716, %v4885
      %v4903 = vld [vmem:[%s5] sm:$0x1]
      %v4905 = vperm.slane %v4903, 0
      %v4907 = vmul.f32 %v4887, %v4905
      %v4908 = vmul.f32 %v4888, %v4905
      %v4909 = vmul.f32 %v4889, %v4905
      %v4910 = vmul.f32 %v4890, %v4905
      %v4911 = vmul.f32 %v4891, %v4905
      %v4912 = vmul.f32 %v4892, %v4905
      %v4913 = vmul.f32 %v4893, %v4905
      %v4914 = vmul.f32 %v4894, %v4905
      %v4915 = vmul.f32 %v4895, %v4905
      %v4916 = vmul.f32 %v4896, %v4905
      %v4917 = vmul.f32 %v4897, %v4905
      %v4918 = vmul.f32 %v4898, %v4905
      %v4919 = vmul.f32 %v4899, %v4905
      %v4920 = vmul.f32 %v4900, %v4905
      %v4921 = vmul.f32 %v4901, %v4905
      %v4922 = vmul.f32 %v4902, %v4905
      %v4923 = vld [vmem:[%s6] sm:$0x1]
      %v4925 = vperm.slane %v4923, 0
      %v4927 = vadd.f32 %v4907, %v4925
      %v4928 = vadd.f32 %v4908, %v4925
      %v4929 = vadd.f32 %v4909, %v4925
      %v4930 = vadd.f32 %v4910, %v4925
      %v4931 = vadd.f32 %v4911, %v4925
      %v4932 = vadd.f32 %v4912, %v4925
      %v4933 = vadd.f32 %v4913, %v4925
      %v4934 = vadd.f32 %v4914, %v4925
      %v4935 = vadd.f32 %v4915, %v4925
      %v4936 = vadd.f32 %v4916, %v4925
      %v4937 = vadd.f32 %v4917, %v4925
      %v4938 = vadd.f32 %v4918, %v4925
      %v4939 = vadd.f32 %v4919, %v4925
      %v4940 = vadd.f32 %v4920, %v4925
      %v4941 = vadd.f32 %v4921, %v4925
      %v4942 = vadd.f32 %v4922, %v4925
      %v4943 = vmul.f32 %v4927, 0.1
      %v4944 = vmul.f32 %v4928, 0.1
      %v4945 = vmul.f32 %v4929, 0.1
      %v4946 = vmul.f32 %v4930, 0.1
      %v4947 = vmul.f32 %v4931, 0.1
      %v4948 = vmul.f32 %v4932, 0.1
      %v4949 = vmul.f32 %v4933, 0.1
      %v4950 = vmul.f32 %v4934, 0.1
      %v4951 = vmul.f32 %v4935, 0.1
      %v4952 = vmul.f32 %v4936, 0.1
      %v4953 = vmul.f32 %v4937, 0.1
      %v4954 = vmul.f32 %v4938, 0.1
      %v4955 = vmul.f32 %v4939, 0.1
      %v4956 = vmul.f32 %v4940, 0.1
      %v4957 = vmul.f32 %v4941, 0.1
      %v4958 = vmul.f32 %v4942, 0.1
      %v4959 = vmax.f32 %v4927, %v4943
      %v4960 = vmax.f32 %v4928, %v4944
      %v4961 = vmax.f32 %v4929, %v4945
      %v4962 = vmax.f32 %v4930, %v4946
      %v4963 = vmax.f32 %v4931, %v4947
      %v4964 = vmax.f32 %v4932, %v4948
      %v4965 = vmax.f32 %v4933, %v4949
      %v4966 = vmax.f32 %v4934, %v4950
      %v4967 = vmax.f32 %v4935, %v4951
      %v4968 = vmax.f32 %v4936, %v4952
      %v4969 = vmax.f32 %v4937, %v4953
      %v4970 = vmax.f32 %v4938, %v4954
      %v4971 = vmax.f32 %v4939, %v4955
      %v4972 = vmax.f32 %v4940, %v4956
      %v4973 = vmax.f32 %v4941, %v4957
      %v4974 = vmax.f32 %v4942, %v4958
      %v4975 = vld [vmem:[%s7 + $0x80] sm:$0xff]
      %v4976 = vld [vmem:[%s7 + $0x88] sm:$0xff]
      %v4977 = vld [vmem:[%s7 + $0x90] sm:$0xff]
      %v4978 = vld [vmem:[%s7 + $0x98] sm:$0xff]
      %v4979 = vld [vmem:[%s7 + $0xa0] sm:$0xff]
      %v4980 = vld [vmem:[%s7 + $0xa8] sm:$0xff]
      %v4981 = vld [vmem:[%s7 + $0xb0] sm:$0xff]
      %v4982 = vld [vmem:[%s7 + $0xb8] sm:$0xff]
      %v4983 = vld [vmem:[%s7 + $0xc0] sm:$0xff]
      %v4984 = vld [vmem:[%s7 + $0xc8] sm:$0xff]
      %v4985 = vld [vmem:[%s7 + $0xd0] sm:$0xff]
      %v4986 = vld [vmem:[%s7 + $0xd8] sm:$0xff]
      %v4987 = vld [vmem:[%s7 + $0xe0] sm:$0xff]
      %v4988 = vld [vmem:[%s7 + $0xe8] sm:$0xff]
      %v4989 = vld [vmem:[%s7 + $0xf0] sm:$0xff]
      %v4990 = vld [vmem:[%s7 + $0xf8] sm:$0xff]
      %4992 = vset.pattern.permute.xlu0 0
      %4993 = vperm.xlu0 %4992, %v4975
      %v4994 = vpop.permute.xlu0 %4993
      %4997 = vset.pattern.permute.xlu0 0
      %4998 = vperm.xlu0 %4997, %v4976
      %v4999 = vpop.permute.xlu0 %4998
      %5002 = vset.pattern.permute.xlu0 0
      %5003 = vperm.xlu0 %5002, %v4977
      %v5004 = vpop.permute.xlu0 %5003
      %5007 = vset.pattern.permute.xlu0 0
      %5008 = vperm.xlu0 %5007, %v4978
      %v5009 = vpop.permute.xlu0 %5008
      %5012 = vset.pattern.permute.xlu0 0
      %5013 = vperm.xlu0 %5012, %v4979
      %v5014 = vpop.permute.xlu0 %5013
      %5017 = vset.pattern.permute.xlu0 0
      %5018 = vperm.xlu0 %5017, %v4980
      %v5019 = vpop.permute.xlu0 %5018
      %5022 = vset.pattern.permute.xlu0 0
      %5023 = vperm.xlu0 %5022, %v4981
      %v5024 = vpop.permute.xlu0 %5023
      %5027 = vset.pattern.permute.xlu0 0
      %5028 = vperm.xlu0 %5027, %v4982
      %v5029 = vpop.permute.xlu0 %5028
      %5032 = vset.pattern.permute.xlu0 0
      %5033 = vperm.xlu0 %5032, %v4983
      %v5034 = vpop.permute.xlu0 %5033
      %5037 = vset.pattern.permute.xlu0 0
      %5038 = vperm.xlu0 %5037, %v4984
      %v5039 = vpop.permute.xlu0 %5038
      %5042 = vset.pattern.permute.xlu0 0
      %5043 = vperm.xlu0 %5042, %v4985
      %v5044 = vpop.permute.xlu0 %5043
      %5047 = vset.pattern.permute.xlu0 0
      %5048 = vperm.xlu0 %5047, %v4986
      %v5049 = vpop.permute.xlu0 %5048
      %5052 = vset.pattern.permute.xlu0 0
      %5053 = vperm.xlu0 %5052, %v4987
      %v5054 = vpop.permute.xlu0 %5053
      %5057 = vset.pattern.permute.xlu0 0
      %5058 = vperm.xlu0 %5057, %v4988
      %v5059 = vpop.permute.xlu0 %5058
      %5062 = vset.pattern.permute.xlu0 0
      %5063 = vperm.xlu0 %5062, %v4989
      %v5064 = vpop.permute.xlu0 %5063
      %5067 = vset.pattern.permute.xlu0 0
      %5068 = vperm.xlu0 %5067, %v4990
      %v5069 = vpop.permute.xlu0 %5068
      %v5071 = vmul.f32 %v4959, %v4994
      %v5072 = vmul.f32 %v4960, %v4999
      %v5073 = vmul.f32 %v4961, %v5004
      %v5074 = vmul.f32 %v4962, %v5009
      %v5075 = vmul.f32 %v4963, %v5014
      %v5076 = vmul.f32 %v4964, %v5019
      %v5077 = vmul.f32 %v4965, %v5024
      %v5078 = vmul.f32 %v4966, %v5029
      %v5079 = vmul.f32 %v4967, %v5034
      %v5080 = vmul.f32 %v4968, %v5039
      %v5081 = vmul.f32 %v4969, %v5044
      %v5082 = vmul.f32 %v4970, %v5049
      %v5083 = vmul.f32 %v4971, %v5054
      %v5084 = vmul.f32 %v4972, %v5059
      %v5085 = vmul.f32 %v4973, %v5064
      %v5086 = vmul.f32 %v4974, %v5069
      %v5087 = vpack.c.bf16 %v5071, %v5071
      %v5088 = vpack.c.bf16 %v5072, %v5072
      %v5089 = vpack.c.bf16 %v5073, %v5073
      %v5090 = vpack.c.bf16 %v5074, %v5074
      %v5091 = vpack.c.bf16 %v5075, %v5075
      %v5092 = vpack.c.bf16 %v5076, %v5076
      %v5093 = vpack.c.bf16 %v5077, %v5077
      %v5094 = vpack.c.bf16 %v5078, %v5078
      %v5095 = vpack.c.bf16 %v5079, %v5079
      %v5096 = vpack.c.bf16 %v5080, %v5080
      %v5097 = vpack.c.bf16 %v5081, %v5081
      %v5098 = vpack.c.bf16 %v5082, %v5082
      %v5099 = vpack.c.bf16 %v5083, %v5083
      %v5100 = vpack.c.bf16 %v5084, %v5084
      %v5101 = vpack.c.bf16 %v5085, %v5085
      %v5102 = vpack.c.bf16 %v5086, %v5086
      %5103 = vst [vmem:[#allocation3 + $0x4c] sm:$0xf] %v5087
      %5104 = vst [vmem:[#allocation3 + $0x50] sm:$0xf] %v5088
      %5105 = vst [vmem:[#allocation3 + $0x54] sm:$0xf] %v5089
      %5106 = vst [vmem:[#allocation3 + $0x58] sm:$0xf] %v5090
      %5107 = vst [vmem:[#allocation3 + $0x5c] sm:$0xf] %v5091
      %5108 = vst [vmem:[#allocation3 + $0x60] sm:$0xf] %v5092
      %5109 = vst [vmem:[#allocation3 + $0x64] sm:$0xf] %v5093
      %5110 = vst [vmem:[#allocation3 + $0x68] sm:$0xf] %v5094
      %5111 = vst [vmem:[#allocation3 + $0x6c] sm:$0xf] %v5095
      %5112 = vst [vmem:[#allocation3 + $0x70] sm:$0xf] %v5096
      %5113 = vst [vmem:[#allocation3 + $0x74] sm:$0xf] %v5097
      %5114 = vst [vmem:[#allocation3 + $0x78] sm:$0xf] %v5098
      %5115 = vst [vmem:[#allocation3 + $0x7c] sm:$0xf] %v5099
      %5116 = vst [vmem:[#allocation3 + $0x80] sm:$0xf] %v5100
      %5117 = vst [vmem:[#allocation3 + $0x84] sm:$0xf] %v5101
      %5118 = vst [vmem:[#allocation3 + $0x88] sm:$0xf] %v5102
      %v5119 = vld [vmem:[#allocation2 + $0x80] sm:$0xc]
      %v5120 = vld [vmem:[#allocation2 + $0x84] sm:$0xf]
      %v5121 = vld [vmem:[#allocation2 + $0x88] sm:$0xf]
      %v5122 = vld [vmem:[#allocation2 + $0x8c] sm:$0xf]
      %v5123 = vld [vmem:[#allocation2 + $0x90] sm:$0xf]
      %v5124 = vld [vmem:[#allocation2 + $0x94] sm:$0xf]
      %v5125 = vld [vmem:[#allocation2 + $0x98] sm:$0xf]
      %v5126 = vld [vmem:[#allocation2 + $0x9c] sm:$0xf]
      %v5127 = vld [vmem:[#allocation2 + $0xa0] sm:$0xf]
      %v5128 = vld [vmem:[#allocation2 + $0xa4] sm:$0x1]
      %v5129 = vld [vmem:[%s1] sm:$0xf]
      %v5130 = vld [vmem:[%s1 + $0x4] sm:$0xf]
      %v5131 = vld [vmem:[%s1 + $0x8] sm:$0xf]
      %v5132 = vld [vmem:[%s1 + $0xc] sm:$0xf]
      %v5133 = vld [vmem:[%s1 + $0x10] sm:$0xf]
      %v5134 = vld [vmem:[%s1 + $0x14] sm:$0xf]
      %v5135 = vld [vmem:[%s1 + $0x18] sm:$0xf]
      %v5136 = vld [vmem:[%s1 + $0x1c] sm:$0xf]
      %v5137 = vld [vmem:[%s1 + $0x20] sm:$0xf]
      %v5138 = vld [vmem:[%s1 + $0x24] sm:$0xf]
      %v5139 = vld [vmem:[%s1 + $0x28] sm:$0xf]
      %v5140 = vld [vmem:[%s1 + $0x2c] sm:$0xf]
      %v5141 = vld [vmem:[%s1 + $0x30] sm:$0xf]
      %v5142 = vld [vmem:[%s1 + $0x34] sm:$0xf]
      %v5143 = vld [vmem:[%s1 + $0x38] sm:$0xf]
      %v5144 = vld [vmem:[%s1 + $0x3c] sm:$0xf]
      %v5145 = vld [vmem:[#allocation2 + $0x80] sm:$0x8]
      %v5146 = vld [vmem:[%s937] sm:$0xf]
      %v5147 = vld [vmem:[%s937 + $0x4] sm:$0xf]
      %v5148 = vld [vmem:[%s937 + $0x8] sm:$0xf]
      %v5149 = vld [vmem:[%s937 + $0xc] sm:$0xf]
      %v5150 = vld [vmem:[%s937 + $0x10] sm:$0xf]
      %v5151 = vld [vmem:[%s937 + $0x14] sm:$0xf]
      %v5152 = vld [vmem:[%s937 + $0x18] sm:$0xf]
      %v5153 = vld [vmem:[%s937 + $0x1c] sm:$0xf]
      %v5154 = vld [vmem:[%s937 + $0x20] sm:$0xf]
      %v5155 = vld [vmem:[%s937 + $0x24] sm:$0xf]
      %v5156 = vld [vmem:[%s937 + $0x28] sm:$0xf]
      %v5157 = vld [vmem:[%s937 + $0x2c] sm:$0xf]
      %v5158 = vld [vmem:[%s937 + $0x30] sm:$0xf]
      %v5159 = vld [vmem:[%s937 + $0x34] sm:$0xf]
      %v5160 = vld [vmem:[%s937 + $0x38] sm:$0xf]
      %v5161 = vld [vmem:[%s937 + $0x3c] sm:$0xf]
      %v5172 = vunpack.c.l.b16 %v5145
      %v5173 = vunpack.c.l.b16 %v5120
      %v5174 = vunpack.c.l.b16 %v5121
      %v5175 = vunpack.c.l.b16 %v5122
      %v5176 = vunpack.c.l.b16 %v5123
      %v5177 = vunpack.c.l.b16 %v5124
      %v5178 = vunpack.c.l.b16 %v5125
      %v5179 = vunpack.c.l.b16 %v5126
      %v5180 = vunpack.c.l.b16 %v5127
      %v5181 = vunpack.c.l.b16 %v5128
      %v5182 = vpack.c.b16 %v5173, %v5172
      %v5183 = vpack.c.b16 %v5175, %v5174
      %v5184 = vpack.c.b16 %v5177, %v5176
      %v5185 = vpack.c.b16 %v5179, %v5178
      %v5186 = vpack.c.b16 %v5181, %v5180
      %v5187 = vrot.slane %v5182, 3
      %v5188 = vrot.slane %v5183, 3
      %v5189 = vsel %vm997, %v5187, %v5188
      %v5190 = vrot.slane %v5184, 3
      %v5191 = vsel %vm997, %v5188, %v5190
      %v5192 = vrot.slane %v5185, 3
      %v5193 = vsel %vm997, %v5190, %v5192
      %v5194 = vrot.slane %v5186, 3
      %v5195 = vsel %vm997, %v5192, %v5194
      %v5217 = vunpack.c.l.b16 %v5146
      %v5218 = vunpack.c.l.b16 %v5147
      %v5219 = vunpack.c.l.b16 %v5148
      %v5220 = vunpack.c.l.b16 %v5149
      %v5221 = vunpack.c.l.b16 %v5150
      %v5222 = vunpack.c.l.b16 %v5151
      %v5223 = vunpack.c.l.b16 %v5152
      %v5224 = vunpack.c.l.b16 %v5153
      %v5225 = vunpack.c.l.b16 %v5154
      %v5226 = vunpack.c.l.b16 %v5155
      %v5227 = vunpack.c.l.b16 %v5156
      %v5228 = vunpack.c.l.b16 %v5157
      %v5229 = vunpack.c.l.b16 %v5158
      %v5230 = vunpack.c.l.b16 %v5159
      %v5231 = vunpack.c.l.b16 %v5160
      %v5232 = vunpack.c.l.b16 %v5161
      %v5233 = vpack.c.b16 %v5218, %v5217
      %v5234 = vpack.c.b16 %v5220, %v5219
      %v5235 = vpack.c.b16 %v5222, %v5221
      %v5236 = vpack.c.b16 %v5224, %v5223
      %v5237 = vpack.c.b16 %v5226, %v5225
      %v5238 = vpack.c.b16 %v5228, %v5227
      %v5239 = vpack.c.b16 %v5230, %v5229
      %v5240 = vpack.c.b16 %v5232, %v5231
      %5249 = vmatpush.bf16.msra.mxu0 %v5240
      %5250 = vmatpush.bf16.msra.mxu0 %v5239
      %5251 = vmatpush.bf16.msra.mxu0 %v5238
      %5252 = vmatpush.bf16.msra.mxu0 %v5237
      %5253 = vmatpush.bf16.msra.mxu0 %v5236
      %5254 = vmatpush.bf16.msra.mxu0 %v5235
      %5255 = vmatpush.bf16.msra.mxu0 %v5234
      %5256 = vmatpush.bf16.msra.mxu0 %v5233
      %5257 = vmatmul.bf16.gmra.mxu0 %v5189
      %v5258 = vpop.f32.mrf.mxu0
      %v5259 = vadd.f32 0.0, %v5258
      %v5260 = vpop.f32.mrf.mxu0
      %v5261 = vadd.f32 0.0, %v5260
      %5262 = vmatmul.bf16.gmra.mxu0 %v5191
      %v5263 = vpop.f32.mrf.mxu0
      %v5264 = vadd.f32 0.0, %v5263
      %v5265 = vpop.f32.mrf.mxu0
      %v5266 = vadd.f32 0.0, %v5265
      %5267 = vmatmul.bf16.gmra.mxu0 %v5193
      %v5268 = vpop.f32.mrf.mxu0
      %v5269 = vadd.f32 0.0, %v5268
      %v5270 = vpop.f32.mrf.mxu0
      %v5271 = vadd.f32 0.0, %v5270
      %5272 = vmatmul.bf16.gmra.mxu0 %v5195
      %v5273 = vpop.f32.mrf.mxu0
      %v5274 = vadd.f32 0.0, %v5273
      %v5275 = vpop.f32.mrf.mxu0
      %v5276 = vadd.f32 0.0, %v5275
      %5277 = vmatmul.bf16.gmra.mxu0 %v5194
      %v5278 = vpop.f32.mrf.mxu0
      %v5279 = vadd.f32 0.0, %v5278
      %v5280 = vpop.f32.mrf.mxu0
      %5281 = vdwg.mxu0
      %v5283 = vunpack.c.l.b16 %v5119
      %v5284 = vpack.c.b16 %v5173, %v5283
      %v5286 = vshrl.u32 %v5284, 16
      %v5288 = vrot.slane %v5286, 2
      %v5289 = vshll.u32 %v5284, 16
      %v5291 = vrot.slane %v5289, 3
      %v5292 = vor.u32 %v5288, %v5291
      %v5294 = vshrl.u32 %v5183, 16
      %v5296 = vrot.slane %v5294, 2
      %v5297 = vshll.u32 %v5183, 16
      %v5299 = vrot.slane %v5297, 3
      %v5300 = vor.u32 %v5296, %v5299
      %v5301 = vsel %vm1123, %v5292, %v5300
      %v5303 = vshrl.u32 %v5184, 16
      %v5305 = vrot.slane %v5303, 2
      %v5306 = vshll.u32 %v5184, 16
      %v5308 = vrot.slane %v5306, 3
      %v5309 = vor.u32 %v5305, %v5308
      %v5310 = vsel %vm1123, %v5300, %v5309
      %v5312 = vshrl.u32 %v5185, 16
      %v5314 = vrot.slane %v5312, 2
      %v5315 = vshll.u32 %v5185, 16
      %v5317 = vrot.slane %v5315, 3
      %v5318 = vor.u32 %v5314, %v5317
      %v5319 = vsel %vm1123, %v5309, %v5318
      %v5321 = vshrl.u32 %v5186, 16
      %v5323 = vrot.slane %v5321, 2
      %v5324 = vshll.u32 %v5186, 16
      %v5326 = vrot.slane %v5324, 3
      %v5327 = vor.u32 %v5323, %v5326
      %v5328 = vsel %vm1123, %v5318, %v5327
      %v5350 = vunpack.c.l.b16 %v5129
      %v5351 = vunpack.c.l.b16 %v5130
      %v5352 = vunpack.c.l.b16 %v5131
      %v5353 = vunpack.c.l.b16 %v5132
      %v5354 = vunpack.c.l.b16 %v5133
      %v5355 = vunpack.c.l.b16 %v5134
      %v5356 = vunpack.c.l.b16 %v5135
      %v5357 = vunpack.c.l.b16 %v5136
      %v5358 = vunpack.c.l.b16 %v5137
      %v5359 = vunpack.c.l.b16 %v5138
      %v5360 = vunpack.c.l.b16 %v5139
      %v5361 = vunpack.c.l.b16 %v5140
      %v5362 = vunpack.c.l.b16 %v5141
      %v5363 = vunpack.c.l.b16 %v5142
      %v5364 = vunpack.c.l.b16 %v5143
      %v5365 = vunpack.c.l.b16 %v5144
      %v5366 = vpack.c.b16 %v5351, %v5350
      %v5367 = vpack.c.b16 %v5353, %v5352
      %v5368 = vpack.c.b16 %v5355, %v5354
      %v5369 = vpack.c.b16 %v5357, %v5356
      %v5370 = vpack.c.b16 %v5359, %v5358
      %v5371 = vpack.c.b16 %v5361, %v5360
      %v5372 = vpack.c.b16 %v5363, %v5362
      %v5373 = vpack.c.b16 %v5365, %v5364
      %5382 = vmatpush.bf16.msra.mxu0 %v5373
      %5383 = vmatpush.bf16.msra.mxu0 %v5372
      %5384 = vmatpush.bf16.msra.mxu0 %v5371
      %5385 = vmatpush.bf16.msra.mxu0 %v5370
      %5386 = vmatpush.bf16.msra.mxu0 %v5369
      %5387 = vmatpush.bf16.msra.mxu0 %v5368
      %5388 = vmatpush.bf16.msra.mxu0 %v5367
      %5389 = vmatpush.bf16.msra.mxu0 %v5366
      %5390 = vmatmul.bf16.gmra.mxu0 %v5301
      %v5391 = vpop.f32.mrf.mxu0
      %v5392 = vadd.f32 %v5259, %v5391
      %v5393 = vpop.f32.mrf.mxu0
      %v5394 = vadd.f32 %v5261, %v5393
      %5395 = vmatmul.bf16.gmra.mxu0 %v5310
      %v5396 = vpop.f32.mrf.mxu0
      %v5397 = vadd.f32 %v5264, %v5396
      %v5398 = vpop.f32.mrf.mxu0
      %v5399 = vadd.f32 %v5266, %v5398
      %5400 = vmatmul.bf16.gmra.mxu0 %v5319
      %v5401 = vpop.f32.mrf.mxu0
      %v5402 = vadd.f32 %v5269, %v5401
      %v5403 = vpop.f32.mrf.mxu0
      %v5404 = vadd.f32 %v5271, %v5403
      %5405 = vmatmul.bf16.gmra.mxu0 %v5328
      %v5406 = vpop.f32.mrf.mxu0
      %v5407 = vadd.f32 %v5274, %v5406
      %v5408 = vpop.f32.mrf.mxu0
      %v5409 = vadd.f32 %v5276, %v5408
      %5410 = vmatmul.bf16.gmra.mxu0 %v5327
      %v5411 = vpop.f32.mrf.mxu0
      %v5412 = vadd.f32 %v5279, %v5411
      %v5413 = vpop.f32.mrf.mxu0
      %5414 = vdwg.mxu0
      %v5415 = vld [vmem:[#allocation2 + $0xa4] sm:$0x3]
      %v5416 = vld [vmem:[%s1310] sm:$0xf]
      %v5417 = vld [vmem:[%s1310 + $0x4] sm:$0xf]
      %v5418 = vld [vmem:[%s1310 + $0x8] sm:$0xf]
      %v5419 = vld [vmem:[%s1310 + $0xc] sm:$0xf]
      %v5420 = vld [vmem:[%s1310 + $0x10] sm:$0xf]
      %v5421 = vld [vmem:[%s1310 + $0x14] sm:$0xf]
      %v5422 = vld [vmem:[%s1310 + $0x18] sm:$0xf]
      %v5423 = vld [vmem:[%s1310 + $0x1c] sm:$0xf]
      %v5424 = vld [vmem:[%s1310 + $0x20] sm:$0xf]
      %v5425 = vld [vmem:[%s1310 + $0x24] sm:$0xf]
      %v5426 = vld [vmem:[%s1310 + $0x28] sm:$0xf]
      %v5427 = vld [vmem:[%s1310 + $0x2c] sm:$0xf]
      %v5428 = vld [vmem:[%s1310 + $0x30] sm:$0xf]
      %v5429 = vld [vmem:[%s1310 + $0x34] sm:$0xf]
      %v5430 = vld [vmem:[%s1310 + $0x38] sm:$0xf]
      %v5431 = vld [vmem:[%s1310 + $0x3c] sm:$0xf]
      %v5433 = vunpack.c.l.b16 %v5415
      %v5434 = vpack.c.b16 %v5433, %v5180
      %v5436 = vshrl.u32 %v5182, 16
      %v5438 = vrot.slane %v5436, 3
      %v5439 = vshll.u32 %v5182, 16
      %v5441 = vrot.slane %v5439, 4
      %v5442 = vor.u32 %v5438, %v5441
      %v5443 = vrot.slane %v5294, 3
      %v5444 = vrot.slane %v5297, 4
      %v5445 = vor.u32 %v5443, %v5444
      %v5446 = vsel %vm1330, %v5442, %v5445
      %v5447 = vrot.slane %v5303, 3
      %v5448 = vrot.slane %v5306, 4
      %v5449 = vor.u32 %v5447, %v5448
      %v5450 = vsel %vm1330, %v5445, %v5449
      %v5451 = vrot.slane %v5312, 3
      %v5452 = vrot.slane %v5315, 4
      %v5453 = vor.u32 %v5451, %v5452
      %v5454 = vsel %vm1330, %v5449, %v5453
      %v5456 = vshrl.u32 %v5434, 16
      %v5458 = vrot.slane %v5456, 3
      %v5459 = vshll.u32 %v5434, 16
      %v5461 = vrot.slane %v5459, 4
      %v5462 = vor.u32 %v5458, %v5461
      %v5463 = vsel %vm1330, %v5453, %v5462
      %v5485 = vunpack.c.l.b16 %v5416
      %v5486 = vunpack.c.l.b16 %v5417
      %v5487 = vunpack.c.l.b16 %v5418
      %v5488 = vunpack.c.l.b16 %v5419
      %v5489 = vunpack.c.l.b16 %v5420
      %v5490 = vunpack.c.l.b16 %v5421
      %v5491 = vunpack.c.l.b16 %v5422
      %v5492 = vunpack.c.l.b16 %v5423
      %v5493 = vunpack.c.l.b16 %v5424
      %v5494 = vunpack.c.l.b16 %v5425
      %v5495 = vunpack.c.l.b16 %v5426
      %v5496 = vunpack.c.l.b16 %v5427
      %v5497 = vunpack.c.l.b16 %v5428
      %v5498 = vunpack.c.l.b16 %v5429
      %v5499 = vunpack.c.l.b16 %v5430
      %v5500 = vunpack.c.l.b16 %v5431
      %v5501 = vpack.c.b16 %v5486, %v5485
      %v5502 = vpack.c.b16 %v5488, %v5487
      %v5503 = vpack.c.b16 %v5490, %v5489
      %v5504 = vpack.c.b16 %v5492, %v5491
      %v5505 = vpack.c.b16 %v5494, %v5493
      %v5506 = vpack.c.b16 %v5496, %v5495
      %v5507 = vpack.c.b16 %v5498, %v5497
      %v5508 = vpack.c.b16 %v5500, %v5499
      %5517 = vmatpush.bf16.msra.mxu0 %v5508
      %5518 = vmatpush.bf16.msra.mxu0 %v5507
      %5519 = vmatpush.bf16.msra.mxu0 %v5506
      %5520 = vmatpush.bf16.msra.mxu0 %v5505
      %5521 = vmatpush.bf16.msra.mxu0 %v5504
      %5522 = vmatpush.bf16.msra.mxu0 %v5503
      %5523 = vmatpush.bf16.msra.mxu0 %v5502
      %5524 = vmatpush.bf16.msra.mxu0 %v5501
      %5525 = vmatmul.bf16.gmra.mxu0 %v5446
      %v5526 = vpop.f32.mrf.mxu0
      %v5527 = vadd.f32 0.0, %v5526
      %v5528 = vpop.f32.mrf.mxu0
      %v5529 = vadd.f32 0.0, %v5528
      %5530 = vmatmul.bf16.gmra.mxu0 %v5450
      %v5531 = vpop.f32.mrf.mxu0
      %v5532 = vadd.f32 0.0, %v5531
      %v5533 = vpop.f32.mrf.mxu0
      %v5534 = vadd.f32 0.0, %v5533
      %5535 = vmatmul.bf16.gmra.mxu0 %v5454
      %v5536 = vpop.f32.mrf.mxu0
      %v5537 = vadd.f32 0.0, %v5536
      %v5538 = vpop.f32.mrf.mxu0
      %v5539 = vadd.f32 0.0, %v5538
      %5540 = vmatmul.bf16.gmra.mxu0 %v5463
      %v5541 = vpop.f32.mrf.mxu0
      %v5542 = vadd.f32 0.0, %v5541
      %v5543 = vpop.f32.mrf.mxu0
      %v5544 = vadd.f32 0.0, %v5543
      %5545 = vmatmul.bf16.gmra.mxu0 %v5462
      %v5546 = vpop.f32.mrf.mxu0
      %v5547 = vadd.f32 0.0, %v5546
      %v5548 = vpop.f32.mrf.mxu0
      %5549 = vdwg.mxu0
      %v5550 = vadd.f32 %v5392, %v5527
      %v5551 = vadd.f32 %v5394, %v5529
      %v5552 = vadd.f32 %v5397, %v5532
      %v5553 = vadd.f32 %v5399, %v5534
      %v5554 = vadd.f32 %v5402, %v5537
      %v5555 = vadd.f32 %v5404, %v5539
      %v5556 = vadd.f32 %v5407, %v5542
      %v5557 = vadd.f32 %v5409, %v5544
      %v5558 = vadd.f32 %v5412, %v5547
      %v5559 = vld [vmem:[#allocation2 + $0x88] sm:$0x8]
      %v5560 = vld [vmem:[#allocation2 + $0x8c] sm:$0xf]
      %v5561 = vld [vmem:[#allocation2 + $0x90] sm:$0xf]
      %v5562 = vld [vmem:[#allocation2 + $0x94] sm:$0xf]
      %v5563 = vld [vmem:[#allocation2 + $0x98] sm:$0xf]
      %v5564 = vld [vmem:[#allocation2 + $0x9c] sm:$0xf]
      %v5565 = vld [vmem:[#allocation2 + $0xa0] sm:$0xf]
      %v5566 = vld [vmem:[#allocation2 + $0xa4] sm:$0xf]
      %v5567 = vld [vmem:[#allocation2 + $0xa8] sm:$0xf]
      %v5568 = vld [vmem:[#allocation2 + $0xac] sm:$0x3]
      %v5569 = vld [vmem:[%s1514] sm:$0xf]
      %v5570 = vld [vmem:[%s1514 + $0x4] sm:$0xf]
      %v5571 = vld [vmem:[%s1514 + $0x8] sm:$0xf]
      %v5572 = vld [vmem:[%s1514 + $0xc] sm:$0xf]
      %v5573 = vld [vmem:[%s1514 + $0x10] sm:$0xf]
      %v5574 = vld [vmem:[%s1514 + $0x14] sm:$0xf]
      %v5575 = vld [vmem:[%s1514 + $0x18] sm:$0xf]
      %v5576 = vld [vmem:[%s1514 + $0x1c] sm:$0xf]
      %v5577 = vld [vmem:[%s1514 + $0x20] sm:$0xf]
      %v5578 = vld [vmem:[%s1514 + $0x24] sm:$0xf]
      %v5579 = vld [vmem:[%s1514 + $0x28] sm:$0xf]
      %v5580 = vld [vmem:[%s1514 + $0x2c] sm:$0xf]
      %v5581 = vld [vmem:[%s1514 + $0x30] sm:$0xf]
      %v5582 = vld [vmem:[%s1514 + $0x34] sm:$0xf]
      %v5583 = vld [vmem:[%s1514 + $0x38] sm:$0xf]
      %v5584 = vld [vmem:[%s1514 + $0x3c] sm:$0xf]
      %v5595 = vunpack.c.l.b16 %v5559
      %v5596 = vunpack.c.l.b16 %v5560
      %v5597 = vunpack.c.l.b16 %v5561
      %v5598 = vunpack.c.l.b16 %v5562
      %v5599 = vunpack.c.l.b16 %v5563
      %v5600 = vunpack.c.l.b16 %v5564
      %v5601 = vunpack.c.l.b16 %v5565
      %v5602 = vunpack.c.l.b16 %v5566
      %v5603 = vunpack.c.l.b16 %v5567
      %v5604 = vunpack.c.l.b16 %v5568
      %v5605 = vpack.c.b16 %v5596, %v5595
      %v5606 = vpack.c.b16 %v5598, %v5597
      %v5607 = vpack.c.b16 %v5600, %v5599
      %v5608 = vpack.c.b16 %v5602, %v5601
      %v5609 = vpack.c.b16 %v5604, %v5603
      %v5611 = vshrl.u32 %v5605, 16
      %v5613 = vrot.slane %v5611, 3
      %v5614 = vshll.u32 %v5605, 16
      %v5616 = vrot.slane %v5614, 4
      %v5617 = vor.u32 %v5613, %v5616
      %v5619 = vshrl.u32 %v5606, 16
      %v5621 = vrot.slane %v5619, 3
      %v5622 = vshll.u32 %v5606, 16
      %v5624 = vrot.slane %v5622, 4
      %v5625 = vor.u32 %v5621, %v5624
      %v5626 = vsel %vm1330, %v5617, %v5625
      %v5628 = vshrl.u32 %v5607, 16
      %v5630 = vrot.slane %v5628, 3
      %v5631 = vshll.u32 %v5607, 16
      %v5633 = vrot.slane %v5631, 4
      %v5634 = vor.u32 %v5630, %v5633
      %v5635 = vsel %vm1330, %v5625, %v5634
      %v5637 = vshrl.u32 %v5608, 16
      %v5639 = vrot.slane %v5637, 3
      %v5640 = vshll.u32 %v5608, 16
      %v5642 = vrot.slane %v5640, 4
      %v5643 = vor.u32 %v5639, %v5642
      %v5644 = vsel %vm1330, %v5634, %v5643
      %v5646 = vshrl.u32 %v5609, 16
      %v5648 = vrot.slane %v5646, 3
      %v5649 = vshll.u32 %v5609, 16
      %v5651 = vrot.slane %v5649, 4
      %v5652 = vor.u32 %v5648, %v5651
      %v5653 = vsel %vm1330, %v5643, %v5652
      %v5675 = vunpack.c.l.b16 %v5569
      %v5676 = vunpack.c.l.b16 %v5570
      %v5677 = vunpack.c.l.b16 %v5571
      %v5678 = vunpack.c.l.b16 %v5572
      %v5679 = vunpack.c.l.b16 %v5573
      %v5680 = vunpack.c.l.b16 %v5574
      %v5681 = vunpack.c.l.b16 %v5575
      %v5682 = vunpack.c.l.b16 %v5576
      %v5683 = vunpack.c.l.b16 %v5577
      %v5684 = vunpack.c.l.b16 %v5578
      %v5685 = vunpack.c.l.b16 %v5579
      %v5686 = vunpack.c.l.b16 %v5580
      %v5687 = vunpack.c.l.b16 %v5581
      %v5688 = vunpack.c.l.b16 %v5582
      %v5689 = vunpack.c.l.b16 %v5583
      %v5690 = vunpack.c.l.b16 %v5584
      %v5691 = vpack.c.b16 %v5676, %v5675
      %v5692 = vpack.c.b16 %v5678, %v5677
      %v5693 = vpack.c.b16 %v5680, %v5679
      %v5694 = vpack.c.b16 %v5682, %v5681
      %v5695 = vpack.c.b16 %v5684, %v5683
      %v5696 = vpack.c.b16 %v5686, %v5685
      %v5697 = vpack.c.b16 %v5688, %v5687
      %v5698 = vpack.c.b16 %v5690, %v5689
      %5707 = vmatpush.bf16.msra.mxu0 %v5698
      %5708 = vmatpush.bf16.msra.mxu0 %v5697
      %5709 = vmatpush.bf16.msra.mxu0 %v5696
      %5710 = vmatpush.bf16.msra.mxu0 %v5695
      %5711 = vmatpush.bf16.msra.mxu0 %v5694
      %5712 = vmatpush.bf16.msra.mxu0 %v5693
      %5713 = vmatpush.bf16.msra.mxu0 %v5692
      %5714 = vmatpush.bf16.msra.mxu0 %v5691
      %5715 = vmatmul.bf16.gmra.mxu0 %v5626
      %v5716 = vpop.f32.mrf.mxu0
      %v5717 = vadd.f32 0.0, %v5716
      %v5718 = vpop.f32.mrf.mxu0
      %v5719 = vadd.f32 0.0, %v5718
      %5720 = vmatmul.bf16.gmra.mxu0 %v5635
      %v5721 = vpop.f32.mrf.mxu0
      %v5722 = vadd.f32 0.0, %v5721
      %v5723 = vpop.f32.mrf.mxu0
      %v5724 = vadd.f32 0.0, %v5723
      %5725 = vmatmul.bf16.gmra.mxu0 %v5644
      %v5726 = vpop.f32.mrf.mxu0
      %v5727 = vadd.f32 0.0, %v5726
      %v5728 = vpop.f32.mrf.mxu0
      %v5729 = vadd.f32 0.0, %v5728
      %5730 = vmatmul.bf16.gmra.mxu0 %v5653
      %v5731 = vpop.f32.mrf.mxu0
      %v5732 = vadd.f32 0.0, %v5731
      %v5733 = vpop.f32.mrf.mxu0
      %v5734 = vadd.f32 0.0, %v5733
      %5735 = vmatmul.bf16.gmra.mxu0 %v5652
      %v5736 = vpop.f32.mrf.mxu0
      %v5737 = vadd.f32 0.0, %v5736
      %v5738 = vpop.f32.mrf.mxu0
      %5739 = vdwg.mxu0
      %v5740 = vadd.f32 %v5550, %v5717
      %v5741 = vadd.f32 %v5551, %v5719
      %v5742 = vadd.f32 %v5552, %v5722
      %v5743 = vadd.f32 %v5553, %v5724
      %v5744 = vadd.f32 %v5554, %v5727
      %v5745 = vadd.f32 %v5555, %v5729
      %v5746 = vadd.f32 %v5556, %v5732
      %v5747 = vadd.f32 %v5557, %v5734
      %v5748 = vadd.f32 %v5558, %v5737
      %v5749 = vld [vmem:[%s1775] sm:$0xf]
      %v5750 = vld [vmem:[%s1775 + $0x4] sm:$0xf]
      %v5751 = vld [vmem:[%s1775 + $0x8] sm:$0xf]
      %v5752 = vld [vmem:[%s1775 + $0xc] sm:$0xf]
      %v5753 = vld [vmem:[%s1775 + $0x10] sm:$0xf]
      %v5754 = vld [vmem:[%s1775 + $0x14] sm:$0xf]
      %v5755 = vld [vmem:[%s1775 + $0x18] sm:$0xf]
      %v5756 = vld [vmem:[%s1775 + $0x1c] sm:$0xf]
      %v5757 = vld [vmem:[%s1775 + $0x20] sm:$0xf]
      %v5758 = vld [vmem:[%s1775 + $0x24] sm:$0xf]
      %v5759 = vld [vmem:[%s1775 + $0x28] sm:$0xf]
      %v5760 = vld [vmem:[%s1775 + $0x2c] sm:$0xf]
      %v5761 = vld [vmem:[%s1775 + $0x30] sm:$0xf]
      %v5762 = vld [vmem:[%s1775 + $0x34] sm:$0xf]
      %v5763 = vld [vmem:[%s1775 + $0x38] sm:$0xf]
      %v5764 = vld [vmem:[%s1775 + $0x3c] sm:$0xf]
      %v5765 = vpack.c.b16 %v5597, %v5596
      %v5766 = vpack.c.b16 %v5599, %v5598
      %v5767 = vpack.c.b16 %v5601, %v5600
      %v5768 = vpack.c.b16 %v5603, %v5602
      %v5769 = vpack.c.b16 %v5604, %v5604
      %v5791 = vunpack.c.l.b16 %v5749
      %v5792 = vunpack.c.l.b16 %v5750
      %v5793 = vunpack.c.l.b16 %v5751
      %v5794 = vunpack.c.l.b16 %v5752
      %v5795 = vunpack.c.l.b16 %v5753
      %v5796 = vunpack.c.l.b16 %v5754
      %v5797 = vunpack.c.l.b16 %v5755
      %v5798 = vunpack.c.l.b16 %v5756
      %v5799 = vunpack.c.l.b16 %v5757
      %v5800 = vunpack.c.l.b16 %v5758
      %v5801 = vunpack.c.l.b16 %v5759
      %v5802 = vunpack.c.l.b16 %v5760
      %v5803 = vunpack.c.l.b16 %v5761
      %v5804 = vunpack.c.l.b16 %v5762
      %v5805 = vunpack.c.l.b16 %v5763
      %v5806 = vunpack.c.l.b16 %v5764
      %v5807 = vpack.c.b16 %v5792, %v5791
      %v5808 = vpack.c.b16 %v5794, %v5793
      %v5809 = vpack.c.b16 %v5796, %v5795
      %v5810 = vpack.c.b16 %v5798, %v5797
      %v5811 = vpack.c.b16 %v5800, %v5799
      %v5812 = vpack.c.b16 %v5802, %v5801
      %v5813 = vpack.c.b16 %v5804, %v5803
      %v5814 = vpack.c.b16 %v5806, %v5805
      %5823 = vmatpush.bf16.msra.mxu0 %v5814
      %5824 = vmatpush.bf16.msra.mxu0 %v5813
      %5825 = vmatpush.bf16.msra.mxu0 %v5812
      %5826 = vmatpush.bf16.msra.mxu0 %v5811
      %5827 = vmatpush.bf16.msra.mxu0 %v5810
      %5828 = vmatpush.bf16.msra.mxu0 %v5809
      %5829 = vmatpush.bf16.msra.mxu0 %v5808
      %5830 = vmatpush.bf16.msra.mxu0 %v5807
      %5831 = vmatmul.bf16.gmra.mxu0 %v5765
      %v5832 = vpop.f32.mrf.mxu0
      %v5833 = vadd.f32 0.0, %v5832
      %v5834 = vpop.f32.mrf.mxu0
      %v5835 = vadd.f32 0.0, %v5834
      %5836 = vmatmul.bf16.gmra.mxu0 %v5766
      %v5837 = vpop.f32.mrf.mxu0
      %v5838 = vadd.f32 0.0, %v5837
      %v5839 = vpop.f32.mrf.mxu0
      %v5840 = vadd.f32 0.0, %v5839
      %5841 = vmatmul.bf16.gmra.mxu0 %v5767
      %v5842 = vpop.f32.mrf.mxu0
      %v5843 = vadd.f32 0.0, %v5842
      %v5844 = vpop.f32.mrf.mxu0
      %v5845 = vadd.f32 0.0, %v5844
      %5846 = vmatmul.bf16.gmra.mxu0 %v5768
      %v5847 = vpop.f32.mrf.mxu0
      %v5848 = vadd.f32 0.0, %v5847
      %v5849 = vpop.f32.mrf.mxu0
      %v5850 = vadd.f32 0.0, %v5849
      %5851 = vmatmul.bf16.gmra.mxu0 %v5769
      %v5852 = vpop.f32.mrf.mxu0
      %v5853 = vadd.f32 0.0, %v5852
      %v5854 = vpop.f32.mrf.mxu0
      %5855 = vdwg.mxu0
      %v5856 = vadd.f32 %v5740, %v5833
      %v5857 = vadd.f32 %v5741, %v5835
      %v5858 = vadd.f32 %v5742, %v5838
      %v5859 = vadd.f32 %v5743, %v5840
      %v5860 = vadd.f32 %v5744, %v5843
      %v5861 = vadd.f32 %v5745, %v5845
      %v5862 = vadd.f32 %v5746, %v5848
      %v5863 = vadd.f32 %v5747, %v5850
      %v5864 = vadd.f32 %v5748, %v5853
      %v5865 = vld [vmem:[#allocation2 + $0xac] sm:$0x7]
      %v5866 = vld [vmem:[%s1938] sm:$0xf]
      %v5867 = vld [vmem:[%s1938 + $0x4] sm:$0xf]
      %v5868 = vld [vmem:[%s1938 + $0x8] sm:$0xf]
      %v5869 = vld [vmem:[%s1938 + $0xc] sm:$0xf]
      %v5870 = vld [vmem:[%s1938 + $0x10] sm:$0xf]
      %v5871 = vld [vmem:[%s1938 + $0x14] sm:$0xf]
      %v5872 = vld [vmem:[%s1938 + $0x18] sm:$0xf]
      %v5873 = vld [vmem:[%s1938 + $0x1c] sm:$0xf]
      %v5874 = vld [vmem:[%s1938 + $0x20] sm:$0xf]
      %v5875 = vld [vmem:[%s1938 + $0x24] sm:$0xf]
      %v5876 = vld [vmem:[%s1938 + $0x28] sm:$0xf]
      %v5877 = vld [vmem:[%s1938 + $0x2c] sm:$0xf]
      %v5878 = vld [vmem:[%s1938 + $0x30] sm:$0xf]
      %v5879 = vld [vmem:[%s1938 + $0x34] sm:$0xf]
      %v5880 = vld [vmem:[%s1938 + $0x38] sm:$0xf]
      %v5881 = vld [vmem:[%s1938 + $0x3c] sm:$0xf]
      %v5883 = vunpack.c.l.b16 %v5865
      %v5884 = vpack.c.b16 %v5883, %v5883
      %v5886 = vshrl.u32 %v5765, 16
      %v5888 = vshll.u32 %v5765, 16
      %v5890 = vrot.slane %v5888, 1
      %v5891 = vor.u32 %v5886, %v5890
      %v5893 = vshll.u32 %v5766, 16
      %v5895 = vrot.slane %v5893, 1
      %v5896 = vsel %vm1998, %v5891, %v5895
      %v5897 = vshrl.u32 %v5766, 16
      %v5899 = vor.u32 %v5897, %v5895
      %v5901 = vshll.u32 %v5767, 16
      %v5903 = vrot.slane %v5901, 1
      %v5904 = vsel %vm1998, %v5899, %v5903
      %v5905 = vshrl.u32 %v5767, 16
      %v5907 = vor.u32 %v5905, %v5903
      %v5909 = vshll.u32 %v5768, 16
      %v5911 = vrot.slane %v5909, 1
      %v5912 = vsel %vm1998, %v5907, %v5911
      %v5913 = vshrl.u32 %v5768, 16
      %v5915 = vor.u32 %v5913, %v5911
      %v5917 = vshll.u32 %v5884, 16
      %v5919 = vrot.slane %v5917, 1
      %v5920 = vsel %vm1998, %v5915, %v5919
      %v5921 = vshrl.u32 %v5884, 16
      %v5923 = vor.u32 %v5921, %v5919
      %v5945 = vunpack.c.l.b16 %v5866
      %v5946 = vunpack.c.l.b16 %v5867
      %v5947 = vunpack.c.l.b16 %v5868
      %v5948 = vunpack.c.l.b16 %v5869
      %v5949 = vunpack.c.l.b16 %v5870
      %v5950 = vunpack.c.l.b16 %v5871
      %v5951 = vunpack.c.l.b16 %v5872
      %v5952 = vunpack.c.l.b16 %v5873
      %v5953 = vunpack.c.l.b16 %v5874
      %v5954 = vunpack.c.l.b16 %v5875
      %v5955 = vunpack.c.l.b16 %v5876
      %v5956 = vunpack.c.l.b16 %v5877
      %v5957 = vunpack.c.l.b16 %v5878
      %v5958 = vunpack.c.l.b16 %v5879
      %v5959 = vunpack.c.l.b16 %v5880
      %v5960 = vunpack.c.l.b16 %v5881
      %v5961 = vpack.c.b16 %v5946, %v5945
      %v5962 = vpack.c.b16 %v5948, %v5947
      %v5963 = vpack.c.b16 %v5950, %v5949
      %v5964 = vpack.c.b16 %v5952, %v5951
      %v5965 = vpack.c.b16 %v5954, %v5953
      %v5966 = vpack.c.b16 %v5956, %v5955
      %v5967 = vpack.c.b16 %v5958, %v5957
      %v5968 = vpack.c.b16 %v5960, %v5959
      %5977 = vmatpush.bf16.msra.mxu0 %v5968
      %5978 = vmatpush.bf16.msra.mxu0 %v5967
      %5979 = vmatpush.bf16.msra.mxu0 %v5966
      %5980 = vmatpush.bf16.msra.mxu0 %v5965
      %5981 = vmatpush.bf16.msra.mxu0 %v5964
      %5982 = vmatpush.bf16.msra.mxu0 %v5963
      %5983 = vmatpush.bf16.msra.mxu0 %v5962
      %5984 = vmatpush.bf16.msra.mxu0 %v5961
      %5985 = vmatmul.bf16.gmra.mxu0 %v5896
      %v5986 = vpop.f32.mrf.mxu0
      %v5987 = vadd.f32 0.0, %v5986
      %v5988 = vpop.f32.mrf.mxu0
      %v5989 = vadd.f32 0.0, %v5988
      %5990 = vmatmul.bf16.gmra.mxu0 %v5904
      %v5991 = vpop.f32.mrf.mxu0
      %v5992 = vadd.f32 0.0, %v5991
      %v5993 = vpop.f32.mrf.mxu0
      %v5994 = vadd.f32 0.0, %v5993
      %5995 = vmatmul.bf16.gmra.mxu0 %v5912
      %v5996 = vpop.f32.mrf.mxu0
      %v5997 = vadd.f32 0.0, %v5996
      %v5998 = vpop.f32.mrf.mxu0
      %v5999 = vadd.f32 0.0, %v5998
      %6000 = vmatmul.bf16.gmra.mxu0 %v5920
      %v6001 = vpop.f32.mrf.mxu0
      %v6002 = vadd.f32 0.0, %v6001
      %v6003 = vpop.f32.mrf.mxu0
      %v6004 = vadd.f32 0.0, %v6003
      %6005 = vmatmul.bf16.gmra.mxu0 %v5923
      %v6006 = vpop.f32.mrf.mxu0
      %v6007 = vadd.f32 0.0, %v6006
      %v6008 = vpop.f32.mrf.mxu0
      %6009 = vdwg.mxu0
      %v6010 = vadd.f32 %v5856, %v5987
      %v6011 = vadd.f32 %v5857, %v5989
      %v6012 = vadd.f32 %v5858, %v5992
      %v6013 = vadd.f32 %v5859, %v5994
      %v6014 = vadd.f32 %v5860, %v5997
      %v6015 = vadd.f32 %v5861, %v5999
      %v6016 = vadd.f32 %v5862, %v6002
      %v6017 = vadd.f32 %v5863, %v6004
      %v6018 = vadd.f32 %v5864, %v6007
      %v6019 = vld [vmem:[#allocation2 + $0x94] sm:$0xf]
      %v6020 = vld [vmem:[#allocation2 + $0x98] sm:$0xf]
      %v6021 = vld [vmem:[#allocation2 + $0x9c] sm:$0xf]
      %v6022 = vld [vmem:[#allocation2 + $0xa0] sm:$0xf]
      %v6023 = vld [vmem:[#allocation2 + $0xa4] sm:$0xf]
      %v6024 = vld [vmem:[#allocation2 + $0xa8] sm:$0xf]
      %v6025 = vld [vmem:[#allocation2 + $0xac] sm:$0xf]
      %v6026 = vld [vmem:[#allocation2 + $0xb0] sm:$0xf]
      %v6027 = vld [vmem:[#allocation2 + $0xb4] sm:$0x7]
      %v6028 = vld [vmem:[%s2205] sm:$0xf]
      %v6029 = vld [vmem:[%s2205 + $0x4] sm:$0xf]
      %v6030 = vld [vmem:[%s2205 + $0x8] sm:$0xf]
      %v6031 = vld [vmem:[%s2205 + $0xc] sm:$0xf]
      %v6032 = vld [vmem:[%s2205 + $0x10] sm:$0xf]
      %v6033 = vld [vmem:[%s2205 + $0x14] sm:$0xf]
      %v6034 = vld [vmem:[%s2205 + $0x18] sm:$0xf]
      %v6035 = vld [vmem:[%s2205 + $0x1c] sm:$0xf]
      %v6036 = vld [vmem:[%s2205 + $0x20] sm:$0xf]
      %v6037 = vld [vmem:[%s2205 + $0x24] sm:$0xf]
      %v6038 = vld [vmem:[%s2205 + $0x28] sm:$0xf]
      %v6039 = vld [vmem:[%s2205 + $0x2c] sm:$0xf]
      %v6040 = vld [vmem:[%s2205 + $0x30] sm:$0xf]
      %v6041 = vld [vmem:[%s2205 + $0x34] sm:$0xf]
      %v6042 = vld [vmem:[%s2205 + $0x38] sm:$0xf]
      %v6043 = vld [vmem:[%s2205 + $0x3c] sm:$0xf]
      %v6053 = vunpack.c.l.b16 %v6019
      %v6054 = vunpack.c.l.b16 %v6020
      %v6055 = vunpack.c.l.b16 %v6021
      %v6056 = vunpack.c.l.b16 %v6022
      %v6057 = vunpack.c.l.b16 %v6023
      %v6058 = vunpack.c.l.b16 %v6024
      %v6059 = vunpack.c.l.b16 %v6025
      %v6060 = vunpack.c.l.b16 %v6026
      %v6061 = vunpack.c.l.b16 %v6027
      %v6062 = vpack.c.b16 %v6054, %v6053
      %v6063 = vpack.c.b16 %v6056, %v6055
      %v6064 = vpack.c.b16 %v6058, %v6057
      %v6065 = vpack.c.b16 %v6060, %v6059
      %v6066 = vpack.c.b16 %v6061, %v6061
      %v6068 = vshrl.u32 %v6062, 16
      %v6070 = vshll.u32 %v6062, 16
      %v6072 = vrot.slane %v6070, 1
      %v6073 = vor.u32 %v6068, %v6072
      %v6075 = vshll.u32 %v6063, 16
      %v6077 = vrot.slane %v6075, 1
      %v6078 = vsel %vm1998, %v6073, %v6077
      %v6079 = vshrl.u32 %v6063, 16
      %v6081 = vor.u32 %v6079, %v6077
      %v6083 = vshll.u32 %v6064, 16
      %v6085 = vrot.slane %v6083, 1
      %v6086 = vsel %vm1998, %v6081, %v6085
      %v6087 = vshrl.u32 %v6064, 16
      %v6089 = vor.u32 %v6087, %v6085
      %v6091 = vshll.u32 %v6065, 16
      %v6093 = vrot.slane %v6091, 1
      %v6094 = vsel %vm1998, %v6089, %v6093
      %v6095 = vshrl.u32 %v6065, 16
      %v6097 = vor.u32 %v6095, %v6093
      %v6099 = vshll.u32 %v6066, 16
      %v6101 = vrot.slane %v6099, 1
      %v6102 = vsel %vm1998, %v6097, %v6101
      %v6103 = vshrl.u32 %v6066, 16
      %v6105 = vor.u32 %v6103, %v6101
      %v6127 = vunpack.c.l.b16 %v6028
      %v6128 = vunpack.c.l.b16 %v6029
      %v6129 = vunpack.c.l.b16 %v6030
      %v6130 = vunpack.c.l.b16 %v6031
      %v6131 = vunpack.c.l.b16 %v6032
      %v6132 = vunpack.c.l.b16 %v6033
      %v6133 = vunpack.c.l.b16 %v6034
      %v6134 = vunpack.c.l.b16 %v6035
      %v6135 = vunpack.c.l.b16 %v6036
      %v6136 = vunpack.c.l.b16 %v6037
      %v6137 = vunpack.c.l.b16 %v6038
      %v6138 = vunpack.c.l.b16 %v6039
      %v6139 = vunpack.c.l.b16 %v6040
      %v6140 = vunpack.c.l.b16 %v6041
      %v6141 = vunpack.c.l.b16 %v6042
      %v6142 = vunpack.c.l.b16 %v6043
      %v6143 = vpack.c.b16 %v6128, %v6127
      %v6144 = vpack.c.b16 %v6130, %v6129
      %v6145 = vpack.c.b16 %v6132, %v6131
      %v6146 = vpack.c.b16 %v6134, %v6133
      %v6147 = vpack.c.b16 %v6136, %v6135
      %v6148 = vpack.c.b16 %v6138, %v6137
      %v6149 = vpack.c.b16 %v6140, %v6139
      %v6150 = vpack.c.b16 %v6142, %v6141
      %6159 = vmatpush.bf16.msra.mxu0 %v6150
      %6160 = vmatpush.bf16.msra.mxu0 %v6149
      %6161 = vmatpush.bf16.msra.mxu0 %v6148
      %6162 = vmatpush.bf16.msra.mxu0 %v6147
      %6163 = vmatpush.bf16.msra.mxu0 %v6146
      %6164 = vmatpush.bf16.msra.mxu0 %v6145
      %6165 = vmatpush.bf16.msra.mxu0 %v6144
      %6166 = vmatpush.bf16.msra.mxu0 %v6143
      %6167 = vmatmul.bf16.gmra.mxu0 %v6078
      %v6168 = vpop.f32.mrf.mxu0
      %v6169 = vadd.f32 0.0, %v6168
      %v6170 = vpop.f32.mrf.mxu0
      %v6171 = vadd.f32 0.0, %v6170
      %6172 = vmatmul.bf16.gmra.mxu0 %v6086
      %v6173 = vpop.f32.mrf.mxu0
      %v6174 = vadd.f32 0.0, %v6173
      %v6175 = vpop.f32.mrf.mxu0
      %v6176 = vadd.f32 0.0, %v6175
      %6177 = vmatmul.bf16.gmra.mxu0 %v6094
      %v6178 = vpop.f32.mrf.mxu0
      %v6179 = vadd.f32 0.0, %v6178
      %v6180 = vpop.f32.mrf.mxu0
      %v6181 = vadd.f32 0.0, %v6180
      %6182 = vmatmul.bf16.gmra.mxu0 %v6102
      %v6183 = vpop.f32.mrf.mxu0
      %v6184 = vadd.f32 0.0, %v6183
      %v6185 = vpop.f32.mrf.mxu0
      %v6186 = vadd.f32 0.0, %v6185
      %6187 = vmatmul.bf16.gmra.mxu0 %v6105
      %v6188 = vpop.f32.mrf.mxu0
      %v6189 = vadd.f32 0.0, %v6188
      %v6190 = vpop.f32.mrf.mxu0
      %6191 = vdwg.mxu0
      %v6192 = vadd.f32 %v6010, %v6169
      %v6193 = vadd.f32 %v6011, %v6171
      %v6194 = vadd.f32 %v6012, %v6174
      %v6195 = vadd.f32 %v6013, %v6176
      %v6196 = vadd.f32 %v6014, %v6179
      %v6197 = vadd.f32 %v6015, %v6181
      %v6198 = vadd.f32 %v6016, %v6184
      %v6199 = vadd.f32 %v6017, %v6186
      %v6200 = vadd.f32 %v6018, %v6189
      %v6201 = vld [vmem:[#allocation2 + $0x94] sm:$0xe]
      %v6202 = vld [vmem:[%s2455] sm:$0xf]
      %v6203 = vld [vmem:[%s2455 + $0x4] sm:$0xf]
      %v6204 = vld [vmem:[%s2455 + $0x8] sm:$0xf]
      %v6205 = vld [vmem:[%s2455 + $0xc] sm:$0xf]
      %v6206 = vld [vmem:[%s2455 + $0x10] sm:$0xf]
      %v6207 = vld [vmem:[%s2455 + $0x14] sm:$0xf]
      %v6208 = vld [vmem:[%s2455 + $0x18] sm:$0xf]
      %v6209 = vld [vmem:[%s2455 + $0x1c] sm:$0xf]
      %v6210 = vld [vmem:[%s2455 + $0x20] sm:$0xf]
      %v6211 = vld [vmem:[%s2455 + $0x24] sm:$0xf]
      %v6212 = vld [vmem:[%s2455 + $0x28] sm:$0xf]
      %v6213 = vld [vmem:[%s2455 + $0x2c] sm:$0xf]
      %v6214 = vld [vmem:[%s2455 + $0x30] sm:$0xf]
      %v6215 = vld [vmem:[%s2455 + $0x34] sm:$0xf]
      %v6216 = vld [vmem:[%s2455 + $0x38] sm:$0xf]
      %v6217 = vld [vmem:[%s2455 + $0x3c] sm:$0xf]
      %v6219 = vunpack.c.l.b16 %v6201
      %v6220 = vpack.c.b16 %v6054, %v6219
      %v6221 = vrot.slane %v6220, 1
      %v6222 = vrot.slane %v6063, 1
      %v6223 = vsel %vm2475, %v6221, %v6222
      %v6224 = vrot.slane %v6064, 1
      %v6225 = vsel %vm2475, %v6222, %v6224
      %v6226 = vrot.slane %v6065, 1
      %v6227 = vsel %vm2475, %v6224, %v6226
      %v6228 = vrot.slane %v6066, 1
      %v6229 = vsel %vm2475, %v6226, %v6228
      %v6251 = vunpack.c.l.b16 %v6202
      %v6252 = vunpack.c.l.b16 %v6203
      %v6253 = vunpack.c.l.b16 %v6204
      %v6254 = vunpack.c.l.b16 %v6205
      %v6255 = vunpack.c.l.b16 %v6206
      %v6256 = vunpack.c.l.b16 %v6207
      %v6257 = vunpack.c.l.b16 %v6208
      %v6258 = vunpack.c.l.b16 %v6209
      %v6259 = vunpack.c.l.b16 %v6210
      %v6260 = vunpack.c.l.b16 %v6211
      %v6261 = vunpack.c.l.b16 %v6212
      %v6262 = vunpack.c.l.b16 %v6213
      %v6263 = vunpack.c.l.b16 %v6214
      %v6264 = vunpack.c.l.b16 %v6215
      %v6265 = vunpack.c.l.b16 %v6216
      %v6266 = vunpack.c.l.b16 %v6217
      %v6267 = vpack.c.b16 %v6252, %v6251
      %v6268 = vpack.c.b16 %v6254, %v6253
      %v6269 = vpack.c.b16 %v6256, %v6255
      %v6270 = vpack.c.b16 %v6258, %v6257
      %v6271 = vpack.c.b16 %v6260, %v6259
      %v6272 = vpack.c.b16 %v6262, %v6261
      %v6273 = vpack.c.b16 %v6264, %v6263
      %v6274 = vpack.c.b16 %v6266, %v6265
      %6283 = vmatpush.bf16.msra.mxu0 %v6274
      %6284 = vmatpush.bf16.msra.mxu0 %v6273
      %6285 = vmatpush.bf16.msra.mxu0 %v6272
      %6286 = vmatpush.bf16.msra.mxu0 %v6271
      %6287 = vmatpush.bf16.msra.mxu0 %v6270
      %6288 = vmatpush.bf16.msra.mxu0 %v6269
      %6289 = vmatpush.bf16.msra.mxu0 %v6268
      %6290 = vmatpush.bf16.msra.mxu0 %v6267
      %6291 = vmatmul.bf16.gmra.mxu0 %v6223
      %v6292 = vpop.f32.mrf.mxu0
      %v6293 = vadd.f32 0.0, %v6292
      %v6294 = vpop.f32.mrf.mxu0
      %v6295 = vadd.f32 0.0, %v6294
      %6296 = vmatmul.bf16.gmra.mxu0 %v6225
      %v6297 = vpop.f32.mrf.mxu0
      %v6298 = vadd.f32 0.0, %v6297
      %v6299 = vpop.f32.mrf.mxu0
      %v6300 = vadd.f32 0.0, %v6299
      %6301 = vmatmul.bf16.gmra.mxu0 %v6227
      %v6302 = vpop.f32.mrf.mxu0
      %v6303 = vadd.f32 0.0, %v6302
      %v6304 = vpop.f32.mrf.mxu0
      %v6305 = vadd.f32 0.0, %v6304
      %6306 = vmatmul.bf16.gmra.mxu0 %v6229
      %v6307 = vpop.f32.mrf.mxu0
      %v6308 = vadd.f32 0.0, %v6307
      %v6309 = vpop.f32.mrf.mxu0
      %v6310 = vadd.f32 0.0, %v6309
      %6311 = vmatmul.bf16.gmra.mxu0 %v6228
      %v6312 = vpop.f32.mrf.mxu0
      %v6313 = vadd.f32 0.0, %v6312
      %v6314 = vpop.f32.mrf.mxu0
      %6315 = vdwg.mxu0
      %v6316 = vadd.f32 %v6192, %v6293
      %v6317 = vadd.f32 %v6193, %v6295
      %v6318 = vadd.f32 %v6194, %v6298
      %v6319 = vadd.f32 %v6195, %v6300
      %v6320 = vadd.f32 %v6196, %v6303
      %v6321 = vadd.f32 %v6197, %v6305
      %v6322 = vadd.f32 %v6198, %v6308
      %v6323 = vadd.f32 %v6199, %v6310
      %v6324 = vadd.f32 %v6200, %v6313
      %v6325 = vld [vmem:[#allocation2 + $0xb4] sm:$0xf]
      %v6326 = vld [vmem:[%s2615] sm:$0xf]
      %v6327 = vld [vmem:[%s2615 + $0x4] sm:$0xf]
      %v6328 = vld [vmem:[%s2615 + $0x8] sm:$0xf]
      %v6329 = vld [vmem:[%s2615 + $0xc] sm:$0xf]
      %v6330 = vld [vmem:[%s2615 + $0x10] sm:$0xf]
      %v6331 = vld [vmem:[%s2615 + $0x14] sm:$0xf]
      %v6332 = vld [vmem:[%s2615 + $0x18] sm:$0xf]
      %v6333 = vld [vmem:[%s2615 + $0x1c] sm:$0xf]
      %v6334 = vld [vmem:[%s2615 + $0x20] sm:$0xf]
      %v6335 = vld [vmem:[%s2615 + $0x24] sm:$0xf]
      %v6336 = vld [vmem:[%s2615 + $0x28] sm:$0xf]
      %v6337 = vld [vmem:[%s2615 + $0x2c] sm:$0xf]
      %v6338 = vld [vmem:[%s2615 + $0x30] sm:$0xf]
      %v6339 = vld [vmem:[%s2615 + $0x34] sm:$0xf]
      %v6340 = vld [vmem:[%s2615 + $0x38] sm:$0xf]
      %v6341 = vld [vmem:[%s2615 + $0x3c] sm:$0xf]
      %v6343 = vunpack.c.l.b16 %v6325
      %v6344 = vpack.c.b16 %v6343, %v6343
      %v6346 = vshrl.u32 %v6220, 16
      %v6348 = vrot.slane %v6346, 1
      %v6349 = vshll.u32 %v6220, 16
      %v6351 = vrot.slane %v6349, 2
      %v6352 = vor.u32 %v6348, %v6351
      %v6353 = vrot.slane %v6079, 1
      %v6354 = vrot.slane %v6075, 2
      %v6355 = vor.u32 %v6353, %v6354
      %v6356 = vsel %vm2635, %v6352, %v6355
      %v6357 = vrot.slane %v6087, 1
      %v6358 = vrot.slane %v6083, 2
      %v6359 = vor.u32 %v6357, %v6358
      %v6360 = vsel %vm2635, %v6355, %v6359
      %v6361 = vrot.slane %v6095, 1
      %v6362 = vrot.slane %v6091, 2
      %v6363 = vor.u32 %v6361, %v6362
      %v6364 = vsel %vm2635, %v6359, %v6363
      %v6366 = vshrl.u32 %v6344, 16
      %v6368 = vrot.slane %v6366, 1
      %v6369 = vshll.u32 %v6344, 16
      %v6371 = vrot.slane %v6369, 2
      %v6372 = vor.u32 %v6368, %v6371
      %v6373 = vsel %vm2635, %v6363, %v6372
      %v6395 = vunpack.c.l.b16 %v6326
      %v6396 = vunpack.c.l.b16 %v6327
      %v6397 = vunpack.c.l.b16 %v6328
      %v6398 = vunpack.c.l.b16 %v6329
      %v6399 = vunpack.c.l.b16 %v6330
      %v6400 = vunpack.c.l.b16 %v6331
      %v6401 = vunpack.c.l.b16 %v6332
      %v6402 = vunpack.c.l.b16 %v6333
      %v6403 = vunpack.c.l.b16 %v6334
      %v6404 = vunpack.c.l.b16 %v6335
      %v6405 = vunpack.c.l.b16 %v6336
      %v6406 = vunpack.c.l.b16 %v6337
      %v6407 = vunpack.c.l.b16 %v6338
      %v6408 = vunpack.c.l.b16 %v6339
      %v6409 = vunpack.c.l.b16 %v6340
      %v6410 = vunpack.c.l.b16 %v6341
      %v6411 = vpack.c.b16 %v6396, %v6395
      %v6412 = vpack.c.b16 %v6398, %v6397
      %v6413 = vpack.c.b16 %v6400, %v6399
      %v6414 = vpack.c.b16 %v6402, %v6401
      %v6415 = vpack.c.b16 %v6404, %v6403
      %v6416 = vpack.c.b16 %v6406, %v6405
      %v6417 = vpack.c.b16 %v6408, %v6407
      %v6418 = vpack.c.b16 %v6410, %v6409
      %6427 = vmatpush.bf16.msra.mxu0 %v6418
      %6428 = vmatpush.bf16.msra.mxu0 %v6417
      %6429 = vmatpush.bf16.msra.mxu0 %v6416
      %6430 = vmatpush.bf16.msra.mxu0 %v6415
      %6431 = vmatpush.bf16.msra.mxu0 %v6414
      %6432 = vmatpush.bf16.msra.mxu0 %v6413
      %6433 = vmatpush.bf16.msra.mxu0 %v6412
      %6434 = vmatpush.bf16.msra.mxu0 %v6411
      %6435 = vmatmul.bf16.gmra.mxu0 %v6356
      %v6436 = vpop.f32.mrf.mxu0
      %v6437 = vadd.f32 0.0, %v6436
      %v6438 = vpop.f32.mrf.mxu0
      %v6439 = vadd.f32 0.0, %v6438
      %6440 = vmatmul.bf16.gmra.mxu0 %v6360
      %v6441 = vpop.f32.mrf.mxu0
      %v6442 = vadd.f32 0.0, %v6441
      %v6443 = vpop.f32.mrf.mxu0
      %v6444 = vadd.f32 0.0, %v6443
      %6445 = vmatmul.bf16.gmra.mxu0 %v6364
      %v6446 = vpop.f32.mrf.mxu0
      %v6447 = vadd.f32 0.0, %v6446
      %v6448 = vpop.f32.mrf.mxu0
      %v6449 = vadd.f32 0.0, %v6448
      %6450 = vmatmul.bf16.gmra.mxu0 %v6373
      %v6451 = vpop.f32.mrf.mxu0
      %v6452 = vadd.f32 0.0, %v6451
      %v6453 = vpop.f32.mrf.mxu0
      %v6454 = vadd.f32 0.0, %v6453
      %6455 = vmatmul.bf16.gmra.mxu0 %v6372
      %v6456 = vpop.f32.mrf.mxu0
      %v6457 = vadd.f32 0.0, %v6456
      %v6458 = vpop.f32.mrf.mxu0
      %6459 = vdwg.mxu0
      %v6460 = vadd.f32 %v6316, %v6437
      %v6461 = vadd.f32 %v6317, %v6439
      %v6462 = vadd.f32 %v6318, %v6442
      %v6463 = vadd.f32 %v6319, %v6444
      %v6464 = vadd.f32 %v6320, %v6447
      %v6465 = vadd.f32 %v6321, %v6449
      %v6466 = vadd.f32 %v6322, %v6452
      %v6467 = vadd.f32 %v6323, %v6454
      %v6468 = vadd.f32 %v6324, %v6457
      %v6469 = vld [vmem:[%s5] sm:$0x1]
      %v6471 = vperm.slane %v6469, 0
      %v6473 = vmul.f32 %v6460, %v6471
      %v6474 = vmul.f32 %v6461, %v6471
      %v6475 = vmul.f32 %v6462, %v6471
      %v6476 = vmul.f32 %v6463, %v6471
      %v6477 = vmul.f32 %v6464, %v6471
      %v6478 = vmul.f32 %v6465, %v6471
      %v6479 = vmul.f32 %v6466, %v6471
      %v6480 = vmul.f32 %v6467, %v6471
      %v6481 = vmul.f32 %v6468, %v6471
      %v6482 = vld [vmem:[%s6] sm:$0x1]
      %v6484 = vperm.slane %v6482, 0
      %v6486 = vadd.f32 %v6473, %v6484
      %v6487 = vadd.f32 %v6474, %v6484
      %v6488 = vadd.f32 %v6475, %v6484
      %v6489 = vadd.f32 %v6476, %v6484
      %v6490 = vadd.f32 %v6477, %v6484
      %v6491 = vadd.f32 %v6478, %v6484
      %v6492 = vadd.f32 %v6479, %v6484
      %v6493 = vadd.f32 %v6480, %v6484
      %v6494 = vadd.f32 %v6481, %v6484
      %v6495 = vmul.f32 %v6486, 0.1
      %v6496 = vmul.f32 %v6487, 0.1
      %v6497 = vmul.f32 %v6488, 0.1
      %v6498 = vmul.f32 %v6489, 0.1
      %v6499 = vmul.f32 %v6490, 0.1
      %v6500 = vmul.f32 %v6491, 0.1
      %v6501 = vmul.f32 %v6492, 0.1
      %v6502 = vmul.f32 %v6493, 0.1
      %v6503 = vmul.f32 %v6494, 0.1
      %v6504 = vmax.f32 %v6486, %v6495
      %v6505 = vmax.f32 %v6487, %v6496
      %v6506 = vmax.f32 %v6488, %v6497
      %v6507 = vmax.f32 %v6489, %v6498
      %v6508 = vmax.f32 %v6490, %v6499
      %v6509 = vmax.f32 %v6491, %v6500
      %v6510 = vmax.f32 %v6492, %v6501
      %v6511 = vmax.f32 %v6493, %v6502
      %v6512 = vmax.f32 %v6494, %v6503
      %v6513 = vld [vmem:[%s7 + $0x100] sm:$0xff]
      %v6514 = vld [vmem:[%s7 + $0x108] sm:$0xff]
      %v6515 = vld [vmem:[%s7 + $0x110] sm:$0xff]
      %v6516 = vld [vmem:[%s7 + $0x118] sm:$0xff]
      %v6517 = vld [vmem:[%s7 + $0x120] sm:$0xff]
      %v6518 = vld [vmem:[%s7 + $0x128] sm:$0xff]
      %v6519 = vld [vmem:[%s7 + $0x130] sm:$0xff]
      %v6520 = vld [vmem:[%s7 + $0x138] sm:$0xff]
      %v6521 = vld [vmem:[%s7 + $0x140] sm:$0xf]
      %6523 = vset.pattern.permute.xlu0 0
      %6524 = vperm.xlu0 %6523, %v6513
      %v6525 = vpop.permute.xlu0 %6524
      %6528 = vset.pattern.permute.xlu0 0
      %6529 = vperm.xlu0 %6528, %v6514
      %v6530 = vpop.permute.xlu0 %6529
      %6533 = vset.pattern.permute.xlu0 0
      %6534 = vperm.xlu0 %6533, %v6515
      %v6535 = vpop.permute.xlu0 %6534
      %6538 = vset.pattern.permute.xlu0 0
      %6539 = vperm.xlu0 %6538, %v6516
      %v6540 = vpop.permute.xlu0 %6539
      %6543 = vset.pattern.permute.xlu0 0
      %6544 = vperm.xlu0 %6543, %v6517
      %v6545 = vpop.permute.xlu0 %6544
      %6548 = vset.pattern.permute.xlu0 0
      %6549 = vperm.xlu0 %6548, %v6518
      %v6550 = vpop.permute.xlu0 %6549
      %6553 = vset.pattern.permute.xlu0 0
      %6554 = vperm.xlu0 %6553, %v6519
      %v6555 = vpop.permute.xlu0 %6554
      %6558 = vset.pattern.permute.xlu0 0
      %6559 = vperm.xlu0 %6558, %v6520
      %v6560 = vpop.permute.xlu0 %6559
      %6563 = vset.pattern.permute.xlu0 0
      %6564 = vperm.xlu0 %6563, %v6521
      %v6565 = vpop.permute.xlu0 %6564
      %v6567 = vmul.f32 %v6504, %v6525
      %v6568 = vmul.f32 %v6505, %v6530
      %v6569 = vmul.f32 %v6506, %v6535
      %v6570 = vmul.f32 %v6507, %v6540
      %v6571 = vmul.f32 %v6508, %v6545
      %v6572 = vmul.f32 %v6509, %v6550
      %v6573 = vmul.f32 %v6510, %v6555
      %v6574 = vmul.f32 %v6511, %v6560
      %v6575 = vmul.f32 %v6512, %v6565
      %v6576 = vpack.c.bf16 %v6567, %v6567
      %v6577 = vpack.c.bf16 %v6568, %v6568
      %v6578 = vpack.c.bf16 %v6569, %v6569
      %v6579 = vpack.c.bf16 %v6570, %v6570
      %v6580 = vpack.c.bf16 %v6571, %v6571
      %v6581 = vpack.c.bf16 %v6572, %v6572
      %v6582 = vpack.c.bf16 %v6573, %v6573
      %v6583 = vpack.c.bf16 %v6574, %v6574
      %v6584 = vpack.c.bf16 %v6575, %v6575
      %6585 = vst [vmem:[#allocation3 + $0x8c] sm:$0xf] %v6576
      %6586 = vst [vmem:[#allocation3 + $0x90] sm:$0xf] %v6577
      %6587 = vst [vmem:[#allocation3 + $0x94] sm:$0xf] %v6578
      %6588 = vst [vmem:[#allocation3 + $0x98] sm:$0xf] %v6579
      %6589 = vst [vmem:[#allocation3 + $0x9c] sm:$0xf] %v6580
      %6590 = vst [vmem:[#allocation3 + $0xa0] sm:$0xf] %v6581
      %6591 = vst [vmem:[#allocation3 + $0xa4] sm:$0xf] %v6582
      %6592 = vst [vmem:[#allocation3 + $0xa8] sm:$0xf] %v6583
      %6593 = vst [vmem:[#allocation3 + $0xac] sm:$0x3] %v6584
      %v6594 = vld [vmem:[%s300] sm:$0xff]
      %v6595 = vld [vmem:[%s300 + $0x8] sm:$0xff]
      %v6596 = vld [vmem:[%s300 + $0x10] sm:$0xff]
      %v6597 = vld [vmem:[%s300 + $0x18] sm:$0xff]
      %v6598 = vld [vmem:[%s300 + $0x20] sm:$0xff]
      %v6599 = vld [vmem:[%s300 + $0x28] sm:$0xff]
      %v6600 = vld [vmem:[%s300 + $0x30] sm:$0xff]
      %v6601 = vld [vmem:[%s300 + $0x38] sm:$0xff]
      %v6602 = vld [vmem:[%s300 + $0x40] sm:$0xff]
      %v6603 = vld [vmem:[%s300 + $0x48] sm:$0xff]
      %v6604 = vld [vmem:[%s300 + $0x50] sm:$0xff]
      %v6605 = vld [vmem:[%s300 + $0x58] sm:$0xff]
      %v6606 = vld [vmem:[%s300 + $0x60] sm:$0xff]
      %v6607 = vld [vmem:[%s300 + $0x68] sm:$0xff]
      %v6608 = vld [vmem:[%s300 + $0x70] sm:$0xff]
      %v6609 = vld [vmem:[%s300 + $0x78] sm:$0xff]
      %v6610 = vld [vmem:[#allocation3] sm:$0xc]
      %v6611 = vld [vmem:[#allocation3 + $0x4] sm:$0xf]
      %v6612 = vld [vmem:[#allocation3 + $0x8] sm:$0xf]
      %v6613 = vld [vmem:[#allocation3 + $0xc] sm:$0xf]
      %v6614 = vld [vmem:[#allocation3 + $0x10] sm:$0xf]
      %v6615 = vld [vmem:[#allocation3 + $0x14] sm:$0xf]
      %v6616 = vld [vmem:[#allocation3 + $0x18] sm:$0xf]
      %v6617 = vld [vmem:[#allocation3 + $0x1c] sm:$0xf]
      %v6618 = vld [vmem:[#allocation3 + $0x20] sm:$0xf]
      %v6619 = vld [vmem:[#allocation3 + $0x24] sm:$0xf]
      %v6620 = vld [vmem:[#allocation3 + $0x28] sm:$0xf]
      %v6621 = vld [vmem:[#allocation3 + $0x2c] sm:$0xf]
      %v6622 = vld [vmem:[#allocation3 + $0x30] sm:$0xf]
      %v6623 = vld [vmem:[#allocation3 + $0x34] sm:$0xf]
      %v6624 = vld [vmem:[#allocation3 + $0x38] sm:$0xf]
      %v6625 = vld [vmem:[#allocation3 + $0x3c] sm:$0xf]
      %v6626 = vld [vmem:[#allocation3 + $0x40] sm:$0x7]
      %v6627 = vld [vmem:[%s2] sm:$0xf]
      %v6628 = vld [vmem:[%s2 + $0x4] sm:$0xf]
      %v6629 = vld [vmem:[%s2 + $0x8] sm:$0xf]
      %v6630 = vld [vmem:[%s2 + $0xc] sm:$0xf]
      %v6631 = vld [vmem:[%s2 + $0x10] sm:$0xf]
      %v6632 = vld [vmem:[%s2 + $0x14] sm:$0xf]
      %v6633 = vld [vmem:[%s2 + $0x18] sm:$0xf]
      %v6634 = vld [vmem:[%s2 + $0x1c] sm:$0xf]
      %v6635 = vld [vmem:[%s2 + $0x20] sm:$0xf]
      %v6636 = vld [vmem:[%s2 + $0x24] sm:$0xf]
      %v6637 = vld [vmem:[%s2 + $0x28] sm:$0xf]
      %v6638 = vld [vmem:[%s2 + $0x2c] sm:$0xf]
      %v6639 = vld [vmem:[%s2 + $0x30] sm:$0xf]
      %v6640 = vld [vmem:[%s2 + $0x34] sm:$0xf]
      %v6641 = vld [vmem:[%s2 + $0x38] sm:$0xf]
      %v6642 = vld [vmem:[%s2 + $0x3c] sm:$0xf]
      %v6660 = vunpack.c.l.b16 %v6610
      %v6661 = vunpack.c.l.b16 %v6611
      %v6662 = vunpack.c.l.b16 %v6612
      %v6663 = vunpack.c.l.b16 %v6613
      %v6664 = vunpack.c.l.b16 %v6614
      %v6665 = vunpack.c.l.b16 %v6615
      %v6666 = vunpack.c.l.b16 %v6616
      %v6667 = vunpack.c.l.b16 %v6617
      %v6668 = vunpack.c.l.b16 %v6618
      %v6669 = vunpack.c.l.b16 %v6619
      %v6670 = vunpack.c.l.b16 %v6620
      %v6671 = vunpack.c.l.b16 %v6621
      %v6672 = vunpack.c.l.b16 %v6622
      %v6673 = vunpack.c.l.b16 %v6623
      %v6674 = vunpack.c.l.b16 %v6624
      %v6675 = vunpack.c.l.b16 %v6625
      %v6676 = vunpack.c.l.b16 %v6626
      %v6677 = vpack.c.b16 %v6661, %v6660
      %v6678 = vpack.c.b16 %v6663, %v6662
      %v6679 = vpack.c.b16 %v6665, %v6664
      %v6680 = vpack.c.b16 %v6667, %v6666
      %v6681 = vpack.c.b16 %v6669, %v6668
      %v6682 = vpack.c.b16 %v6671, %v6670
      %v6683 = vpack.c.b16 %v6673, %v6672
      %v6684 = vpack.c.b16 %v6675, %v6674
      %v6685 = vpack.c.b16 %v6676, %v6676
      %v6687 = vshrl.u32 %v6677, 16
      %v6689 = vrot.slane %v6687, 2
      %v6690 = vshll.u32 %v6677, 16
      %v6692 = vrot.slane %v6690, 3
      %v6693 = vor.u32 %v6689, %v6692
      %v6695 = vshrl.u32 %v6678, 16
      %v6697 = vrot.slane %v6695, 2
      %v6698 = vshll.u32 %v6678, 16
      %v6700 = vrot.slane %v6698, 3
      %v6701 = vor.u32 %v6697, %v6700
      %v6702 = vsel %vm1123, %v6693, %v6701
      %v6704 = vshrl.u32 %v6679, 16
      %v6706 = vrot.slane %v6704, 2
      %v6707 = vshll.u32 %v6679, 16
      %v6709 = vrot.slane %v6707, 3
      %v6710 = vor.u32 %v6706, %v6709
      %v6711 = vsel %vm1123, %v6701, %v6710
      %v6713 = vshrl.u32 %v6680, 16
      %v6715 = vrot.slane %v6713, 2
      %v6716 = vshll.u32 %v6680, 16
      %v6718 = vrot.slane %v6716, 3
      %v6719 = vor.u32 %v6715, %v6718
      %v6720 = vsel %vm1123, %v6710, %v6719
      %v6722 = vshrl.u32 %v6681, 16
      %v6724 = vrot.slane %v6722, 2
      %v6725 = vshll.u32 %v6681, 16
      %v6727 = vrot.slane %v6725, 3
      %v6728 = vor.u32 %v6724, %v6727
      %v6729 = vsel %vm1123, %v6719, %v6728
      %v6731 = vshrl.u32 %v6682, 16
      %v6733 = vrot.slane %v6731, 2
      %v6734 = vshll.u32 %v6682, 16
      %v6736 = vrot.slane %v6734, 3
      %v6737 = vor.u32 %v6733, %v6736
      %v6738 = vsel %vm1123, %v6728, %v6737
      %v6740 = vshrl.u32 %v6683, 16
      %v6742 = vrot.slane %v6740, 2
      %v6743 = vshll.u32 %v6683, 16
      %v6745 = vrot.slane %v6743, 3
      %v6746 = vor.u32 %v6742, %v6745
      %v6747 = vsel %vm1123, %v6737, %v6746
      %v6749 = vshrl.u32 %v6684, 16
      %v6751 = vrot.slane %v6749, 2
      %v6752 = vshll.u32 %v6684, 16
      %v6754 = vrot.slane %v6752, 3
      %v6755 = vor.u32 %v6751, %v6754
      %v6756 = vsel %vm1123, %v6746, %v6755
      %v6758 = vshrl.u32 %v6685, 16
      %v6760 = vrot.slane %v6758, 2
      %v6761 = vshll.u32 %v6685, 16
      %v6763 = vrot.slane %v6761, 3
      %v6764 = vor.u32 %v6760, %v6763
      %v6765 = vsel %vm1123, %v6755, %v6764
      %v6790 = vunpack.c.l.b16 %v6627
      %v6791 = vunpack.c.l.b16 %v6628
      %v6792 = vunpack.c.l.b16 %v6629
      %v6793 = vunpack.c.l.b16 %v6630
      %v6794 = vunpack.c.l.b16 %v6631
      %v6795 = vunpack.c.l.b16 %v6632
      %v6796 = vunpack.c.l.b16 %v6633
      %v6797 = vunpack.c.l.b16 %v6634
      %v6798 = vunpack.c.l.b16 %v6635
      %v6799 = vunpack.c.l.b16 %v6636
      %v6800 = vunpack.c.l.b16 %v6637
      %v6801 = vunpack.c.l.b16 %v6638
      %v6802 = vunpack.c.l.b16 %v6639
      %v6803 = vunpack.c.l.b16 %v6640
      %v6804 = vunpack.c.l.b16 %v6641
      %v6805 = vunpack.c.l.b16 %v6642
      %v6806 = vpack.c.b16 %v6791, %v6790
      %v6807 = vpack.c.b16 %v6793, %v6792
      %v6808 = vpack.c.b16 %v6795, %v6794
      %v6809 = vpack.c.b16 %v6797, %v6796
      %v6810 = vpack.c.b16 %v6799, %v6798
      %v6811 = vpack.c.b16 %v6801, %v6800
      %v6812 = vpack.c.b16 %v6803, %v6802
      %v6813 = vpack.c.b16 %v6805, %v6804
      %6822 = vmatpush.bf16.msra.mxu0 %v6813
      %6823 = vmatpush.bf16.msra.mxu0 %v6812
      %6824 = vmatpush.bf16.msra.mxu0 %v6811
      %6825 = vmatpush.bf16.msra.mxu0 %v6810
      %6826 = vmatpush.bf16.msra.mxu0 %v6809
      %6827 = vmatpush.bf16.msra.mxu0 %v6808
      %6828 = vmatpush.bf16.msra.mxu0 %v6807
      %6829 = vmatpush.bf16.msra.mxu0 %v6806
      %6830 = vmatmul.bf16.gmra.mxu0 %v6702
      %v6831 = vpop.f32.mrf.mxu0
      %v6832 = vadd.f32 0.0, %v6831
      %v6833 = vpop.f32.mrf.mxu0
      %v6834 = vadd.f32 0.0, %v6833
      %6835 = vmatmul.bf16.gmra.mxu0 %v6711
      %v6836 = vpop.f32.mrf.mxu0
      %v6837 = vadd.f32 0.0, %v6836
      %v6838 = vpop.f32.mrf.mxu0
      %v6839 = vadd.f32 0.0, %v6838
      %6840 = vmatmul.bf16.gmra.mxu0 %v6720
      %v6841 = vpop.f32.mrf.mxu0
      %v6842 = vadd.f32 0.0, %v6841
      %v6843 = vpop.f32.mrf.mxu0
      %v6844 = vadd.f32 0.0, %v6843
      %6845 = vmatmul.bf16.gmra.mxu0 %v6729
      %v6846 = vpop.f32.mrf.mxu0
      %v6847 = vadd.f32 0.0, %v6846
      %v6848 = vpop.f32.mrf.mxu0
      %v6849 = vadd.f32 0.0, %v6848
      %6850 = vmatmul.bf16.gmra.mxu0 %v6738
      %v6851 = vpop.f32.mrf.mxu0
      %v6852 = vadd.f32 0.0, %v6851
      %v6853 = vpop.f32.mrf.mxu0
      %v6854 = vadd.f32 0.0, %v6853
      %6855 = vmatmul.bf16.gmra.mxu0 %v6747
      %v6856 = vpop.f32.mrf.mxu0
      %v6857 = vadd.f32 0.0, %v6856
      %v6858 = vpop.f32.mrf.mxu0
      %v6859 = vadd.f32 0.0, %v6858
      %6860 = vmatmul.bf16.gmra.mxu0 %v6756
      %v6861 = vpop.f32.mrf.mxu0
      %v6862 = vadd.f32 0.0, %v6861
      %v6863 = vpop.f32.mrf.mxu0
      %v6864 = vadd.f32 0.0, %v6863
      %6865 = vmatmul.bf16.gmra.mxu0 %v6765
      %v6866 = vpop.f32.mrf.mxu0
      %v6867 = vadd.f32 0.0, %v6866
      %v6868 = vpop.f32.mrf.mxu0
      %v6869 = vadd.f32 0.0, %v6868
      %6870 = vdwg.mxu0
      %v6871 = vadd.f32 %v6594, %v6832
      %v6872 = vadd.f32 %v6595, %v6834
      %v6873 = vadd.f32 %v6596, %v6837
      %v6874 = vadd.f32 %v6597, %v6839
      %v6875 = vadd.f32 %v6598, %v6842
      %v6876 = vadd.f32 %v6599, %v6844
      %v6877 = vadd.f32 %v6600, %v6847
      %v6878 = vadd.f32 %v6601, %v6849
      %v6879 = vadd.f32 %v6602, %v6852
      %v6880 = vadd.f32 %v6603, %v6854
      %v6881 = vadd.f32 %v6604, %v6857
      %v6882 = vadd.f32 %v6605, %v6859
      %v6883 = vadd.f32 %v6606, %v6862
      %v6884 = vadd.f32 %v6607, %v6864
      %v6885 = vadd.f32 %v6608, %v6867
      %v6886 = vadd.f32 %v6609, %v6869
      %v6887 = vld [vmem:[#allocation3] sm:$0x8]
      %s6888 = scalar_lea.vmem %s2, 64
      %v6889 = vld [vmem:[%s6888] sm:$0xf]
      %v6890 = vld [vmem:[%s6888 + $0x4] sm:$0xf]
      %v6891 = vld [vmem:[%s6888 + $0x8] sm:$0xf]
      %v6892 = vld [vmem:[%s6888 + $0xc] sm:$0xf]
      %v6893 = vld [vmem:[%s6888 + $0x10] sm:$0xf]
      %v6894 = vld [vmem:[%s6888 + $0x14] sm:$0xf]
      %v6895 = vld [vmem:[%s6888 + $0x18] sm:$0xf]
      %v6896 = vld [vmem:[%s6888 + $0x1c] sm:$0xf]
      %v6897 = vld [vmem:[%s6888 + $0x20] sm:$0xf]
      %v6898 = vld [vmem:[%s6888 + $0x24] sm:$0xf]
      %v6899 = vld [vmem:[%s6888 + $0x28] sm:$0xf]
      %v6900 = vld [vmem:[%s6888 + $0x2c] sm:$0xf]
      %v6901 = vld [vmem:[%s6888 + $0x30] sm:$0xf]
      %v6902 = vld [vmem:[%s6888 + $0x34] sm:$0xf]
      %v6903 = vld [vmem:[%s6888 + $0x38] sm:$0xf]
      %v6904 = vld [vmem:[%s6888 + $0x3c] sm:$0xf]
      %v6906 = vunpack.c.l.b16 %v6887
      %v6907 = vpack.c.b16 %v6661, %v6906
      %v6908 = vrot.slane %v6907, 3
      %v6909 = vrot.slane %v6678, 3
      %v6910 = vsel %vm997, %v6908, %v6909
      %v6911 = vrot.slane %v6679, 3
      %v6912 = vsel %vm997, %v6909, %v6911
      %v6913 = vrot.slane %v6680, 3
      %v6914 = vsel %vm997, %v6911, %v6913
      %v6915 = vrot.slane %v6681, 3
      %v6916 = vsel %vm997, %v6913, %v6915
      %v6917 = vrot.slane %v6682, 3
      %v6918 = vsel %vm997, %v6915, %v6917
      %v6919 = vrot.slane %v6683, 3
      %v6920 = vsel %vm997, %v6917, %v6919
      %v6921 = vrot.slane %v6684, 3
      %v6922 = vsel %vm997, %v6919, %v6921
      %v6923 = vrot.slane %v6685, 3
      %v6924 = vsel %vm997, %v6921, %v6923
      %v6949 = vunpack.c.l.b16 %v6889
      %v6950 = vunpack.c.l.b16 %v6890
      %v6951 = vunpack.c.l.b16 %v6891
      %v6952 = vunpack.c.l.b16 %v6892
      %v6953 = vunpack.c.l.b16 %v6893
      %v6954 = vunpack.c.l.b16 %v6894
      %v6955 = vunpack.c.l.b16 %v6895
      %v6956 = vunpack.c.l.b16 %v6896
      %v6957 = vunpack.c.l.b16 %v6897
      %v6958 = vunpack.c.l.b16 %v6898
      %v6959 = vunpack.c.l.b16 %v6899
      %v6960 = vunpack.c.l.b16 %v6900
      %v6961 = vunpack.c.l.b16 %v6901
      %v6962 = vunpack.c.l.b16 %v6902
      %v6963 = vunpack.c.l.b16 %v6903
      %v6964 = vunpack.c.l.b16 %v6904
      %v6965 = vpack.c.b16 %v6950, %v6949
      %v6966 = vpack.c.b16 %v6952, %v6951
      %v6967 = vpack.c.b16 %v6954, %v6953
      %v6968 = vpack.c.b16 %v6956, %v6955
      %v6969 = vpack.c.b16 %v6958, %v6957
      %v6970 = vpack.c.b16 %v6960, %v6959
      %v6971 = vpack.c.b16 %v6962, %v6961
      %v6972 = vpack.c.b16 %v6964, %v6963
      %6981 = vmatpush.bf16.msra.mxu0 %v6972
      %6982 = vmatpush.bf16.msra.mxu0 %v6971
      %6983 = vmatpush.bf16.msra.mxu0 %v6970
      %6984 = vmatpush.bf16.msra.mxu0 %v6969
      %6985 = vmatpush.bf16.msra.mxu0 %v6968
      %6986 = vmatpush.bf16.msra.mxu0 %v6967
      %6987 = vmatpush.bf16.msra.mxu0 %v6966
      %6988 = vmatpush.bf16.msra.mxu0 %v6965
      %6989 = vmatmul.bf16.gmra.mxu0 %v6910
      %v6990 = vpop.f32.mrf.mxu0
      %v6991 = vadd.f32 0.0, %v6990
      %v6992 = vpop.f32.mrf.mxu0
      %v6993 = vadd.f32 0.0, %v6992
      %6994 = vmatmul.bf16.gmra.mxu0 %v6912
      %v6995 = vpop.f32.mrf.mxu0
      %v6996 = vadd.f32 0.0, %v6995
      %v6997 = vpop.f32.mrf.mxu0
      %v6998 = vadd.f32 0.0, %v6997
      %6999 = vmatmul.bf16.gmra.mxu0 %v6914
      %v7000 = vpop.f32.mrf.mxu0
      %v7001 = vadd.f32 0.0, %v7000
      %v7002 = vpop.f32.mrf.mxu0
      %v7003 = vadd.f32 0.0, %v7002
      %7004 = vmatmul.bf16.gmra.mxu0 %v6916
      %v7005 = vpop.f32.mrf.mxu0
      %v7006 = vadd.f32 0.0, %v7005
      %v7007 = vpop.f32.mrf.mxu0
      %v7008 = vadd.f32 0.0, %v7007
      %7009 = vmatmul.bf16.gmra.mxu0 %v6918
      %v7010 = vpop.f32.mrf.mxu0
      %v7011 = vadd.f32 0.0, %v7010
      %v7012 = vpop.f32.mrf.mxu0
      %v7013 = vadd.f32 0.0, %v7012
      %7014 = vmatmul.bf16.gmra.mxu0 %v6920
      %v7015 = vpop.f32.mrf.mxu0
      %v7016 = vadd.f32 0.0, %v7015
      %v7017 = vpop.f32.mrf.mxu0
      %v7018 = vadd.f32 0.0, %v7017
      %7019 = vmatmul.bf16.gmra.mxu0 %v6922
      %v7020 = vpop.f32.mrf.mxu0
      %v7021 = vadd.f32 0.0, %v7020
      %v7022 = vpop.f32.mrf.mxu0
      %v7023 = vadd.f32 0.0, %v7022
      %7024 = vmatmul.bf16.gmra.mxu0 %v6924
      %v7025 = vpop.f32.mrf.mxu0
      %v7026 = vadd.f32 0.0, %v7025
      %v7027 = vpop.f32.mrf.mxu0
      %v7028 = vadd.f32 0.0, %v7027
      %7029 = vdwg.mxu0
      %v7030 = vadd.f32 %v6871, %v6991
      %v7031 = vadd.f32 %v6872, %v6993
      %v7032 = vadd.f32 %v6873, %v6996
      %v7033 = vadd.f32 %v6874, %v6998
      %v7034 = vadd.f32 %v6875, %v7001
      %v7035 = vadd.f32 %v6876, %v7003
      %v7036 = vadd.f32 %v6877, %v7006
      %v7037 = vadd.f32 %v6878, %v7008
      %v7038 = vadd.f32 %v6879, %v7011
      %v7039 = vadd.f32 %v6880, %v7013
      %v7040 = vadd.f32 %v6881, %v7016
      %v7041 = vadd.f32 %v6882, %v7018
      %v7042 = vadd.f32 %v6883, %v7021
      %v7043 = vadd.f32 %v6884, %v7023
      %v7044 = vadd.f32 %v6885, %v7026
      %v7045 = vadd.f32 %v6886, %v7028
      %v7046 = vld [vmem:[#allocation3 + $0x40] sm:$0xf]
      %s7047 = scalar_lea.vmem %s2, 128
      %v7048 = vld [vmem:[%s7047] sm:$0xf]
      %v7049 = vld [vmem:[%s7047 + $0x4] sm:$0xf]
      %v7050 = vld [vmem:[%s7047 + $0x8] sm:$0xf]
      %v7051 = vld [vmem:[%s7047 + $0xc] sm:$0xf]
      %v7052 = vld [vmem:[%s7047 + $0x10] sm:$0xf]
      %v7053 = vld [vmem:[%s7047 + $0x14] sm:$0xf]
      %v7054 = vld [vmem:[%s7047 + $0x18] sm:$0xf]
      %v7055 = vld [vmem:[%s7047 + $0x1c] sm:$0xf]
      %v7056 = vld [vmem:[%s7047 + $0x20] sm:$0xf]
      %v7057 = vld [vmem:[%s7047 + $0x24] sm:$0xf]
      %v7058 = vld [vmem:[%s7047 + $0x28] sm:$0xf]
      %v7059 = vld [vmem:[%s7047 + $0x2c] sm:$0xf]
      %v7060 = vld [vmem:[%s7047 + $0x30] sm:$0xf]
      %v7061 = vld [vmem:[%s7047 + $0x34] sm:$0xf]
      %v7062 = vld [vmem:[%s7047 + $0x38] sm:$0xf]
      %v7063 = vld [vmem:[%s7047 + $0x3c] sm:$0xf]
      %v7065 = vunpack.c.l.b16 %v7046
      %v7066 = vpack.c.b16 %v7065, %v7065
      %v7068 = vshrl.u32 %v6907, 16
      %v7070 = vrot.slane %v7068, 3
      %v7071 = vshll.u32 %v6907, 16
      %v7073 = vrot.slane %v7071, 4
      %v7074 = vor.u32 %v7070, %v7073
      %v7075 = vrot.slane %v6695, 3
      %v7076 = vrot.slane %v6698, 4
      %v7077 = vor.u32 %v7075, %v7076
      %v7078 = vsel %vm1330, %v7074, %v7077
      %v7079 = vrot.slane %v6704, 3
      %v7080 = vrot.slane %v6707, 4
      %v7081 = vor.u32 %v7079, %v7080
      %v7082 = vsel %vm1330, %v7077, %v7081
      %v7083 = vrot.slane %v6713, 3
      %v7084 = vrot.slane %v6716, 4
      %v7085 = vor.u32 %v7083, %v7084
      %v7086 = vsel %vm1330, %v7081, %v7085
      %v7087 = vrot.slane %v6722, 3
      %v7088 = vrot.slane %v6725, 4
      %v7089 = vor.u32 %v7087, %v7088
      %v7090 = vsel %vm1330, %v7085, %v7089
      %v7091 = vrot.slane %v6731, 3
      %v7092 = vrot.slane %v6734, 4
      %v7093 = vor.u32 %v7091, %v7092
      %v7094 = vsel %vm1330, %v7089, %v7093
      %v7095 = vrot.slane %v6740, 3
      %v7096 = vrot.slane %v6743, 4
      %v7097 = vor.u32 %v7095, %v7096
      %v7098 = vsel %vm1330, %v7093, %v7097
      %v7099 = vrot.slane %v6749, 3
      %v7100 = vrot.slane %v6752, 4
      %v7101 = vor.u32 %v7099, %v7100
      %v7102 = vsel %vm1330, %v7097, %v7101
      %v7104 = vshrl.u32 %v7066, 16
      %v7106 = vrot.slane %v7104, 3
      %v7107 = vshll.u32 %v7066, 16
      %v7109 = vrot.slane %v7107, 4
      %v7110 = vor.u32 %v7106, %v7109
      %v7111 = vsel %vm1330, %v7101, %v7110
      %v7136 = vunpack.c.l.b16 %v7048
      %v7137 = vunpack.c.l.b16 %v7049
      %v7138 = vunpack.c.l.b16 %v7050
      %v7139 = vunpack.c.l.b16 %v7051
      %v7140 = vunpack.c.l.b16 %v7052
      %v7141 = vunpack.c.l.b16 %v7053
      %v7142 = vunpack.c.l.b16 %v7054
      %v7143 = vunpack.c.l.b16 %v7055
      %v7144 = vunpack.c.l.b16 %v7056
      %v7145 = vunpack.c.l.b16 %v7057
      %v7146 = vunpack.c.l.b16 %v7058
      %v7147 = vunpack.c.l.b16 %v7059
      %v7148 = vunpack.c.l.b16 %v7060
      %v7149 = vunpack.c.l.b16 %v7061
      %v7150 = vunpack.c.l.b16 %v7062
      %v7151 = vunpack.c.l.b16 %v7063
      %v7152 = vpack.c.b16 %v7137, %v7136
      %v7153 = vpack.c.b16 %v7139, %v7138
      %v7154 = vpack.c.b16 %v7141, %v7140
      %v7155 = vpack.c.b16 %v7143, %v7142
      %v7156 = vpack.c.b16 %v7145, %v7144
      %v7157 = vpack.c.b16 %v7147, %v7146
      %v7158 = vpack.c.b16 %v7149, %v7148
      %v7159 = vpack.c.b16 %v7151, %v7150
      %7168 = vmatpush.bf16.msra.mxu0 %v7159
      %7169 = vmatpush.bf16.msra.mxu0 %v7158
      %7170 = vmatpush.bf16.msra.mxu0 %v7157
      %7171 = vmatpush.bf16.msra.mxu0 %v7156
      %7172 = vmatpush.bf16.msra.mxu0 %v7155
      %7173 = vmatpush.bf16.msra.mxu0 %v7154
      %7174 = vmatpush.bf16.msra.mxu0 %v7153
      %7175 = vmatpush.bf16.msra.mxu0 %v7152
      %7176 = vmatmul.bf16.gmra.mxu0 %v7078
      %v7177 = vpop.f32.mrf.mxu0
      %v7178 = vadd.f32 0.0, %v7177
      %v7179 = vpop.f32.mrf.mxu0
      %v7180 = vadd.f32 0.0, %v7179
      %7181 = vmatmul.bf16.gmra.mxu0 %v7082
      %v7182 = vpop.f32.mrf.mxu0
      %v7183 = vadd.f32 0.0, %v7182
      %v7184 = vpop.f32.mrf.mxu0
      %v7185 = vadd.f32 0.0, %v7184
      %7186 = vmatmul.bf16.gmra.mxu0 %v7086
      %v7187 = vpop.f32.mrf.mxu0
      %v7188 = vadd.f32 0.0, %v7187
      %v7189 = vpop.f32.mrf.mxu0
      %v7190 = vadd.f32 0.0, %v7189
      %7191 = vmatmul.bf16.gmra.mxu0 %v7090
      %v7192 = vpop.f32.mrf.mxu0
      %v7193 = vadd.f32 0.0, %v7192
      %v7194 = vpop.f32.mrf.mxu0
      %v7195 = vadd.f32 0.0, %v7194
      %7196 = vmatmul.bf16.gmra.mxu0 %v7094
      %v7197 = vpop.f32.mrf.mxu0
      %v7198 = vadd.f32 0.0, %v7197
      %v7199 = vpop.f32.mrf.mxu0
      %v7200 = vadd.f32 0.0, %v7199
      %7201 = vmatmul.bf16.gmra.mxu0 %v7098
      %v7202 = vpop.f32.mrf.mxu0
      %v7203 = vadd.f32 0.0, %v7202
      %v7204 = vpop.f32.mrf.mxu0
      %v7205 = vadd.f32 0.0, %v7204
      %7206 = vmatmul.bf16.gmra.mxu0 %v7102
      %v7207 = vpop.f32.mrf.mxu0
      %v7208 = vadd.f32 0.0, %v7207
      %v7209 = vpop.f32.mrf.mxu0
      %v7210 = vadd.f32 0.0, %v7209
      %7211 = vmatmul.bf16.gmra.mxu0 %v7111
      %v7212 = vpop.f32.mrf.mxu0
      %v7213 = vadd.f32 0.0, %v7212
      %v7214 = vpop.f32.mrf.mxu0
      %v7215 = vadd.f32 0.0, %v7214
      %7216 = vdwg.mxu0
      %v7217 = vadd.f32 %v7030, %v7178
      %v7218 = vadd.f32 %v7031, %v7180
      %v7219 = vadd.f32 %v7032, %v7183
      %v7220 = vadd.f32 %v7033, %v7185
      %v7221 = vadd.f32 %v7034, %v7188
      %v7222 = vadd.f32 %v7035, %v7190
      %v7223 = vadd.f32 %v7036, %v7193
      %v7224 = vadd.f32 %v7037, %v7195
      %v7225 = vadd.f32 %v7038, %v7198
      %v7226 = vadd.f32 %v7039, %v7200
      %v7227 = vadd.f32 %v7040, %v7203
      %v7228 = vadd.f32 %v7041, %v7205
      %v7229 = vadd.f32 %v7042, %v7208
      %v7230 = vadd.f32 %v7043, %v7210
      %v7231 = vadd.f32 %v7044, %v7213
      %v7232 = vadd.f32 %v7045, %v7215
      %v7233 = vld [vmem:[#allocation3 + $0x8] sm:$0x8]
      %v7234 = vld [vmem:[#allocation3 + $0xc] sm:$0xf]
      %v7235 = vld [vmem:[#allocation3 + $0x10] sm:$0xf]
      %v7236 = vld [vmem:[#allocation3 + $0x14] sm:$0xf]
      %v7237 = vld [vmem:[#allocation3 + $0x18] sm:$0xf]
      %v7238 = vld [vmem:[#allocation3 + $0x1c] sm:$0xf]
      %v7239 = vld [vmem:[#allocation3 + $0x20] sm:$0xf]
      %v7240 = vld [vmem:[#allocation3 + $0x24] sm:$0xf]
      %v7241 = vld [vmem:[#allocation3 + $0x28] sm:$0xf]
      %v7242 = vld [vmem:[#allocation3 + $0x2c] sm:$0xf]
      %v7243 = vld [vmem:[#allocation3 + $0x30] sm:$0xf]
      %v7244 = vld [vmem:[#allocation3 + $0x34] sm:$0xf]
      %v7245 = vld [vmem:[#allocation3 + $0x38] sm:$0xf]
      %v7246 = vld [vmem:[#allocation3 + $0x3c] sm:$0xf]
      %v7247 = vld [vmem:[#allocation3 + $0x40] sm:$0xf]
      %v7248 = vld [vmem:[#allocation3 + $0x44] sm:$0xf]
      %v7249 = vld [vmem:[#allocation3 + $0x48] sm:$0xf]
      %s7250 = scalar_lea.vmem %s2, 192
      %v7251 = vld [vmem:[%s7250] sm:$0xf]
      %v7252 = vld [vmem:[%s7250 + $0x4] sm:$0xf]
      %v7253 = vld [vmem:[%s7250 + $0x8] sm:$0xf]
      %v7254 = vld [vmem:[%s7250 + $0xc] sm:$0xf]
      %v7255 = vld [vmem:[%s7250 + $0x10] sm:$0xf]
      %v7256 = vld [vmem:[%s7250 + $0x14] sm:$0xf]
      %v7257 = vld [vmem:[%s7250 + $0x18] sm:$0xf]
      %v7258 = vld [vmem:[%s7250 + $0x1c] sm:$0xf]
      %v7259 = vld [vmem:[%s7250 + $0x20] sm:$0xf]
      %v7260 = vld [vmem:[%s7250 + $0x24] sm:$0xf]
      %v7261 = vld [vmem:[%s7250 + $0x28] sm:$0xf]
      %v7262 = vld [vmem:[%s7250 + $0x2c] sm:$0xf]
      %v7263 = vld [vmem:[%s7250 + $0x30] sm:$0xf]
      %v7264 = vld [vmem:[%s7250 + $0x34] sm:$0xf]
      %v7265 = vld [vmem:[%s7250 + $0x38] sm:$0xf]
      %v7266 = vld [vmem:[%s7250 + $0x3c] sm:$0xf]
      %v7284 = vunpack.c.l.b16 %v7233
      %v7285 = vunpack.c.l.b16 %v7234
      %v7286 = vunpack.c.l.b16 %v7235
      %v7287 = vunpack.c.l.b16 %v7236
      %v7288 = vunpack.c.l.b16 %v7237
      %v7289 = vunpack.c.l.b16 %v7238
      %v7290 = vunpack.c.l.b16 %v7239
      %v7291 = vunpack.c.l.b16 %v7240
      %v7292 = vunpack.c.l.b16 %v7241
      %v7293 = vunpack.c.l.b16 %v7242
      %v7294 = vunpack.c.l.b16 %v7243
      %v7295 = vunpack.c.l.b16 %v7244
      %v7296 = vunpack.c.l.b16 %v7245
      %v7297 = vunpack.c.l.b16 %v7246
      %v7298 = vunpack.c.l.b16 %v7247
      %v7299 = vunpack.c.l.b16 %v7248
      %v7300 = vunpack.c.l.b16 %v7249
      %v7301 = vpack.c.b16 %v7285, %v7284
      %v7302 = vpack.c.b16 %v7287, %v7286
      %v7303 = vpack.c.b16 %v7289, %v7288
      %v7304 = vpack.c.b16 %v7291, %v7290
      %v7305 = vpack.c.b16 %v7293, %v7292
      %v7306 = vpack.c.b16 %v7295, %v7294
      %v7307 = vpack.c.b16 %v7297, %v7296
      %v7308 = vpack.c.b16 %v7299, %v7298
      %v7309 = vpack.c.b16 %v7300, %v7300
      %v7311 = vshrl.u32 %v7301, 16
      %v7313 = vrot.slane %v7311, 3
      %v7314 = vshll.u32 %v7301, 16
      %v7316 = vrot.slane %v7314, 4
      %v7317 = vor.u32 %v7313, %v7316
      %v7319 = vshrl.u32 %v7302, 16
      %v7321 = vrot.slane %v7319, 3
      %v7322 = vshll.u32 %v7302, 16
      %v7324 = vrot.slane %v7322, 4
      %v7325 = vor.u32 %v7321, %v7324
      %v7326 = vsel %vm1330, %v7317, %v7325
      %v7328 = vshrl.u32 %v7303, 16
      %v7330 = vrot.slane %v7328, 3
      %v7331 = vshll.u32 %v7303, 16
      %v7333 = vrot.slane %v7331, 4
      %v7334 = vor.u32 %v7330, %v7333
      %v7335 = vsel %vm1330, %v7325, %v7334
      %v7337 = vshrl.u32 %v7304, 16
      %v7339 = vrot.slane %v7337, 3
      %v7340 = vshll.u32 %v7304, 16
      %v7342 = vrot.slane %v7340, 4
      %v7343 = vor.u32 %v7339, %v7342
      %v7344 = vsel %vm1330, %v7334, %v7343
      %v7346 = vshrl.u32 %v7305, 16
      %v7348 = vrot.slane %v7346, 3
      %v7349 = vshll.u32 %v7305, 16
      %v7351 = vrot.slane %v7349, 4
      %v7352 = vor.u32 %v7348, %v7351
      %v7353 = vsel %vm1330, %v7343, %v7352
      %v7355 = vshrl.u32 %v7306, 16
      %v7357 = vrot.slane %v7355, 3
      %v7358 = vshll.u32 %v7306, 16
      %v7360 = vrot.slane %v7358, 4
      %v7361 = vor.u32 %v7357, %v7360
      %v7362 = vsel %vm1330, %v7352, %v7361
      %v7364 = vshrl.u32 %v7307, 16
      %v7366 = vrot.slane %v7364, 3
      %v7367 = vshll.u32 %v7307, 16
      %v7369 = vrot.slane %v7367, 4
      %v7370 = vor.u32 %v7366, %v7369
      %v7371 = vsel %vm1330, %v7361, %v7370
      %v7373 = vshrl.u32 %v7308, 16
      %v7375 = vrot.slane %v7373, 3
      %v7376 = vshll.u32 %v7308, 16
      %v7378 = vrot.slane %v7376, 4
      %v7379 = vor.u32 %v7375, %v7378
      %v7380 = vsel %vm1330, %v7370, %v7379
      %v7382 = vshrl.u32 %v7309, 16
      %v7384 = vrot.slane %v7382, 3
      %v7385 = vshll.u32 %v7309, 16
      %v7387 = vrot.slane %v7385, 4
      %v7388 = vor.u32 %v7384, %v7387
      %v7389 = vsel %vm1330, %v7379, %v7388
      %v7414 = vunpack.c.l.b16 %v7251
      %v7415 = vunpack.c.l.b16 %v7252
      %v7416 = vunpack.c.l.b16 %v7253
      %v7417 = vunpack.c.l.b16 %v7254
      %v7418 = vunpack.c.l.b16 %v7255
      %v7419 = vunpack.c.l.b16 %v7256
      %v7420 = vunpack.c.l.b16 %v7257
      %v7421 = vunpack.c.l.b16 %v7258
      %v7422 = vunpack.c.l.b16 %v7259
      %v7423 = vunpack.c.l.b16 %v7260
      %v7424 = vunpack.c.l.b16 %v7261
      %v7425 = vunpack.c.l.b16 %v7262
      %v7426 = vunpack.c.l.b16 %v7263
      %v7427 = vunpack.c.l.b16 %v7264
      %v7428 = vunpack.c.l.b16 %v7265
      %v7429 = vunpack.c.l.b16 %v7266
      %v7430 = vpack.c.b16 %v7415, %v7414
      %v7431 = vpack.c.b16 %v7417, %v7416
      %v7432 = vpack.c.b16 %v7419, %v7418
      %v7433 = vpack.c.b16 %v7421, %v7420
      %v7434 = vpack.c.b16 %v7423, %v7422
      %v7435 = vpack.c.b16 %v7425, %v7424
      %v7436 = vpack.c.b16 %v7427, %v7426
      %v7437 = vpack.c.b16 %v7429, %v7428
      %7446 = vmatpush.bf16.msra.mxu0 %v7437
      %7447 = vmatpush.bf16.msra.mxu0 %v7436
      %7448 = vmatpush.bf16.msra.mxu0 %v7435
      %7449 = vmatpush.bf16.msra.mxu0 %v7434
      %7450 = vmatpush.bf16.msra.mxu0 %v7433
      %7451 = vmatpush.bf16.msra.mxu0 %v7432
      %7452 = vmatpush.bf16.msra.mxu0 %v7431
      %7453 = vmatpush.bf16.msra.mxu0 %v7430
      %7454 = vmatmul.bf16.gmra.mxu0 %v7326
      %v7455 = vpop.f32.mrf.mxu0
      %v7456 = vadd.f32 0.0, %v7455
      %v7457 = vpop.f32.mrf.mxu0
      %v7458 = vadd.f32 0.0, %v7457
      %7459 = vmatmul.bf16.gmra.mxu0 %v7335
      %v7460 = vpop.f32.mrf.mxu0
      %v7461 = vadd.f32 0.0, %v7460
      %v7462 = vpop.f32.mrf.mxu0
      %v7463 = vadd.f32 0.0, %v7462
      %7464 = vmatmul.bf16.gmra.mxu0 %v7344
      %v7465 = vpop.f32.mrf.mxu0
      %v7466 = vadd.f32 0.0, %v7465
      %v7467 = vpop.f32.mrf.mxu0
      %v7468 = vadd.f32 0.0, %v7467
      %7469 = vmatmul.bf16.gmra.mxu0 %v7353
      %v7470 = vpop.f32.mrf.mxu0
      %v7471 = vadd.f32 0.0, %v7470
      %v7472 = vpop.f32.mrf.mxu0
      %v7473 = vadd.f32 0.0, %v7472
      %7474 = vmatmul.bf16.gmra.mxu0 %v7362
      %v7475 = vpop.f32.mrf.mxu0
      %v7476 = vadd.f32 0.0, %v7475
      %v7477 = vpop.f32.mrf.mxu0
      %v7478 = vadd.f32 0.0, %v7477
      %7479 = vmatmul.bf16.gmra.mxu0 %v7371
      %v7480 = vpop.f32.mrf.mxu0
      %v7481 = vadd.f32 0.0, %v7480
      %v7482 = vpop.f32.mrf.mxu0
      %v7483 = vadd.f32 0.0, %v7482
      %7484 = vmatmul.bf16.gmra.mxu0 %v7380
      %v7485 = vpop.f32.mrf.mxu0
      %v7486 = vadd.f32 0.0, %v7485
      %v7487 = vpop.f32.mrf.mxu0
      %v7488 = vadd.f32 0.0, %v7487
      %7489 = vmatmul.bf16.gmra.mxu0 %v7389
      %v7490 = vpop.f32.mrf.mxu0
      %v7491 = vadd.f32 0.0, %v7490
      %v7492 = vpop.f32.mrf.mxu0
      %v7493 = vadd.f32 0.0, %v7492
      %7494 = vdwg.mxu0
      %v7495 = vadd.f32 %v7217, %v7456
      %v7496 = vadd.f32 %v7218, %v7458
      %v7497 = vadd.f32 %v7219, %v7461
      %v7498 = vadd.f32 %v7220, %v7463
      %v7499 = vadd.f32 %v7221, %v7466
      %v7500 = vadd.f32 %v7222, %v7468
      %v7501 = vadd.f32 %v7223, %v7471
      %v7502 = vadd.f32 %v7224, %v7473
      %v7503 = vadd.f32 %v7225, %v7476
      %v7504 = vadd.f32 %v7226, %v7478
      %v7505 = vadd.f32 %v7227, %v7481
      %v7506 = vadd.f32 %v7228, %v7483
      %v7507 = vadd.f32 %v7229, %v7486
      %v7508 = vadd.f32 %v7230, %v7488
      %v7509 = vadd.f32 %v7231, %v7491
      %v7510 = vadd.f32 %v7232, %v7493
      %s7511 = scalar_lea.vmem %s2, 256
      %v7512 = vld [vmem:[%s7511] sm:$0xf]
      %v7513 = vld [vmem:[%s7511 + $0x4] sm:$0xf]
      %v7514 = vld [vmem:[%s7511 + $0x8] sm:$0xf]
      %v7515 = vld [vmem:[%s7511 + $0xc] sm:$0xf]
      %v7516 = vld [vmem:[%s7511 + $0x10] sm:$0xf]
      %v7517 = vld [vmem:[%s7511 + $0x14] sm:$0xf]
      %v7518 = vld [vmem:[%s7511 + $0x18] sm:$0xf]
      %v7519 = vld [vmem:[%s7511 + $0x1c] sm:$0xf]
      %v7520 = vld [vmem:[%s7511 + $0x20] sm:$0xf]
      %v7521 = vld [vmem:[%s7511 + $0x24] sm:$0xf]
      %v7522 = vld [vmem:[%s7511 + $0x28] sm:$0xf]
      %v7523 = vld [vmem:[%s7511 + $0x2c] sm:$0xf]
      %v7524 = vld [vmem:[%s7511 + $0x30] sm:$0xf]
      %v7525 = vld [vmem:[%s7511 + $0x34] sm:$0xf]
      %v7526 = vld [vmem:[%s7511 + $0x38] sm:$0xf]
      %v7527 = vld [vmem:[%s7511 + $0x3c] sm:$0xf]
      %v7528 = vpack.c.b16 %v7286, %v7285
      %v7529 = vpack.c.b16 %v7288, %v7287
      %v7530 = vpack.c.b16 %v7290, %v7289
      %v7531 = vpack.c.b16 %v7292, %v7291
      %v7532 = vpack.c.b16 %v7294, %v7293
      %v7533 = vpack.c.b16 %v7296, %v7295
      %v7534 = vpack.c.b16 %v7298, %v7297
      %v7535 = vpack.c.b16 %v7300, %v7299
      %v7560 = vunpack.c.l.b16 %v7512
      %v7561 = vunpack.c.l.b16 %v7513
      %v7562 = vunpack.c.l.b16 %v7514
      %v7563 = vunpack.c.l.b16 %v7515
      %v7564 = vunpack.c.l.b16 %v7516
      %v7565 = vunpack.c.l.b16 %v7517
      %v7566 = vunpack.c.l.b16 %v7518
      %v7567 = vunpack.c.l.b16 %v7519
      %v7568 = vunpack.c.l.b16 %v7520
      %v7569 = vunpack.c.l.b16 %v7521
      %v7570 = vunpack.c.l.b16 %v7522
      %v7571 = vunpack.c.l.b16 %v7523
      %v7572 = vunpack.c.l.b16 %v7524
      %v7573 = vunpack.c.l.b16 %v7525
      %v7574 = vunpack.c.l.b16 %v7526
      %v7575 = vunpack.c.l.b16 %v7527
      %v7576 = vpack.c.b16 %v7561, %v7560
      %v7577 = vpack.c.b16 %v7563, %v7562
      %v7578 = vpack.c.b16 %v7565, %v7564
      %v7579 = vpack.c.b16 %v7567, %v7566
      %v7580 = vpack.c.b16 %v7569, %v7568
      %v7581 = vpack.c.b16 %v7571, %v7570
      %v7582 = vpack.c.b16 %v7573, %v7572
      %v7583 = vpack.c.b16 %v7575, %v7574
      %7592 = vmatpush.bf16.msra.mxu0 %v7583
      %7593 = vmatpush.bf16.msra.mxu0 %v7582
      %7594 = vmatpush.bf16.msra.mxu0 %v7581
      %7595 = vmatpush.bf16.msra.mxu0 %v7580
      %7596 = vmatpush.bf16.msra.mxu0 %v7579
      %7597 = vmatpush.bf16.msra.mxu0 %v7578
      %7598 = vmatpush.bf16.msra.mxu0 %v7577
      %7599 = vmatpush.bf16.msra.mxu0 %v7576
      %7600 = vmatmul.bf16.gmra.mxu0 %v7528
      %v7601 = vpop.f32.mrf.mxu0
      %v7602 = vadd.f32 0.0, %v7601
      %v7603 = vpop.f32.mrf.mxu0
      %v7604 = vadd.f32 0.0, %v7603
      %7605 = vmatmul.bf16.gmra.mxu0 %v7529
      %v7606 = vpop.f32.mrf.mxu0
      %v7607 = vadd.f32 0.0, %v7606
      %v7608 = vpop.f32.mrf.mxu0
      %v7609 = vadd.f32 0.0, %v7608
      %7610 = vmatmul.bf16.gmra.mxu0 %v7530
      %v7611 = vpop.f32.mrf.mxu0
      %v7612 = vadd.f32 0.0, %v7611
      %v7613 = vpop.f32.mrf.mxu0
      %v7614 = vadd.f32 0.0, %v7613
      %7615 = vmatmul.bf16.gmra.mxu0 %v7531
      %v7616 = vpop.f32.mrf.mxu0
      %v7617 = vadd.f32 0.0, %v7616
      %v7618 = vpop.f32.mrf.mxu0
      %v7619 = vadd.f32 0.0, %v7618
      %7620 = vmatmul.bf16.gmra.mxu0 %v7532
      %v7621 = vpop.f32.mrf.mxu0
      %v7622 = vadd.f32 0.0, %v7621
      %v7623 = vpop.f32.mrf.mxu0
      %v7624 = vadd.f32 0.0, %v7623
      %7625 = vmatmul.bf16.gmra.mxu0 %v7533
      %v7626 = vpop.f32.mrf.mxu0
      %v7627 = vadd.f32 0.0, %v7626
      %v7628 = vpop.f32.mrf.mxu0
      %v7629 = vadd.f32 0.0, %v7628
      %7630 = vmatmul.bf16.gmra.mxu0 %v7534
      %v7631 = vpop.f32.mrf.mxu0
      %v7632 = vadd.f32 0.0, %v7631
      %v7633 = vpop.f32.mrf.mxu0
      %v7634 = vadd.f32 0.0, %v7633
      %7635 = vmatmul.bf16.gmra.mxu0 %v7535
      %v7636 = vpop.f32.mrf.mxu0
      %v7637 = vadd.f32 0.0, %v7636
      %v7638 = vpop.f32.mrf.mxu0
      %v7639 = vadd.f32 0.0, %v7638
      %7640 = vdwg.mxu0
      %v7641 = vadd.f32 %v7495, %v7602
      %v7642 = vadd.f32 %v7496, %v7604
      %v7643 = vadd.f32 %v7497, %v7607
      %v7644 = vadd.f32 %v7498, %v7609
      %v7645 = vadd.f32 %v7499, %v7612
      %v7646 = vadd.f32 %v7500, %v7614
      %v7647 = vadd.f32 %v7501, %v7617
      %v7648 = vadd.f32 %v7502, %v7619
      %v7649 = vadd.f32 %v7503, %v7622
      %v7650 = vadd.f32 %v7504, %v7624
      %v7651 = vadd.f32 %v7505, %v7627
      %v7652 = vadd.f32 %v7506, %v7629
      %v7653 = vadd.f32 %v7507, %v7632
      %v7654 = vadd.f32 %v7508, %v7634
      %v7655 = vadd.f32 %v7509, %v7637
      %v7656 = vadd.f32 %v7510, %v7639
      %v7657 = vld [vmem:[#allocation3 + $0xc] sm:$0xf]
      %v7658 = vld [vmem:[#allocation3 + $0x10] sm:$0xf]
      %v7659 = vld [vmem:[#allocation3 + $0x14] sm:$0xf]
      %v7660 = vld [vmem:[#allocation3 + $0x18] sm:$0xf]
      %v7661 = vld [vmem:[#allocation3 + $0x1c] sm:$0xf]
      %v7662 = vld [vmem:[#allocation3 + $0x20] sm:$0xf]
      %v7663 = vld [vmem:[#allocation3 + $0x24] sm:$0xf]
      %v7664 = vld [vmem:[#allocation3 + $0x28] sm:$0xf]
      %v7665 = vld [vmem:[#allocation3 + $0x2c] sm:$0xf]
      %v7666 = vld [vmem:[#allocation3 + $0x30] sm:$0xf]
      %v7667 = vld [vmem:[#allocation3 + $0x34] sm:$0xf]
      %v7668 = vld [vmem:[#allocation3 + $0x38] sm:$0xf]
      %v7669 = vld [vmem:[#allocation3 + $0x3c] sm:$0xf]
      %v7670 = vld [vmem:[#allocation3 + $0x40] sm:$0xf]
      %v7671 = vld [vmem:[#allocation3 + $0x44] sm:$0xf]
      %v7672 = vld [vmem:[#allocation3 + $0x48] sm:$0xf]
      %v7673 = vld [vmem:[#allocation3 + $0x4c] sm:$0x1]
      %s7674 = scalar_lea.vmem %s2, 320
      %v7675 = vld [vmem:[%s7674] sm:$0xf]
      %v7676 = vld [vmem:[%s7674 + $0x4] sm:$0xf]
      %v7677 = vld [vmem:[%s7674 + $0x8] sm:$0xf]
      %v7678 = vld [vmem:[%s7674 + $0xc] sm:$0xf]
      %v7679 = vld [vmem:[%s7674 + $0x10] sm:$0xf]
      %v7680 = vld [vmem:[%s7674 + $0x14] sm:$0xf]
      %v7681 = vld [vmem:[%s7674 + $0x18] sm:$0xf]
      %v7682 = vld [vmem:[%s7674 + $0x1c] sm:$0xf]
      %v7683 = vld [vmem:[%s7674 + $0x20] sm:$0xf]
      %v7684 = vld [vmem:[%s7674 + $0x24] sm:$0xf]
      %v7685 = vld [vmem:[%s7674 + $0x28] sm:$0xf]
      %v7686 = vld [vmem:[%s7674 + $0x2c] sm:$0xf]
      %v7687 = vld [vmem:[%s7674 + $0x30] sm:$0xf]
      %v7688 = vld [vmem:[%s7674 + $0x34] sm:$0xf]
      %v7689 = vld [vmem:[%s7674 + $0x38] sm:$0xf]
      %v7690 = vld [vmem:[%s7674 + $0x3c] sm:$0xf]
      %v7708 = vunpack.c.l.b16 %v7657
      %v7709 = vunpack.c.l.b16 %v7658
      %v7710 = vunpack.c.l.b16 %v7659
      %v7711 = vunpack.c.l.b16 %v7660
      %v7712 = vunpack.c.l.b16 %v7661
      %v7713 = vunpack.c.l.b16 %v7662
      %v7714 = vunpack.c.l.b16 %v7663
      %v7715 = vunpack.c.l.b16 %v7664
      %v7716 = vunpack.c.l.b16 %v7665
      %v7717 = vunpack.c.l.b16 %v7666
      %v7718 = vunpack.c.l.b16 %v7667
      %v7719 = vunpack.c.l.b16 %v7668
      %v7720 = vunpack.c.l.b16 %v7669
      %v7721 = vunpack.c.l.b16 %v7670
      %v7722 = vunpack.c.l.b16 %v7671
      %v7723 = vunpack.c.l.b16 %v7672
      %v7724 = vunpack.c.l.b16 %v7673
      %v7725 = vpack.c.b16 %v7709, %v7708
      %v7726 = vpack.c.b16 %v7711, %v7710
      %v7727 = vpack.c.b16 %v7713, %v7712
      %v7728 = vpack.c.b16 %v7715, %v7714
      %v7729 = vpack.c.b16 %v7717, %v7716
      %v7730 = vpack.c.b16 %v7719, %v7718
      %v7731 = vpack.c.b16 %v7721, %v7720
      %v7732 = vpack.c.b16 %v7723, %v7722
      %v7733 = vpack.c.b16 %v7724, %v7724
      %v7735 = vshrl.u32 %v7725, 16
      %v7737 = vshll.u32 %v7725, 16
      %v7739 = vrot.slane %v7737, 1
      %v7740 = vor.u32 %v7735, %v7739
      %v7742 = vshll.u32 %v7726, 16
      %v7744 = vrot.slane %v7742, 1
      %v7745 = vsel %vm1998, %v7740, %v7744
      %v7746 = vshrl.u32 %v7726, 16
      %v7748 = vor.u32 %v7746, %v7744
      %v7750 = vshll.u32 %v7727, 16
      %v7752 = vrot.slane %v7750, 1
      %v7753 = vsel %vm1998, %v7748, %v7752
      %v7754 = vshrl.u32 %v7727, 16
      %v7756 = vor.u32 %v7754, %v7752
      %v7758 = vshll.u32 %v7728, 16
      %v7760 = vrot.slane %v7758, 1
      %v7761 = vsel %vm1998, %v7756, %v7760
      %v7762 = vshrl.u32 %v7728, 16
      %v7764 = vor.u32 %v7762, %v7760
      %v7766 = vshll.u32 %v7729, 16
      %v7768 = vrot.slane %v7766, 1
      %v7769 = vsel %vm1998, %v7764, %v7768
      %v7770 = vshrl.u32 %v7729, 16
      %v7772 = vor.u32 %v7770, %v7768
      %v7774 = vshll.u32 %v7730, 16
      %v7776 = vrot.slane %v7774, 1
      %v7777 = vsel %vm1998, %v7772, %v7776
      %v7778 = vshrl.u32 %v7730, 16
      %v7780 = vor.u32 %v7778, %v7776
      %v7782 = vshll.u32 %v7731, 16
      %v7784 = vrot.slane %v7782, 1
      %v7785 = vsel %vm1998, %v7780, %v7784
      %v7786 = vshrl.u32 %v7731, 16
      %v7788 = vor.u32 %v7786, %v7784
      %v7790 = vshll.u32 %v7732, 16
      %v7792 = vrot.slane %v7790, 1
      %v7793 = vsel %vm1998, %v7788, %v7792
      %v7794 = vshrl.u32 %v7732, 16
      %v7796 = vor.u32 %v7794, %v7792
      %v7798 = vshll.u32 %v7733, 16
      %v7800 = vrot.slane %v7798, 1
      %v7801 = vsel %vm1998, %v7796, %v7800
      %v7826 = vunpack.c.l.b16 %v7675
      %v7827 = vunpack.c.l.b16 %v7676
      %v7828 = vunpack.c.l.b16 %v7677
      %v7829 = vunpack.c.l.b16 %v7678
      %v7830 = vunpack.c.l.b16 %v7679
      %v7831 = vunpack.c.l.b16 %v7680
      %v7832 = vunpack.c.l.b16 %v7681
      %v7833 = vunpack.c.l.b16 %v7682
      %v7834 = vunpack.c.l.b16 %v7683
      %v7835 = vunpack.c.l.b16 %v7684
      %v7836 = vunpack.c.l.b16 %v7685
      %v7837 = vunpack.c.l.b16 %v7686
      %v7838 = vunpack.c.l.b16 %v7687
      %v7839 = vunpack.c.l.b16 %v7688
      %v7840 = vunpack.c.l.b16 %v7689
      %v7841 = vunpack.c.l.b16 %v7690
      %v7842 = vpack.c.b16 %v7827, %v7826
      %v7843 = vpack.c.b16 %v7829, %v7828
      %v7844 = vpack.c.b16 %v7831, %v7830
      %v7845 = vpack.c.b16 %v7833, %v7832
      %v7846 = vpack.c.b16 %v7835, %v7834
      %v7847 = vpack.c.b16 %v7837, %v7836
      %v7848 = vpack.c.b16 %v7839, %v7838
      %v7849 = vpack.c.b16 %v7841, %v7840
      %7858 = vmatpush.bf16.msra.mxu0 %v7849
      %7859 = vmatpush.bf16.msra.mxu0 %v7848
      %7860 = vmatpush.bf16.msra.mxu0 %v7847
      %7861 = vmatpush.bf16.msra.mxu0 %v7846
      %7862 = vmatpush.bf16.msra.mxu0 %v7845
      %7863 = vmatpush.bf16.msra.mxu0 %v7844
      %7864 = vmatpush.bf16.msra.mxu0 %v7843
      %7865 = vmatpush.bf16.msra.mxu0 %v7842
      %7866 = vmatmul.bf16.gmra.mxu0 %v7745
      %v7867 = vpop.f32.mrf.mxu0
      %v7868 = vadd.f32 0.0, %v7867
      %v7869 = vpop.f32.mrf.mxu0
      %v7870 = vadd.f32 0.0, %v7869
      %7871 = vmatmul.bf16.gmra.mxu0 %v7753
      %v7872 = vpop.f32.mrf.mxu0
      %v7873 = vadd.f32 0.0, %v7872
      %v7874 = vpop.f32.mrf.mxu0
      %v7875 = vadd.f32 0.0, %v7874
      %7876 = vmatmul.bf16.gmra.mxu0 %v7761
      %v7877 = vpop.f32.mrf.mxu0
      %v7878 = vadd.f32 0.0, %v7877
      %v7879 = vpop.f32.mrf.mxu0
      %v7880 = vadd.f32 0.0, %v7879
      %7881 = vmatmul.bf16.gmra.mxu0 %v7769
      %v7882 = vpop.f32.mrf.mxu0
      %v7883 = vadd.f32 0.0, %v7882
      %v7884 = vpop.f32.mrf.mxu0
      %v7885 = vadd.f32 0.0, %v7884
      %7886 = vmatmul.bf16.gmra.mxu0 %v7777
      %v7887 = vpop.f32.mrf.mxu0
      %v7888 = vadd.f32 0.0, %v7887
      %v7889 = vpop.f32.mrf.mxu0
      %v7890 = vadd.f32 0.0, %v7889
      %7891 = vmatmul.bf16.gmra.mxu0 %v7785
      %v7892 = vpop.f32.mrf.mxu0
      %v7893 = vadd.f32 0.0, %v7892
      %v7894 = vpop.f32.mrf.mxu0
      %v7895 = vadd.f32 0.0, %v7894
      %7896 = vmatmul.bf16.gmra.mxu0 %v7793
      %v7897 = vpop.f32.mrf.mxu0
      %v7898 = vadd.f32 0.0, %v7897
      %v7899 = vpop.f32.mrf.mxu0
      %v7900 = vadd.f32 0.0, %v7899
      %7901 = vmatmul.bf16.gmra.mxu0 %v7801
      %v7902 = vpop.f32.mrf.mxu0
      %v7903 = vadd.f32 0.0, %v7902
      %v7904 = vpop.f32.mrf.mxu0
      %v7905 = vadd.f32 0.0, %v7904
      %7906 = vdwg.mxu0
      %v7907 = vadd.f32 %v7641, %v7868
      %v7908 = vadd.f32 %v7642, %v7870
      %v7909 = vadd.f32 %v7643, %v7873
      %v7910 = vadd.f32 %v7644, %v7875
      %v7911 = vadd.f32 %v7645, %v7878
      %v7912 = vadd.f32 %v7646, %v7880
      %v7913 = vadd.f32 %v7647, %v7883
      %v7914 = vadd.f32 %v7648, %v7885
      %v7915 = vadd.f32 %v7649, %v7888
      %v7916 = vadd.f32 %v7650, %v7890
      %v7917 = vadd.f32 %v7651, %v7893
      %v7918 = vadd.f32 %v7652, %v7895
      %v7919 = vadd.f32 %v7653, %v7898
      %v7920 = vadd.f32 %v7654, %v7900
      %v7921 = vadd.f32 %v7655, %v7903
      %v7922 = vadd.f32 %v7656, %v7905
      %v7923 = vld [vmem:[#allocation3 + $0x14] sm:$0xf]
      %v7924 = vld [vmem:[#allocation3 + $0x18] sm:$0xf]
      %v7925 = vld [vmem:[#allocation3 + $0x1c] sm:$0xf]
      %v7926 = vld [vmem:[#allocation3 + $0x20] sm:$0xf]
      %v7927 = vld [vmem:[#allocation3 + $0x24] sm:$0xf]
      %v7928 = vld [vmem:[#allocation3 + $0x28] sm:$0xf]
      %v7929 = vld [vmem:[#allocation3 + $0x2c] sm:$0xf]
      %v7930 = vld [vmem:[#allocation3 + $0x30] sm:$0xf]
      %v7931 = vld [vmem:[#allocation3 + $0x34] sm:$0xf]
      %v7932 = vld [vmem:[#allocation3 + $0x38] sm:$0xf]
      %v7933 = vld [vmem:[#allocation3 + $0x3c] sm:$0xf]
      %v7934 = vld [vmem:[#allocation3 + $0x40] sm:$0xf]
      %v7935 = vld [vmem:[#allocation3 + $0x44] sm:$0xf]
      %v7936 = vld [vmem:[#allocation3 + $0x48] sm:$0xf]
      %v7937 = vld [vmem:[#allocation3 + $0x4c] sm:$0xf]
      %v7938 = vld [vmem:[#allocation3 + $0x50] sm:$0xf]
      %v7939 = vld [vmem:[#allocation3 + $0x54] sm:$0x1]
      %s7940 = scalar_lea.vmem %s2, 384
      %v7941 = vld [vmem:[%s7940] sm:$0xf]
      %v7942 = vld [vmem:[%s7940 + $0x4] sm:$0xf]
      %v7943 = vld [vmem:[%s7940 + $0x8] sm:$0xf]
      %v7944 = vld [vmem:[%s7940 + $0xc] sm:$0xf]
      %v7945 = vld [vmem:[%s7940 + $0x10] sm:$0xf]
      %v7946 = vld [vmem:[%s7940 + $0x14] sm:$0xf]
      %v7947 = vld [vmem:[%s7940 + $0x18] sm:$0xf]
      %v7948 = vld [vmem:[%s7940 + $0x1c] sm:$0xf]
      %v7949 = vld [vmem:[%s7940 + $0x20] sm:$0xf]
      %v7950 = vld [vmem:[%s7940 + $0x24] sm:$0xf]
      %v7951 = vld [vmem:[%s7940 + $0x28] sm:$0xf]
      %v7952 = vld [vmem:[%s7940 + $0x2c] sm:$0xf]
      %v7953 = vld [vmem:[%s7940 + $0x30] sm:$0xf]
      %v7954 = vld [vmem:[%s7940 + $0x34] sm:$0xf]
      %v7955 = vld [vmem:[%s7940 + $0x38] sm:$0xf]
      %v7956 = vld [vmem:[%s7940 + $0x3c] sm:$0xf]
      %v7974 = vunpack.c.l.b16 %v7923
      %v7975 = vunpack.c.l.b16 %v7924
      %v7976 = vunpack.c.l.b16 %v7925
      %v7977 = vunpack.c.l.b16 %v7926
      %v7978 = vunpack.c.l.b16 %v7927
      %v7979 = vunpack.c.l.b16 %v7928
      %v7980 = vunpack.c.l.b16 %v7929
      %v7981 = vunpack.c.l.b16 %v7930
      %v7982 = vunpack.c.l.b16 %v7931
      %v7983 = vunpack.c.l.b16 %v7932
      %v7984 = vunpack.c.l.b16 %v7933
      %v7985 = vunpack.c.l.b16 %v7934
      %v7986 = vunpack.c.l.b16 %v7935
      %v7987 = vunpack.c.l.b16 %v7936
      %v7988 = vunpack.c.l.b16 %v7937
      %v7989 = vunpack.c.l.b16 %v7938
      %v7990 = vunpack.c.l.b16 %v7939
      %v7991 = vpack.c.b16 %v7975, %v7974
      %v7992 = vpack.c.b16 %v7977, %v7976
      %v7993 = vpack.c.b16 %v7979, %v7978
      %v7994 = vpack.c.b16 %v7981, %v7980
      %v7995 = vpack.c.b16 %v7983, %v7982
      %v7996 = vpack.c.b16 %v7985, %v7984
      %v7997 = vpack.c.b16 %v7987, %v7986
      %v7998 = vpack.c.b16 %v7989, %v7988
      %v7999 = vpack.c.b16 %v7990, %v7990
      %v8001 = vshrl.u32 %v7991, 16
      %v8003 = vshll.u32 %v7991, 16
      %v8005 = vrot.slane %v8003, 1
      %v8006 = vor.u32 %v8001, %v8005
      %v8008 = vshll.u32 %v7992, 16
      %v8010 = vrot.slane %v8008, 1
      %v8011 = vsel %vm1998, %v8006, %v8010
      %v8012 = vshrl.u32 %v7992, 16
      %v8014 = vor.u32 %v8012, %v8010
      %v8016 = vshll.u32 %v7993, 16
      %v8018 = vrot.slane %v8016, 1
      %v8019 = vsel %vm1998, %v8014, %v8018
      %v8020 = vshrl.u32 %v7993, 16
      %v8022 = vor.u32 %v8020, %v8018
      %v8024 = vshll.u32 %v7994, 16
      %v8026 = vrot.slane %v8024, 1
      %v8027 = vsel %vm1998, %v8022, %v8026
      %v8028 = vshrl.u32 %v7994, 16
      %v8030 = vor.u32 %v8028, %v8026
      %v8032 = vshll.u32 %v7995, 16
      %v8034 = vrot.slane %v8032, 1
      %v8035 = vsel %vm1998, %v8030, %v8034
      %v8036 = vshrl.u32 %v7995, 16
      %v8038 = vor.u32 %v8036, %v8034
      %v8040 = vshll.u32 %v7996, 16
      %v8042 = vrot.slane %v8040, 1
      %v8043 = vsel %vm1998, %v8038, %v8042
      %v8044 = vshrl.u32 %v7996, 16
      %v8046 = vor.u32 %v8044, %v8042
      %v8048 = vshll.u32 %v7997, 16
      %v8050 = vrot.slane %v8048, 1
      %v8051 = vsel %vm1998, %v8046, %v8050
      %v8052 = vshrl.u32 %v7997, 16
      %v8054 = vor.u32 %v8052, %v8050
      %v8056 = vshll.u32 %v7998, 16
      %v8058 = vrot.slane %v8056, 1
      %v8059 = vsel %vm1998, %v8054, %v8058
      %v8060 = vshrl.u32 %v7998, 16
      %v8062 = vor.u32 %v8060, %v8058
      %v8064 = vshll.u32 %v7999, 16
      %v8066 = vrot.slane %v8064, 1
      %v8067 = vsel %vm1998, %v8062, %v8066
      %v8092 = vunpack.c.l.b16 %v7941
      %v8093 = vunpack.c.l.b16 %v7942
      %v8094 = vunpack.c.l.b16 %v7943
      %v8095 = vunpack.c.l.b16 %v7944
      %v8096 = vunpack.c.l.b16 %v7945
      %v8097 = vunpack.c.l.b16 %v7946
      %v8098 = vunpack.c.l.b16 %v7947
      %v8099 = vunpack.c.l.b16 %v7948
      %v8100 = vunpack.c.l.b16 %v7949
      %v8101 = vunpack.c.l.b16 %v7950
      %v8102 = vunpack.c.l.b16 %v7951
      %v8103 = vunpack.c.l.b16 %v7952
      %v8104 = vunpack.c.l.b16 %v7953
      %v8105 = vunpack.c.l.b16 %v7954
      %v8106 = vunpack.c.l.b16 %v7955
      %v8107 = vunpack.c.l.b16 %v7956
      %v8108 = vpack.c.b16 %v8093, %v8092
      %v8109 = vpack.c.b16 %v8095, %v8094
      %v8110 = vpack.c.b16 %v8097, %v8096
      %v8111 = vpack.c.b16 %v8099, %v8098
      %v8112 = vpack.c.b16 %v8101, %v8100
      %v8113 = vpack.c.b16 %v8103, %v8102
      %v8114 = vpack.c.b16 %v8105, %v8104
      %v8115 = vpack.c.b16 %v8107, %v8106
      %8124 = vmatpush.bf16.msra.mxu0 %v8115
      %8125 = vmatpush.bf16.msra.mxu0 %v8114
      %8126 = vmatpush.bf16.msra.mxu0 %v8113
      %8127 = vmatpush.bf16.msra.mxu0 %v8112
      %8128 = vmatpush.bf16.msra.mxu0 %v8111
      %8129 = vmatpush.bf16.msra.mxu0 %v8110
      %8130 = vmatpush.bf16.msra.mxu0 %v8109
      %8131 = vmatpush.bf16.msra.mxu0 %v8108
      %8132 = vmatmul.bf16.gmra.mxu0 %v8011
      %v8133 = vpop.f32.mrf.mxu0
      %v8134 = vadd.f32 0.0, %v8133
      %v8135 = vpop.f32.mrf.mxu0
      %v8136 = vadd.f32 0.0, %v8135
      %8137 = vmatmul.bf16.gmra.mxu0 %v8019
      %v8138 = vpop.f32.mrf.mxu0
      %v8139 = vadd.f32 0.0, %v8138
      %v8140 = vpop.f32.mrf.mxu0
      %v8141 = vadd.f32 0.0, %v8140
      %8142 = vmatmul.bf16.gmra.mxu0 %v8027
      %v8143 = vpop.f32.mrf.mxu0
      %v8144 = vadd.f32 0.0, %v8143
      %v8145 = vpop.f32.mrf.mxu0
      %v8146 = vadd.f32 0.0, %v8145
      %8147 = vmatmul.bf16.gmra.mxu0 %v8035
      %v8148 = vpop.f32.mrf.mxu0
      %v8149 = vadd.f32 0.0, %v8148
      %v8150 = vpop.f32.mrf.mxu0
      %v8151 = vadd.f32 0.0, %v8150
      %8152 = vmatmul.bf16.gmra.mxu0 %v8043
      %v8153 = vpop.f32.mrf.mxu0
      %v8154 = vadd.f32 0.0, %v8153
      %v8155 = vpop.f32.mrf.mxu0
      %v8156 = vadd.f32 0.0, %v8155
      %8157 = vmatmul.bf16.gmra.mxu0 %v8051
      %v8158 = vpop.f32.mrf.mxu0
      %v8159 = vadd.f32 0.0, %v8158
      %v8160 = vpop.f32.mrf.mxu0
      %v8161 = vadd.f32 0.0, %v8160
      %8162 = vmatmul.bf16.gmra.mxu0 %v8059
      %v8163 = vpop.f32.mrf.mxu0
      %v8164 = vadd.f32 0.0, %v8163
      %v8165 = vpop.f32.mrf.mxu0
      %v8166 = vadd.f32 0.0, %v8165
      %8167 = vmatmul.bf16.gmra.mxu0 %v8067
      %v8168 = vpop.f32.mrf.mxu0
      %v8169 = vadd.f32 0.0, %v8168
      %v8170 = vpop.f32.mrf.mxu0
      %v8171 = vadd.f32 0.0, %v8170
      %8172 = vdwg.mxu0
      %v8173 = vadd.f32 %v7907, %v8134
      %v8174 = vadd.f32 %v7908, %v8136
      %v8175 = vadd.f32 %v7909, %v8139
      %v8176 = vadd.f32 %v7910, %v8141
      %v8177 = vadd.f32 %v7911, %v8144
      %v8178 = vadd.f32 %v7912, %v8146
      %v8179 = vadd.f32 %v7913, %v8149
      %v8180 = vadd.f32 %v7914, %v8151
      %v8181 = vadd.f32 %v7915, %v8154
      %v8182 = vadd.f32 %v7916, %v8156
      %v8183 = vadd.f32 %v7917, %v8159
      %v8184 = vadd.f32 %v7918, %v8161
      %v8185 = vadd.f32 %v7919, %v8164
      %v8186 = vadd.f32 %v7920, %v8166
      %v8187 = vadd.f32 %v7921, %v8169
      %v8188 = vadd.f32 %v7922, %v8171
      %v8189 = vld [vmem:[#allocation3 + $0x14] sm:$0xe]
      %s8190 = scalar_lea.vmem %s2, 448
      %v8191 = vld [vmem:[%s8190] sm:$0xf]
      %v8192 = vld [vmem:[%s8190 + $0x4] sm:$0xf]
      %v8193 = vld [vmem:[%s8190 + $0x8] sm:$0xf]
      %v8194 = vld [vmem:[%s8190 + $0xc] sm:$0xf]
      %v8195 = vld [vmem:[%s8190 + $0x10] sm:$0xf]
      %v8196 = vld [vmem:[%s8190 + $0x14] sm:$0xf]
      %v8197 = vld [vmem:[%s8190 + $0x18] sm:$0xf]
      %v8198 = vld [vmem:[%s8190 + $0x1c] sm:$0xf]
      %v8199 = vld [vmem:[%s8190 + $0x20] sm:$0xf]
      %v8200 = vld [vmem:[%s8190 + $0x24] sm:$0xf]
      %v8201 = vld [vmem:[%s8190 + $0x28] sm:$0xf]
      %v8202 = vld [vmem:[%s8190 + $0x2c] sm:$0xf]
      %v8203 = vld [vmem:[%s8190 + $0x30] sm:$0xf]
      %v8204 = vld [vmem:[%s8190 + $0x34] sm:$0xf]
      %v8205 = vld [vmem:[%s8190 + $0x38] sm:$0xf]
      %v8206 = vld [vmem:[%s8190 + $0x3c] sm:$0xf]
      %v8208 = vunpack.c.l.b16 %v8189
      %v8209 = vpack.c.b16 %v7975, %v8208
      %v8210 = vrot.slane %v8209, 1
      %v8211 = vrot.slane %v7992, 1
      %v8212 = vsel %vm2475, %v8210, %v8211
      %v8213 = vrot.slane %v7993, 1
      %v8214 = vsel %vm2475, %v8211, %v8213
      %v8215 = vrot.slane %v7994, 1
      %v8216 = vsel %vm2475, %v8213, %v8215
      %v8217 = vrot.slane %v7995, 1
      %v8218 = vsel %vm2475, %v8215, %v8217
      %v8219 = vrot.slane %v7996, 1
      %v8220 = vsel %vm2475, %v8217, %v8219
      %v8221 = vrot.slane %v7997, 1
      %v8222 = vsel %vm2475, %v8219, %v8221
      %v8223 = vrot.slane %v7998, 1
      %v8224 = vsel %vm2475, %v8221, %v8223
      %v8225 = vrot.slane %v7999, 1
      %v8226 = vsel %vm2475, %v8223, %v8225
      %v8251 = vunpack.c.l.b16 %v8191
      %v8252 = vunpack.c.l.b16 %v8192
      %v8253 = vunpack.c.l.b16 %v8193
      %v8254 = vunpack.c.l.b16 %v8194
      %v8255 = vunpack.c.l.b16 %v8195
      %v8256 = vunpack.c.l.b16 %v8196
      %v8257 = vunpack.c.l.b16 %v8197
      %v8258 = vunpack.c.l.b16 %v8198
      %v8259 = vunpack.c.l.b16 %v8199
      %v8260 = vunpack.c.l.b16 %v8200
      %v8261 = vunpack.c.l.b16 %v8201
      %v8262 = vunpack.c.l.b16 %v8202
      %v8263 = vunpack.c.l.b16 %v8203
      %v8264 = vunpack.c.l.b16 %v8204
      %v8265 = vunpack.c.l.b16 %v8205
      %v8266 = vunpack.c.l.b16 %v8206
      %v8267 = vpack.c.b16 %v8252, %v8251
      %v8268 = vpack.c.b16 %v8254, %v8253
      %v8269 = vpack.c.b16 %v8256, %v8255
      %v8270 = vpack.c.b16 %v8258, %v8257
      %v8271 = vpack.c.b16 %v8260, %v8259
      %v8272 = vpack.c.b16 %v8262, %v8261
      %v8273 = vpack.c.b16 %v8264, %v8263
      %v8274 = vpack.c.b16 %v8266, %v8265
      %8283 = vmatpush.bf16.msra.mxu0 %v8274
      %8284 = vmatpush.bf16.msra.mxu0 %v8273
      %8285 = vmatpush.bf16.msra.mxu0 %v8272
      %8286 = vmatpush.bf16.msra.mxu0 %v8271
      %8287 = vmatpush.bf16.msra.mxu0 %v8270
      %8288 = vmatpush.bf16.msra.mxu0 %v8269
      %8289 = vmatpush.bf16.msra.mxu0 %v8268
      %8290 = vmatpush.bf16.msra.mxu0 %v8267
      %8291 = vmatmul.bf16.gmra.mxu0 %v8212
      %v8292 = vpop.f32.mrf.mxu0
      %v8293 = vadd.f32 0.0, %v8292
      %v8294 = vpop.f32.mrf.mxu0
      %v8295 = vadd.f32 0.0, %v8294
      %8296 = vmatmul.bf16.gmra.mxu0 %v8214
      %v8297 = vpop.f32.mrf.mxu0
      %v8298 = vadd.f32 0.0, %v8297
      %v8299 = vpop.f32.mrf.mxu0
      %v8300 = vadd.f32 0.0, %v8299
      %8301 = vmatmul.bf16.gmra.mxu0 %v8216
      %v8302 = vpop.f32.mrf.mxu0
      %v8303 = vadd.f32 0.0, %v8302
      %v8304 = vpop.f32.mrf.mxu0
      %v8305 = vadd.f32 0.0, %v8304
      %8306 = vmatmul.bf16.gmra.mxu0 %v8218
      %v8307 = vpop.f32.mrf.mxu0
      %v8308 = vadd.f32 0.0, %v8307
      %v8309 = vpop.f32.mrf.mxu0
      %v8310 = vadd.f32 0.0, %v8309
      %8311 = vmatmul.bf16.gmra.mxu0 %v8220
      %v8312 = vpop.f32.mrf.mxu0
      %v8313 = vadd.f32 0.0, %v8312
      %v8314 = vpop.f32.mrf.mxu0
      %v8315 = vadd.f32 0.0, %v8314
      %8316 = vmatmul.bf16.gmra.mxu0 %v8222
      %v8317 = vpop.f32.mrf.mxu0
      %v8318 = vadd.f32 0.0, %v8317
      %v8319 = vpop.f32.mrf.mxu0
      %v8320 = vadd.f32 0.0, %v8319
      %8321 = vmatmul.bf16.gmra.mxu0 %v8224
      %v8322 = vpop.f32.mrf.mxu0
      %v8323 = vadd.f32 0.0, %v8322
      %v8324 = vpop.f32.mrf.mxu0
      %v8325 = vadd.f32 0.0, %v8324
      %8326 = vmatmul.bf16.gmra.mxu0 %v8226
      %v8327 = vpop.f32.mrf.mxu0
      %v8328 = vadd.f32 0.0, %v8327
      %v8329 = vpop.f32.mrf.mxu0
      %v8330 = vadd.f32 0.0, %v8329
      %8331 = vdwg.mxu0
      %v8332 = vadd.f32 %v8173, %v8293
      %v8333 = vadd.f32 %v8174, %v8295
      %v8334 = vadd.f32 %v8175, %v8298
      %v8335 = vadd.f32 %v8176, %v8300
      %v8336 = vadd.f32 %v8177, %v8303
      %v8337 = vadd.f32 %v8178, %v8305
      %v8338 = vadd.f32 %v8179, %v8308
      %v8339 = vadd.f32 %v8180, %v8310
      %v8340 = vadd.f32 %v8181, %v8313
      %v8341 = vadd.f32 %v8182, %v8315
      %v8342 = vadd.f32 %v8183, %v8318
      %v8343 = vadd.f32 %v8184, %v8320
      %v8344 = vadd.f32 %v8185, %v8323
      %v8345 = vadd.f32 %v8186, %v8325
      %v8346 = vadd.f32 %v8187, %v8328
      %v8347 = vadd.f32 %v8188, %v8330
      %v8348 = vld [vmem:[#allocation3 + $0x54] sm:$0x3]
      %s8349 = scalar_lea.vmem %s2, 512
      %v8350 = vld [vmem:[%s8349] sm:$0xf]
      %v8351 = vld [vmem:[%s8349 + $0x4] sm:$0xf]
      %v8352 = vld [vmem:[%s8349 + $0x8] sm:$0xf]
      %v8353 = vld [vmem:[%s8349 + $0xc] sm:$0xf]
      %v8354 = vld [vmem:[%s8349 + $0x10] sm:$0xf]
      %v8355 = vld [vmem:[%s8349 + $0x14] sm:$0xf]
      %v8356 = vld [vmem:[%s8349 + $0x18] sm:$0xf]
      %v8357 = vld [vmem:[%s8349 + $0x1c] sm:$0xf]
      %v8358 = vld [vmem:[%s8349 + $0x20] sm:$0xf]
      %v8359 = vld [vmem:[%s8349 + $0x24] sm:$0xf]
      %v8360 = vld [vmem:[%s8349 + $0x28] sm:$0xf]
      %v8361 = vld [vmem:[%s8349 + $0x2c] sm:$0xf]
      %v8362 = vld [vmem:[%s8349 + $0x30] sm:$0xf]
      %v8363 = vld [vmem:[%s8349 + $0x34] sm:$0xf]
      %v8364 = vld [vmem:[%s8349 + $0x38] sm:$0xf]
      %v8365 = vld [vmem:[%s8349 + $0x3c] sm:$0xf]
      %v8367 = vunpack.c.l.b16 %v8348
      %v8368 = vpack.c.b16 %v8367, %v8367
      %v8370 = vshrl.u32 %v8209, 16
      %v8372 = vrot.slane %v8370, 1
      %v8373 = vshll.u32 %v8209, 16
      %v8375 = vrot.slane %v8373, 2
      %v8376 = vor.u32 %v8372, %v8375
      %v8377 = vrot.slane %v8012, 1
      %v8378 = vrot.slane %v8008, 2
      %v8379 = vor.u32 %v8377, %v8378
      %v8380 = vsel %vm2635, %v8376, %v8379
      %v8381 = vrot.slane %v8020, 1
      %v8382 = vrot.slane %v8016, 2
      %v8383 = vor.u32 %v8381, %v8382
      %v8384 = vsel %vm2635, %v8379, %v8383
      %v8385 = vrot.slane %v8028, 1
      %v8386 = vrot.slane %v8024, 2
      %v8387 = vor.u32 %v8385, %v8386
      %v8388 = vsel %vm2635, %v8383, %v8387
      %v8389 = vrot.slane %v8036, 1
      %v8390 = vrot.slane %v8032, 2
      %v8391 = vor.u32 %v8389, %v8390
      %v8392 = vsel %vm2635, %v8387, %v8391
      %v8393 = vrot.slane %v8044, 1
      %v8394 = vrot.slane %v8040, 2
      %v8395 = vor.u32 %v8393, %v8394
      %v8396 = vsel %vm2635, %v8391, %v8395
      %v8397 = vrot.slane %v8052, 1
      %v8398 = vrot.slane %v8048, 2
      %v8399 = vor.u32 %v8397, %v8398
      %v8400 = vsel %vm2635, %v8395, %v8399
      %v8401 = vrot.slane %v8060, 1
      %v8402 = vrot.slane %v8056, 2
      %v8403 = vor.u32 %v8401, %v8402
      %v8404 = vsel %vm2635, %v8399, %v8403
      %v8406 = vshrl.u32 %v8368, 16
      %v8408 = vrot.slane %v8406, 1
      %v8409 = vshll.u32 %v8368, 16
      %v8411 = vrot.slane %v8409, 2
      %v8412 = vor.u32 %v8408, %v8411
      %v8413 = vsel %vm2635, %v8403, %v8412
      %v8438 = vunpack.c.l.b16 %v8350
      %v8439 = vunpack.c.l.b16 %v8351
      %v8440 = vunpack.c.l.b16 %v8352
      %v8441 = vunpack.c.l.b16 %v8353
      %v8442 = vunpack.c.l.b16 %v8354
      %v8443 = vunpack.c.l.b16 %v8355
      %v8444 = vunpack.c.l.b16 %v8356
      %v8445 = vunpack.c.l.b16 %v8357
      %v8446 = vunpack.c.l.b16 %v8358
      %v8447 = vunpack.c.l.b16 %v8359
      %v8448 = vunpack.c.l.b16 %v8360
      %v8449 = vunpack.c.l.b16 %v8361
      %v8450 = vunpack.c.l.b16 %v8362
      %v8451 = vunpack.c.l.b16 %v8363
      %v8452 = vunpack.c.l.b16 %v8364
      %v8453 = vunpack.c.l.b16 %v8365
      %v8454 = vpack.c.b16 %v8439, %v8438
      %v8455 = vpack.c.b16 %v8441, %v8440
      %v8456 = vpack.c.b16 %v8443, %v8442
      %v8457 = vpack.c.b16 %v8445, %v8444
      %v8458 = vpack.c.b16 %v8447, %v8446
      %v8459 = vpack.c.b16 %v8449, %v8448
      %v8460 = vpack.c.b16 %v8451, %v8450
      %v8461 = vpack.c.b16 %v8453, %v8452
      %8470 = vmatpush.bf16.msra.mxu0 %v8461
      %8471 = vmatpush.bf16.msra.mxu0 %v8460
      %8472 = vmatpush.bf16.msra.mxu0 %v8459
      %8473 = vmatpush.bf16.msra.mxu0 %v8458
      %8474 = vmatpush.bf16.msra.mxu0 %v8457
      %8475 = vmatpush.bf16.msra.mxu0 %v8456
      %8476 = vmatpush.bf16.msra.mxu0 %v8455
      %8477 = vmatpush.bf16.msra.mxu0 %v8454
      %8478 = vmatmul.bf16.gmra.mxu0 %v8380
      %v8479 = vpop.f32.mrf.mxu0
      %v8480 = vadd.f32 0.0, %v8479
      %v8481 = vpop.f32.mrf.mxu0
      %v8482 = vadd.f32 0.0, %v8481
      %8483 = vmatmul.bf16.gmra.mxu0 %v8384
      %v8484 = vpop.f32.mrf.mxu0
      %v8485 = vadd.f32 0.0, %v8484
      %v8486 = vpop.f32.mrf.mxu0
      %v8487 = vadd.f32 0.0, %v8486
      %8488 = vmatmul.bf16.gmra.mxu0 %v8388
      %v8489 = vpop.f32.mrf.mxu0
      %v8490 = vadd.f32 0.0, %v8489
      %v8491 = vpop.f32.mrf.mxu0
      %v8492 = vadd.f32 0.0, %v8491
      %8493 = vmatmul.bf16.gmra.mxu0 %v8392
      %v8494 = vpop.f32.mrf.mxu0
      %v8495 = vadd.f32 0.0, %v8494
      %v8496 = vpop.f32.mrf.mxu0
      %v8497 = vadd.f32 0.0, %v8496
      %8498 = vmatmul.bf16.gmra.mxu0 %v8396
      %v8499 = vpop.f32.mrf.mxu0
      %v8500 = vadd.f32 0.0, %v8499
      %v8501 = vpop.f32.mrf.mxu0
      %v8502 = vadd.f32 0.0, %v8501
      %8503 = vmatmul.bf16.gmra.mxu0 %v8400
      %v8504 = vpop.f32.mrf.mxu0
      %v8505 = vadd.f32 0.0, %v8504
      %v8506 = vpop.f32.mrf.mxu0
      %v8507 = vadd.f32 0.0, %v8506
      %8508 = vmatmul.bf16.gmra.mxu0 %v8404
      %v8509 = vpop.f32.mrf.mxu0
      %v8510 = vadd.f32 0.0, %v8509
      %v8511 = vpop.f32.mrf.mxu0
      %v8512 = vadd.f32 0.0, %v8511
      %8513 = vmatmul.bf16.gmra.mxu0 %v8413
      %v8514 = vpop.f32.mrf.mxu0
      %v8515 = vadd.f32 0.0, %v8514
      %v8516 = vpop.f32.mrf.mxu0
      %v8517 = vadd.f32 0.0, %v8516
      %8518 = vdwg.mxu0
      %v8519 = vadd.f32 %v8332, %v8480
      %v8520 = vadd.f32 %v8333, %v8482
      %v8521 = vadd.f32 %v8334, %v8485
      %v8522 = vadd.f32 %v8335, %v8487
      %v8523 = vadd.f32 %v8336, %v8490
      %v8524 = vadd.f32 %v8337, %v8492
      %v8525 = vadd.f32 %v8338, %v8495
      %v8526 = vadd.f32 %v8339, %v8497
      %v8527 = vadd.f32 %v8340, %v8500
      %v8528 = vadd.f32 %v8341, %v8502
      %v8529 = vadd.f32 %v8342, %v8505
      %v8530 = vadd.f32 %v8343, %v8507
      %v8531 = vadd.f32 %v8344, %v8510
      %v8532 = vadd.f32 %v8345, %v8512
      %v8533 = vadd.f32 %v8346, %v8515
      %v8534 = vadd.f32 %v8347, %v8517
      %8535 = vst [vmem:[%s305] sm:$0xff] %v8519
      %8536 = vst [vmem:[%s305 + $0x8] sm:$0xff] %v8520
      %8537 = vst [vmem:[%s305 + $0x10] sm:$0xff] %v8521
      %8538 = vst [vmem:[%s305 + $0x18] sm:$0xff] %v8522
      %8539 = vst [vmem:[%s305 + $0x20] sm:$0xff] %v8523
      %8540 = vst [vmem:[%s305 + $0x28] sm:$0xff] %v8524
      %8541 = vst [vmem:[%s305 + $0x30] sm:$0xff] %v8525
      %8542 = vst [vmem:[%s305 + $0x38] sm:$0xff] %v8526
      %8543 = vst [vmem:[%s305 + $0x40] sm:$0xff] %v8527
      %8544 = vst [vmem:[%s305 + $0x48] sm:$0xff] %v8528
      %8545 = vst [vmem:[%s305 + $0x50] sm:$0xff] %v8529
      %8546 = vst [vmem:[%s305 + $0x58] sm:$0xff] %v8530
      %8547 = vst [vmem:[%s305 + $0x60] sm:$0xff] %v8531
      %8548 = vst [vmem:[%s305 + $0x68] sm:$0xff] %v8532
      %8549 = vst [vmem:[%s305 + $0x70] sm:$0xff] %v8533
      %8550 = vst [vmem:[%s305 + $0x78] sm:$0xff] %v8534
      %v8551 = vld [vmem:[%s300 + $0x80] sm:$0xff]
      %v8552 = vld [vmem:[%s300 + $0x88] sm:$0xff]
      %v8553 = vld [vmem:[%s300 + $0x90] sm:$0xff]
      %v8554 = vld [vmem:[%s300 + $0x98] sm:$0xff]
      %v8555 = vld [vmem:[%s300 + $0xa0] sm:$0xff]
      %v8556 = vld [vmem:[%s300 + $0xa8] sm:$0xff]
      %v8557 = vld [vmem:[%s300 + $0xb0] sm:$0xff]
      %v8558 = vld [vmem:[%s300 + $0xb8] sm:$0xff]
      %v8559 = vld [vmem:[%s300 + $0xc0] sm:$0xff]
      %v8560 = vld [vmem:[%s300 + $0xc8] sm:$0xff]
      %v8561 = vld [vmem:[%s300 + $0xd0] sm:$0xff]
      %v8562 = vld [vmem:[%s300 + $0xd8] sm:$0xff]
      %v8563 = vld [vmem:[%s300 + $0xe0] sm:$0xff]
      %v8564 = vld [vmem:[%s300 + $0xe8] sm:$0xff]
      %v8565 = vld [vmem:[%s300 + $0xf0] sm:$0xff]
      %v8566 = vld [vmem:[%s300 + $0xf8] sm:$0xff]
      %v8567 = vld [vmem:[#allocation3 + $0x40] sm:$0xc]
      %v8568 = vld [vmem:[#allocation3 + $0x44] sm:$0xf]
      %v8569 = vld [vmem:[#allocation3 + $0x48] sm:$0xf]
      %v8570 = vld [vmem:[#allocation3 + $0x4c] sm:$0xf]
      %v8571 = vld [vmem:[#allocation3 + $0x50] sm:$0xf]
      %v8572 = vld [vmem:[#allocation3 + $0x54] sm:$0xf]
      %v8573 = vld [vmem:[#allocation3 + $0x58] sm:$0xf]
      %v8574 = vld [vmem:[#allocation3 + $0x5c] sm:$0xf]
      %v8575 = vld [vmem:[#allocation3 + $0x60] sm:$0xf]
      %v8576 = vld [vmem:[#allocation3 + $0x64] sm:$0xf]
      %v8577 = vld [vmem:[#allocation3 + $0x68] sm:$0xf]
      %v8578 = vld [vmem:[#allocation3 + $0x6c] sm:$0xf]
      %v8579 = vld [vmem:[#allocation3 + $0x70] sm:$0xf]
      %v8580 = vld [vmem:[#allocation3 + $0x74] sm:$0xf]
      %v8581 = vld [vmem:[#allocation3 + $0x78] sm:$0xf]
      %v8582 = vld [vmem:[#allocation3 + $0x7c] sm:$0xf]
      %v8583 = vld [vmem:[#allocation3 + $0x80] sm:$0x7]
      %v8584 = vld [vmem:[%s2] sm:$0xf]
      %v8585 = vld [vmem:[%s2 + $0x4] sm:$0xf]
      %v8586 = vld [vmem:[%s2 + $0x8] sm:$0xf]
      %v8587 = vld [vmem:[%s2 + $0xc] sm:$0xf]
      %v8588 = vld [vmem:[%s2 + $0x10] sm:$0xf]
      %v8589 = vld [vmem:[%s2 + $0x14] sm:$0xf]
      %v8590 = vld [vmem:[%s2 + $0x18] sm:$0xf]
      %v8591 = vld [vmem:[%s2 + $0x1c] sm:$0xf]
      %v8592 = vld [vmem:[%s2 + $0x20] sm:$0xf]
      %v8593 = vld [vmem:[%s2 + $0x24] sm:$0xf]
      %v8594 = vld [vmem:[%s2 + $0x28] sm:$0xf]
      %v8595 = vld [vmem:[%s2 + $0x2c] sm:$0xf]
      %v8596 = vld [vmem:[%s2 + $0x30] sm:$0xf]
      %v8597 = vld [vmem:[%s2 + $0x34] sm:$0xf]
      %v8598 = vld [vmem:[%s2 + $0x38] sm:$0xf]
      %v8599 = vld [vmem:[%s2 + $0x3c] sm:$0xf]
      %v8617 = vunpack.c.l.b16 %v8567
      %v8618 = vunpack.c.l.b16 %v8568
      %v8619 = vunpack.c.l.b16 %v8569
      %v8620 = vunpack.c.l.b16 %v8570
      %v8621 = vunpack.c.l.b16 %v8571
      %v8622 = vunpack.c.l.b16 %v8572
      %v8623 = vunpack.c.l.b16 %v8573
      %v8624 = vunpack.c.l.b16 %v8574
      %v8625 = vunpack.c.l.b16 %v8575
      %v8626 = vunpack.c.l.b16 %v8576
      %v8627 = vunpack.c.l.b16 %v8577
      %v8628 = vunpack.c.l.b16 %v8578
      %v8629 = vunpack.c.l.b16 %v8579
      %v8630 = vunpack.c.l.b16 %v8580
      %v8631 = vunpack.c.l.b16 %v8581
      %v8632 = vunpack.c.l.b16 %v8582
      %v8633 = vunpack.c.l.b16 %v8583
      %v8634 = vpack.c.b16 %v8618, %v8617
      %v8635 = vpack.c.b16 %v8620, %v8619
      %v8636 = vpack.c.b16 %v8622, %v8621
      %v8637 = vpack.c.b16 %v8624, %v8623
      %v8638 = vpack.c.b16 %v8626, %v8625
      %v8639 = vpack.c.b16 %v8628, %v8627
      %v8640 = vpack.c.b16 %v8630, %v8629
      %v8641 = vpack.c.b16 %v8632, %v8631
      %v8642 = vpack.c.b16 %v8633, %v8633
      %v8644 = vshrl.u32 %v8634, 16
      %v8646 = vrot.slane %v8644, 2
      %v8647 = vshll.u32 %v8634, 16
      %v8649 = vrot.slane %v8647, 3
      %v8650 = vor.u32 %v8646, %v8649
      %v8652 = vshrl.u32 %v8635, 16
      %v8654 = vrot.slane %v8652, 2
      %v8655 = vshll.u32 %v8635, 16
      %v8657 = vrot.slane %v8655, 3
      %v8658 = vor.u32 %v8654, %v8657
      %v8659 = vsel %vm1123, %v8650, %v8658
      %v8661 = vshrl.u32 %v8636, 16
      %v8663 = vrot.slane %v8661, 2
      %v8664 = vshll.u32 %v8636, 16
      %v8666 = vrot.slane %v8664, 3
      %v8667 = vor.u32 %v8663, %v8666
      %v8668 = vsel %vm1123, %v8658, %v8667
      %v8670 = vshrl.u32 %v8637, 16
      %v8672 = vrot.slane %v8670, 2
      %v8673 = vshll.u32 %v8637, 16
      %v8675 = vrot.slane %v8673, 3
      %v8676 = vor.u32 %v8672, %v8675
      %v8677 = vsel %vm1123, %v8667, %v8676
      %v8679 = vshrl.u32 %v8638, 16
      %v8681 = vrot.slane %v8679, 2
      %v8682 = vshll.u32 %v8638, 16
      %v8684 = vrot.slane %v8682, 3
      %v8685 = vor.u32 %v8681, %v8684
      %v8686 = vsel %vm1123, %v8676, %v8685
      %v8688 = vshrl.u32 %v8639, 16
      %v8690 = vrot.slane %v8688, 2
      %v8691 = vshll.u32 %v8639, 16
      %v8693 = vrot.slane %v8691, 3
      %v8694 = vor.u32 %v8690, %v8693
      %v8695 = vsel %vm1123, %v8685, %v8694
      %v8697 = vshrl.u32 %v8640, 16
      %v8699 = vrot.slane %v8697, 2
      %v8700 = vshll.u32 %v8640, 16
      %v8702 = vrot.slane %v8700, 3
      %v8703 = vor.u32 %v8699, %v8702
      %v8704 = vsel %vm1123, %v8694, %v8703
      %v8706 = vshrl.u32 %v8641, 16
      %v8708 = vrot.slane %v8706, 2
      %v8709 = vshll.u32 %v8641, 16
      %v8711 = vrot.slane %v8709, 3
      %v8712 = vor.u32 %v8708, %v8711
      %v8713 = vsel %vm1123, %v8703, %v8712
      %v8715 = vshrl.u32 %v8642, 16
      %v8717 = vrot.slane %v8715, 2
      %v8718 = vshll.u32 %v8642, 16
      %v8720 = vrot.slane %v8718, 3
      %v8721 = vor.u32 %v8717, %v8720
      %v8722 = vsel %vm1123, %v8712, %v8721
      %v8747 = vunpack.c.l.b16 %v8584
      %v8748 = vunpack.c.l.b16 %v8585
      %v8749 = vunpack.c.l.b16 %v8586
      %v8750 = vunpack.c.l.b16 %v8587
      %v8751 = vunpack.c.l.b16 %v8588
      %v8752 = vunpack.c.l.b16 %v8589
      %v8753 = vunpack.c.l.b16 %v8590
      %v8754 = vunpack.c.l.b16 %v8591
      %v8755 = vunpack.c.l.b16 %v8592
      %v8756 = vunpack.c.l.b16 %v8593
      %v8757 = vunpack.c.l.b16 %v8594
      %v8758 = vunpack.c.l.b16 %v8595
      %v8759 = vunpack.c.l.b16 %v8596
      %v8760 = vunpack.c.l.b16 %v8597
      %v8761 = vunpack.c.l.b16 %v8598
      %v8762 = vunpack.c.l.b16 %v8599
      %v8763 = vpack.c.b16 %v8748, %v8747
      %v8764 = vpack.c.b16 %v8750, %v8749
      %v8765 = vpack.c.b16 %v8752, %v8751
      %v8766 = vpack.c.b16 %v8754, %v8753
      %v8767 = vpack.c.b16 %v8756, %v8755
      %v8768 = vpack.c.b16 %v8758, %v8757
      %v8769 = vpack.c.b16 %v8760, %v8759
      %v8770 = vpack.c.b16 %v8762, %v8761
      %8779 = vmatpush.bf16.msra.mxu0 %v8770
      %8780 = vmatpush.bf16.msra.mxu0 %v8769
      %8781 = vmatpush.bf16.msra.mxu0 %v8768
      %8782 = vmatpush.bf16.msra.mxu0 %v8767
      %8783 = vmatpush.bf16.msra.mxu0 %v8766
      %8784 = vmatpush.bf16.msra.mxu0 %v8765
      %8785 = vmatpush.bf16.msra.mxu0 %v8764
      %8786 = vmatpush.bf16.msra.mxu0 %v8763
      %8787 = vmatmul.bf16.gmra.mxu0 %v8659
      %v8788 = vpop.f32.mrf.mxu0
      %v8789 = vadd.f32 0.0, %v8788
      %v8790 = vpop.f32.mrf.mxu0
      %v8791 = vadd.f32 0.0, %v8790
      %8792 = vmatmul.bf16.gmra.mxu0 %v8668
      %v8793 = vpop.f32.mrf.mxu0
      %v8794 = vadd.f32 0.0, %v8793
      %v8795 = vpop.f32.mrf.mxu0
      %v8796 = vadd.f32 0.0, %v8795
      %8797 = vmatmul.bf16.gmra.mxu0 %v8677
      %v8798 = vpop.f32.mrf.mxu0
      %v8799 = vadd.f32 0.0, %v8798
      %v8800 = vpop.f32.mrf.mxu0
      %v8801 = vadd.f32 0.0, %v8800
      %8802 = vmatmul.bf16.gmra.mxu0 %v8686
      %v8803 = vpop.f32.mrf.mxu0
      %v8804 = vadd.f32 0.0, %v8803
      %v8805 = vpop.f32.mrf.mxu0
      %v8806 = vadd.f32 0.0, %v8805
      %8807 = vmatmul.bf16.gmra.mxu0 %v8695
      %v8808 = vpop.f32.mrf.mxu0
      %v8809 = vadd.f32 0.0, %v8808
      %v8810 = vpop.f32.mrf.mxu0
      %v8811 = vadd.f32 0.0, %v8810
      %8812 = vmatmul.bf16.gmra.mxu0 %v8704
      %v8813 = vpop.f32.mrf.mxu0
      %v8814 = vadd.f32 0.0, %v8813
      %v8815 = vpop.f32.mrf.mxu0
      %v8816 = vadd.f32 0.0, %v8815
      %8817 = vmatmul.bf16.gmra.mxu0 %v8713
      %v8818 = vpop.f32.mrf.mxu0
      %v8819 = vadd.f32 0.0, %v8818
      %v8820 = vpop.f32.mrf.mxu0
      %v8821 = vadd.f32 0.0, %v8820
      %8822 = vmatmul.bf16.gmra.mxu0 %v8722
      %v8823 = vpop.f32.mrf.mxu0
      %v8824 = vadd.f32 0.0, %v8823
      %v8825 = vpop.f32.mrf.mxu0
      %v8826 = vadd.f32 0.0, %v8825
      %8827 = vdwg.mxu0
      %v8828 = vadd.f32 %v8551, %v8789
      %v8829 = vadd.f32 %v8552, %v8791
      %v8830 = vadd.f32 %v8553, %v8794
      %v8831 = vadd.f32 %v8554, %v8796
      %v8832 = vadd.f32 %v8555, %v8799
      %v8833 = vadd.f32 %v8556, %v8801
      %v8834 = vadd.f32 %v8557, %v8804
      %v8835 = vadd.f32 %v8558, %v8806
      %v8836 = vadd.f32 %v8559, %v8809
      %v8837 = vadd.f32 %v8560, %v8811
      %v8838 = vadd.f32 %v8561, %v8814
      %v8839 = vadd.f32 %v8562, %v8816
      %v8840 = vadd.f32 %v8563, %v8819
      %v8841 = vadd.f32 %v8564, %v8821
      %v8842 = vadd.f32 %v8565, %v8824
      %v8843 = vadd.f32 %v8566, %v8826
      %v8844 = vld [vmem:[#allocation3 + $0x40] sm:$0x8]
      %v8845 = vld [vmem:[%s6888] sm:$0xf]
      %v8846 = vld [vmem:[%s6888 + $0x4] sm:$0xf]
      %v8847 = vld [vmem:[%s6888 + $0x8] sm:$0xf]
      %v8848 = vld [vmem:[%s6888 + $0xc] sm:$0xf]
      %v8849 = vld [vmem:[%s6888 + $0x10] sm:$0xf]
      %v8850 = vld [vmem:[%s6888 + $0x14] sm:$0xf]
      %v8851 = vld [vmem:[%s6888 + $0x18] sm:$0xf]
      %v8852 = vld [vmem:[%s6888 + $0x1c] sm:$0xf]
      %v8853 = vld [vmem:[%s6888 + $0x20] sm:$0xf]
      %v8854 = vld [vmem:[%s6888 + $0x24] sm:$0xf]
      %v8855 = vld [vmem:[%s6888 + $0x28] sm:$0xf]
      %v8856 = vld [vmem:[%s6888 + $0x2c] sm:$0xf]
      %v8857 = vld [vmem:[%s6888 + $0x30] sm:$0xf]
      %v8858 = vld [vmem:[%s6888 + $0x34] sm:$0xf]
      %v8859 = vld [vmem:[%s6888 + $0x38] sm:$0xf]
      %v8860 = vld [vmem:[%s6888 + $0x3c] sm:$0xf]
      %v8862 = vunpack.c.l.b16 %v8844
      %v8863 = vpack.c.b16 %v8618, %v8862
      %v8864 = vrot.slane %v8863, 3
      %v8865 = vrot.slane %v8635, 3
      %v8866 = vsel %vm997, %v8864, %v8865
      %v8867 = vrot.slane %v8636, 3
      %v8868 = vsel %vm997, %v8865, %v8867
      %v8869 = vrot.slane %v8637, 3
      %v8870 = vsel %vm997, %v8867, %v8869
      %v8871 = vrot.slane %v8638, 3
      %v8872 = vsel %vm997, %v8869, %v8871
      %v8873 = vrot.slane %v8639, 3
      %v8874 = vsel %vm997, %v8871, %v8873
      %v8875 = vrot.slane %v8640, 3
      %v8876 = vsel %vm997, %v8873, %v8875
      %v8877 = vrot.slane %v8641, 3
      %v8878 = vsel %vm997, %v8875, %v8877
      %v8879 = vrot.slane %v8642, 3
      %v8880 = vsel %vm997, %v8877, %v8879
      %v8905 = vunpack.c.l.b16 %v8845
      %v8906 = vunpack.c.l.b16 %v8846
      %v8907 = vunpack.c.l.b16 %v8847
      %v8908 = vunpack.c.l.b16 %v8848
      %v8909 = vunpack.c.l.b16 %v8849
      %v8910 = vunpack.c.l.b16 %v8850
      %v8911 = vunpack.c.l.b16 %v8851
      %v8912 = vunpack.c.l.b16 %v8852
      %v8913 = vunpack.c.l.b16 %v8853
      %v8914 = vunpack.c.l.b16 %v8854
      %v8915 = vunpack.c.l.b16 %v8855
      %v8916 = vunpack.c.l.b16 %v8856
      %v8917 = vunpack.c.l.b16 %v8857
      %v8918 = vunpack.c.l.b16 %v8858
      %v8919 = vunpack.c.l.b16 %v8859
      %v8920 = vunpack.c.l.b16 %v8860
      %v8921 = vpack.c.b16 %v8906, %v8905
      %v8922 = vpack.c.b16 %v8908, %v8907
      %v8923 = vpack.c.b16 %v8910, %v8909
      %v8924 = vpack.c.b16 %v8912, %v8911
      %v8925 = vpack.c.b16 %v8914, %v8913
      %v8926 = vpack.c.b16 %v8916, %v8915
      %v8927 = vpack.c.b16 %v8918, %v8917
      %v8928 = vpack.c.b16 %v8920, %v8919
      %8937 = vmatpush.bf16.msra.mxu0 %v8928
      %8938 = vmatpush.bf16.msra.mxu0 %v8927
      %8939 = vmatpush.bf16.msra.mxu0 %v8926
      %8940 = vmatpush.bf16.msra.mxu0 %v8925
      %8941 = vmatpush.bf16.msra.mxu0 %v8924
      %8942 = vmatpush.bf16.msra.mxu0 %v8923
      %8943 = vmatpush.bf16.msra.mxu0 %v8922
      %8944 = vmatpush.bf16.msra.mxu0 %v8921
      %8945 = vmatmul.bf16.gmra.mxu0 %v8866
      %v8946 = vpop.f32.mrf.mxu0
      %v8947 = vadd.f32 0.0, %v8946
      %v8948 = vpop.f32.mrf.mxu0
      %v8949 = vadd.f32 0.0, %v8948
      %8950 = vmatmul.bf16.gmra.mxu0 %v8868
      %v8951 = vpop.f32.mrf.mxu0
      %v8952 = vadd.f32 0.0, %v8951
      %v8953 = vpop.f32.mrf.mxu0
      %v8954 = vadd.f32 0.0, %v8953
      %8955 = vmatmul.bf16.gmra.mxu0 %v8870
      %v8956 = vpop.f32.mrf.mxu0
      %v8957 = vadd.f32 0.0, %v8956
      %v8958 = vpop.f32.mrf.mxu0
      %v8959 = vadd.f32 0.0, %v8958
      %8960 = vmatmul.bf16.gmra.mxu0 %v8872
      %v8961 = vpop.f32.mrf.mxu0
      %v8962 = vadd.f32 0.0, %v8961
      %v8963 = vpop.f32.mrf.mxu0
      %v8964 = vadd.f32 0.0, %v8963
      %8965 = vmatmul.bf16.gmra.mxu0 %v8874
      %v8966 = vpop.f32.mrf.mxu0
      %v8967 = vadd.f32 0.0, %v8966
      %v8968 = vpop.f32.mrf.mxu0
      %v8969 = vadd.f32 0.0, %v8968
      %8970 = vmatmul.bf16.gmra.mxu0 %v8876
      %v8971 = vpop.f32.mrf.mxu0
      %v8972 = vadd.f32 0.0, %v8971
      %v8973 = vpop.f32.mrf.mxu0
      %v8974 = vadd.f32 0.0, %v8973
      %8975 = vmatmul.bf16.gmra.mxu0 %v8878
      %v8976 = vpop.f32.mrf.mxu0
      %v8977 = vadd.f32 0.0, %v8976
      %v8978 = vpop.f32.mrf.mxu0
      %v8979 = vadd.f32 0.0, %v8978
      %8980 = vmatmul.bf16.gmra.mxu0 %v8880
      %v8981 = vpop.f32.mrf.mxu0
      %v8982 = vadd.f32 0.0, %v8981
      %v8983 = vpop.f32.mrf.mxu0
      %v8984 = vadd.f32 0.0, %v8983
      %8985 = vdwg.mxu0
      %v8986 = vadd.f32 %v8828, %v8947
      %v8987 = vadd.f32 %v8829, %v8949
      %v8988 = vadd.f32 %v8830, %v8952
      %v8989 = vadd.f32 %v8831, %v8954
      %v8990 = vadd.f32 %v8832, %v8957
      %v8991 = vadd.f32 %v8833, %v8959
      %v8992 = vadd.f32 %v8834, %v8962
      %v8993 = vadd.f32 %v8835, %v8964
      %v8994 = vadd.f32 %v8836, %v8967
      %v8995 = vadd.f32 %v8837, %v8969
      %v8996 = vadd.f32 %v8838, %v8972
      %v8997 = vadd.f32 %v8839, %v8974
      %v8998 = vadd.f32 %v8840, %v8977
      %v8999 = vadd.f32 %v8841, %v8979
      %v9000 = vadd.f32 %v8842, %v8982
      %v9001 = vadd.f32 %v8843, %v8984
      %v9002 = vld [vmem:[#allocation3 + $0x80] sm:$0xf]
      %v9003 = vld [vmem:[%s7047] sm:$0xf]
      %v9004 = vld [vmem:[%s7047 + $0x4] sm:$0xf]
      %v9005 = vld [vmem:[%s7047 + $0x8] sm:$0xf]
      %v9006 = vld [vmem:[%s7047 + $0xc] sm:$0xf]
      %v9007 = vld [vmem:[%s7047 + $0x10] sm:$0xf]
      %v9008 = vld [vmem:[%s7047 + $0x14] sm:$0xf]
      %v9009 = vld [vmem:[%s7047 + $0x18] sm:$0xf]
      %v9010 = vld [vmem:[%s7047 + $0x1c] sm:$0xf]
      %v9011 = vld [vmem:[%s7047 + $0x20] sm:$0xf]
      %v9012 = vld [vmem:[%s7047 + $0x24] sm:$0xf]
      %v9013 = vld [vmem:[%s7047 + $0x28] sm:$0xf]
      %v9014 = vld [vmem:[%s7047 + $0x2c] sm:$0xf]
      %v9015 = vld [vmem:[%s7047 + $0x30] sm:$0xf]
      %v9016 = vld [vmem:[%s7047 + $0x34] sm:$0xf]
      %v9017 = vld [vmem:[%s7047 + $0x38] sm:$0xf]
      %v9018 = vld [vmem:[%s7047 + $0x3c] sm:$0xf]
      %v9020 = vunpack.c.l.b16 %v9002
      %v9021 = vpack.c.b16 %v9020, %v9020
      %v9023 = vshrl.u32 %v8863, 16
      %v9025 = vrot.slane %v9023, 3
      %v9026 = vshll.u32 %v8863, 16
      %v9028 = vrot.slane %v9026, 4
      %v9029 = vor.u32 %v9025, %v9028
      %v9030 = vrot.slane %v8652, 3
      %v9031 = vrot.slane %v8655, 4
      %v9032 = vor.u32 %v9030, %v9031
      %v9033 = vsel %vm1330, %v9029, %v9032
      %v9034 = vrot.slane %v8661, 3
      %v9035 = vrot.slane %v8664, 4
      %v9036 = vor.u32 %v9034, %v9035
      %v9037 = vsel %vm1330, %v9032, %v9036
      %v9038 = vrot.slane %v8670, 3
      %v9039 = vrot.slane %v8673, 4
      %v9040 = vor.u32 %v9038, %v9039
      %v9041 = vsel %vm1330, %v9036, %v9040
      %v9042 = vrot.slane %v8679, 3
      %v9043 = vrot.slane %v8682, 4
      %v9044 = vor.u32 %v9042, %v9043
      %v9045 = vsel %vm1330, %v9040, %v9044
      %v9046 = vrot.slane %v8688, 3
      %v9047 = vrot.slane %v8691, 4
      %v9048 = vor.u32 %v9046, %v9047
      %v9049 = vsel %vm1330, %v9044, %v9048
      %v9050 = vrot.slane %v8697, 3
      %v9051 = vrot.slane %v8700, 4
      %v9052 = vor.u32 %v9050, %v9051
      %v9053 = vsel %vm1330, %v9048, %v9052
      %v9054 = vrot.slane %v8706, 3
      %v9055 = vrot.slane %v8709, 4
      %v9056 = vor.u32 %v9054, %v9055
      %v9057 = vsel %vm1330, %v9052, %v9056
      %v9059 = vshrl.u32 %v9021, 16
      %v9061 = vrot.slane %v9059, 3
      %v9062 = vshll.u32 %v9021, 16
      %v9064 = vrot.slane %v9062, 4
      %v9065 = vor.u32 %v9061, %v9064
      %v9066 = vsel %vm1330, %v9056, %v9065
      %v9091 = vunpack.c.l.b16 %v9003
      %v9092 = vunpack.c.l.b16 %v9004
      %v9093 = vunpack.c.l.b16 %v9005
      %v9094 = vunpack.c.l.b16 %v9006
      %v9095 = vunpack.c.l.b16 %v9007
      %v9096 = vunpack.c.l.b16 %v9008
      %v9097 = vunpack.c.l.b16 %v9009
      %v9098 = vunpack.c.l.b16 %v9010
      %v9099 = vunpack.c.l.b16 %v9011
      %v9100 = vunpack.c.l.b16 %v9012
      %v9101 = vunpack.c.l.b16 %v9013
      %v9102 = vunpack.c.l.b16 %v9014
      %v9103 = vunpack.c.l.b16 %v9015
      %v9104 = vunpack.c.l.b16 %v9016
      %v9105 = vunpack.c.l.b16 %v9017
      %v9106 = vunpack.c.l.b16 %v9018
      %v9107 = vpack.c.b16 %v9092, %v9091
      %v9108 = vpack.c.b16 %v9094, %v9093
      %v9109 = vpack.c.b16 %v9096, %v9095
      %v9110 = vpack.c.b16 %v9098, %v9097
      %v9111 = vpack.c.b16 %v9100, %v9099
      %v9112 = vpack.c.b16 %v9102, %v9101
      %v9113 = vpack.c.b16 %v9104, %v9103
      %v9114 = vpack.c.b16 %v9106, %v9105
      %9123 = vmatpush.bf16.msra.mxu0 %v9114
      %9124 = vmatpush.bf16.msra.mxu0 %v9113
      %9125 = vmatpush.bf16.msra.mxu0 %v9112
      %9126 = vmatpush.bf16.msra.mxu0 %v9111
      %9127 = vmatpush.bf16.msra.mxu0 %v9110
      %9128 = vmatpush.bf16.msra.mxu0 %v9109
      %9129 = vmatpush.bf16.msra.mxu0 %v9108
      %9130 = vmatpush.bf16.msra.mxu0 %v9107
      %9131 = vmatmul.bf16.gmra.mxu0 %v9033
      %v9132 = vpop.f32.mrf.mxu0
      %v9133 = vadd.f32 0.0, %v9132
      %v9134 = vpop.f32.mrf.mxu0
      %v9135 = vadd.f32 0.0, %v9134
      %9136 = vmatmul.bf16.gmra.mxu0 %v9037
      %v9137 = vpop.f32.mrf.mxu0
      %v9138 = vadd.f32 0.0, %v9137
      %v9139 = vpop.f32.mrf.mxu0
      %v9140 = vadd.f32 0.0, %v9139
      %9141 = vmatmul.bf16.gmra.mxu0 %v9041
      %v9142 = vpop.f32.mrf.mxu0
      %v9143 = vadd.f32 0.0, %v9142
      %v9144 = vpop.f32.mrf.mxu0
      %v9145 = vadd.f32 0.0, %v9144
      %9146 = vmatmul.bf16.gmra.mxu0 %v9045
      %v9147 = vpop.f32.mrf.mxu0
      %v9148 = vadd.f32 0.0, %v9147
      %v9149 = vpop.f32.mrf.mxu0
      %v9150 = vadd.f32 0.0, %v9149
      %9151 = vmatmul.bf16.gmra.mxu0 %v9049
      %v9152 = vpop.f32.mrf.mxu0
      %v9153 = vadd.f32 0.0, %v9152
      %v9154 = vpop.f32.mrf.mxu0
      %v9155 = vadd.f32 0.0, %v9154
      %9156 = vmatmul.bf16.gmra.mxu0 %v9053
      %v9157 = vpop.f32.mrf.mxu0
      %v9158 = vadd.f32 0.0, %v9157
      %v9159 = vpop.f32.mrf.mxu0
      %v9160 = vadd.f32 0.0, %v9159
      %9161 = vmatmul.bf16.gmra.mxu0 %v9057
      %v9162 = vpop.f32.mrf.mxu0
      %v9163 = vadd.f32 0.0, %v9162
      %v9164 = vpop.f32.mrf.mxu0
      %v9165 = vadd.f32 0.0, %v9164
      %9166 = vmatmul.bf16.gmra.mxu0 %v9066
      %v9167 = vpop.f32.mrf.mxu0
      %v9168 = vadd.f32 0.0, %v9167
      %v9169 = vpop.f32.mrf.mxu0
      %v9170 = vadd.f32 0.0, %v9169
      %9171 = vdwg.mxu0
      %v9172 = vadd.f32 %v8986, %v9133
      %v9173 = vadd.f32 %v8987, %v9135
      %v9174 = vadd.f32 %v8988, %v9138
      %v9175 = vadd.f32 %v8989, %v9140
      %v9176 = vadd.f32 %v8990, %v9143
      %v9177 = vadd.f32 %v8991, %v9145
      %v9178 = vadd.f32 %v8992, %v9148
      %v9179 = vadd.f32 %v8993, %v9150
      %v9180 = vadd.f32 %v8994, %v9153
      %v9181 = vadd.f32 %v8995, %v9155
      %v9182 = vadd.f32 %v8996, %v9158
      %v9183 = vadd.f32 %v8997, %v9160
      %v9184 = vadd.f32 %v8998, %v9163
      %v9185 = vadd.f32 %v8999, %v9165
      %v9186 = vadd.f32 %v9000, %v9168
      %v9187 = vadd.f32 %v9001, %v9170
      %v9188 = vld [vmem:[#allocation3 + $0x48] sm:$0x8]
      %v9189 = vld [vmem:[#allocation3 + $0x4c] sm:$0xf]
      %v9190 = vld [vmem:[#allocation3 + $0x50] sm:$0xf]
      %v9191 = vld [vmem:[#allocation3 + $0x54] sm:$0xf]
      %v9192 = vld [vmem:[#allocation3 + $0x58] sm:$0xf]
      %v9193 = vld [vmem:[#allocation3 + $0x5c] sm:$0xf]
      %v9194 = vld [vmem:[#allocation3 + $0x60] sm:$0xf]
      %v9195 = vld [vmem:[#allocation3 + $0x64] sm:$0xf]
      %v9196 = vld [vmem:[#allocation3 + $0x68] sm:$0xf]
      %v9197 = vld [vmem:[#allocation3 + $0x6c] sm:$0xf]
      %v9198 = vld [vmem:[#allocation3 + $0x70] sm:$0xf]
      %v9199 = vld [vmem:[#allocation3 + $0x74] sm:$0xf]
      %v9200 = vld [vmem:[#allocation3 + $0x78] sm:$0xf]
      %v9201 = vld [vmem:[#allocation3 + $0x7c] sm:$0xf]
      %v9202 = vld [vmem:[#allocation3 + $0x80] sm:$0xf]
      %v9203 = vld [vmem:[#allocation3 + $0x84] sm:$0xf]
      %v9204 = vld [vmem:[#allocation3 + $0x88] sm:$0xf]
      %v9205 = vld [vmem:[%s7250] sm:$0xf]
      %v9206 = vld [vmem:[%s7250 + $0x4] sm:$0xf]
      %v9207 = vld [vmem:[%s7250 + $0x8] sm:$0xf]
      %v9208 = vld [vmem:[%s7250 + $0xc] sm:$0xf]
      %v9209 = vld [vmem:[%s7250 + $0x10] sm:$0xf]
      %v9210 = vld [vmem:[%s7250 + $0x14] sm:$0xf]
      %v9211 = vld [vmem:[%s7250 + $0x18] sm:$0xf]
      %v9212 = vld [vmem:[%s7250 + $0x1c] sm:$0xf]
      %v9213 = vld [vmem:[%s7250 + $0x20] sm:$0xf]
      %v9214 = vld [vmem:[%s7250 + $0x24] sm:$0xf]
      %v9215 = vld [vmem:[%s7250 + $0x28] sm:$0xf]
      %v9216 = vld [vmem:[%s7250 + $0x2c] sm:$0xf]
      %v9217 = vld [vmem:[%s7250 + $0x30] sm:$0xf]
      %v9218 = vld [vmem:[%s7250 + $0x34] sm:$0xf]
      %v9219 = vld [vmem:[%s7250 + $0x38] sm:$0xf]
      %v9220 = vld [vmem:[%s7250 + $0x3c] sm:$0xf]
      %v9238 = vunpack.c.l.b16 %v9188
      %v9239 = vunpack.c.l.b16 %v9189
      %v9240 = vunpack.c.l.b16 %v9190
      %v9241 = vunpack.c.l.b16 %v9191
      %v9242 = vunpack.c.l.b16 %v9192
      %v9243 = vunpack.c.l.b16 %v9193
      %v9244 = vunpack.c.l.b16 %v9194
      %v9245 = vunpack.c.l.b16 %v9195
      %v9246 = vunpack.c.l.b16 %v9196
      %v9247 = vunpack.c.l.b16 %v9197
      %v9248 = vunpack.c.l.b16 %v9198
      %v9249 = vunpack.c.l.b16 %v9199
      %v9250 = vunpack.c.l.b16 %v9200
      %v9251 = vunpack.c.l.b16 %v9201
      %v9252 = vunpack.c.l.b16 %v9202
      %v9253 = vunpack.c.l.b16 %v9203
      %v9254 = vunpack.c.l.b16 %v9204
      %v9255 = vpack.c.b16 %v9239, %v9238
      %v9256 = vpack.c.b16 %v9241, %v9240
      %v9257 = vpack.c.b16 %v9243, %v9242
      %v9258 = vpack.c.b16 %v9245, %v9244
      %v9259 = vpack.c.b16 %v9247, %v9246
      %v9260 = vpack.c.b16 %v9249, %v9248
      %v9261 = vpack.c.b16 %v9251, %v9250
      %v9262 = vpack.c.b16 %v9253, %v9252
      %v9263 = vpack.c.b16 %v9254, %v9254
      %v9265 = vshrl.u32 %v9255, 16
      %v9267 = vrot.slane %v9265, 3
      %v9268 = vshll.u32 %v9255, 16
      %v9270 = vrot.slane %v9268, 4
      %v9271 = vor.u32 %v9267, %v9270
      %v9273 = vshrl.u32 %v9256, 16
      %v9275 = vrot.slane %v9273, 3
      %v9276 = vshll.u32 %v9256, 16
      %v9278 = vrot.slane %v9276, 4
      %v9279 = vor.u32 %v9275, %v9278
      %v9280 = vsel %vm1330, %v9271, %v9279
      %v9282 = vshrl.u32 %v9257, 16
      %v9284 = vrot.slane %v9282, 3
      %v9285 = vshll.u32 %v9257, 16
      %v9287 = vrot.slane %v9285, 4
      %v9288 = vor.u32 %v9284, %v9287
      %v9289 = vsel %vm1330, %v9279, %v9288
      %v9291 = vshrl.u32 %v9258, 16
      %v9293 = vrot.slane %v9291, 3
      %v9294 = vshll.u32 %v9258, 16
      %v9296 = vrot.slane %v9294, 4
      %v9297 = vor.u32 %v9293, %v9296
      %v9298 = vsel %vm1330, %v9288, %v9297
      %v9300 = vshrl.u32 %v9259, 16
      %v9302 = vrot.slane %v9300, 3
      %v9303 = vshll.u32 %v9259, 16
      %v9305 = vrot.slane %v9303, 4
      %v9306 = vor.u32 %v9302, %v9305
      %v9307 = vsel %vm1330, %v9297, %v9306
      %v9309 = vshrl.u32 %v9260, 16
      %v9311 = vrot.slane %v9309, 3
      %v9312 = vshll.u32 %v9260, 16
      %v9314 = vrot.slane %v9312, 4
      %v9315 = vor.u32 %v9311, %v9314
      %v9316 = vsel %vm1330, %v9306, %v9315
      %v9318 = vshrl.u32 %v9261, 16
      %v9320 = vrot.slane %v9318, 3
      %v9321 = vshll.u32 %v9261, 16
      %v9323 = vrot.slane %v9321, 4
      %v9324 = vor.u32 %v9320, %v9323
      %v9325 = vsel %vm1330, %v9315, %v9324
      %v9327 = vshrl.u32 %v9262, 16
      %v9329 = vrot.slane %v9327, 3
      %v9330 = vshll.u32 %v9262, 16
      %v9332 = vrot.slane %v9330, 4
      %v9333 = vor.u32 %v9329, %v9332
      %v9334 = vsel %vm1330, %v9324, %v9333
      %v9336 = vshrl.u32 %v9263, 16
      %v9338 = vrot.slane %v9336, 3
      %v9339 = vshll.u32 %v9263, 16
      %v9341 = vrot.slane %v9339, 4
      %v9342 = vor.u32 %v9338, %v9341
      %v9343 = vsel %vm1330, %v9333, %v9342
      %v9368 = vunpack.c.l.b16 %v9205
      %v9369 = vunpack.c.l.b16 %v9206
      %v9370 = vunpack.c.l.b16 %v9207
      %v9371 = vunpack.c.l.b16 %v9208
      %v9372 = vunpack.c.l.b16 %v9209
      %v9373 = vunpack.c.l.b16 %v9210
      %v9374 = vunpack.c.l.b16 %v9211
      %v9375 = vunpack.c.l.b16 %v9212
      %v9376 = vunpack.c.l.b16 %v9213
      %v9377 = vunpack.c.l.b16 %v9214
      %v9378 = vunpack.c.l.b16 %v9215
      %v9379 = vunpack.c.l.b16 %v9216
      %v9380 = vunpack.c.l.b16 %v9217
      %v9381 = vunpack.c.l.b16 %v9218
      %v9382 = vunpack.c.l.b16 %v9219
      %v9383 = vunpack.c.l.b16 %v9220
      %v9384 = vpack.c.b16 %v9369, %v9368
      %v9385 = vpack.c.b16 %v9371, %v9370
      %v9386 = vpack.c.b16 %v9373, %v9372
      %v9387 = vpack.c.b16 %v9375, %v9374
      %v9388 = vpack.c.b16 %v9377, %v9376
      %v9389 = vpack.c.b16 %v9379, %v9378
      %v9390 = vpack.c.b16 %v9381, %v9380
      %v9391 = vpack.c.b16 %v9383, %v9382
      %9400 = vmatpush.bf16.msra.mxu0 %v9391
      %9401 = vmatpush.bf16.msra.mxu0 %v9390
      %9402 = vmatpush.bf16.msra.mxu0 %v9389
      %9403 = vmatpush.bf16.msra.mxu0 %v9388
      %9404 = vmatpush.bf16.msra.mxu0 %v9387
      %9405 = vmatpush.bf16.msra.mxu0 %v9386
      %9406 = vmatpush.bf16.msra.mxu0 %v9385
      %9407 = vmatpush.bf16.msra.mxu0 %v9384
      %9408 = vmatmul.bf16.gmra.mxu0 %v9280
      %v9409 = vpop.f32.mrf.mxu0
      %v9410 = vadd.f32 0.0, %v9409
      %v9411 = vpop.f32.mrf.mxu0
      %v9412 = vadd.f32 0.0, %v9411
      %9413 = vmatmul.bf16.gmra.mxu0 %v9289
      %v9414 = vpop.f32.mrf.mxu0
      %v9415 = vadd.f32 0.0, %v9414
      %v9416 = vpop.f32.mrf.mxu0
      %v9417 = vadd.f32 0.0, %v9416
      %9418 = vmatmul.bf16.gmra.mxu0 %v9298
      %v9419 = vpop.f32.mrf.mxu0
      %v9420 = vadd.f32 0.0, %v9419
      %v9421 = vpop.f32.mrf.mxu0
      %v9422 = vadd.f32 0.0, %v9421
      %9423 = vmatmul.bf16.gmra.mxu0 %v9307
      %v9424 = vpop.f32.mrf.mxu0
      %v9425 = vadd.f32 0.0, %v9424
      %v9426 = vpop.f32.mrf.mxu0
      %v9427 = vadd.f32 0.0, %v9426
      %9428 = vmatmul.bf16.gmra.mxu0 %v9316
      %v9429 = vpop.f32.mrf.mxu0
      %v9430 = vadd.f32 0.0, %v9429
      %v9431 = vpop.f32.mrf.mxu0
      %v9432 = vadd.f32 0.0, %v9431
      %9433 = vmatmul.bf16.gmra.mxu0 %v9325
      %v9434 = vpop.f32.mrf.mxu0
      %v9435 = vadd.f32 0.0, %v9434
      %v9436 = vpop.f32.mrf.mxu0
      %v9437 = vadd.f32 0.0, %v9436
      %9438 = vmatmul.bf16.gmra.mxu0 %v9334
      %v9439 = vpop.f32.mrf.mxu0
      %v9440 = vadd.f32 0.0, %v9439
      %v9441 = vpop.f32.mrf.mxu0
      %v9442 = vadd.f32 0.0, %v9441
      %9443 = vmatmul.bf16.gmra.mxu0 %v9343
      %v9444 = vpop.f32.mrf.mxu0
      %v9445 = vadd.f32 0.0, %v9444
      %v9446 = vpop.f32.mrf.mxu0
      %v9447 = vadd.f32 0.0, %v9446
      %9448 = vdwg.mxu0
      %v9449 = vadd.f32 %v9172, %v9410
      %v9450 = vadd.f32 %v9173, %v9412
      %v9451 = vadd.f32 %v9174, %v9415
      %v9452 = vadd.f32 %v9175, %v9417
      %v9453 = vadd.f32 %v9176, %v9420
      %v9454 = vadd.f32 %v9177, %v9422
      %v9455 = vadd.f32 %v9178, %v9425
      %v9456 = vadd.f32 %v9179, %v9427
      %v9457 = vadd.f32 %v9180, %v9430
      %v9458 = vadd.f32 %v9181, %v9432
      %v9459 = vadd.f32 %v9182, %v9435
      %v9460 = vadd.f32 %v9183, %v9437
      %v9461 = vadd.f32 %v9184, %v9440
      %v9462 = vadd.f32 %v9185, %v9442
      %v9463 = vadd.f32 %v9186, %v9445
      %v9464 = vadd.f32 %v9187, %v9447
      %v9465 = vld [vmem:[%s7511] sm:$0xf]
      %v9466 = vld [vmem:[%s7511 + $0x4] sm:$0xf]
      %v9467 = vld [vmem:[%s7511 + $0x8] sm:$0xf]
      %v9468 = vld [vmem:[%s7511 + $0xc] sm:$0xf]
      %v9469 = vld [vmem:[%s7511 + $0x10] sm:$0xf]
      %v9470 = vld [vmem:[%s7511 + $0x14] sm:$0xf]
      %v9471 = vld [vmem:[%s7511 + $0x18] sm:$0xf]
      %v9472 = vld [vmem:[%s7511 + $0x1c] sm:$0xf]
      %v9473 = vld [vmem:[%s7511 + $0x20] sm:$0xf]
      %v9474 = vld [vmem:[%s7511 + $0x24] sm:$0xf]
      %v9475 = vld [vmem:[%s7511 + $0x28] sm:$0xf]
      %v9476 = vld [vmem:[%s7511 + $0x2c] sm:$0xf]
      %v9477 = vld [vmem:[%s7511 + $0x30] sm:$0xf]
      %v9478 = vld [vmem:[%s7511 + $0x34] sm:$0xf]
      %v9479 = vld [vmem:[%s7511 + $0x38] sm:$0xf]
      %v9480 = vld [vmem:[%s7511 + $0x3c] sm:$0xf]
      %v9481 = vpack.c.b16 %v9240, %v9239
      %v9482 = vpack.c.b16 %v9242, %v9241
      %v9483 = vpack.c.b16 %v9244, %v9243
      %v9484 = vpack.c.b16 %v9246, %v9245
      %v9485 = vpack.c.b16 %v9248, %v9247
      %v9486 = vpack.c.b16 %v9250, %v9249
      %v9487 = vpack.c.b16 %v9252, %v9251
      %v9488 = vpack.c.b16 %v9254, %v9253
      %v9513 = vunpack.c.l.b16 %v9465
      %v9514 = vunpack.c.l.b16 %v9466
      %v9515 = vunpack.c.l.b16 %v9467
      %v9516 = vunpack.c.l.b16 %v9468
      %v9517 = vunpack.c.l.b16 %v9469
      %v9518 = vunpack.c.l.b16 %v9470
      %v9519 = vunpack.c.l.b16 %v9471
      %v9520 = vunpack.c.l.b16 %v9472
      %v9521 = vunpack.c.l.b16 %v9473
      %v9522 = vunpack.c.l.b16 %v9474
      %v9523 = vunpack.c.l.b16 %v9475
      %v9524 = vunpack.c.l.b16 %v9476
      %v9525 = vunpack.c.l.b16 %v9477
      %v9526 = vunpack.c.l.b16 %v9478
      %v9527 = vunpack.c.l.b16 %v9479
      %v9528 = vunpack.c.l.b16 %v9480
      %v9529 = vpack.c.b16 %v9514, %v9513
      %v9530 = vpack.c.b16 %v9516, %v9515
      %v9531 = vpack.c.b16 %v9518, %v9517
      %v9532 = vpack.c.b16 %v9520, %v9519
      %v9533 = vpack.c.b16 %v9522, %v9521
      %v9534 = vpack.c.b16 %v9524, %v9523
      %v9535 = vpack.c.b16 %v9526, %v9525
      %v9536 = vpack.c.b16 %v9528, %v9527
      %9545 = vmatpush.bf16.msra.mxu0 %v9536
      %9546 = vmatpush.bf16.msra.mxu0 %v9535
      %9547 = vmatpush.bf16.msra.mxu0 %v9534
      %9548 = vmatpush.bf16.msra.mxu0 %v9533
      %9549 = vmatpush.bf16.msra.mxu0 %v9532
      %9550 = vmatpush.bf16.msra.mxu0 %v9531
      %9551 = vmatpush.bf16.msra.mxu0 %v9530
      %9552 = vmatpush.bf16.msra.mxu0 %v9529
      %9553 = vmatmul.bf16.gmra.mxu0 %v9481
      %v9554 = vpop.f32.mrf.mxu0
      %v9555 = vadd.f32 0.0, %v9554
      %v9556 = vpop.f32.mrf.mxu0
      %v9557 = vadd.f32 0.0, %v9556
      %9558 = vmatmul.bf16.gmra.mxu0 %v9482
      %v9559 = vpop.f32.mrf.mxu0
      %v9560 = vadd.f32 0.0, %v9559
      %v9561 = vpop.f32.mrf.mxu0
      %v9562 = vadd.f32 0.0, %v9561
      %9563 = vmatmul.bf16.gmra.mxu0 %v9483
      %v9564 = vpop.f32.mrf.mxu0
      %v9565 = vadd.f32 0.0, %v9564
      %v9566 = vpop.f32.mrf.mxu0
      %v9567 = vadd.f32 0.0, %v9566
      %9568 = vmatmul.bf16.gmra.mxu0 %v9484
      %v9569 = vpop.f32.mrf.mxu0
      %v9570 = vadd.f32 0.0, %v9569
      %v9571 = vpop.f32.mrf.mxu0
      %v9572 = vadd.f32 0.0, %v9571
      %9573 = vmatmul.bf16.gmra.mxu0 %v9485
      %v9574 = vpop.f32.mrf.mxu0
      %v9575 = vadd.f32 0.0, %v9574
      %v9576 = vpop.f32.mrf.mxu0
      %v9577 = vadd.f32 0.0, %v9576
      %9578 = vmatmul.bf16.gmra.mxu0 %v9486
      %v9579 = vpop.f32.mrf.mxu0
      %v9580 = vadd.f32 0.0, %v9579
      %v9581 = vpop.f32.mrf.mxu0
      %v9582 = vadd.f32 0.0, %v9581
      %9583 = vmatmul.bf16.gmra.mxu0 %v9487
      %v9584 = vpop.f32.mrf.mxu0
      %v9585 = vadd.f32 0.0, %v9584
      %v9586 = vpop.f32.mrf.mxu0
      %v9587 = vadd.f32 0.0, %v9586
      %9588 = vmatmul.bf16.gmra.mxu0 %v9488
      %v9589 = vpop.f32.mrf.mxu0
      %v9590 = vadd.f32 0.0, %v9589
      %v9591 = vpop.f32.mrf.mxu0
      %v9592 = vadd.f32 0.0, %v9591
      %9593 = vdwg.mxu0
      %v9594 = vadd.f32 %v9449, %v9555
      %v9595 = vadd.f32 %v9450, %v9557
      %v9596 = vadd.f32 %v9451, %v9560
      %v9597 = vadd.f32 %v9452, %v9562
      %v9598 = vadd.f32 %v9453, %v9565
      %v9599 = vadd.f32 %v9454, %v9567
      %v9600 = vadd.f32 %v9455, %v9570
      %v9601 = vadd.f32 %v9456, %v9572
      %v9602 = vadd.f32 %v9457, %v9575
      %v9603 = vadd.f32 %v9458, %v9577
      %v9604 = vadd.f32 %v9459, %v9580
      %v9605 = vadd.f32 %v9460, %v9582
      %v9606 = vadd.f32 %v9461, %v9585
      %v9607 = vadd.f32 %v9462, %v9587
      %v9608 = vadd.f32 %v9463, %v9590
      %v9609 = vadd.f32 %v9464, %v9592
      %v9610 = vld [vmem:[#allocation3 + $0x4c] sm:$0xf]
      %v9611 = vld [vmem:[#allocation3 + $0x50] sm:$0xf]
      %v9612 = vld [vmem:[#allocation3 + $0x54] sm:$0xf]
      %v9613 = vld [vmem:[#allocation3 + $0x58] sm:$0xf]
      %v9614 = vld [vmem:[#allocation3 + $0x5c] sm:$0xf]
      %v9615 = vld [vmem:[#allocation3 + $0x60] sm:$0xf]
      %v9616 = vld [vmem:[#allocation3 + $0x64] sm:$0xf]
      %v9617 = vld [vmem:[#allocation3 + $0x68] sm:$0xf]
      %v9618 = vld [vmem:[#allocation3 + $0x6c] sm:$0xf]
      %v9619 = vld [vmem:[#allocation3 + $0x70] sm:$0xf]
      %v9620 = vld [vmem:[#allocation3 + $0x74] sm:$0xf]
      %v9621 = vld [vmem:[#allocation3 + $0x78] sm:$0xf]
      %v9622 = vld [vmem:[#allocation3 + $0x7c] sm:$0xf]
      %v9623 = vld [vmem:[#allocation3 + $0x80] sm:$0xf]
      %v9624 = vld [vmem:[#allocation3 + $0x84] sm:$0xf]
      %v9625 = vld [vmem:[#allocation3 + $0x88] sm:$0xf]
      %v9626 = vld [vmem:[#allocation3 + $0x8c] sm:$0x1]
      %v9627 = vld [vmem:[%s7674] sm:$0xf]
      %v9628 = vld [vmem:[%s7674 + $0x4] sm:$0xf]
      %v9629 = vld [vmem:[%s7674 + $0x8] sm:$0xf]
      %v9630 = vld [vmem:[%s7674 + $0xc] sm:$0xf]
      %v9631 = vld [vmem:[%s7674 + $0x10] sm:$0xf]
      %v9632 = vld [vmem:[%s7674 + $0x14] sm:$0xf]
      %v9633 = vld [vmem:[%s7674 + $0x18] sm:$0xf]
      %v9634 = vld [vmem:[%s7674 + $0x1c] sm:$0xf]
      %v9635 = vld [vmem:[%s7674 + $0x20] sm:$0xf]
      %v9636 = vld [vmem:[%s7674 + $0x24] sm:$0xf]
      %v9637 = vld [vmem:[%s7674 + $0x28] sm:$0xf]
      %v9638 = vld [vmem:[%s7674 + $0x2c] sm:$0xf]
      %v9639 = vld [vmem:[%s7674 + $0x30] sm:$0xf]
      %v9640 = vld [vmem:[%s7674 + $0x34] sm:$0xf]
      %v9641 = vld [vmem:[%s7674 + $0x38] sm:$0xf]
      %v9642 = vld [vmem:[%s7674 + $0x3c] sm:$0xf]
      %v9660 = vunpack.c.l.b16 %v9610
      %v9661 = vunpack.c.l.b16 %v9611
      %v9662 = vunpack.c.l.b16 %v9612
      %v9663 = vunpack.c.l.b16 %v9613
      %v9664 = vunpack.c.l.b16 %v9614
      %v9665 = vunpack.c.l.b16 %v9615
      %v9666 = vunpack.c.l.b16 %v9616
      %v9667 = vunpack.c.l.b16 %v9617
      %v9668 = vunpack.c.l.b16 %v9618
      %v9669 = vunpack.c.l.b16 %v9619
      %v9670 = vunpack.c.l.b16 %v9620
      %v9671 = vunpack.c.l.b16 %v9621
      %v9672 = vunpack.c.l.b16 %v9622
      %v9673 = vunpack.c.l.b16 %v9623
      %v9674 = vunpack.c.l.b16 %v9624
      %v9675 = vunpack.c.l.b16 %v9625
      %v9676 = vunpack.c.l.b16 %v9626
      %v9677 = vpack.c.b16 %v9661, %v9660
      %v9678 = vpack.c.b16 %v9663, %v9662
      %v9679 = vpack.c.b16 %v9665, %v9664
      %v9680 = vpack.c.b16 %v9667, %v9666
      %v9681 = vpack.c.b16 %v9669, %v9668
      %v9682 = vpack.c.b16 %v9671, %v9670
      %v9683 = vpack.c.b16 %v9673, %v9672
      %v9684 = vpack.c.b16 %v9675, %v9674
      %v9685 = vpack.c.b16 %v9676, %v9676
      %v9687 = vshrl.u32 %v9677, 16
      %v9689 = vshll.u32 %v9677, 16
      %v9691 = vrot.slane %v9689, 1
      %v9692 = vor.u32 %v9687, %v9691
      %v9694 = vshll.u32 %v9678, 16
      %v9696 = vrot.slane %v9694, 1
      %v9697 = vsel %vm1998, %v9692, %v9696
      %v9698 = vshrl.u32 %v9678, 16
      %v9700 = vor.u32 %v9698, %v9696
      %v9702 = vshll.u32 %v9679, 16
      %v9704 = vrot.slane %v9702, 1
      %v9705 = vsel %vm1998, %v9700, %v9704
      %v9706 = vshrl.u32 %v9679, 16
      %v9708 = vor.u32 %v9706, %v9704
      %v9710 = vshll.u32 %v9680, 16
      %v9712 = vrot.slane %v9710, 1
      %v9713 = vsel %vm1998, %v9708, %v9712
      %v9714 = vshrl.u32 %v9680, 16
      %v9716 = vor.u32 %v9714, %v9712
      %v9718 = vshll.u32 %v9681, 16
      %v9720 = vrot.slane %v9718, 1
      %v9721 = vsel %vm1998, %v9716, %v9720
      %v9722 = vshrl.u32 %v9681, 16
      %v9724 = vor.u32 %v9722, %v9720
      %v9726 = vshll.u32 %v9682, 16
      %v9728 = vrot.slane %v9726, 1
      %v9729 = vsel %vm1998, %v9724, %v9728
      %v9730 = vshrl.u32 %v9682, 16
      %v9732 = vor.u32 %v9730, %v9728
      %v9734 = vshll.u32 %v9683, 16
      %v9736 = vrot.slane %v9734, 1
      %v9737 = vsel %vm1998, %v9732, %v9736
      %v9738 = vshrl.u32 %v9683, 16
      %v9740 = vor.u32 %v9738, %v9736
      %v9742 = vshll.u32 %v9684, 16
      %v9744 = vrot.slane %v9742, 1
      %v9745 = vsel %vm1998, %v9740, %v9744
      %v9746 = vshrl.u32 %v9684, 16
      %v9748 = vor.u32 %v9746, %v9744
      %v9750 = vshll.u32 %v9685, 16
      %v9752 = vrot.slane %v9750, 1
      %v9753 = vsel %vm1998, %v9748, %v9752
      %v9778 = vunpack.c.l.b16 %v9627
      %v9779 = vunpack.c.l.b16 %v9628
      %v9780 = vunpack.c.l.b16 %v9629
      %v9781 = vunpack.c.l.b16 %v9630
      %v9782 = vunpack.c.l.b16 %v9631
      %v9783 = vunpack.c.l.b16 %v9632
      %v9784 = vunpack.c.l.b16 %v9633
      %v9785 = vunpack.c.l.b16 %v9634
      %v9786 = vunpack.c.l.b16 %v9635
      %v9787 = vunpack.c.l.b16 %v9636
      %v9788 = vunpack.c.l.b16 %v9637
      %v9789 = vunpack.c.l.b16 %v9638
      %v9790 = vunpack.c.l.b16 %v9639
      %v9791 = vunpack.c.l.b16 %v9640
      %v9792 = vunpack.c.l.b16 %v9641
      %v9793 = vunpack.c.l.b16 %v9642
      %v9794 = vpack.c.b16 %v9779, %v9778
      %v9795 = vpack.c.b16 %v9781, %v9780
      %v9796 = vpack.c.b16 %v9783, %v9782
      %v9797 = vpack.c.b16 %v9785, %v9784
      %v9798 = vpack.c.b16 %v9787, %v9786
      %v9799 = vpack.c.b16 %v9789, %v9788
      %v9800 = vpack.c.b16 %v9791, %v9790
      %v9801 = vpack.c.b16 %v9793, %v9792
      %9810 = vmatpush.bf16.msra.mxu0 %v9801
      %9811 = vmatpush.bf16.msra.mxu0 %v9800
      %9812 = vmatpush.bf16.msra.mxu0 %v9799
      %9813 = vmatpush.bf16.msra.mxu0 %v9798
      %9814 = vmatpush.bf16.msra.mxu0 %v9797
      %9815 = vmatpush.bf16.msra.mxu0 %v9796
      %9816 = vmatpush.bf16.msra.mxu0 %v9795
      %9817 = vmatpush.bf16.msra.mxu0 %v9794
      %9818 = vmatmul.bf16.gmra.mxu0 %v9697
      %v9819 = vpop.f32.mrf.mxu0
      %v9820 = vadd.f32 0.0, %v9819
      %v9821 = vpop.f32.mrf.mxu0
      %v9822 = vadd.f32 0.0, %v9821
      %9823 = vmatmul.bf16.gmra.mxu0 %v9705
      %v9824 = vpop.f32.mrf.mxu0
      %v9825 = vadd.f32 0.0, %v9824
      %v9826 = vpop.f32.mrf.mxu0
      %v9827 = vadd.f32 0.0, %v9826
      %9828 = vmatmul.bf16.gmra.mxu0 %v9713
      %v9829 = vpop.f32.mrf.mxu0
      %v9830 = vadd.f32 0.0, %v9829
      %v9831 = vpop.f32.mrf.mxu0
      %v9832 = vadd.f32 0.0, %v9831
      %9833 = vmatmul.bf16.gmra.mxu0 %v9721
      %v9834 = vpop.f32.mrf.mxu0
      %v9835 = vadd.f32 0.0, %v9834
      %v9836 = vpop.f32.mrf.mxu0
      %v9837 = vadd.f32 0.0, %v9836
      %9838 = vmatmul.bf16.gmra.mxu0 %v9729
      %v9839 = vpop.f32.mrf.mxu0
      %v9840 = vadd.f32 0.0, %v9839
      %v9841 = vpop.f32.mrf.mxu0
      %v9842 = vadd.f32 0.0, %v9841
      %9843 = vmatmul.bf16.gmra.mxu0 %v9737
      %v9844 = vpop.f32.mrf.mxu0
      %v9845 = vadd.f32 0.0, %v9844
      %v9846 = vpop.f32.mrf.mxu0
      %v9847 = vadd.f32 0.0, %v9846
      %9848 = vmatmul.bf16.gmra.mxu0 %v9745
      %v9849 = vpop.f32.mrf.mxu0
      %v9850 = vadd.f32 0.0, %v9849
      %v9851 = vpop.f32.mrf.mxu0
      %v9852 = vadd.f32 0.0, %v9851
      %9853 = vmatmul.bf16.gmra.mxu0 %v9753
      %v9854 = vpop.f32.mrf.mxu0
      %v9855 = vadd.f32 0.0, %v9854
      %v9856 = vpop.f32.mrf.mxu0
      %v9857 = vadd.f32 0.0, %v9856
      %9858 = vdwg.mxu0
      %v9859 = vadd.f32 %v9594, %v9820
      %v9860 = vadd.f32 %v9595, %v9822
      %v9861 = vadd.f32 %v9596, %v9825
      %v9862 = vadd.f32 %v9597, %v9827
      %v9863 = vadd.f32 %v9598, %v9830
      %v9864 = vadd.f32 %v9599, %v9832
      %v9865 = vadd.f32 %v9600, %v9835
      %v9866 = vadd.f32 %v9601, %v9837
      %v9867 = vadd.f32 %v9602, %v9840
      %v9868 = vadd.f32 %v9603, %v9842
      %v9869 = vadd.f32 %v9604, %v9845
      %v9870 = vadd.f32 %v9605, %v9847
      %v9871 = vadd.f32 %v9606, %v9850
      %v9872 = vadd.f32 %v9607, %v9852
      %v9873 = vadd.f32 %v9608, %v9855
      %v9874 = vadd.f32 %v9609, %v9857
      %v9875 = vld [vmem:[#allocation3 + $0x54] sm:$0xf]
      %v9876 = vld [vmem:[#allocation3 + $0x58] sm:$0xf]
      %v9877 = vld [vmem:[#allocation3 + $0x5c] sm:$0xf]
      %v9878 = vld [vmem:[#allocation3 + $0x60] sm:$0xf]
      %v9879 = vld [vmem:[#allocation3 + $0x64] sm:$0xf]
      %v9880 = vld [vmem:[#allocation3 + $0x68] sm:$0xf]
      %v9881 = vld [vmem:[#allocation3 + $0x6c] sm:$0xf]
      %v9882 = vld [vmem:[#allocation3 + $0x70] sm:$0xf]
      %v9883 = vld [vmem:[#allocation3 + $0x74] sm:$0xf]
      %v9884 = vld [vmem:[#allocation3 + $0x78] sm:$0xf]
      %v9885 = vld [vmem:[#allocation3 + $0x7c] sm:$0xf]
      %v9886 = vld [vmem:[#allocation3 + $0x80] sm:$0xf]
      %v9887 = vld [vmem:[#allocation3 + $0x84] sm:$0xf]
      %v9888 = vld [vmem:[#allocation3 + $0x88] sm:$0xf]
      %v9889 = vld [vmem:[#allocation3 + $0x8c] sm:$0xf]
      %v9890 = vld [vmem:[#allocation3 + $0x90] sm:$0xf]
      %v9891 = vld [vmem:[#allocation3 + $0x94] sm:$0x1]
      %v9892 = vld [vmem:[%s7940] sm:$0xf]
      %v9893 = vld [vmem:[%s7940 + $0x4] sm:$0xf]
      %v9894 = vld [vmem:[%s7940 + $0x8] sm:$0xf]
      %v9895 = vld [vmem:[%s7940 + $0xc] sm:$0xf]
      %v9896 = vld [vmem:[%s7940 + $0x10] sm:$0xf]
      %v9897 = vld [vmem:[%s7940 + $0x14] sm:$0xf]
      %v9898 = vld [vmem:[%s7940 + $0x18] sm:$0xf]
      %v9899 = vld [vmem:[%s7940 + $0x1c] sm:$0xf]
      %v9900 = vld [vmem:[%s7940 + $0x20] sm:$0xf]
      %v9901 = vld [vmem:[%s7940 + $0x24] sm:$0xf]
      %v9902 = vld [vmem:[%s7940 + $0x28] sm:$0xf]
      %v9903 = vld [vmem:[%s7940 + $0x2c] sm:$0xf]
      %v9904 = vld [vmem:[%s7940 + $0x30] sm:$0xf]
      %v9905 = vld [vmem:[%s7940 + $0x34] sm:$0xf]
      %v9906 = vld [vmem:[%s7940 + $0x38] sm:$0xf]
      %v9907 = vld [vmem:[%s7940 + $0x3c] sm:$0xf]
      %v9925 = vunpack.c.l.b16 %v9875
      %v9926 = vunpack.c.l.b16 %v9876
      %v9927 = vunpack.c.l.b16 %v9877
      %v9928 = vunpack.c.l.b16 %v9878
      %v9929 = vunpack.c.l.b16 %v9879
      %v9930 = vunpack.c.l.b16 %v9880
      %v9931 = vunpack.c.l.b16 %v9881
      %v9932 = vunpack.c.l.b16 %v9882
      %v9933 = vunpack.c.l.b16 %v9883
      %v9934 = vunpack.c.l.b16 %v9884
      %v9935 = vunpack.c.l.b16 %v9885
      %v9936 = vunpack.c.l.b16 %v9886
      %v9937 = vunpack.c.l.b16 %v9887
      %v9938 = vunpack.c.l.b16 %v9888
      %v9939 = vunpack.c.l.b16 %v9889
      %v9940 = vunpack.c.l.b16 %v9890
      %v9941 = vunpack.c.l.b16 %v9891
      %v9942 = vpack.c.b16 %v9926, %v9925
      %v9943 = vpack.c.b16 %v9928, %v9927
      %v9944 = vpack.c.b16 %v9930, %v9929
      %v9945 = vpack.c.b16 %v9932, %v9931
      %v9946 = vpack.c.b16 %v9934, %v9933
      %v9947 = vpack.c.b16 %v9936, %v9935
      %v9948 = vpack.c.b16 %v9938, %v9937
      %v9949 = vpack.c.b16 %v9940, %v9939
      %v9950 = vpack.c.b16 %v9941, %v9941
      %v9952 = vshrl.u32 %v9942, 16
      %v9954 = vshll.u32 %v9942, 16
      %v9956 = vrot.slane %v9954, 1
      %v9957 = vor.u32 %v9952, %v9956
      %v9959 = vshll.u32 %v9943, 16
      %v9961 = vrot.slane %v9959, 1
      %v9962 = vsel %vm1998, %v9957, %v9961
      %v9963 = vshrl.u32 %v9943, 16
      %v9965 = vor.u32 %v9963, %v9961
      %v9967 = vshll.u32 %v9944, 16
      %v9969 = vrot.slane %v9967, 1
      %v9970 = vsel %vm1998, %v9965, %v9969
      %v9971 = vshrl.u32 %v9944, 16
      %v9973 = vor.u32 %v9971, %v9969
      %v9975 = vshll.u32 %v9945, 16
      %v9977 = vrot.slane %v9975, 1
      %v9978 = vsel %vm1998, %v9973, %v9977
      %v9979 = vshrl.u32 %v9945, 16
      %v9981 = vor.u32 %v9979, %v9977
      %v9983 = vshll.u32 %v9946, 16
      %v9985 = vrot.slane %v9983, 1
      %v9986 = vsel %vm1998, %v9981, %v9985
      %v9987 = vshrl.u32 %v9946, 16
      %v9989 = vor.u32 %v9987, %v9985
      %v9991 = vshll.u32 %v9947, 16
      %v9993 = vrot.slane %v9991, 1
      %v9994 = vsel %vm1998, %v9989, %v9993
      %v9995 = vshrl.u32 %v9947, 16
      %v9997 = vor.u32 %v9995, %v9993
      %v9999 = vshll.u32 %v9948, 16
      %v10001 = vrot.slane %v9999, 1
      %v10002 = vsel %vm1998, %v9997, %v10001
      %v10003 = vshrl.u32 %v9948, 16
      %v10005 = vor.u32 %v10003, %v10001
      %v10007 = vshll.u32 %v9949, 16
      %v10009 = vrot.slane %v10007, 1
      %v10010 = vsel %vm1998, %v10005, %v10009
      %v10011 = vshrl.u32 %v9949, 16
      %v10013 = vor.u32 %v10011, %v10009
      %v10015 = vshll.u32 %v9950, 16
      %v10017 = vrot.slane %v10015, 1
      %v10018 = vsel %vm1998, %v10013, %v10017
      %v10043 = vunpack.c.l.b16 %v9892
      %v10044 = vunpack.c.l.b16 %v9893
      %v10045 = vunpack.c.l.b16 %v9894
      %v10046 = vunpack.c.l.b16 %v9895
      %v10047 = vunpack.c.l.b16 %v9896
      %v10048 = vunpack.c.l.b16 %v9897
      %v10049 = vunpack.c.l.b16 %v9898
      %v10050 = vunpack.c.l.b16 %v9899
      %v10051 = vunpack.c.l.b16 %v9900
      %v10052 = vunpack.c.l.b16 %v9901
      %v10053 = vunpack.c.l.b16 %v9902
      %v10054 = vunpack.c.l.b16 %v9903
      %v10055 = vunpack.c.l.b16 %v9904
      %v10056 = vunpack.c.l.b16 %v9905
      %v10057 = vunpack.c.l.b16 %v9906
      %v10058 = vunpack.c.l.b16 %v9907
      %v10059 = vpack.c.b16 %v10044, %v10043
      %v10060 = vpack.c.b16 %v10046, %v10045
      %v10061 = vpack.c.b16 %v10048, %v10047
      %v10062 = vpack.c.b16 %v10050, %v10049
      %v10063 = vpack.c.b16 %v10052, %v10051
      %v10064 = vpack.c.b16 %v10054, %v10053
      %v10065 = vpack.c.b16 %v10056, %v10055
      %v10066 = vpack.c.b16 %v10058, %v10057
      %10075 = vmatpush.bf16.msra.mxu0 %v10066
      %10076 = vmatpush.bf16.msra.mxu0 %v10065
      %10077 = vmatpush.bf16.msra.mxu0 %v10064
      %10078 = vmatpush.bf16.msra.mxu0 %v10063
      %10079 = vmatpush.bf16.msra.mxu0 %v10062
      %10080 = vmatpush.bf16.msra.mxu0 %v10061
      %10081 = vmatpush.bf16.msra.mxu0 %v10060
      %10082 = vmatpush.bf16.msra.mxu0 %v10059
      %10083 = vmatmul.bf16.gmra.mxu0 %v9962
      %v10084 = vpop.f32.mrf.mxu0
      %v10085 = vadd.f32 0.0, %v10084
      %v10086 = vpop.f32.mrf.mxu0
      %v10087 = vadd.f32 0.0, %v10086
      %10088 = vmatmul.bf16.gmra.mxu0 %v9970
      %v10089 = vpop.f32.mrf.mxu0
      %v10090 = vadd.f32 0.0, %v10089
      %v10091 = vpop.f32.mrf.mxu0
      %v10092 = vadd.f32 0.0, %v10091
      %10093 = vmatmul.bf16.gmra.mxu0 %v9978
      %v10094 = vpop.f32.mrf.mxu0
      %v10095 = vadd.f32 0.0, %v10094
      %v10096 = vpop.f32.mrf.mxu0
      %v10097 = vadd.f32 0.0, %v10096
      %10098 = vmatmul.bf16.gmra.mxu0 %v9986
      %v10099 = vpop.f32.mrf.mxu0
      %v10100 = vadd.f32 0.0, %v10099
      %v10101 = vpop.f32.mrf.mxu0
      %v10102 = vadd.f32 0.0, %v10101
      %10103 = vmatmul.bf16.gmra.mxu0 %v9994
      %v10104 = vpop.f32.mrf.mxu0
      %v10105 = vadd.f32 0.0, %v10104
      %v10106 = vpop.f32.mrf.mxu0
      %v10107 = vadd.f32 0.0, %v10106
      %10108 = vmatmul.bf16.gmra.mxu0 %v10002
      %v10109 = vpop.f32.mrf.mxu0
      %v10110 = vadd.f32 0.0, %v10109
      %v10111 = vpop.f32.mrf.mxu0
      %v10112 = vadd.f32 0.0, %v10111
      %10113 = vmatmul.bf16.gmra.mxu0 %v10010
      %v10114 = vpop.f32.mrf.mxu0
      %v10115 = vadd.f32 0.0, %v10114
      %v10116 = vpop.f32.mrf.mxu0
      %v10117 = vadd.f32 0.0, %v10116
      %10118 = vmatmul.bf16.gmra.mxu0 %v10018
      %v10119 = vpop.f32.mrf.mxu0
      %v10120 = vadd.f32 0.0, %v10119
      %v10121 = vpop.f32.mrf.mxu0
      %v10122 = vadd.f32 0.0, %v10121
      %10123 = vdwg.mxu0
      %v10124 = vadd.f32 %v9859, %v10085
      %v10125 = vadd.f32 %v9860, %v10087
      %v10126 = vadd.f32 %v9861, %v10090
      %v10127 = vadd.f32 %v9862, %v10092
      %v10128 = vadd.f32 %v9863, %v10095
      %v10129 = vadd.f32 %v9864, %v10097
      %v10130 = vadd.f32 %v9865, %v10100
      %v10131 = vadd.f32 %v9866, %v10102
      %v10132 = vadd.f32 %v9867, %v10105
      %v10133 = vadd.f32 %v9868, %v10107
      %v10134 = vadd.f32 %v9869, %v10110
      %v10135 = vadd.f32 %v9870, %v10112
      %v10136 = vadd.f32 %v9871, %v10115
      %v10137 = vadd.f32 %v9872, %v10117
      %v10138 = vadd.f32 %v9873, %v10120
      %v10139 = vadd.f32 %v9874, %v10122
      %v10140 = vld [vmem:[#allocation3 + $0x54] sm:$0xe]
      %v10141 = vld [vmem:[%s8190] sm:$0xf]
      %v10142 = vld [vmem:[%s8190 + $0x4] sm:$0xf]
      %v10143 = vld [vmem:[%s8190 + $0x8] sm:$0xf]
      %v10144 = vld [vmem:[%s8190 + $0xc] sm:$0xf]
      %v10145 = vld [vmem:[%s8190 + $0x10] sm:$0xf]
      %v10146 = vld [vmem:[%s8190 + $0x14] sm:$0xf]
      %v10147 = vld [vmem:[%s8190 + $0x18] sm:$0xf]
      %v10148 = vld [vmem:[%s8190 + $0x1c] sm:$0xf]
      %v10149 = vld [vmem:[%s8190 + $0x20] sm:$0xf]
      %v10150 = vld [vmem:[%s8190 + $0x24] sm:$0xf]
      %v10151 = vld [vmem:[%s8190 + $0x28] sm:$0xf]
      %v10152 = vld [vmem:[%s8190 + $0x2c] sm:$0xf]
      %v10153 = vld [vmem:[%s8190 + $0x30] sm:$0xf]
      %v10154 = vld [vmem:[%s8190 + $0x34] sm:$0xf]
      %v10155 = vld [vmem:[%s8190 + $0x38] sm:$0xf]
      %v10156 = vld [vmem:[%s8190 + $0x3c] sm:$0xf]
      %v10158 = vunpack.c.l.b16 %v10140
      %v10159 = vpack.c.b16 %v9926, %v10158
      %v10160 = vrot.slane %v10159, 1
      %v10161 = vrot.slane %v9943, 1
      %v10162 = vsel %vm2475, %v10160, %v10161
      %v10163 = vrot.slane %v9944, 1
      %v10164 = vsel %vm2475, %v10161, %v10163
      %v10165 = vrot.slane %v9945, 1
      %v10166 = vsel %vm2475, %v10163, %v10165
      %v10167 = vrot.slane %v9946, 1
      %v10168 = vsel %vm2475, %v10165, %v10167
      %v10169 = vrot.slane %v9947, 1
      %v10170 = vsel %vm2475, %v10167, %v10169
      %v10171 = vrot.slane %v9948, 1
      %v10172 = vsel %vm2475, %v10169, %v10171
      %v10173 = vrot.slane %v9949, 1
      %v10174 = vsel %vm2475, %v10171, %v10173
      %v10175 = vrot.slane %v9950, 1
      %v10176 = vsel %vm2475, %v10173, %v10175
      %v10201 = vunpack.c.l.b16 %v10141
      %v10202 = vunpack.c.l.b16 %v10142
      %v10203 = vunpack.c.l.b16 %v10143
      %v10204 = vunpack.c.l.b16 %v10144
      %v10205 = vunpack.c.l.b16 %v10145
      %v10206 = vunpack.c.l.b16 %v10146
      %v10207 = vunpack.c.l.b16 %v10147
      %v10208 = vunpack.c.l.b16 %v10148
      %v10209 = vunpack.c.l.b16 %v10149
      %v10210 = vunpack.c.l.b16 %v10150
      %v10211 = vunpack.c.l.b16 %v10151
      %v10212 = vunpack.c.l.b16 %v10152
      %v10213 = vunpack.c.l.b16 %v10153
      %v10214 = vunpack.c.l.b16 %v10154
      %v10215 = vunpack.c.l.b16 %v10155
      %v10216 = vunpack.c.l.b16 %v10156
      %v10217 = vpack.c.b16 %v10202, %v10201
      %v10218 = vpack.c.b16 %v10204, %v10203
      %v10219 = vpack.c.b16 %v10206, %v10205
      %v10220 = vpack.c.b16 %v10208, %v10207
      %v10221 = vpack.c.b16 %v10210, %v10209
      %v10222 = vpack.c.b16 %v10212, %v10211
      %v10223 = vpack.c.b16 %v10214, %v10213
      %v10224 = vpack.c.b16 %v10216, %v10215
      %10233 = vmatpush.bf16.msra.mxu0 %v10224
      %10234 = vmatpush.bf16.msra.mxu0 %v10223
      %10235 = vmatpush.bf16.msra.mxu0 %v10222
      %10236 = vmatpush.bf16.msra.mxu0 %v10221
      %10237 = vmatpush.bf16.msra.mxu0 %v10220
      %10238 = vmatpush.bf16.msra.mxu0 %v10219
      %10239 = vmatpush.bf16.msra.mxu0 %v10218
      %10240 = vmatpush.bf16.msra.mxu0 %v10217
      %10241 = vmatmul.bf16.gmra.mxu0 %v10162
      %v10242 = vpop.f32.mrf.mxu0
      %v10243 = vadd.f32 0.0, %v10242
      %v10244 = vpop.f32.mrf.mxu0
      %v10245 = vadd.f32 0.0, %v10244
      %10246 = vmatmul.bf16.gmra.mxu0 %v10164
      %v10247 = vpop.f32.mrf.mxu0
      %v10248 = vadd.f32 0.0, %v10247
      %v10249 = vpop.f32.mrf.mxu0
      %v10250 = vadd.f32 0.0, %v10249
      %10251 = vmatmul.bf16.gmra.mxu0 %v10166
      %v10252 = vpop.f32.mrf.mxu0
      %v10253 = vadd.f32 0.0, %v10252
      %v10254 = vpop.f32.mrf.mxu0
      %v10255 = vadd.f32 0.0, %v10254
      %10256 = vmatmul.bf16.gmra.mxu0 %v10168
      %v10257 = vpop.f32.mrf.mxu0
      %v10258 = vadd.f32 0.0, %v10257
      %v10259 = vpop.f32.mrf.mxu0
      %v10260 = vadd.f32 0.0, %v10259
      %10261 = vmatmul.bf16.gmra.mxu0 %v10170
      %v10262 = vpop.f32.mrf.mxu0
      %v10263 = vadd.f32 0.0, %v10262
      %v10264 = vpop.f32.mrf.mxu0
      %v10265 = vadd.f32 0.0, %v10264
      %10266 = vmatmul.bf16.gmra.mxu0 %v10172
      %v10267 = vpop.f32.mrf.mxu0
      %v10268 = vadd.f32 0.0, %v10267
      %v10269 = vpop.f32.mrf.mxu0
      %v10270 = vadd.f32 0.0, %v10269
      %10271 = vmatmul.bf16.gmra.mxu0 %v10174
      %v10272 = vpop.f32.mrf.mxu0
      %v10273 = vadd.f32 0.0, %v10272
      %v10274 = vpop.f32.mrf.mxu0
      %v10275 = vadd.f32 0.0, %v10274
      %10276 = vmatmul.bf16.gmra.mxu0 %v10176
      %v10277 = vpop.f32.mrf.mxu0
      %v10278 = vadd.f32 0.0, %v10277
      %v10279 = vpop.f32.mrf.mxu0
      %v10280 = vadd.f32 0.0, %v10279
      %10281 = vdwg.mxu0
      %v10282 = vadd.f32 %v10124, %v10243
      %v10283 = vadd.f32 %v10125, %v10245
      %v10284 = vadd.f32 %v10126, %v10248
      %v10285 = vadd.f32 %v10127, %v10250
      %v10286 = vadd.f32 %v10128, %v10253
      %v10287 = vadd.f32 %v10129, %v10255
      %v10288 = vadd.f32 %v10130, %v10258
      %v10289 = vadd.f32 %v10131, %v10260
      %v10290 = vadd.f32 %v10132, %v10263
      %v10291 = vadd.f32 %v10133, %v10265
      %v10292 = vadd.f32 %v10134, %v10268
      %v10293 = vadd.f32 %v10135, %v10270
      %v10294 = vadd.f32 %v10136, %v10273
      %v10295 = vadd.f32 %v10137, %v10275
      %v10296 = vadd.f32 %v10138, %v10278
      %v10297 = vadd.f32 %v10139, %v10280
      %v10298 = vld [vmem:[#allocation3 + $0x94] sm:$0x3]
      %v10299 = vld [vmem:[%s8349] sm:$0xf]
      %v10300 = vld [vmem:[%s8349 + $0x4] sm:$0xf]
      %v10301 = vld [vmem:[%s8349 + $0x8] sm:$0xf]
      %v10302 = vld [vmem:[%s8349 + $0xc] sm:$0xf]
      %v10303 = vld [vmem:[%s8349 + $0x10] sm:$0xf]
      %v10304 = vld [vmem:[%s8349 + $0x14] sm:$0xf]
      %v10305 = vld [vmem:[%s8349 + $0x18] sm:$0xf]
      %v10306 = vld [vmem:[%s8349 + $0x1c] sm:$0xf]
      %v10307 = vld [vmem:[%s8349 + $0x20] sm:$0xf]
      %v10308 = vld [vmem:[%s8349 + $0x24] sm:$0xf]
      %v10309 = vld [vmem:[%s8349 + $0x28] sm:$0xf]
      %v10310 = vld [vmem:[%s8349 + $0x2c] sm:$0xf]
      %v10311 = vld [vmem:[%s8349 + $0x30] sm:$0xf]
      %v10312 = vld [vmem:[%s8349 + $0x34] sm:$0xf]
      %v10313 = vld [vmem:[%s8349 + $0x38] sm:$0xf]
      %v10314 = vld [vmem:[%s8349 + $0x3c] sm:$0xf]
      %v10316 = vunpack.c.l.b16 %v10298
      %v10317 = vpack.c.b16 %v10316, %v10316
      %v10319 = vshrl.u32 %v10159, 16
      %v10321 = vrot.slane %v10319, 1
      %v10322 = vshll.u32 %v10159, 16
      %v10324 = vrot.slane %v10322, 2
      %v10325 = vor.u32 %v10321, %v10324
      %v10326 = vrot.slane %v9963, 1
      %v10327 = vrot.slane %v9959, 2
      %v10328 = vor.u32 %v10326, %v10327
      %v10329 = vsel %vm2635, %v10325, %v10328
      %v10330 = vrot.slane %v9971, 1
      %v10331 = vrot.slane %v9967, 2
      %v10332 = vor.u32 %v10330, %v10331
      %v10333 = vsel %vm2635, %v10328, %v10332
      %v10334 = vrot.slane %v9979, 1
      %v10335 = vrot.slane %v9975, 2
      %v10336 = vor.u32 %v10334, %v10335
      %v10337 = vsel %vm2635, %v10332, %v10336
      %v10338 = vrot.slane %v9987, 1
      %v10339 = vrot.slane %v9983, 2
      %v10340 = vor.u32 %v10338, %v10339
      %v10341 = vsel %vm2635, %v10336, %v10340
      %v10342 = vrot.slane %v9995, 1
      %v10343 = vrot.slane %v9991, 2
      %v10344 = vor.u32 %v10342, %v10343
      %v10345 = vsel %vm2635, %v10340, %v10344
      %v10346 = vrot.slane %v10003, 1
      %v10347 = vrot.slane %v9999, 2
      %v10348 = vor.u32 %v10346, %v10347
      %v10349 = vsel %vm2635, %v10344, %v10348
      %v10350 = vrot.slane %v10011, 1
      %v10351 = vrot.slane %v10007, 2
      %v10352 = vor.u32 %v10350, %v10351
      %v10353 = vsel %vm2635, %v10348, %v10352
      %v10355 = vshrl.u32 %v10317, 16
      %v10357 = vrot.slane %v10355, 1
      %v10358 = vshll.u32 %v10317, 16
      %v10360 = vrot.slane %v10358, 2
      %v10361 = vor.u32 %v10357, %v10360
      %v10362 = vsel %vm2635, %v10352, %v10361
      %v10387 = vunpack.c.l.b16 %v10299
      %v10388 = vunpack.c.l.b16 %v10300
      %v10389 = vunpack.c.l.b16 %v10301
      %v10390 = vunpack.c.l.b16 %v10302
      %v10391 = vunpack.c.l.b16 %v10303
      %v10392 = vunpack.c.l.b16 %v10304
      %v10393 = vunpack.c.l.b16 %v10305
      %v10394 = vunpack.c.l.b16 %v10306
      %v10395 = vunpack.c.l.b16 %v10307
      %v10396 = vunpack.c.l.b16 %v10308
      %v10397 = vunpack.c.l.b16 %v10309
      %v10398 = vunpack.c.l.b16 %v10310
      %v10399 = vunpack.c.l.b16 %v10311
      %v10400 = vunpack.c.l.b16 %v10312
      %v10401 = vunpack.c.l.b16 %v10313
      %v10402 = vunpack.c.l.b16 %v10314
      %v10403 = vpack.c.b16 %v10388, %v10387
      %v10404 = vpack.c.b16 %v10390, %v10389
      %v10405 = vpack.c.b16 %v10392, %v10391
      %v10406 = vpack.c.b16 %v10394, %v10393
      %v10407 = vpack.c.b16 %v10396, %v10395
      %v10408 = vpack.c.b16 %v10398, %v10397
      %v10409 = vpack.c.b16 %v10400, %v10399
      %v10410 = vpack.c.b16 %v10402, %v10401
      %10419 = vmatpush.bf16.msra.mxu0 %v10410
      %10420 = vmatpush.bf16.msra.mxu0 %v10409
      %10421 = vmatpush.bf16.msra.mxu0 %v10408
      %10422 = vmatpush.bf16.msra.mxu0 %v10407
      %10423 = vmatpush.bf16.msra.mxu0 %v10406
      %10424 = vmatpush.bf16.msra.mxu0 %v10405
      %10425 = vmatpush.bf16.msra.mxu0 %v10404
      %10426 = vmatpush.bf16.msra.mxu0 %v10403
      %10427 = vmatmul.bf16.gmra.mxu0 %v10329
      %v10428 = vpop.f32.mrf.mxu0
      %v10429 = vadd.f32 0.0, %v10428
      %v10430 = vpop.f32.mrf.mxu0
      %v10431 = vadd.f32 0.0, %v10430
      %10432 = vmatmul.bf16.gmra.mxu0 %v10333
      %v10433 = vpop.f32.mrf.mxu0
      %v10434 = vadd.f32 0.0, %v10433
      %v10435 = vpop.f32.mrf.mxu0
      %v10436 = vadd.f32 0.0, %v10435
      %10437 = vmatmul.bf16.gmra.mxu0 %v10337
      %v10438 = vpop.f32.mrf.mxu0
      %v10439 = vadd.f32 0.0, %v10438
      %v10440 = vpop.f32.mrf.mxu0
      %v10441 = vadd.f32 0.0, %v10440
      %10442 = vmatmul.bf16.gmra.mxu0 %v10341
      %v10443 = vpop.f32.mrf.mxu0
      %v10444 = vadd.f32 0.0, %v10443
      %v10445 = vpop.f32.mrf.mxu0
      %v10446 = vadd.f32 0.0, %v10445
      %10447 = vmatmul.bf16.gmra.mxu0 %v10345
      %v10448 = vpop.f32.mrf.mxu0
      %v10449 = vadd.f32 0.0, %v10448
      %v10450 = vpop.f32.mrf.mxu0
      %v10451 = vadd.f32 0.0, %v10450
      %10452 = vmatmul.bf16.gmra.mxu0 %v10349
      %v10453 = vpop.f32.mrf.mxu0
      %v10454 = vadd.f32 0.0, %v10453
      %v10455 = vpop.f32.mrf.mxu0
      %v10456 = vadd.f32 0.0, %v10455
      %10457 = vmatmul.bf16.gmra.mxu0 %v10353
      %v10458 = vpop.f32.mrf.mxu0
      %v10459 = vadd.f32 0.0, %v10458
      %v10460 = vpop.f32.mrf.mxu0
      %v10461 = vadd.f32 0.0, %v10460
      %10462 = vmatmul.bf16.gmra.mxu0 %v10362
      %v10463 = vpop.f32.mrf.mxu0
      %v10464 = vadd.f32 0.0, %v10463
      %v10465 = vpop.f32.mrf.mxu0
      %v10466 = vadd.f32 0.0, %v10465
      %10467 = vdwg.mxu0
      %v10468 = vadd.f32 %v10282, %v10429
      %v10469 = vadd.f32 %v10283, %v10431
      %v10470 = vadd.f32 %v10284, %v10434
      %v10471 = vadd.f32 %v10285, %v10436
      %v10472 = vadd.f32 %v10286, %v10439
      %v10473 = vadd.f32 %v10287, %v10441
      %v10474 = vadd.f32 %v10288, %v10444
      %v10475 = vadd.f32 %v10289, %v10446
      %v10476 = vadd.f32 %v10290, %v10449
      %v10477 = vadd.f32 %v10291, %v10451
      %v10478 = vadd.f32 %v10292, %v10454
      %v10479 = vadd.f32 %v10293, %v10456
      %v10480 = vadd.f32 %v10294, %v10459
      %v10481 = vadd.f32 %v10295, %v10461
      %v10482 = vadd.f32 %v10296, %v10464
      %v10483 = vadd.f32 %v10297, %v10466
      %10484 = vst [vmem:[%s305 + $0x80] sm:$0xff] %v10468
      %10485 = vst [vmem:[%s305 + $0x88] sm:$0xff] %v10469
      %10486 = vst [vmem:[%s305 + $0x90] sm:$0xff] %v10470
      %10487 = vst [vmem:[%s305 + $0x98] sm:$0xff] %v10471
      %10488 = vst [vmem:[%s305 + $0xa0] sm:$0xff] %v10472
      %10489 = vst [vmem:[%s305 + $0xa8] sm:$0xff] %v10473
      %10490 = vst [vmem:[%s305 + $0xb0] sm:$0xff] %v10474
      %10491 = vst [vmem:[%s305 + $0xb8] sm:$0xff] %v10475
      %10492 = vst [vmem:[%s305 + $0xc0] sm:$0xff] %v10476
      %10493 = vst [vmem:[%s305 + $0xc8] sm:$0xff] %v10477
      %10494 = vst [vmem:[%s305 + $0xd0] sm:$0xff] %v10478
      %10495 = vst [vmem:[%s305 + $0xd8] sm:$0xff] %v10479
      %10496 = vst [vmem:[%s305 + $0xe0] sm:$0xff] %v10480
      %10497 = vst [vmem:[%s305 + $0xe8] sm:$0xff] %v10481
      %10498 = vst [vmem:[%s305 + $0xf0] sm:$0xff] %v10482
      %10499 = vst [vmem:[%s305 + $0xf8] sm:$0xff] %v10483
      %v10500 = vld [vmem:[%s300 + $0x100] sm:$0xff]
      %v10501 = vld [vmem:[%s300 + $0x108] sm:$0xff]
      %v10502 = vld [vmem:[%s300 + $0x110] sm:$0xff]
      %v10503 = vld [vmem:[%s300 + $0x118] sm:$0xff]
      %v10504 = vld [vmem:[%s300 + $0x120] sm:$0xff]
      %v10505 = vld [vmem:[%s300 + $0x128] sm:$0xff]
      %v10506 = vld [vmem:[%s300 + $0x130] sm:$0xff]
      %v10507 = vld [vmem:[%s300 + $0x138] sm:$0xff]
      %v10508 = vld [vmem:[%s300 + $0x140] sm:$0xf]
      %v10509 = vld [vmem:[#allocation3 + $0x80] sm:$0xc]
      %v10510 = vld [vmem:[#allocation3 + $0x84] sm:$0xf]
      %v10511 = vld [vmem:[#allocation3 + $0x88] sm:$0xf]
      %v10512 = vld [vmem:[#allocation3 + $0x8c] sm:$0xf]
      %v10513 = vld [vmem:[#allocation3 + $0x90] sm:$0xf]
      %v10514 = vld [vmem:[#allocation3 + $0x94] sm:$0xf]
      %v10515 = vld [vmem:[#allocation3 + $0x98] sm:$0xf]
      %v10516 = vld [vmem:[#allocation3 + $0x9c] sm:$0xf]
      %v10517 = vld [vmem:[#allocation3 + $0xa0] sm:$0xf]
      %v10518 = vld [vmem:[#allocation3 + $0xa4] sm:$0x1]
      %v10519 = vld [vmem:[%s2] sm:$0xf]
      %v10520 = vld [vmem:[%s2 + $0x4] sm:$0xf]
      %v10521 = vld [vmem:[%s2 + $0x8] sm:$0xf]
      %v10522 = vld [vmem:[%s2 + $0xc] sm:$0xf]
      %v10523 = vld [vmem:[%s2 + $0x10] sm:$0xf]
      %v10524 = vld [vmem:[%s2 + $0x14] sm:$0xf]
      %v10525 = vld [vmem:[%s2 + $0x18] sm:$0xf]
      %v10526 = vld [vmem:[%s2 + $0x1c] sm:$0xf]
      %v10527 = vld [vmem:[%s2 + $0x20] sm:$0xf]
      %v10528 = vld [vmem:[%s2 + $0x24] sm:$0xf]
      %v10529 = vld [vmem:[%s2 + $0x28] sm:$0xf]
      %v10530 = vld [vmem:[%s2 + $0x2c] sm:$0xf]
      %v10531 = vld [vmem:[%s2 + $0x30] sm:$0xf]
      %v10532 = vld [vmem:[%s2 + $0x34] sm:$0xf]
      %v10533 = vld [vmem:[%s2 + $0x38] sm:$0xf]
      %v10534 = vld [vmem:[%s2 + $0x3c] sm:$0xf]
      %v10545 = vunpack.c.l.b16 %v10509
      %v10546 = vunpack.c.l.b16 %v10510
      %v10547 = vunpack.c.l.b16 %v10511
      %v10548 = vunpack.c.l.b16 %v10512
      %v10549 = vunpack.c.l.b16 %v10513
      %v10550 = vunpack.c.l.b16 %v10514
      %v10551 = vunpack.c.l.b16 %v10515
      %v10552 = vunpack.c.l.b16 %v10516
      %v10553 = vunpack.c.l.b16 %v10517
      %v10554 = vunpack.c.l.b16 %v10518
      %v10555 = vpack.c.b16 %v10546, %v10545
      %v10556 = vpack.c.b16 %v10548, %v10547
      %v10557 = vpack.c.b16 %v10550, %v10549
      %v10558 = vpack.c.b16 %v10552, %v10551
      %v10559 = vpack.c.b16 %v10554, %v10553
      %v10561 = vshrl.u32 %v10555, 16
      %v10563 = vrot.slane %v10561, 2
      %v10564 = vshll.u32 %v10555, 16
      %v10566 = vrot.slane %v10564, 3
      %v10567 = vor.u32 %v10563, %v10566
      %v10569 = vshrl.u32 %v10556, 16
      %v10571 = vrot.slane %v10569, 2
      %v10572 = vshll.u32 %v10556, 16
      %v10574 = vrot.slane %v10572, 3
      %v10575 = vor.u32 %v10571, %v10574
      %v10576 = vsel %vm1123, %v10567, %v10575
      %v10578 = vshrl.u32 %v10557, 16
      %v10580 = vrot.slane %v10578, 2
      %v10581 = vshll.u32 %v10557, 16
      %v10583 = vrot.slane %v10581, 3
      %v10584 = vor.u32 %v10580, %v10583
      %v10585 = vsel %vm1123, %v10575, %v10584
      %v10587 = vshrl.u32 %v10558, 16
      %v10589 = vrot.slane %v10587, 2
      %v10590 = vshll.u32 %v10558, 16
      %v10592 = vrot.slane %v10590, 3
      %v10593 = vor.u32 %v10589, %v10592
      %v10594 = vsel %vm1123, %v10584, %v10593
      %v10596 = vshrl.u32 %v10559, 16
      %v10598 = vrot.slane %v10596, 2
      %v10599 = vshll.u32 %v10559, 16
      %v10601 = vrot.slane %v10599, 3
      %v10602 = vor.u32 %v10598, %v10601
      %v10603 = vsel %vm1123, %v10593, %v10602
      %v10625 = vunpack.c.l.b16 %v10519
      %v10626 = vunpack.c.l.b16 %v10520
      %v10627 = vunpack.c.l.b16 %v10521
      %v10628 = vunpack.c.l.b16 %v10522
      %v10629 = vunpack.c.l.b16 %v10523
      %v10630 = vunpack.c.l.b16 %v10524
      %v10631 = vunpack.c.l.b16 %v10525
      %v10632 = vunpack.c.l.b16 %v10526
      %v10633 = vunpack.c.l.b16 %v10527
      %v10634 = vunpack.c.l.b16 %v10528
      %v10635 = vunpack.c.l.b16 %v10529
      %v10636 = vunpack.c.l.b16 %v10530
      %v10637 = vunpack.c.l.b16 %v10531
      %v10638 = vunpack.c.l.b16 %v10532
      %v10639 = vunpack.c.l.b16 %v10533
      %v10640 = vunpack.c.l.b16 %v10534
      %v10641 = vpack.c.b16 %v10626, %v10625
      %v10642 = vpack.c.b16 %v10628, %v10627
      %v10643 = vpack.c.b16 %v10630, %v10629
      %v10644 = vpack.c.b16 %v10632, %v10631
      %v10645 = vpack.c.b16 %v10634, %v10633
      %v10646 = vpack.c.b16 %v10636, %v10635
      %v10647 = vpack.c.b16 %v10638, %v10637
      %v10648 = vpack.c.b16 %v10640, %v10639
      %10657 = vmatpush.bf16.msra.mxu0 %v10648
      %10658 = vmatpush.bf16.msra.mxu0 %v10647
      %10659 = vmatpush.bf16.msra.mxu0 %v10646
      %10660 = vmatpush.bf16.msra.mxu0 %v10645
      %10661 = vmatpush.bf16.msra.mxu0 %v10644
      %10662 = vmatpush.bf16.msra.mxu0 %v10643
      %10663 = vmatpush.bf16.msra.mxu0 %v10642
      %10664 = vmatpush.bf16.msra.mxu0 %v10641
      %10665 = vmatmul.bf16.gmra.mxu0 %v10576
      %v10666 = vpop.f32.mrf.mxu0
      %v10667 = vadd.f32 0.0, %v10666
      %v10668 = vpop.f32.mrf.mxu0
      %v10669 = vadd.f32 0.0, %v10668
      %10670 = vmatmul.bf16.gmra.mxu0 %v10585
      %v10671 = vpop.f32.mrf.mxu0
      %v10672 = vadd.f32 0.0, %v10671
      %v10673 = vpop.f32.mrf.mxu0
      %v10674 = vadd.f32 0.0, %v10673
      %10675 = vmatmul.bf16.gmra.mxu0 %v10594
      %v10676 = vpop.f32.mrf.mxu0
      %v10677 = vadd.f32 0.0, %v10676
      %v10678 = vpop.f32.mrf.mxu0
      %v10679 = vadd.f32 0.0, %v10678
      %10680 = vmatmul.bf16.gmra.mxu0 %v10603
      %v10681 = vpop.f32.mrf.mxu0
      %v10682 = vadd.f32 0.0, %v10681
      %v10683 = vpop.f32.mrf.mxu0
      %v10684 = vadd.f32 0.0, %v10683
      %10685 = vmatmul.bf16.gmra.mxu0 %v10602
      %v10686 = vpop.f32.mrf.mxu0
      %v10687 = vadd.f32 0.0, %v10686
      %v10688 = vpop.f32.mrf.mxu0
      %10689 = vdwg.mxu0
      %v10690 = vadd.f32 %v10500, %v10667
      %v10691 = vadd.f32 %v10501, %v10669
      %v10692 = vadd.f32 %v10502, %v10672
      %v10693 = vadd.f32 %v10503, %v10674
      %v10694 = vadd.f32 %v10504, %v10677
      %v10695 = vadd.f32 %v10505, %v10679
      %v10696 = vadd.f32 %v10506, %v10682
      %v10697 = vadd.f32 %v10507, %v10684
      %v10698 = vadd.f32 %v10508, %v10687
      %v10699 = vld [vmem:[#allocation3 + $0x80] sm:$0x8]
      %v10700 = vld [vmem:[%s6888] sm:$0xf]
      %v10701 = vld [vmem:[%s6888 + $0x4] sm:$0xf]
      %v10702 = vld [vmem:[%s6888 + $0x8] sm:$0xf]
      %v10703 = vld [vmem:[%s6888 + $0xc] sm:$0xf]
      %v10704 = vld [vmem:[%s6888 + $0x10] sm:$0xf]
      %v10705 = vld [vmem:[%s6888 + $0x14] sm:$0xf]
      %v10706 = vld [vmem:[%s6888 + $0x18] sm:$0xf]
      %v10707 = vld [vmem:[%s6888 + $0x1c] sm:$0xf]
      %v10708 = vld [vmem:[%s6888 + $0x20] sm:$0xf]
      %v10709 = vld [vmem:[%s6888 + $0x24] sm:$0xf]
      %v10710 = vld [vmem:[%s6888 + $0x28] sm:$0xf]
      %v10711 = vld [vmem:[%s6888 + $0x2c] sm:$0xf]
      %v10712 = vld [vmem:[%s6888 + $0x30] sm:$0xf]
      %v10713 = vld [vmem:[%s6888 + $0x34] sm:$0xf]
      %v10714 = vld [vmem:[%s6888 + $0x38] sm:$0xf]
      %v10715 = vld [vmem:[%s6888 + $0x3c] sm:$0xf]
      %v10717 = vunpack.c.l.b16 %v10699
      %v10718 = vpack.c.b16 %v10546, %v10717
      %v10719 = vrot.slane %v10718, 3
      %v10720 = vrot.slane %v10556, 3
      %v10721 = vsel %vm997, %v10719, %v10720
      %v10722 = vrot.slane %v10557, 3
      %v10723 = vsel %vm997, %v10720, %v10722
      %v10724 = vrot.slane %v10558, 3
      %v10725 = vsel %vm997, %v10722, %v10724
      %v10726 = vrot.slane %v10559, 3
      %v10727 = vsel %vm997, %v10724, %v10726
      %v10749 = vunpack.c.l.b16 %v10700
      %v10750 = vunpack.c.l.b16 %v10701
      %v10751 = vunpack.c.l.b16 %v10702
      %v10752 = vunpack.c.l.b16 %v10703
      %v10753 = vunpack.c.l.b16 %v10704
      %v10754 = vunpack.c.l.b16 %v10705
      %v10755 = vunpack.c.l.b16 %v10706
      %v10756 = vunpack.c.l.b16 %v10707
      %v10757 = vunpack.c.l.b16 %v10708
      %v10758 = vunpack.c.l.b16 %v10709
      %v10759 = vunpack.c.l.b16 %v10710
      %v10760 = vunpack.c.l.b16 %v10711
      %v10761 = vunpack.c.l.b16 %v10712
      %v10762 = vunpack.c.l.b16 %v10713
      %v10763 = vunpack.c.l.b16 %v10714
      %v10764 = vunpack.c.l.b16 %v10715
      %v10765 = vpack.c.b16 %v10750, %v10749
      %v10766 = vpack.c.b16 %v10752, %v10751
      %v10767 = vpack.c.b16 %v10754, %v10753
      %v10768 = vpack.c.b16 %v10756, %v10755
      %v10769 = vpack.c.b16 %v10758, %v10757
      %v10770 = vpack.c.b16 %v10760, %v10759
      %v10771 = vpack.c.b16 %v10762, %v10761
      %v10772 = vpack.c.b16 %v10764, %v10763
      %10781 = vmatpush.bf16.msra.mxu0 %v10772
      %10782 = vmatpush.bf16.msra.mxu0 %v10771
      %10783 = vmatpush.bf16.msra.mxu0 %v10770
      %10784 = vmatpush.bf16.msra.mxu0 %v10769
      %10785 = vmatpush.bf16.msra.mxu0 %v10768
      %10786 = vmatpush.bf16.msra.mxu0 %v10767
      %10787 = vmatpush.bf16.msra.mxu0 %v10766
      %10788 = vmatpush.bf16.msra.mxu0 %v10765
      %10789 = vmatmul.bf16.gmra.mxu0 %v10721
      %v10790 = vpop.f32.mrf.mxu0
      %v10791 = vadd.f32 0.0, %v10790
      %v10792 = vpop.f32.mrf.mxu0
      %v10793 = vadd.f32 0.0, %v10792
      %10794 = vmatmul.bf16.gmra.mxu0 %v10723
      %v10795 = vpop.f32.mrf.mxu0
      %v10796 = vadd.f32 0.0, %v10795
      %v10797 = vpop.f32.mrf.mxu0
      %v10798 = vadd.f32 0.0, %v10797
      %10799 = vmatmul.bf16.gmra.mxu0 %v10725
      %v10800 = vpop.f32.mrf.mxu0
      %v10801 = vadd.f32 0.0, %v10800
      %v10802 = vpop.f32.mrf.mxu0
      %v10803 = vadd.f32 0.0, %v10802
      %10804 = vmatmul.bf16.gmra.mxu0 %v10727
      %v10805 = vpop.f32.mrf.mxu0
      %v10806 = vadd.f32 0.0, %v10805
      %v10807 = vpop.f32.mrf.mxu0
      %v10808 = vadd.f32 0.0, %v10807
      %10809 = vmatmul.bf16.gmra.mxu0 %v10726
      %v10810 = vpop.f32.mrf.mxu0
      %v10811 = vadd.f32 0.0, %v10810
      %v10812 = vpop.f32.mrf.mxu0
      %10813 = vdwg.mxu0
      %v10814 = vadd.f32 %v10690, %v10791
      %v10815 = vadd.f32 %v10691, %v10793
      %v10816 = vadd.f32 %v10692, %v10796
      %v10817 = vadd.f32 %v10693, %v10798
      %v10818 = vadd.f32 %v10694, %v10801
      %v10819 = vadd.f32 %v10695, %v10803
      %v10820 = vadd.f32 %v10696, %v10806
      %v10821 = vadd.f32 %v10697, %v10808
      %v10822 = vadd.f32 %v10698, %v10811
      %v10823 = vld [vmem:[#allocation3 + $0xa4] sm:$0x3]
      %v10824 = vld [vmem:[%s7047] sm:$0xf]
      %v10825 = vld [vmem:[%s7047 + $0x4] sm:$0xf]
      %v10826 = vld [vmem:[%s7047 + $0x8] sm:$0xf]
      %v10827 = vld [vmem:[%s7047 + $0xc] sm:$0xf]
      %v10828 = vld [vmem:[%s7047 + $0x10] sm:$0xf]
      %v10829 = vld [vmem:[%s7047 + $0x14] sm:$0xf]
      %v10830 = vld [vmem:[%s7047 + $0x18] sm:$0xf]
      %v10831 = vld [vmem:[%s7047 + $0x1c] sm:$0xf]
      %v10832 = vld [vmem:[%s7047 + $0x20] sm:$0xf]
      %v10833 = vld [vmem:[%s7047 + $0x24] sm:$0xf]
      %v10834 = vld [vmem:[%s7047 + $0x28] sm:$0xf]
      %v10835 = vld [vmem:[%s7047 + $0x2c] sm:$0xf]
      %v10836 = vld [vmem:[%s7047 + $0x30] sm:$0xf]
      %v10837 = vld [vmem:[%s7047 + $0x34] sm:$0xf]
      %v10838 = vld [vmem:[%s7047 + $0x38] sm:$0xf]
      %v10839 = vld [vmem:[%s7047 + $0x3c] sm:$0xf]
      %v10841 = vunpack.c.l.b16 %v10823
      %v10842 = vpack.c.b16 %v10841, %v10553
      %v10844 = vshrl.u32 %v10718, 16
      %v10846 = vrot.slane %v10844, 3
      %v10847 = vshll.u32 %v10718, 16
      %v10849 = vrot.slane %v10847, 4
      %v10850 = vor.u32 %v10846, %v10849
      %v10851 = vrot.slane %v10569, 3
      %v10852 = vrot.slane %v10572, 4
      %v10853 = vor.u32 %v10851, %v10852
      %v10854 = vsel %vm1330, %v10850, %v10853
      %v10855 = vrot.slane %v10578, 3
      %v10856 = vrot.slane %v10581, 4
      %v10857 = vor.u32 %v10855, %v10856
      %v10858 = vsel %vm1330, %v10853, %v10857
      %v10859 = vrot.slane %v10587, 3
      %v10860 = vrot.slane %v10590, 4
      %v10861 = vor.u32 %v10859, %v10860
      %v10862 = vsel %vm1330, %v10857, %v10861
      %v10864 = vshrl.u32 %v10842, 16
      %v10866 = vrot.slane %v10864, 3
      %v10867 = vshll.u32 %v10842, 16
      %v10869 = vrot.slane %v10867, 4
      %v10870 = vor.u32 %v10866, %v10869
      %v10871 = vsel %vm1330, %v10861, %v10870
      %v10893 = vunpack.c.l.b16 %v10824
      %v10894 = vunpack.c.l.b16 %v10825
      %v10895 = vunpack.c.l.b16 %v10826
      %v10896 = vunpack.c.l.b16 %v10827
      %v10897 = vunpack.c.l.b16 %v10828
      %v10898 = vunpack.c.l.b16 %v10829
      %v10899 = vunpack.c.l.b16 %v10830
      %v10900 = vunpack.c.l.b16 %v10831
      %v10901 = vunpack.c.l.b16 %v10832
      %v10902 = vunpack.c.l.b16 %v10833
      %v10903 = vunpack.c.l.b16 %v10834
      %v10904 = vunpack.c.l.b16 %v10835
      %v10905 = vunpack.c.l.b16 %v10836
      %v10906 = vunpack.c.l.b16 %v10837
      %v10907 = vunpack.c.l.b16 %v10838
      %v10908 = vunpack.c.l.b16 %v10839
      %v10909 = vpack.c.b16 %v10894, %v10893
      %v10910 = vpack.c.b16 %v10896, %v10895
      %v10911 = vpack.c.b16 %v10898, %v10897
      %v10912 = vpack.c.b16 %v10900, %v10899
      %v10913 = vpack.c.b16 %v10902, %v10901
      %v10914 = vpack.c.b16 %v10904, %v10903
      %v10915 = vpack.c.b16 %v10906, %v10905
      %v10916 = vpack.c.b16 %v10908, %v10907
      %10925 = vmatpush.bf16.msra.mxu0 %v10916
      %10926 = vmatpush.bf16.msra.mxu0 %v10915
      %10927 = vmatpush.bf16.msra.mxu0 %v10914
      %10928 = vmatpush.bf16.msra.mxu0 %v10913
      %10929 = vmatpush.bf16.msra.mxu0 %v10912
      %10930 = vmatpush.bf16.msra.mxu0 %v10911
      %10931 = vmatpush.bf16.msra.mxu0 %v10910
      %10932 = vmatpush.bf16.msra.mxu0 %v10909
      %10933 = vmatmul.bf16.gmra.mxu0 %v10854
      %v10934 = vpop.f32.mrf.mxu0
      %v10935 = vadd.f32 0.0, %v10934
      %v10936 = vpop.f32.mrf.mxu0
      %v10937 = vadd.f32 0.0, %v10936
      %10938 = vmatmul.bf16.gmra.mxu0 %v10858
      %v10939 = vpop.f32.mrf.mxu0
      %v10940 = vadd.f32 0.0, %v10939
      %v10941 = vpop.f32.mrf.mxu0
      %v10942 = vadd.f32 0.0, %v10941
      %10943 = vmatmul.bf16.gmra.mxu0 %v10862
      %v10944 = vpop.f32.mrf.mxu0
      %v10945 = vadd.f32 0.0, %v10944
      %v10946 = vpop.f32.mrf.mxu0
      %v10947 = vadd.f32 0.0, %v10946
      %10948 = vmatmul.bf16.gmra.mxu0 %v10871
      %v10949 = vpop.f32.mrf.mxu0
      %v10950 = vadd.f32 0.0, %v10949
      %v10951 = vpop.f32.mrf.mxu0
      %v10952 = vadd.f32 0.0, %v10951
      %10953 = vmatmul.bf16.gmra.mxu0 %v10870
      %v10954 = vpop.f32.mrf.mxu0
      %v10955 = vadd.f32 0.0, %v10954
      %v10956 = vpop.f32.mrf.mxu0
      %10957 = vdwg.mxu0
      %v10958 = vadd.f32 %v10814, %v10935
      %v10959 = vadd.f32 %v10815, %v10937
      %v10960 = vadd.f32 %v10816, %v10940
      %v10961 = vadd.f32 %v10817, %v10942
      %v10962 = vadd.f32 %v10818, %v10945
      %v10963 = vadd.f32 %v10819, %v10947
      %v10964 = vadd.f32 %v10820, %v10950
      %v10965 = vadd.f32 %v10821, %v10952
      %v10966 = vadd.f32 %v10822, %v10955
      %v10967 = vld [vmem:[#allocation3 + $0x88] sm:$0x8]
      %v10968 = vld [vmem:[#allocation3 + $0x8c] sm:$0xf]
      %v10969 = vld [vmem:[#allocation3 + $0x90] sm:$0xf]
      %v10970 = vld [vmem:[#allocation3 + $0x94] sm:$0xf]
      %v10971 = vld [vmem:[#allocation3 + $0x98] sm:$0xf]
      %v10972 = vld [vmem:[#allocation3 + $0x9c] sm:$0xf]
      %v10973 = vld [vmem:[#allocation3 + $0xa0] sm:$0xf]
      %v10974 = vld [vmem:[#allocation3 + $0xa4] sm:$0xf]
      %v10975 = vld [vmem:[#allocation3 + $0xa8] sm:$0xf]
      %v10976 = vld [vmem:[#allocation3 + $0xac] sm:$0x3]
      %v10977 = vld [vmem:[%s7250] sm:$0xf]
      %v10978 = vld [vmem:[%s7250 + $0x4] sm:$0xf]
      %v10979 = vld [vmem:[%s7250 + $0x8] sm:$0xf]
      %v10980 = vld [vmem:[%s7250 + $0xc] sm:$0xf]
      %v10981 = vld [vmem:[%s7250 + $0x10] sm:$0xf]
      %v10982 = vld [vmem:[%s7250 + $0x14] sm:$0xf]
      %v10983 = vld [vmem:[%s7250 + $0x18] sm:$0xf]
      %v10984 = vld [vmem:[%s7250 + $0x1c] sm:$0xf]
      %v10985 = vld [vmem:[%s7250 + $0x20] sm:$0xf]
      %v10986 = vld [vmem:[%s7250 + $0x24] sm:$0xf]
      %v10987 = vld [vmem:[%s7250 + $0x28] sm:$0xf]
      %v10988 = vld [vmem:[%s7250 + $0x2c] sm:$0xf]
      %v10989 = vld [vmem:[%s7250 + $0x30] sm:$0xf]
      %v10990 = vld [vmem:[%s7250 + $0x34] sm:$0xf]
      %v10991 = vld [vmem:[%s7250 + $0x38] sm:$0xf]
      %v10992 = vld [vmem:[%s7250 + $0x3c] sm:$0xf]
      %v11003 = vunpack.c.l.b16 %v10967
      %v11004 = vunpack.c.l.b16 %v10968
      %v11005 = vunpack.c.l.b16 %v10969
      %v11006 = vunpack.c.l.b16 %v10970
      %v11007 = vunpack.c.l.b16 %v10971
      %v11008 = vunpack.c.l.b16 %v10972
      %v11009 = vunpack.c.l.b16 %v10973
      %v11010 = vunpack.c.l.b16 %v10974
      %v11011 = vunpack.c.l.b16 %v10975
      %v11012 = vunpack.c.l.b16 %v10976
      %v11013 = vpack.c.b16 %v11004, %v11003
      %v11014 = vpack.c.b16 %v11006, %v11005
      %v11015 = vpack.c.b16 %v11008, %v11007
      %v11016 = vpack.c.b16 %v11010, %v11009
      %v11017 = vpack.c.b16 %v11012, %v11011
      %v11019 = vshrl.u32 %v11013, 16
      %v11021 = vrot.slane %v11019, 3
      %v11022 = vshll.u32 %v11013, 16
      %v11024 = vrot.slane %v11022, 4
      %v11025 = vor.u32 %v11021, %v11024
      %v11027 = vshrl.u32 %v11014, 16
      %v11029 = vrot.slane %v11027, 3
      %v11030 = vshll.u32 %v11014, 16
      %v11032 = vrot.slane %v11030, 4
      %v11033 = vor.u32 %v11029, %v11032
      %v11034 = vsel %vm1330, %v11025, %v11033
      %v11036 = vshrl.u32 %v11015, 16
      %v11038 = vrot.slane %v11036, 3
      %v11039 = vshll.u32 %v11015, 16
      %v11041 = vrot.slane %v11039, 4
      %v11042 = vor.u32 %v11038, %v11041
      %v11043 = vsel %vm1330, %v11033, %v11042
      %v11045 = vshrl.u32 %v11016, 16
      %v11047 = vrot.slane %v11045, 3
      %v11048 = vshll.u32 %v11016, 16
      %v11050 = vrot.slane %v11048, 4
      %v11051 = vor.u32 %v11047, %v11050
      %v11052 = vsel %vm1330, %v11042, %v11051
      %v11054 = vshrl.u32 %v11017, 16
      %v11056 = vrot.slane %v11054, 3
      %v11057 = vshll.u32 %v11017, 16
      %v11059 = vrot.slane %v11057, 4
      %v11060 = vor.u32 %v11056, %v11059
      %v11061 = vsel %vm1330, %v11051, %v11060
      %v11083 = vunpack.c.l.b16 %v10977
      %v11084 = vunpack.c.l.b16 %v10978
      %v11085 = vunpack.c.l.b16 %v10979
      %v11086 = vunpack.c.l.b16 %v10980
      %v11087 = vunpack.c.l.b16 %v10981
      %v11088 = vunpack.c.l.b16 %v10982
      %v11089 = vunpack.c.l.b16 %v10983
      %v11090 = vunpack.c.l.b16 %v10984
      %v11091 = vunpack.c.l.b16 %v10985
      %v11092 = vunpack.c.l.b16 %v10986
      %v11093 = vunpack.c.l.b16 %v10987
      %v11094 = vunpack.c.l.b16 %v10988
      %v11095 = vunpack.c.l.b16 %v10989
      %v11096 = vunpack.c.l.b16 %v10990
      %v11097 = vunpack.c.l.b16 %v10991
      %v11098 = vunpack.c.l.b16 %v10992
      %v11099 = vpack.c.b16 %v11084, %v11083
      %v11100 = vpack.c.b16 %v11086, %v11085
      %v11101 = vpack.c.b16 %v11088, %v11087
      %v11102 = vpack.c.b16 %v11090, %v11089
      %v11103 = vpack.c.b16 %v11092, %v11091
      %v11104 = vpack.c.b16 %v11094, %v11093
      %v11105 = vpack.c.b16 %v11096, %v11095
      %v11106 = vpack.c.b16 %v11098, %v11097
      %11115 = vmatpush.bf16.msra.mxu0 %v11106
      %11116 = vmatpush.bf16.msra.mxu0 %v11105
      %11117 = vmatpush.bf16.msra.mxu0 %v11104
      %11118 = vmatpush.bf16.msra.mxu0 %v11103
      %11119 = vmatpush.bf16.msra.mxu0 %v11102
      %11120 = vmatpush.bf16.msra.mxu0 %v11101
      %11121 = vmatpush.bf16.msra.mxu0 %v11100
      %11122 = vmatpush.bf16.msra.mxu0 %v11099
      %11123 = vmatmul.bf16.gmra.mxu0 %v11034
      %v11124 = vpop.f32.mrf.mxu0
      %v11125 = vadd.f32 0.0, %v11124
      %v11126 = vpop.f32.mrf.mxu0
      %v11127 = vadd.f32 0.0, %v11126
      %11128 = vmatmul.bf16.gmra.mxu0 %v11043
      %v11129 = vpop.f32.mrf.mxu0
      %v11130 = vadd.f32 0.0, %v11129
      %v11131 = vpop.f32.mrf.mxu0
      %v11132 = vadd.f32 0.0, %v11131
      %11133 = vmatmul.bf16.gmra.mxu0 %v11052
      %v11134 = vpop.f32.mrf.mxu0
      %v11135 = vadd.f32 0.0, %v11134
      %v11136 = vpop.f32.mrf.mxu0
      %v11137 = vadd.f32 0.0, %v11136
      %11138 = vmatmul.bf16.gmra.mxu0 %v11061
      %v11139 = vpop.f32.mrf.mxu0
      %v11140 = vadd.f32 0.0, %v11139
      %v11141 = vpop.f32.mrf.mxu0
      %v11142 = vadd.f32 0.0, %v11141
      %11143 = vmatmul.bf16.gmra.mxu0 %v11060
      %v11144 = vpop.f32.mrf.mxu0
      %v11145 = vadd.f32 0.0, %v11144
      %v11146 = vpop.f32.mrf.mxu0
      %11147 = vdwg.mxu0
      %v11148 = vadd.f32 %v10958, %v11125
      %v11149 = vadd.f32 %v10959, %v11127
      %v11150 = vadd.f32 %v10960, %v11130
      %v11151 = vadd.f32 %v10961, %v11132
      %v11152 = vadd.f32 %v10962, %v11135
      %v11153 = vadd.f32 %v10963, %v11137
      %v11154 = vadd.f32 %v10964, %v11140
      %v11155 = vadd.f32 %v10965, %v11142
      %v11156 = vadd.f32 %v10966, %v11145
      %v11157 = vld [vmem:[%s7511] sm:$0xf]
      %v11158 = vld [vmem:[%s7511 + $0x4] sm:$0xf]
      %v11159 = vld [vmem:[%s7511 + $0x8] sm:$0xf]
      %v11160 = vld [vmem:[%s7511 + $0xc] sm:$0xf]
      %v11161 = vld [vmem:[%s7511 + $0x10] sm:$0xf]
      %v11162 = vld [vmem:[%s7511 + $0x14] sm:$0xf]
      %v11163 = vld [vmem:[%s7511 + $0x18] sm:$0xf]
      %v11164 = vld [vmem:[%s7511 + $0x1c] sm:$0xf]
      %v11165 = vld [vmem:[%s7511 + $0x20] sm:$0xf]
      %v11166 = vld [vmem:[%s7511 + $0x24] sm:$0xf]
      %v11167 = vld [vmem:[%s7511 + $0x28] sm:$0xf]
      %v11168 = vld [vmem:[%s7511 + $0x2c] sm:$0xf]
      %v11169 = vld [vmem:[%s7511 + $0x30] sm:$0xf]
      %v11170 = vld [vmem:[%s7511 + $0x34] sm:$0xf]
      %v11171 = vld [vmem:[%s7511 + $0x38] sm:$0xf]
      %v11172 = vld [vmem:[%s7511 + $0x3c] sm:$0xf]
      %v11173 = vpack.c.b16 %v11005, %v11004
      %v11174 = vpack.c.b16 %v11007, %v11006
      %v11175 = vpack.c.b16 %v11009, %v11008
      %v11176 = vpack.c.b16 %v11011, %v11010
      %v11177 = vpack.c.b16 %v11012, %v11012
      %v11199 = vunpack.c.l.b16 %v11157
      %v11200 = vunpack.c.l.b16 %v11158
      %v11201 = vunpack.c.l.b16 %v11159
      %v11202 = vunpack.c.l.b16 %v11160
      %v11203 = vunpack.c.l.b16 %v11161
      %v11204 = vunpack.c.l.b16 %v11162
      %v11205 = vunpack.c.l.b16 %v11163
      %v11206 = vunpack.c.l.b16 %v11164
      %v11207 = vunpack.c.l.b16 %v11165
      %v11208 = vunpack.c.l.b16 %v11166
      %v11209 = vunpack.c.l.b16 %v11167
      %v11210 = vunpack.c.l.b16 %v11168
      %v11211 = vunpack.c.l.b16 %v11169
      %v11212 = vunpack.c.l.b16 %v11170
      %v11213 = vunpack.c.l.b16 %v11171
      %v11214 = vunpack.c.l.b16 %v11172
      %v11215 = vpack.c.b16 %v11200, %v11199
      %v11216 = vpack.c.b16 %v11202, %v11201
      %v11217 = vpack.c.b16 %v11204, %v11203
      %v11218 = vpack.c.b16 %v11206, %v11205
      %v11219 = vpack.c.b16 %v11208, %v11207
      %v11220 = vpack.c.b16 %v11210, %v11209
      %v11221 = vpack.c.b16 %v11212, %v11211
      %v11222 = vpack.c.b16 %v11214, %v11213
      %11231 = vmatpush.bf16.msra.mxu0 %v11222
      %11232 = vmatpush.bf16.msra.mxu0 %v11221
      %11233 = vmatpush.bf16.msra.mxu0 %v11220
      %11234 = vmatpush.bf16.msra.mxu0 %v11219
      %11235 = vmatpush.bf16.msra.mxu0 %v11218
      %11236 = vmatpush.bf16.msra.mxu0 %v11217
      %11237 = vmatpush.bf16.msra.mxu0 %v11216
      %11238 = vmatpush.bf16.msra.mxu0 %v11215
      %11239 = vmatmul.bf16.gmra.mxu0 %v11173
      %v11240 = vpop.f32.mrf.mxu0
      %v11241 = vadd.f32 0.0, %v11240
      %v11242 = vpop.f32.mrf.mxu0
      %v11243 = vadd.f32 0.0, %v11242
      %11244 = vmatmul.bf16.gmra.mxu0 %v11174
      %v11245 = vpop.f32.mrf.mxu0
      %v11246 = vadd.f32 0.0, %v11245
      %v11247 = vpop.f32.mrf.mxu0
      %v11248 = vadd.f32 0.0, %v11247
      %11249 = vmatmul.bf16.gmra.mxu0 %v11175
      %v11250 = vpop.f32.mrf.mxu0
      %v11251 = vadd.f32 0.0, %v11250
      %v11252 = vpop.f32.mrf.mxu0
      %v11253 = vadd.f32 0.0, %v11252
      %11254 = vmatmul.bf16.gmra.mxu0 %v11176
      %v11255 = vpop.f32.mrf.mxu0
      %v11256 = vadd.f32 0.0, %v11255
      %v11257 = vpop.f32.mrf.mxu0
      %v11258 = vadd.f32 0.0, %v11257
      %11259 = vmatmul.bf16.gmra.mxu0 %v11177
      %v11260 = vpop.f32.mrf.mxu0
      %v11261 = vadd.f32 0.0, %v11260
      %v11262 = vpop.f32.mrf.mxu0
      %11263 = vdwg.mxu0
      %v11264 = vadd.f32 %v11148, %v11241
      %v11265 = vadd.f32 %v11149, %v11243
      %v11266 = vadd.f32 %v11150, %v11246
      %v11267 = vadd.f32 %v11151, %v11248
      %v11268 = vadd.f32 %v11152, %v11251
      %v11269 = vadd.f32 %v11153, %v11253
      %v11270 = vadd.f32 %v11154, %v11256
      %v11271 = vadd.f32 %v11155, %v11258
      %v11272 = vadd.f32 %v11156, %v11261
      %v11273 = vld [vmem:[#allocation3 + $0xac] sm:$0x7]
      %v11274 = vld [vmem:[%s7674] sm:$0xf]
      %v11275 = vld [vmem:[%s7674 + $0x4] sm:$0xf]
      %v11276 = vld [vmem:[%s7674 + $0x8] sm:$0xf]
      %v11277 = vld [vmem:[%s7674 + $0xc] sm:$0xf]
      %v11278 = vld [vmem:[%s7674 + $0x10] sm:$0xf]
      %v11279 = vld [vmem:[%s7674 + $0x14] sm:$0xf]
      %v11280 = vld [vmem:[%s7674 + $0x18] sm:$0xf]
      %v11281 = vld [vmem:[%s7674 + $0x1c] sm:$0xf]
      %v11282 = vld [vmem:[%s7674 + $0x20] sm:$0xf]
      %v11283 = vld [vmem:[%s7674 + $0x24] sm:$0xf]
      %v11284 = vld [vmem:[%s7674 + $0x28] sm:$0xf]
      %v11285 = vld [vmem:[%s7674 + $0x2c] sm:$0xf]
      %v11286 = vld [vmem:[%s7674 + $0x30] sm:$0xf]
      %v11287 = vld [vmem:[%s7674 + $0x34] sm:$0xf]
      %v11288 = vld [vmem:[%s7674 + $0x38] sm:$0xf]
      %v11289 = vld [vmem:[%s7674 + $0x3c] sm:$0xf]
      %v11291 = vunpack.c.l.b16 %v11273
      %v11292 = vpack.c.b16 %v11291, %v11291
      %v11294 = vshrl.u32 %v11173, 16
      %v11296 = vshll.u32 %v11173, 16
      %v11298 = vrot.slane %v11296, 1
      %v11299 = vor.u32 %v11294, %v11298
      %v11301 = vshll.u32 %v11174, 16
      %v11303 = vrot.slane %v11301, 1
      %v11304 = vsel %vm1998, %v11299, %v11303
      %v11305 = vshrl.u32 %v11174, 16
      %v11307 = vor.u32 %v11305, %v11303
      %v11309 = vshll.u32 %v11175, 16
      %v11311 = vrot.slane %v11309, 1
      %v11312 = vsel %vm1998, %v11307, %v11311
      %v11313 = vshrl.u32 %v11175, 16
      %v11315 = vor.u32 %v11313, %v11311
      %v11317 = vshll.u32 %v11176, 16
      %v11319 = vrot.slane %v11317, 1
      %v11320 = vsel %vm1998, %v11315, %v11319
      %v11321 = vshrl.u32 %v11176, 16
      %v11323 = vor.u32 %v11321, %v11319
      %v11325 = vshll.u32 %v11292, 16
      %v11327 = vrot.slane %v11325, 1
      %v11328 = vsel %vm1998, %v11323, %v11327
      %v11329 = vshrl.u32 %v11292, 16
      %v11331 = vor.u32 %v11329, %v11327
      %v11353 = vunpack.c.l.b16 %v11274
      %v11354 = vunpack.c.l.b16 %v11275
      %v11355 = vunpack.c.l.b16 %v11276
      %v11356 = vunpack.c.l.b16 %v11277
      %v11357 = vunpack.c.l.b16 %v11278
      %v11358 = vunpack.c.l.b16 %v11279
      %v11359 = vunpack.c.l.b16 %v11280
      %v11360 = vunpack.c.l.b16 %v11281
      %v11361 = vunpack.c.l.b16 %v11282
      %v11362 = vunpack.c.l.b16 %v11283
      %v11363 = vunpack.c.l.b16 %v11284
      %v11364 = vunpack.c.l.b16 %v11285
      %v11365 = vunpack.c.l.b16 %v11286
      %v11366 = vunpack.c.l.b16 %v11287
      %v11367 = vunpack.c.l.b16 %v11288
      %v11368 = vunpack.c.l.b16 %v11289
      %v11369 = vpack.c.b16 %v11354, %v11353
      %v11370 = vpack.c.b16 %v11356, %v11355
      %v11371 = vpack.c.b16 %v11358, %v11357
      %v11372 = vpack.c.b16 %v11360, %v11359
      %v11373 = vpack.c.b16 %v11362, %v11361
      %v11374 = vpack.c.b16 %v11364, %v11363
      %v11375 = vpack.c.b16 %v11366, %v11365
      %v11376 = vpack.c.b16 %v11368, %v11367
      %11385 = vmatpush.bf16.msra.mxu0 %v11376
      %11386 = vmatpush.bf16.msra.mxu0 %v11375
      %11387 = vmatpush.bf16.msra.mxu0 %v11374
      %11388 = vmatpush.bf16.msra.mxu0 %v11373
      %11389 = vmatpush.bf16.msra.mxu0 %v11372
      %11390 = vmatpush.bf16.msra.mxu0 %v11371
      %11391 = vmatpush.bf16.msra.mxu0 %v11370
      %11392 = vmatpush.bf16.msra.mxu0 %v11369
      %11393 = vmatmul.bf16.gmra.mxu0 %v11304
      %v11394 = vpop.f32.mrf.mxu0
      %v11395 = vadd.f32 0.0, %v11394
      %v11396 = vpop.f32.mrf.mxu0
      %v11397 = vadd.f32 0.0, %v11396
      %11398 = vmatmul.bf16.gmra.mxu0 %v11312
      %v11399 = vpop.f32.mrf.mxu0
      %v11400 = vadd.f32 0.0, %v11399
      %v11401 = vpop.f32.mrf.mxu0
      %v11402 = vadd.f32 0.0, %v11401
      %11403 = vmatmul.bf16.gmra.mxu0 %v11320
      %v11404 = vpop.f32.mrf.mxu0
      %v11405 = vadd.f32 0.0, %v11404
      %v11406 = vpop.f32.mrf.mxu0
      %v11407 = vadd.f32 0.0, %v11406
      %11408 = vmatmul.bf16.gmra.mxu0 %v11328
      %v11409 = vpop.f32.mrf.mxu0
      %v11410 = vadd.f32 0.0, %v11409
      %v11411 = vpop.f32.mrf.mxu0
      %v11412 = vadd.f32 0.0, %v11411
      %11413 = vmatmul.bf16.gmra.mxu0 %v11331
      %v11414 = vpop.f32.mrf.mxu0
      %v11415 = vadd.f32 0.0, %v11414
      %v11416 = vpop.f32.mrf.mxu0
      %11417 = vdwg.mxu0
      %v11418 = vadd.f32 %v11264, %v11395
      %v11419 = vadd.f32 %v11265, %v11397
      %v11420 = vadd.f32 %v11266, %v11400
      %v11421 = vadd.f32 %v11267, %v11402
      %v11422 = vadd.f32 %v11268, %v11405
      %v11423 = vadd.f32 %v11269, %v11407
      %v11424 = vadd.f32 %v11270, %v11410
      %v11425 = vadd.f32 %v11271, %v11412
      %v11426 = vadd.f32 %v11272, %v11415
      %v11427 = vld [vmem:[#allocation3 + $0x94] sm:$0xf]
      %v11428 = vld [vmem:[#allocation3 + $0x98] sm:$0xf]
      %v11429 = vld [vmem:[#allocation3 + $0x9c] sm:$0xf]
      %v11430 = vld [vmem:[#allocation3 + $0xa0] sm:$0xf]
      %v11431 = vld [vmem:[#allocation3 + $0xa4] sm:$0xf]
      %v11432 = vld [vmem:[#allocation3 + $0xa8] sm:$0xf]
      %v11433 = vld [vmem:[#allocation3 + $0xac] sm:$0xf]
      %v11434 = vld [vmem:[#allocation3 + $0xb0] sm:$0xf]
      %v11435 = vld [vmem:[#allocation3 + $0xb4] sm:$0x7]
      %v11436 = vld [vmem:[%s7940] sm:$0xf]
      %v11437 = vld [vmem:[%s7940 + $0x4] sm:$0xf]
      %v11438 = vld [vmem:[%s7940 + $0x8] sm:$0xf]
      %v11439 = vld [vmem:[%s7940 + $0xc] sm:$0xf]
      %v11440 = vld [vmem:[%s7940 + $0x10] sm:$0xf]
      %v11441 = vld [vmem:[%s7940 + $0x14] sm:$0xf]
      %v11442 = vld [vmem:[%s7940 + $0x18] sm:$0xf]
      %v11443 = vld [vmem:[%s7940 + $0x1c] sm:$0xf]
      %v11444 = vld [vmem:[%s7940 + $0x20] sm:$0xf]
      %v11445 = vld [vmem:[%s7940 + $0x24] sm:$0xf]
      %v11446 = vld [vmem:[%s7940 + $0x28] sm:$0xf]
      %v11447 = vld [vmem:[%s7940 + $0x2c] sm:$0xf]
      %v11448 = vld [vmem:[%s7940 + $0x30] sm:$0xf]
      %v11449 = vld [vmem:[%s7940 + $0x34] sm:$0xf]
      %v11450 = vld [vmem:[%s7940 + $0x38] sm:$0xf]
      %v11451 = vld [vmem:[%s7940 + $0x3c] sm:$0xf]
      %v11461 = vunpack.c.l.b16 %v11427
      %v11462 = vunpack.c.l.b16 %v11428
      %v11463 = vunpack.c.l.b16 %v11429
      %v11464 = vunpack.c.l.b16 %v11430
      %v11465 = vunpack.c.l.b16 %v11431
      %v11466 = vunpack.c.l.b16 %v11432
      %v11467 = vunpack.c.l.b16 %v11433
      %v11468 = vunpack.c.l.b16 %v11434
      %v11469 = vunpack.c.l.b16 %v11435
      %v11470 = vpack.c.b16 %v11462, %v11461
      %v11471 = vpack.c.b16 %v11464, %v11463
      %v11472 = vpack.c.b16 %v11466, %v11465
      %v11473 = vpack.c.b16 %v11468, %v11467
      %v11474 = vpack.c.b16 %v11469, %v11469
      %v11476 = vshrl.u32 %v11470, 16
      %v11478 = vshll.u32 %v11470, 16
      %v11480 = vrot.slane %v11478, 1
      %v11481 = vor.u32 %v11476, %v11480
      %v11483 = vshll.u32 %v11471, 16
      %v11485 = vrot.slane %v11483, 1
      %v11486 = vsel %vm1998, %v11481, %v11485
      %v11487 = vshrl.u32 %v11471, 16
      %v11489 = vor.u32 %v11487, %v11485
      %v11491 = vshll.u32 %v11472, 16
      %v11493 = vrot.slane %v11491, 1
      %v11494 = vsel %vm1998, %v11489, %v11493
      %v11495 = vshrl.u32 %v11472, 16
      %v11497 = vor.u32 %v11495, %v11493
      %v11499 = vshll.u32 %v11473, 16
      %v11501 = vrot.slane %v11499, 1
      %v11502 = vsel %vm1998, %v11497, %v11501
      %v11503 = vshrl.u32 %v11473, 16
      %v11505 = vor.u32 %v11503, %v11501
      %v11507 = vshll.u32 %v11474, 16
      %v11509 = vrot.slane %v11507, 1
      %v11510 = vsel %vm1998, %v11505, %v11509
      %v11511 = vshrl.u32 %v11474, 16
      %v11513 = vor.u32 %v11511, %v11509
      %v11535 = vunpack.c.l.b16 %v11436
      %v11536 = vunpack.c.l.b16 %v11437
      %v11537 = vunpack.c.l.b16 %v11438
      %v11538 = vunpack.c.l.b16 %v11439
      %v11539 = vunpack.c.l.b16 %v11440
      %v11540 = vunpack.c.l.b16 %v11441
      %v11541 = vunpack.c.l.b16 %v11442
      %v11542 = vunpack.c.l.b16 %v11443
      %v11543 = vunpack.c.l.b16 %v11444
      %v11544 = vunpack.c.l.b16 %v11445
      %v11545 = vunpack.c.l.b16 %v11446
      %v11546 = vunpack.c.l.b16 %v11447
      %v11547 = vunpack.c.l.b16 %v11448
      %v11548 = vunpack.c.l.b16 %v11449
      %v11549 = vunpack.c.l.b16 %v11450
      %v11550 = vunpack.c.l.b16 %v11451
      %v11551 = vpack.c.b16 %v11536, %v11535
      %v11552 = vpack.c.b16 %v11538, %v11537
      %v11553 = vpack.c.b16 %v11540, %v11539
      %v11554 = vpack.c.b16 %v11542, %v11541
      %v11555 = vpack.c.b16 %v11544, %v11543
      %v11556 = vpack.c.b16 %v11546, %v11545
      %v11557 = vpack.c.b16 %v11548, %v11547
      %v11558 = vpack.c.b16 %v11550, %v11549
      %11567 = vmatpush.bf16.msra.mxu0 %v11558
      %11568 = vmatpush.bf16.msra.mxu0 %v11557
      %11569 = vmatpush.bf16.msra.mxu0 %v11556
      %11570 = vmatpush.bf16.msra.mxu0 %v11555
      %11571 = vmatpush.bf16.msra.mxu0 %v11554
      %11572 = vmatpush.bf16.msra.mxu0 %v11553
      %11573 = vmatpush.bf16.msra.mxu0 %v11552
      %11574 = vmatpush.bf16.msra.mxu0 %v11551
      %11575 = vmatmul.bf16.gmra.mxu0 %v11486
      %v11576 = vpop.f32.mrf.mxu0
      %v11577 = vadd.f32 0.0, %v11576
      %v11578 = vpop.f32.mrf.mxu0
      %v11579 = vadd.f32 0.0, %v11578
      %11580 = vmatmul.bf16.gmra.mxu0 %v11494
      %v11581 = vpop.f32.mrf.mxu0
      %v11582 = vadd.f32 0.0, %v11581
      %v11583 = vpop.f32.mrf.mxu0
      %v11584 = vadd.f32 0.0, %v11583
      %11585 = vmatmul.bf16.gmra.mxu0 %v11502
      %v11586 = vpop.f32.mrf.mxu0
      %v11587 = vadd.f32 0.0, %v11586
      %v11588 = vpop.f32.mrf.mxu0
      %v11589 = vadd.f32 0.0, %v11588
      %11590 = vmatmul.bf16.gmra.mxu0 %v11510
      %v11591 = vpop.f32.mrf.mxu0
      %v11592 = vadd.f32 0.0, %v11591
      %v11593 = vpop.f32.mrf.mxu0
      %v11594 = vadd.f32 0.0, %v11593
      %11595 = vmatmul.bf16.gmra.mxu0 %v11513
      %v11596 = vpop.f32.mrf.mxu0
      %v11597 = vadd.f32 0.0, %v11596
      %v11598 = vpop.f32.mrf.mxu0
      %11599 = vdwg.mxu0
      %v11600 = vadd.f32 %v11418, %v11577
      %v11601 = vadd.f32 %v11419, %v11579
      %v11602 = vadd.f32 %v11420, %v11582
      %v11603 = vadd.f32 %v11421, %v11584
      %v11604 = vadd.f32 %v11422, %v11587
      %v11605 = vadd.f32 %v11423, %v11589
      %v11606 = vadd.f32 %v11424, %v11592
      %v11607 = vadd.f32 %v11425, %v11594
      %v11608 = vadd.f32 %v11426, %v11597
      %v11609 = vld [vmem:[#allocation3 + $0x94] sm:$0xe]
      %v11610 = vld [vmem:[%s8190] sm:$0xf]
      %v11611 = vld [vmem:[%s8190 + $0x4] sm:$0xf]
      %v11612 = vld [vmem:[%s8190 + $0x8] sm:$0xf]
      %v11613 = vld [vmem:[%s8190 + $0xc] sm:$0xf]
      %v11614 = vld [vmem:[%s8190 + $0x10] sm:$0xf]
      %v11615 = vld [vmem:[%s8190 + $0x14] sm:$0xf]
      %v11616 = vld [vmem:[%s8190 + $0x18] sm:$0xf]
      %v11617 = vld [vmem:[%s8190 + $0x1c] sm:$0xf]
      %v11618 = vld [vmem:[%s8190 + $0x20] sm:$0xf]
      %v11619 = vld [vmem:[%s8190 + $0x24] sm:$0xf]
      %v11620 = vld [vmem:[%s8190 + $0x28] sm:$0xf]
      %v11621 = vld [vmem:[%s8190 + $0x2c] sm:$0xf]
      %v11622 = vld [vmem:[%s8190 + $0x30] sm:$0xf]
      %v11623 = vld [vmem:[%s8190 + $0x34] sm:$0xf]
      %v11624 = vld [vmem:[%s8190 + $0x38] sm:$0xf]
      %v11625 = vld [vmem:[%s8190 + $0x3c] sm:$0xf]
      %v11627 = vunpack.c.l.b16 %v11609
      %v11628 = vpack.c.b16 %v11462, %v11627
      %v11629 = vrot.slane %v11628, 1
      %v11630 = vrot.slane %v11471, 1
      %v11631 = vsel %vm2475, %v11629, %v11630
      %v11632 = vrot.slane %v11472, 1
      %v11633 = vsel %vm2475, %v11630, %v11632
      %v11634 = vrot.slane %v11473, 1
      %v11635 = vsel %vm2475, %v11632, %v11634
      %v11636 = vrot.slane %v11474, 1
      %v11637 = vsel %vm2475, %v11634, %v11636
      %v11659 = vunpack.c.l.b16 %v11610
      %v11660 = vunpack.c.l.b16 %v11611
      %v11661 = vunpack.c.l.b16 %v11612
      %v11662 = vunpack.c.l.b16 %v11613
      %v11663 = vunpack.c.l.b16 %v11614
      %v11664 = vunpack.c.l.b16 %v11615
      %v11665 = vunpack.c.l.b16 %v11616
      %v11666 = vunpack.c.l.b16 %v11617
      %v11667 = vunpack.c.l.b16 %v11618
      %v11668 = vunpack.c.l.b16 %v11619
      %v11669 = vunpack.c.l.b16 %v11620
      %v11670 = vunpack.c.l.b16 %v11621
      %v11671 = vunpack.c.l.b16 %v11622
      %v11672 = vunpack.c.l.b16 %v11623
      %v11673 = vunpack.c.l.b16 %v11624
      %v11674 = vunpack.c.l.b16 %v11625
      %v11675 = vpack.c.b16 %v11660, %v11659
      %v11676 = vpack.c.b16 %v11662, %v11661
      %v11677 = vpack.c.b16 %v11664, %v11663
      %v11678 = vpack.c.b16 %v11666, %v11665
      %v11679 = vpack.c.b16 %v11668, %v11667
      %v11680 = vpack.c.b16 %v11670, %v11669
      %v11681 = vpack.c.b16 %v11672, %v11671
      %v11682 = vpack.c.b16 %v11674, %v11673
      %11691 = vmatpush.bf16.msra.mxu0 %v11682
      %11692 = vmatpush.bf16.msra.mxu0 %v11681
      %11693 = vmatpush.bf16.msra.mxu0 %v11680
      %11694 = vmatpush.bf16.msra.mxu0 %v11679
      %11695 = vmatpush.bf16.msra.mxu0 %v11678
      %11696 = vmatpush.bf16.msra.mxu0 %v11677
      %11697 = vmatpush.bf16.msra.mxu0 %v11676
      %11698 = vmatpush.bf16.msra.mxu0 %v11675
      %11699 = vmatmul.bf16.gmra.mxu0 %v11631
      %v11700 = vpop.f32.mrf.mxu0
      %v11701 = vadd.f32 0.0, %v11700
      %v11702 = vpop.f32.mrf.mxu0
      %v11703 = vadd.f32 0.0, %v11702
      %11704 = vmatmul.bf16.gmra.mxu0 %v11633
      %v11705 = vpop.f32.mrf.mxu0
      %v11706 = vadd.f32 0.0, %v11705
      %v11707 = vpop.f32.mrf.mxu0
      %v11708 = vadd.f32 0.0, %v11707
      %11709 = vmatmul.bf16.gmra.mxu0 %v11635
      %v11710 = vpop.f32.mrf.mxu0
      %v11711 = vadd.f32 0.0, %v11710
      %v11712 = vpop.f32.mrf.mxu0
      %v11713 = vadd.f32 0.0, %v11712
      %11714 = vmatmul.bf16.gmra.mxu0 %v11637
      %v11715 = vpop.f32.mrf.mxu0
      %v11716 = vadd.f32 0.0, %v11715
      %v11717 = vpop.f32.mrf.mxu0
      %v11718 = vadd.f32 0.0, %v11717
      %11719 = vmatmul.bf16.gmra.mxu0 %v11636
      %v11720 = vpop.f32.mrf.mxu0
      %v11721 = vadd.f32 0.0, %v11720
      %v11722 = vpop.f32.mrf.mxu0
      %11723 = vdwg.mxu0
      %v11724 = vadd.f32 %v11600, %v11701
      %v11725 = vadd.f32 %v11601, %v11703
      %v11726 = vadd.f32 %v11602, %v11706
      %v11727 = vadd.f32 %v11603, %v11708
      %v11728 = vadd.f32 %v11604, %v11711
      %v11729 = vadd.f32 %v11605, %v11713
      %v11730 = vadd.f32 %v11606, %v11716
      %v11731 = vadd.f32 %v11607, %v11718
      %v11732 = vadd.f32 %v11608, %v11721
      %v11733 = vld [vmem:[#allocation3 + $0xb4] sm:$0xf]
      %v11734 = vld [vmem:[%s8349] sm:$0xf]
      %v11735 = vld [vmem:[%s8349 + $0x4] sm:$0xf]
      %v11736 = vld [vmem:[%s8349 + $0x8] sm:$0xf]
      %v11737 = vld [vmem:[%s8349 + $0xc] sm:$0xf]
      %v11738 = vld [vmem:[%s8349 + $0x10] sm:$0xf]
      %v11739 = vld [vmem:[%s8349 + $0x14] sm:$0xf]
      %v11740 = vld [vmem:[%s8349 + $0x18] sm:$0xf]
      %v11741 = vld [vmem:[%s8349 + $0x1c] sm:$0xf]
      %v11742 = vld [vmem:[%s8349 + $0x20] sm:$0xf]
      %v11743 = vld [vmem:[%s8349 + $0x24] sm:$0xf]
      %v11744 = vld [vmem:[%s8349 + $0x28] sm:$0xf]
      %v11745 = vld [vmem:[%s8349 + $0x2c] sm:$0xf]
      %v11746 = vld [vmem:[%s8349 + $0x30] sm:$0xf]
      %v11747 = vld [vmem:[%s8349 + $0x34] sm:$0xf]
      %v11748 = vld [vmem:[%s8349 + $0x38] sm:$0xf]
      %v11749 = vld [vmem:[%s8349 + $0x3c] sm:$0xf]
      %v11751 = vunpack.c.l.b16 %v11733
      %v11752 = vpack.c.b16 %v11751, %v11751
      %v11754 = vshrl.u32 %v11628, 16
      %v11756 = vrot.slane %v11754, 1
      %v11757 = vshll.u32 %v11628, 16
      %v11759 = vrot.slane %v11757, 2
      %v11760 = vor.u32 %v11756, %v11759
      %v11761 = vrot.slane %v11487, 1
      %v11762 = vrot.slane %v11483, 2
      %v11763 = vor.u32 %v11761, %v11762
      %v11764 = vsel %vm2635, %v11760, %v11763
      %v11765 = vrot.slane %v11495, 1
      %v11766 = vrot.slane %v11491, 2
      %v11767 = vor.u32 %v11765, %v11766
      %v11768 = vsel %vm2635, %v11763, %v11767
      %v11769 = vrot.slane %v11503, 1
      %v11770 = vrot.slane %v11499, 2
      %v11771 = vor.u32 %v11769, %v11770
      %v11772 = vsel %vm2635, %v11767, %v11771
      %v11774 = vshrl.u32 %v11752, 16
      %v11776 = vrot.slane %v11774, 1
      %v11777 = vshll.u32 %v11752, 16
      %v11779 = vrot.slane %v11777, 2
      %v11780 = vor.u32 %v11776, %v11779
      %v11781 = vsel %vm2635, %v11771, %v11780
      %v11803 = vunpack.c.l.b16 %v11734
      %v11804 = vunpack.c.l.b16 %v11735
      %v11805 = vunpack.c.l.b16 %v11736
      %v11806 = vunpack.c.l.b16 %v11737
      %v11807 = vunpack.c.l.b16 %v11738
      %v11808 = vunpack.c.l.b16 %v11739
      %v11809 = vunpack.c.l.b16 %v11740
      %v11810 = vunpack.c.l.b16 %v11741
      %v11811 = vunpack.c.l.b16 %v11742
      %v11812 = vunpack.c.l.b16 %v11743
      %v11813 = vunpack.c.l.b16 %v11744
      %v11814 = vunpack.c.l.b16 %v11745
      %v11815 = vunpack.c.l.b16 %v11746
      %v11816 = vunpack.c.l.b16 %v11747
      %v11817 = vunpack.c.l.b16 %v11748
      %v11818 = vunpack.c.l.b16 %v11749
      %v11819 = vpack.c.b16 %v11804, %v11803
      %v11820 = vpack.c.b16 %v11806, %v11805
      %v11821 = vpack.c.b16 %v11808, %v11807
      %v11822 = vpack.c.b16 %v11810, %v11809
      %v11823 = vpack.c.b16 %v11812, %v11811
      %v11824 = vpack.c.b16 %v11814, %v11813
      %v11825 = vpack.c.b16 %v11816, %v11815
      %v11826 = vpack.c.b16 %v11818, %v11817
      %11835 = vmatpush.bf16.msra.mxu0 %v11826
      %11836 = vmatpush.bf16.msra.mxu0 %v11825
      %11837 = vmatpush.bf16.msra.mxu0 %v11824
      %11838 = vmatpush.bf16.msra.mxu0 %v11823
      %11839 = vmatpush.bf16.msra.mxu0 %v11822
      %11840 = vmatpush.bf16.msra.mxu0 %v11821
      %11841 = vmatpush.bf16.msra.mxu0 %v11820
      %11842 = vmatpush.bf16.msra.mxu0 %v11819
      %11843 = vmatmul.bf16.gmra.mxu0 %v11764
      %v11844 = vpop.f32.mrf.mxu0
      %v11845 = vadd.f32 0.0, %v11844
      %v11846 = vpop.f32.mrf.mxu0
      %v11847 = vadd.f32 0.0, %v11846
      %11848 = vmatmul.bf16.gmra.mxu0 %v11768
      %v11849 = vpop.f32.mrf.mxu0
      %v11850 = vadd.f32 0.0, %v11849
      %v11851 = vpop.f32.mrf.mxu0
      %v11852 = vadd.f32 0.0, %v11851
      %11853 = vmatmul.bf16.gmra.mxu0 %v11772
      %v11854 = vpop.f32.mrf.mxu0
      %v11855 = vadd.f32 0.0, %v11854
      %v11856 = vpop.f32.mrf.mxu0
      %v11857 = vadd.f32 0.0, %v11856
      %11858 = vmatmul.bf16.gmra.mxu0 %v11781
      %v11859 = vpop.f32.mrf.mxu0
      %v11860 = vadd.f32 0.0, %v11859
      %v11861 = vpop.f32.mrf.mxu0
      %v11862 = vadd.f32 0.0, %v11861
      %11863 = vmatmul.bf16.gmra.mxu0 %v11780
      %v11864 = vpop.f32.mrf.mxu0
      %v11865 = vadd.f32 0.0, %v11864
      %v11866 = vpop.f32.mrf.mxu0
      %11867 = vdwg.mxu0
      %v11868 = vadd.f32 %v11724, %v11845
      %v11869 = vadd.f32 %v11725, %v11847
      %v11870 = vadd.f32 %v11726, %v11850
      %v11871 = vadd.f32 %v11727, %v11852
      %v11872 = vadd.f32 %v11728, %v11855
      %v11873 = vadd.f32 %v11729, %v11857
      %v11874 = vadd.f32 %v11730, %v11860
      %v11875 = vadd.f32 %v11731, %v11862
      %v11876 = vadd.f32 %v11732, %v11865
      %11877 = vst [vmem:[%s305 + $0x100] sm:$0xff] %v11868
      %11878 = vst [vmem:[%s305 + $0x108] sm:$0xff] %v11869
      %11879 = vst [vmem:[%s305 + $0x110] sm:$0xff] %v11870
      %11880 = vst [vmem:[%s305 + $0x118] sm:$0xff] %v11871
      %11881 = vst [vmem:[%s305 + $0x120] sm:$0xff] %v11872
      %11882 = vst [vmem:[%s305 + $0x128] sm:$0xff] %v11873
      %11883 = vst [vmem:[%s305 + $0x130] sm:$0xff] %v11874
      %11884 = vst [vmem:[%s305 + $0x138] sm:$0xff] %v11875
      %11885 = vst [vmem:[%s305 + $0x140] sm:$0xf] %v11876
      %p11886 = scmp.lt.s32.totalorder %s19, 1
      %s11887 = scalar_select %p11886, %s19, 1
      %s11888 = smul.addr %s11887, 41
      %s11889 = smul.addr %s11888, 8
      %s11890 = scalar_lea.vmem %s8, %s11889
      // Predicated region
      $region53: #{tpu_custom_call.1} parent=51 // pred_check
        %p11891 = pneg %p210
      $region54: #{tpu_custom_call.1} parent=51 // pred_check_branch
        %11893 = sbr.rel (%p11891) target = $region56
      $region55: #{tpu_custom_call.1} parent=51 // pred_region
        _
      $region56: #{tpu_custom_call.1} parent=51 // pred_fallthru
        _
    $region52: #{tpu_custom_call.1} parent=5 // pred_fallthru
      _
    %p11894 = scmp.le.s32.totalorder 2, %s14
    // Predicated region
    $region57: #{tpu_custom_call.1} parent=5 // pred_check
      %p11895 = pneg %p11894
    $region58: #{tpu_custom_call.1} parent=5 // pred_check_branch
      %11897 = sbr.rel (%p11895) target = $region60
    $region59: #{tpu_custom_call.1} parent=5 // pred_region
      %s11898 = ssub.s32 %s14, 2
      // Predicated region
      $region61: #{tpu_custom_call.1} parent=59 // pred_check
        %p11899 = pneg %p216
      $region62: #{tpu_custom_call.1} parent=59 // pred_check_branch
        %11901 = sbr.rel (%p11899) target = $region64
      $region63: #{tpu_custom_call.1} parent=59 // pred_region
        %p11902 = scmp.lt.s32.totalorder %s20, 1
        %s11903 = scalar_select %p11902, %s20, 1
        %s11904 = smul.addr %s11903, 41
        %s11905 = smul.addr %s11904, 8
        %s11906 = scalar_lea.vmem %s8, %s11905
      $region64: #{tpu_custom_call.1} parent=59 // pred_fallthru
        _
    $region60: #{tpu_custom_call.1} parent=5 // pred_fallthru
      _
  $region6: #{tpu_custom_call.1} parent=0 // loop_footer
    %s18 = sadd.s32 1, %s14
  $region7: #{tpu_custom_call.1} parent=0 // loop_footer_branch
    %13 = sbr.rel target = $region3
  $region8: #{tpu_custom_call.1} parent=0 // loop_exit
    _

</llo_original>
